<compile_context>
chip_gen: v6e
topology: v6e:2x2x1
jax: 0.10.0
libtpu: 0.0.40
codegen_flags: <defaults>
</compile_context>

<pallas_src>
import numpy as np

import jax
import jax.numpy as jnp
from jax import lax
from jax.experimental import pallas as pl
from jax.experimental.pallas import tpu as pltpu


# ----------------------------------------------------------------------------
# Single fused Pallas kernel: conv1+pool1 -> conv2+pool2 -> fc1 -> fc2
# ----------------------------------------------------------------------------
def _fused_forward_kernel(x_ref, w1_ref, b1_ref, w2_ref, b2_ref,
                          w3_ref, b3_ref, w4_ref, b4_ref, o_ref,
                          y_bf_ref, z_bf_ref):
    x = x_ref[...]                                              # (TB, 512) bf16

    # conv1 (3x3, 2->32) + ReLU + 2x2 maxpool, folded into 4 dense matmuls
    # (one per pool-window corner); max over corners, then bias + ReLU (f32).
    y = jnp.dot(x, w1_ref[0], preferred_element_type=jnp.float32)
    for k in range(1, 4):
        y = jnp.maximum(y, jnp.dot(x, w1_ref[k],
                                   preferred_element_type=jnp.float32))
    y = jnp.maximum(y + b1_ref[...], 0.0)                       # (TB, 1152) f32
    y_bf_ref[...] = y.astype(jnp.bfloat16)                      # bf16 home for layer-2 matmuls

    # conv2 (3x3, 32->64) + ReLU + 2x2 maxpool, same folding.
    yb = y_bf_ref[...]
    z = jnp.dot(yb, w2_ref[0], preferred_element_type=jnp.float32)
    for k in range(1, 4):
        z = jnp.maximum(z, jnp.dot(yb, w2_ref[k],
                                   preferred_element_type=jnp.float32))
    z = jnp.maximum(z + b2_ref[...], 0.0)                       # (TB, 256) f32, NCHW-flatten order
    z_bf_ref[...] = z.astype(jnp.bfloat16)

    # fc1 (256 -> 128) + ReLU
    h = jnp.maximum(
        jnp.dot(z_bf_ref[...], w3_ref[...],
                preferred_element_type=jnp.float32) + b3_ref[...],
        0.0)                                                    # (TB, 128) f32

    # fc2 (128 -> 2) — fused into the same kernel, no extra launch.
    o_ref[...] = (jnp.dot(h.astype(jnp.bfloat16), w4_ref[...],
                          preferred_element_type=jnp.float32)
                  + b4_ref[...]).astype(o_ref.dtype)


# ----------------------------------------------------------------------------
# One-time host-side weight folding (numpy, exact): conv -> dense matrix,
# 2x2-maxpool corners -> 4 column-selected matrices, flatten order -> column
# ordering, Linear (out,in) -> (in,out).
# ----------------------------------------------------------------------------
def _conv_as_matrix(wc, hin, win):
    """Dense matrix of a VALID stride-1 conv.  wc: (Cout,Cin,KH,KW) numpy.
    Returns m of shape (Cin*Hin*Win, Cout, Hout, Wout) with
    m[ci*Hin*Win + hi*Win + wi, co, ho, wo] = wc[co, ci, hi-ho, wi-wo]."""
    cout, cin, kh, kw = wc.shape
    hout, wout = hin - kh + 1, win - kw + 1
    sel_h = (np.arange(hin)[:, None, None] ==
             np.arange(hout)[None, :, None] + np.arange(kh)[None, None, :]
             ).astype(np.float32)                               # (Hin, Hout, KH)
    sel_w = (np.arange(win)[:, None, None] ==
             np.arange(wout)[None, :, None] + np.arange(kw)[None, None, :]
             ).astype(np.float32)                               # (Win, Wout, KW)
    m = np.einsum('xyi,zwj,ucij->cxzuyw', sel_h, sel_w, wc.astype(np.float32))
    return m.reshape(cin * hin * win, cout, hout, wout)


def _conv_pool_matrices(wc, hin, win):
    """Fold VALID conv + 2x2/stride-2 maxpool view-selection into 4 dense
    matrices of shape (Cin*Hin*Win, Cout*Hp*Wp); maxing the 4 matmul outputs
    (then bias+ReLU) reproduces conv->bias->ReLU->pool exactly.
    Column order is NCHW flatten: co*Hp*Wp + ho*Wp + wo."""
    m = _conv_as_matrix(wc, hin, win)                           # (R, Cout, Hout, Wout)
    r, cout, hout, wout = m.shape
    hp, wp = hout // 2, wout // 2
    mats = [m[:, :, dh::2, dw::2].reshape(r, cout * hp * wp)
            for dh in range(2) for dw in range(2)]
    return np.stack(mats, axis=0)                               # (4, R, Cout*Hp*Wp)


def _round_up(a, b):
    return ((a + b - 1) // b) * b


def init_params(key):
    """Generate PyTorch-layout parameters, then pre-fold them into
    kernel-ready dense matrices (one-time host cost, zero runtime cost).
    Weights are stored in bf16 (accumulation stays f32 in-kernel); biases f32.
    Returns (kernel_params, torch_params)."""
    k1, k2, k3, k4, k5, k6, k7, k8 = jax.random.split(key, 8)
    # PyTorch layouts: Conv2d weight (Cout, Cin, KH, KW); Linear weight (out, in).
    wc1 = np.asarray(jax.random.normal(k1, (32, 2, 3, 3), jnp.float32)) * 0.1
    b1 = np.asarray(jax.random.normal(k5, (32,), jnp.float32)) * 0.1
    wc2 = np.asarray(jax.random.normal(k2, (64, 32, 3, 3), jnp.float32)) * 0.05
    b2 = np.asarray(jax.random.normal(k6, (64,), jnp.float32)) * 0.1
    w3 = np.asarray(jax.random.normal(k3, (128, 256), jnp.float32)) * 0.05
    b3 = np.asarray(jax.random.normal(k7, (128,), jnp.float32)) * 0.1
    w4 = np.asarray(jax.random.normal(k4, (2, 128), jnp.float32)) * 0.05
    b4 = np.asarray(jax.random.normal(k8, (2,), jnp.float32)) * 0.1

    torch_params = dict(wc1=wc1, b1=b1, wc2=wc2, b2=b2,
                        w3=w3, b3=b3, w4=w4, b4=b4)

    # conv1+pool1 folded: rows indexed by NCHW-flattened x (392), padded with
    # zero rows to K=512 so the layer-1 contraction / x tile are 128-aligned.
    w1f = _conv_pool_matrices(wc1, 14, 14)                      # (4, 392, 1152)
    kin = w1f.shape[1]
    kpad = _round_up(kin, 128)                                  # 512
    w1f = np.pad(w1f, ((0, 0), (0, kpad - kin), (0, 0)))        # (4, 512, 1152)

    kernel_params = {
        "w1": jnp.asarray(w1f, jnp.bfloat16),                   # (4, 512, 1152) bf16
        "b1": jnp.asarray(np.repeat(b1, 36).reshape(1, 1152), jnp.float32),
        # conv2+pool2 folded: output columns in NCHW order (256 = 64*2*2),
        # which is exactly PyTorch's flatten order -> fc1 needs no permutation.
        "w2": jnp.asarray(_conv_pool_matrices(wc2, 6, 6), jnp.bfloat16),   # (4, 1152, 256)
        "b2": jnp.asarray(np.repeat(b2, 4).reshape(1, 256), jnp.float32),
        # Linear weights transposed once at init to (in, out), bf16.
        "w3": jnp.asarray(w3.T, jnp.bfloat16),                  # (256, 128)
        "b3": jnp.asarray(b3.reshape(1, 128), jnp.float32),
        "w4": jnp.asarray(w4.T, jnp.bfloat16),                  # (128, 2)
        "b4": jnp.asarray(b4.reshape(1, 2), jnp.float32),
    }
    return kernel_params, torch_params


# ----------------------------------------------------------------------------
# Forward: one fused pallas_call, batch-tiled grid, weights VMEM-resident.
# ----------------------------------------------------------------------------
@jax.jit
def forward(params, x_nchw):
    """x: (N, 2, 14, 14) float32 NCHW (PyTorch convention) -> logits (N, 2)."""
    n, c, h, w = x_nchw.shape
    kin = c * h * w                                  # 392
    kpad = params["w1"].shape[1]                     # 512 (128-aligned)
    # Free row-major reshape (NCHW flatten), bf16 cast (matmul input only),
    # zero-pad feature dim to the aligned K.  All zero-cost / tiny wrapper ops.
    xf = x_nchw.reshape(n, kin).astype(jnp.bfloat16)
    if kpad > kin:
        xf = jnp.pad(xf, ((0, 0), (0, kpad - kin)))

    w1, b1 = params["w1"], params["b1"]
    w2, b2 = params["w2"], params["b2"]
    w3, b3 = params["w3"], params["b3"]
    w4, b4 = params["w4"], params["b4"]
    n1 = w1.shape[2]                                 # 1152
    n2 = w2.shape[2]                                 # 256
    nout = w4.shape[1]                               # 2

    # Batch tile: whole batch in one block when small; otherwise split into
    # >= 2 blocks (<= 512 rows) so the "parallel" axis can shard across v7x's
    # two TensorCores and larger tiles amortize per-grid-step overhead on
    # v5e/v6e.  NOTE: when tb does not divide n, the last block reads
    # out-of-bounds input rows; those rows produce garbage but are masked on
    # the output write, so valid rows are unaffected (intentional, do not
    # "fix" by shrinking the block).
    if n <= 128:
        tb = n
    else:
        tb = min(512, _round_up(pl.cdiv(n, 2), 128))
    grid = (pl.cdiv(n, tb),)

    def resident(a):
        # Whole-array block, grid-invariant index_map -> stays in VMEM across
        # the batch grid (no re-DMA between iterations).
        zeros = (0,) * a.ndim
        return pl.BlockSpec(a.shape, lambda i, z=zeros: z)

    return pl.pallas_call(
        _fused_forward_kernel,
        out_shape=jax.ShapeDtypeStruct((n, nout), jnp.float32),
        grid=grid,
        in_specs=[pl.BlockSpec((tb, kpad), lambda i: (i, 0)),
                  resident(w1), resident(b1),
                  resident(w2), resident(b2),
                  resident(w3), resident(b3),
                  resident(w4), resident(b4)],
        out_specs=pl.BlockSpec((tb, nout), lambda i: (i, 0)),
        scratch_shapes=[pltpu.VMEM((tb, n1), jnp.bfloat16),   # y (post conv1/pool1) bf16 home
                        pltpu.VMEM((tb, n2), jnp.bfloat16)],  # z (post conv2/pool2) bf16 home
        compiler_params=pltpu.CompilerParams(
            dimension_semantics=("parallel",),
            # ~7 MiB bf16 weights (x2 pipeline buffers) + x/out blocks +
            # bf16 activation scratch + f32 compiler temps at TB=512 is
            # ~23 MiB; 40 MiB leaves headroom and fits v7x's 64 MiB/TC.
            vmem_limit_bytes=40 * 1024 * 1024,
        ),
    )(xf, w1, b1, w2, b2, w3, b3, w4, b4)


# ----------------------------------------------------------------------------
# Pure-JAX (XLA) f32 reference with the original PyTorch-layout weights.
# ----------------------------------------------------------------------------
def reference_forward(tp, x):
    hp = lax.Precision.HIGHEST
    wc1 = jnp.asarray(tp["wc1"]); wc2 = jnp.asarray(tp["wc2"])
    dn1 = lax.conv_dimension_numbers(x.shape, wc1.shape, ("NCHW", "OIHW", "NCHW"))
    y = lax.conv_general_dilated(x, wc1, (1, 1), "VALID",
                                 dimension_numbers=dn1, precision=hp)
    y = jnp.maximum(y + jnp.asarray(tp["b1"])[None, :, None, None], 0.0)
    y = lax.reduce_window(y, -jnp.inf, lax.max, (1, 1, 2, 2), (1, 1, 2, 2), "VALID")
    dn2 = lax.conv_dimension_numbers(y.shape, wc2.shape, ("NCHW", "OIHW", "NCHW"))
    z = lax.conv_general_dilated(y, wc2, (1, 1), "VALID",
                                 dimension_numbers=dn2, precision=hp)
    z = jnp.maximum(z + jnp.asarray(tp["b2"])[None, :, None, None], 0.0)
    z = lax.reduce_window(z, -jnp.inf, lax.max, (1, 1, 2, 2), (1, 1, 2, 2), "VALID")
    f = z.reshape(z.shape[0], -1)                               # PyTorch NCHW flatten
    h1 = jnp.maximum(jnp.dot(f, jnp.asarray(tp["w3"]).T, precision=hp)
                     + jnp.asarray(tp["b3"]), 0.0)
    return (jnp.dot(h1, jnp.asarray(tp["w4"]).T, precision=hp)
            + jnp.asarray(tp["b4"])).astype(jnp.float32)


if __name__ == "__main__":
    key = jax.random.PRNGKey(0)
    kx, kp = jax.random.split(key)

    # Pair-MNIST input: batch=2, channels=2, spatial=14x14 (as in the project).
    x = jax.random.normal(kx, (2, 2, 14, 14), jnp.float32)
    # Normalize like Model.data(): (x - mean) / std
    x = (x - x.mean()) / x.std()

    kernel_params, torch_params = init_params(kp)

    logits = forward(kernel_params, x)
    jax.block_until_ready(logits)
    assert logits.shape == (2, 2) and logits.dtype == jnp.float32

    # Cross-check the bf16-weight fused kernel against the f32 XLA reference.
    # Tolerance covers bf16 quantization of weights/activations (accumulation
    # stays f32 inside the kernel).
    ref = reference_forward(torch_params, x)
    np.testing.assert_allclose(np.asarray(logits), np.asarray(ref),
                               rtol=3e-2, atol=3e-2)

    print("KERNEL_OK")
</pallas_src>

<mosaic_0001>
module attributes {stable_mosaic.version = 11 : i64} {
  func.func @_fused_forward_kernel(%arg0: i32, %arg1: memref<2x512xbf16, #tpu.memory_space<vmem>>, %arg2: memref<4x512x1152xbf16, #tpu.memory_space<vmem>>, %arg3: memref<1x1152xf32, #tpu.memory_space<vmem>>, %arg4: memref<4x1152x256xbf16, #tpu.memory_space<vmem>>, %arg5: memref<1x256xf32, #tpu.memory_space<vmem>>, %arg6: memref<256x128xbf16, #tpu.memory_space<vmem>>, %arg7: memref<1x128xf32, #tpu.memory_space<vmem>>, %arg8: memref<128x2xbf16, #tpu.memory_space<vmem>>, %arg9: memref<1x2xf32, #tpu.memory_space<vmem>>, %arg10: memref<2x2xf32, #tpu.memory_space<vmem>>, %arg11: memref<2x1152xbf16, #tpu.memory_space<vmem>>, %arg12: memref<2x256xbf16, #tpu.memory_space<vmem>>) attributes {dimension_semantics = [#tpu.dimension_semantics<parallel>], iteration_bounds = array<i64: 1>, scalar_prefetch = 0 : i64, scratch_operands = 2 : i64, tpu.core_type = #tpu.core_type<tc>, window_params = [{transform_indices = @transform_0, window_bounds = array<i64: 2, 512>}, {pipeline_mode = #tpu.pipeline_mode<synchronous>, transform_indices = @transform_1, window_bounds = array<i64: 4, 512, 1152>}, {pipeline_mode = #tpu.pipeline_mode<synchronous>, transform_indices = @transform_2, window_bounds = array<i64: 1, 1152>}, {pipeline_mode = #tpu.pipeline_mode<synchronous>, transform_indices = @transform_3, window_bounds = array<i64: 4, 1152, 256>}, {pipeline_mode = #tpu.pipeline_mode<synchronous>, transform_indices = @transform_4, window_bounds = array<i64: 1, 256>}, {pipeline_mode = #tpu.pipeline_mode<synchronous>, transform_indices = @transform_5, window_bounds = array<i64: 256, 128>}, {pipeline_mode = #tpu.pipeline_mode<synchronous>, transform_indices = @transform_6, window_bounds = array<i64: 1, 128>}, {pipeline_mode = #tpu.pipeline_mode<synchronous>, transform_indices = @transform_7, window_bounds = array<i64: 128, 2>}, {pipeline_mode = #tpu.pipeline_mode<synchronous>, transform_indices = @transform_8, window_bounds = array<i64: 1, 2>}, {transform_indices = @transform_9, window_bounds = array<i64: 2, 2>}]} {
    %c0 = arith.constant 0 : index
    %c0_0 = arith.constant 0 : index
    %0 = vector.load %arg1[%c0, %c0_0] : memref<2x512xbf16, #tpu.memory_space<vmem>>, vector<2x512xbf16>
    %c0_1 = arith.constant 0 : index
    %c0_2 = arith.constant 0 : index
    %c0_3 = arith.constant 0 : index
    %1 = vector.load %arg2[%c0_1, %c0_2, %c0_3] : memref<4x512x1152xbf16, #tpu.memory_space<vmem>>, vector<1x512x1152xbf16>
    %2 = vector.shape_cast %1 : vector<1x512x1152xbf16> to vector<512x1152xbf16>
    %cst = arith.constant dense<0.000000e+00> : vector<2x1152xf32>
    %3 = tpu.matmul %0, %2, %cst {dimension_numbers = #tpu.dot_dimension_numbers<[1], [0], [0], [1], [0, 0, 1, 1], [], []>} : vector<2x512xbf16>, vector<512x1152xbf16>, vector<2x1152xf32> -> vector<2x1152xf32>
    %c1 = arith.constant 1 : index
    %c0_4 = arith.constant 0 : index
    %c0_5 = arith.constant 0 : index
    %4 = vector.load %arg2[%c1, %c0_4, %c0_5] : memref<4x512x1152xbf16, #tpu.memory_space<vmem>>, vector<1x512x1152xbf16>
    %5 = vector.shape_cast %4 : vector<1x512x1152xbf16> to vector<512x1152xbf16>
    %cst_6 = arith.constant dense<0.000000e+00> : vector<2x1152xf32>
    %6 = tpu.matmul %0, %5, %cst_6 {dimension_numbers = #tpu.dot_dimension_numbers<[1], [0], [0], [1], [0, 0, 1, 1], [], []>} : vector<2x512xbf16>, vector<512x1152xbf16>, vector<2x1152xf32> -> vector<2x1152xf32>
    %7 = arith.maximumf %3, %6 : vector<2x1152xf32>
    %c2 = arith.constant 2 : index
    %c0_7 = arith.constant 0 : index
    %c0_8 = arith.constant 0 : index
    %8 = vector.load %arg2[%c2, %c0_7, %c0_8] : memref<4x512x1152xbf16, #tpu.memory_space<vmem>>, vector<1x512x1152xbf16>
    %9 = vector.shape_cast %8 : vector<1x512x1152xbf16> to vector<512x1152xbf16>
    %cst_9 = arith.constant dense<0.000000e+00> : vector<2x1152xf32>
    %10 = tpu.matmul %0, %9, %cst_9 {dimension_numbers = #tpu.dot_dimension_numbers<[1], [0], [0], [1], [0, 0, 1, 1], [], []>} : vector<2x512xbf16>, vector<512x1152xbf16>, vector<2x1152xf32> -> vector<2x1152xf32>
    %11 = arith.maximumf %7, %10 : vector<2x1152xf32>
    %c3 = arith.constant 3 : index
    %c0_10 = arith.constant 0 : index
    %c0_11 = arith.constant 0 : index
    %12 = vector.load %arg2[%c3, %c0_10, %c0_11] : memref<4x512x1152xbf16, #tpu.memory_space<vmem>>, vector<1x512x1152xbf16>
    %13 = vector.shape_cast %12 : vector<1x512x1152xbf16> to vector<512x1152xbf16>
    %cst_12 = arith.constant dense<0.000000e+00> : vector<2x1152xf32>
    %14 = tpu.matmul %0, %13, %cst_12 {dimension_numbers = #tpu.dot_dimension_numbers<[1], [0], [0], [1], [0, 0, 1, 1], [], []>} : vector<2x512xbf16>, vector<512x1152xbf16>, vector<2x1152xf32> -> vector<2x1152xf32>
    %15 = arith.maximumf %11, %14 : vector<2x1152xf32>
    %c0_13 = arith.constant 0 : index
    %c0_14 = arith.constant 0 : index
    %16 = vector.load %arg3[%c0_13, %c0_14] : memref<1x1152xf32, #tpu.memory_space<vmem>>, vector<1x1152xf32>
    %17 = vector.broadcast %16 : vector<1x1152xf32> to vector<2x1152xf32>
    %18 = arith.addf %15, %17 : vector<2x1152xf32>
    %cst_15 = arith.constant 0.000000e+00 : f32
    %19 = vector.broadcast %cst_15 : f32 to vector<2x1152xf32>
    %20 = arith.maximumf %18, %19 : vector<2x1152xf32>
    %21 = arith.truncf %20 : vector<2x1152xf32> to vector<2x1152xbf16>
    %c0_16 = arith.constant 0 : index
    %c0_17 = arith.constant 0 : index
    %22 = vector.load %arg11[%c0_16, %c0_17] : memref<2x1152xbf16, #tpu.memory_space<vmem>>, vector<2x1152xbf16>
    tpu.vector_store %arg11[%c0_16, %c0_17], %21 {strides = array<i32>} : memref<2x1152xbf16, #tpu.memory_space<vmem>>, vector<2x1152xbf16>,
    %c0_18 = arith.constant 0 : index
    %c0_19 = arith.constant 0 : index
    %23 = vector.load %arg11[%c0_18, %c0_19] : memref<2x1152xbf16, #tpu.memory_space<vmem>>, vector<2x1152xbf16>
    %c0_20 = arith.constant 0 : index
    %c0_21 = arith.constant 0 : index
    %c0_22 = arith.constant 0 : index
    %24 = vector.load %arg4[%c0_20, %c0_21, %c0_22] : memref<4x1152x256xbf16, #tpu.memory_space<vmem>>, vector<1x1152x256xbf16>
    %25 = vector.shape_cast %24 : vector<1x1152x256xbf16> to vector<1152x256xbf16>
    %cst_23 = arith.constant dense<0.000000e+00> : vector<2x256xf32>
    %26 = tpu.matmul %23, %25, %cst_23 {dimension_numbers = #tpu.dot_dimension_numbers<[1], [0], [0], [1], [0, 0, 1, 1], [], []>} : vector<2x1152xbf16>, vector<1152x256xbf16>, vector<2x256xf32> -> vector<2x256xf32>
    %c1_24 = arith.constant 1 : index
    %c0_25 = arith.constant 0 : index
    %c0_26 = arith.constant 0 : index
    %27 = vector.load %arg4[%c1_24, %c0_25, %c0_26] : memref<4x1152x256xbf16, #tpu.memory_space<vmem>>, vector<1x1152x256xbf16>
    %28 = vector.shape_cast %27 : vector<1x1152x256xbf16> to vector<1152x256xbf16>
    %cst_27 = arith.constant dense<0.000000e+00> : vector<2x256xf32>
    %29 = tpu.matmul %23, %28, %cst_27 {dimension_numbers = #tpu.dot_dimension_numbers<[1], [0], [0], [1], [0, 0, 1, 1], [], []>} : vector<2x1152xbf16>, vector<1152x256xbf16>, vector<2x256xf32> -> vector<2x256xf32>
    %30 = arith.maximumf %26, %29 : vector<2x256xf32>
    %c2_28 = arith.constant 2 : index
    %c0_29 = arith.constant 0 : index
    %c0_30 = arith.constant 0 : index
    %31 = vector.load %arg4[%c2_28, %c0_29, %c0_30] : memref<4x1152x256xbf16, #tpu.memory_space<vmem>>, vector<1x1152x256xbf16>
    %32 = vector.shape_cast %31 : vector<1x1152x256xbf16> to vector<1152x256xbf16>
    %cst_31 = arith.constant dense<0.000000e+00> : vector<2x256xf32>
    %33 = tpu.matmul %23, %32, %cst_31 {dimension_numbers = #tpu.dot_dimension_numbers<[1], [0], [0], [1], [0, 0, 1, 1], [], []>} : vector<2x1152xbf16>, vector<1152x256xbf16>, vector<2x256xf32> -> vector<2x256xf32>
    %34 = arith.maximumf %30, %33 : vector<2x256xf32>
    %c3_32 = arith.constant 3 : index
    %c0_33 = arith.constant 0 : index
    %c0_34 = arith.constant 0 : index
    %35 = vector.load %arg4[%c3_32, %c0_33, %c0_34] : memref<4x1152x256xbf16, #tpu.memory_space<vmem>>, vector<1x1152x256xbf16>
    %36 = vector.shape_cast %35 : vector<1x1152x256xbf16> to vector<1152x256xbf16>
    %cst_35 = arith.constant dense<0.000000e+00> : vector<2x256xf32>
    %37 = tpu.matmul %23, %36, %cst_35 {dimension_numbers = #tpu.dot_dimension_numbers<[1], [0], [0], [1], [0, 0, 1, 1], [], []>} : vector<2x1152xbf16>, vector<1152x256xbf16>, vector<2x256xf32> -> vector<2x256xf32>
    %38 = arith.maximumf %34, %37 : vector<2x256xf32>
    %c0_36 = arith.constant 0 : index
    %c0_37 = arith.constant 0 : index
    %39 = vector.load %arg5[%c0_36, %c0_37] : memref<1x256xf32, #tpu.memory_space<vmem>>, vector<1x256xf32>
    %40 = vector.broadcast %39 : vector<1x256xf32> to vector<2x256xf32>
    %41 = arith.addf %38, %40 : vector<2x256xf32>
    %cst_38 = arith.constant 0.000000e+00 : f32
    %42 = vector.broadcast %cst_38 : f32 to vector<2x256xf32>
    %43 = arith.maximumf %41, %42 : vector<2x256xf32>
    %44 = arith.truncf %43 : vector<2x256xf32> to vector<2x256xbf16>
    %c0_39 = arith.constant 0 : index
    %c0_40 = arith.constant 0 : index
    %45 = vector.load %arg12[%c0_39, %c0_40] : memref<2x256xbf16, #tpu.memory_space<vmem>>, vector<2x256xbf16>
    tpu.vector_store %arg12[%c0_39, %c0_40], %44 {strides = array<i32>} : memref<2x256xbf16, #tpu.memory_space<vmem>>, vector<2x256xbf16>,
    %c0_41 = arith.constant 0 : index
    %c0_42 = arith.constant 0 : index
    %46 = vector.load %arg12[%c0_41, %c0_42] : memref<2x256xbf16, #tpu.memory_space<vmem>>, vector<2x256xbf16>
    %c0_43 = arith.constant 0 : index
    %c0_44 = arith.constant 0 : index
    %47 = vector.load %arg6[%c0_43, %c0_44] : memref<256x128xbf16, #tpu.memory_space<vmem>>, vector<256x128xbf16>
    %cst_45 = arith.constant dense<0.000000e+00> : vector<2x128xf32>
    %48 = tpu.matmul %46, %47, %cst_45 {dimension_numbers = #tpu.dot_dimension_numbers<[1], [0], [0], [1], [0, 0, 1, 1], [], []>} : vector<2x256xbf16>, vector<256x128xbf16>, vector<2x128xf32> -> vector<2x128xf32>
    %c0_46 = arith.constant 0 : index
    %c0_47 = arith.constant 0 : index
    %49 = vector.load %arg7[%c0_46, %c0_47] : memref<1x128xf32, #tpu.memory_space<vmem>>, vector<1x128xf32>
    %50 = vector.broadcast %49 : vector<1x128xf32> to vector<2x128xf32>
    %51 = arith.addf %48, %50 : vector<2x128xf32>
    %cst_48 = arith.constant 0.000000e+00 : f32
    %52 = vector.broadcast %cst_48 : f32 to vector<2x128xf32>
    %53 = arith.maximumf %51, %52 : vector<2x128xf32>
    %54 = arith.truncf %53 : vector<2x128xf32> to vector<2x128xbf16>
    %c0_49 = arith.constant 0 : index
    %c0_50 = arith.constant 0 : index
    %55 = vector.load %arg8[%c0_49, %c0_50] : memref<128x2xbf16, #tpu.memory_space<vmem>>, vector<128x2xbf16>
    %cst_51 = arith.constant dense<0.000000e+00> : vector<2x2xf32>
    %56 = tpu.matmul %54, %55, %cst_51 {dimension_numbers = #tpu.dot_dimension_numbers<[1], [0], [0], [1], [0, 0, 1, 1], [], []>} : vector<2x128xbf16>, vector<128x2xbf16>, vector<2x2xf32> -> vector<2x2xf32>
    %c0_52 = arith.constant 0 : index
    %c0_53 = arith.constant 0 : index
    %57 = vector.load %arg9[%c0_52, %c0_53] : memref<1x2xf32, #tpu.memory_space<vmem>>, vector<1x2xf32>
    %58 = vector.broadcast %57 : vector<1x2xf32> to vector<2x2xf32>
    %59 = arith.addf %56, %58 : vector<2x2xf32>
    %c0_54 = arith.constant 0 : index
    %c0_55 = arith.constant 0 : index
    %60 = vector.load %arg10[%c0_54, %c0_55] : memref<2x2xf32, #tpu.memory_space<vmem>>, vector<2x2xf32>
    tpu.vector_store %arg10[%c0_54, %c0_55], %59 {strides = array<i32>} : memref<2x2xf32, #tpu.memory_space<vmem>>, vector<2x2xf32>,
    return
  }
  func.func @transform_0(%arg0: i32) -> (i32, i32) {
    %c0_i32 = arith.constant 0 : i32
    %c0_i32_0 = arith.constant 0 : i32
    return %arg0, %c0_i32 : i32, i32
  }
  func.func @transform_1(%arg0: i32) -> (i32, i32, i32) {
    %c0_i32 = arith.constant 0 : i32
    %c0_i32_0 = arith.constant 0 : i32
    %c0_i32_1 = arith.constant 0 : i32
    %c0_i32_2 = arith.constant 0 : i32
    return %c0_i32, %c0_i32_0, %c0_i32_1 : i32, i32, i32
  }
  func.func @transform_2(%arg0: i32) -> (i32, i32) {
    %c0_i32 = arith.constant 0 : i32
    %c0_i32_0 = arith.constant 0 : i32
    %c0_i32_1 = arith.constant 0 : i32
    return %c0_i32, %c0_i32_0 : i32, i32
  }
  func.func @transform_3(%arg0: i32) -> (i32, i32, i32) {
    %c0_i32 = arith.constant 0 : i32
    %c0_i32_0 = arith.constant 0 : i32
    %c0_i32_1 = arith.constant 0 : i32
    %c0_i32_2 = arith.constant 0 : i32
    return %c0_i32, %c0_i32_0, %c0_i32_1 : i32, i32, i32
  }
  func.func @transform_4(%arg0: i32) -> (i32, i32) {
    %c0_i32 = arith.constant 0 : i32
    %c0_i32_0 = arith.constant 0 : i32
    %c0_i32_1 = arith.constant 0 : i32
    return %c0_i32, %c0_i32_0 : i32, i32
  }
  func.func @transform_5(%arg0: i32) -> (i32, i32) {
    %c0_i32 = arith.constant 0 : i32
    %c0_i32_0 = arith.constant 0 : i32
    %c0_i32_1 = arith.constant 0 : i32
    return %c0_i32, %c0_i32_0 : i32, i32
  }
  func.func @transform_6(%arg0: i32) -> (i32, i32) {
    %c0_i32 = arith.constant 0 : i32
    %c0_i32_0 = arith.constant 0 : i32
    %c0_i32_1 = arith.constant 0 : i32
    return %c0_i32, %c0_i32_0 : i32, i32
  }
  func.func @transform_7(%arg0: i32) -> (i32, i32) {
    %c0_i32 = arith.constant 0 : i32
    %c0_i32_0 = arith.constant 0 : i32
    %c0_i32_1 = arith.constant 0 : i32
    return %c0_i32, %c0_i32_0 : i32, i32
  }
  func.func @transform_8(%arg0: i32) -> (i32, i32) {
    %c0_i32 = arith.constant 0 : i32
    %c0_i32_0 = arith.constant 0 : i32
    %c0_i32_1 = arith.constant 0 : i32
    return %c0_i32, %c0_i32_0 : i32, i32
  }
  func.func @transform_9(%arg0: i32) -> (i32, i32) {
    %c0_i32 = arith.constant 0 : i32
    %c0_i32_0 = arith.constant 0 : i32
    return %arg0, %c0_i32 : i32, i32
  }
}

</mosaic_0001>

<llo_original>
// kernel: forward.1
$region0: #{forward.1}
  #allocation0 [shape = 'u32[]', space=smem, size = 0x4, offset = 0x4, fixed_abs, tag = 'smem constant byte address 0x4 - core index']
  #allocation1 [shape = 'u32[144,128]{1,0:T(1,128)}', space=vmem, size = 0x12000, scoped, tag = 'internal scratch']
  #allocation2 [shape = 'bf16[2,1152]{1,0:T(2,128)(2,1)}', space=vmem, size = 0x1200, scoped, tag = 'scratch operand']
  #allocation3 [shape = 'bf16[2,256]{1,0:T(2,128)(2,1)}', space=vmem, size = 0x400, scoped, tag = 'scratch operand']
  %s0 = inlined_call_operand.vmem [shape: bf16[2,512], index: 0, kind: input, shape index: {}]
  %s1 = inlined_call_operand.hbm [shape: bf16[4,512,1152], index: 1, kind: input, shape index: {}]
  %s2 = inlined_call_operand.hbm [shape: f32[1,1152], index: 2, kind: input, shape index: {}]
  %s3 = inlined_call_operand.hbm [shape: bf16[4,1152,256], index: 3, kind: input, shape index: {}]
  %s4 = inlined_call_operand.hbm [shape: f32[1,256], index: 4, kind: input, shape index: {}]
  %s5 = inlined_call_operand.hbm [shape: bf16[256,128], index: 5, kind: input, shape index: {}]
  %s6 = inlined_call_operand.hbm [shape: f32[1,128], index: 6, kind: input, shape index: {}]
  %s7 = inlined_call_operand.vmem [shape: bf16[128,2], index: 7, kind: input, shape index: {}]
  %s8 = inlined_call_operand.hbm [shape: f32[1,2], index: 8, kind: input, shape index: {}]
  %s9 = inlined_call_operand.hbm [shape: f32[2,2], index: 9, kind: output, shape index: {}]
  %s10 = sld [smem:[#allocation0]]
  $region74: #{forward.1} parent=0
    _
  %s12 = ssub.s32 1, %s10
  %s13 = scalar_select 0, %s12, %s10
  $region1: #{forward.1} parent=0
    #allocation4 [shape = 'u8[4718592]{0}', space=vmem, size = 0x480000, scoped, tag = 'input window, operand 1, single buffered']
    #allocation5 [shape = 's32[1]{0}', space=sflag, size = 0x4, scoped, tag = 'scoped memory for forward.1']
    #allocation6 [shape = 's32[1]{0}', space=sflag, size = 0x4, scoped, tag = 'scoped memory for forward.1']
    #allocation7 [shape = 'u8[4608]{0}', space=vmem, size = 0x1400, scoped, tag = 'input window, operand 2, single buffered']
    #allocation8 [shape = 's32[1]{0}', space=sflag, size = 0x4, scoped, tag = 'scoped memory for forward.1']
    #allocation9 [shape = 'u8[2359296]{0}', space=vmem, size = 0x240000, scoped, tag = 'input window, operand 3, single buffered']
    #allocation10 [shape = 'u8[1024]{0}', space=vmem, size = 0x400, scoped, tag = 'input window, operand 4, single buffered']
    #allocation11 [shape = 's32[1]{0}', space=sflag, size = 0x4, scoped, tag = 'scoped memory for forward.1']
    #allocation12 [shape = 'u8[65536]{0}', space=vmem, size = 0x10000, scoped, tag = 'input window, operand 5, single buffered']
    #allocation13 [shape = 'u8[512]{0}', space=vmem, size = 0x400, scoped, tag = 'input window, operand 6, single buffered']
    #allocation14 [shape = 's32[1]{0}', space=sflag, size = 0x4, scoped, tag = 'scoped memory for forward.1']
    #allocation15 [shape = 'u8[512]{0}', space=vmem, size = 0x400, scoped, tag = 'input window, operand 8, single buffered']
    #allocation16 [shape = 'u8[1024]{0}', space=vmem, size = 0x400, scoped, tag = 'output window, operand 0, single buffered']
    %14 = vsyncpa [#allocation5], 0
    %15 = vsyncpa [#allocation8], 0
    %16 = vsyncpa [#allocation11], 0
    %17 = vsyncpa [#allocation14], 0
    %18 = vsyncpa [#allocation6], 0
    // Predicated region
    $region2: #{forward.1} parent=1 // pred_check
      _
    $region3: #{forward.1} parent=1 // pred_check_branch
      %20 = sbr.rel (0) target = $region5
    $region4: #{forward.1} parent=1 // pred_region
      _
    $region5: #{forward.1} parent=1 // pred_fallthru
      _
    // Predicated region
    $region6: #{forward.1} parent=1 // pred_check
      _
    $region7: #{forward.1} parent=1 // pred_check_branch
      %22 = sbr.rel (0) target = $region9
    $region8: #{forward.1} parent=1 // pred_region
      %s24 = ssub.s32 147456, 147456
      %25 = vsyncadd [#allocation5], %s24
      %s26 = sshll.u32 [#allocation4], 4
      %s27 = int_to_ptr.vmem [resolvable:$true] %s26
      %32 = dma.hbm_to_vmem [thread:$0]  %s1, 147456, %s27, [#allocation5], 576, 576, 36
    $region9: #{forward.1} parent=1 // pred_fallthru
      _
    // Predicated region
    $region10: #{forward.1} parent=1 // pred_check
      _
    $region11: #{forward.1} parent=1 // pred_check_branch
      %34 = sbr.rel (0) target = $region13
    $region12: #{forward.1} parent=1 // pred_region
      %s36 = ssub.s32 144, 144
      %37 = vsyncadd [#allocation8], %s36
      %s39 = sshll.u32 [#allocation7], 4
      %s40 = int_to_ptr.vmem [resolvable:$true] %s39
      %42 = dma.hbm_to_vmem [thread:$0]  %s2, 144, %s40, [#allocation8]
    $region13: #{forward.1} parent=1 // pred_fallthru
      _
    // Predicated region
    $region14: #{forward.1} parent=1 // pred_check
      _
    $region15: #{forward.1} parent=1 // pred_check_branch
      %44 = sbr.rel (0) target = $region17
    $region16: #{forward.1} parent=1 // pred_region
      %s46 = ssub.s32 73728, 73728
      %47 = vsyncadd [#allocation8], %s46
      %s48 = sshll.u32 [#allocation9], 4
      %s49 = int_to_ptr.vmem [resolvable:$true] %s48
      %54 = dma.hbm_to_vmem [thread:$0]  %s3, 73728, %s49, [#allocation8], 128, 128, 8
    $region17: #{forward.1} parent=1 // pred_fallthru
      _
    // Predicated region
    $region18: #{forward.1} parent=1 // pred_check
      _
    $region19: #{forward.1} parent=1 // pred_check_branch
      %56 = sbr.rel (0) target = $region21
    $region20: #{forward.1} parent=1 // pred_region
      %s58 = ssub.s32 32, 32
      %59 = vsyncadd [#allocation11], %s58
      %s61 = sshll.u32 [#allocation10], 4
      %s62 = int_to_ptr.vmem [resolvable:$true] %s61
      %64 = dma.hbm_to_vmem [thread:$0]  %s4, 32, %s62, [#allocation11]
    $region21: #{forward.1} parent=1 // pred_fallthru
      _
    // Predicated region
    $region22: #{forward.1} parent=1 // pred_check
      _
    $region23: #{forward.1} parent=1 // pred_check_branch
      %66 = sbr.rel (0) target = $region25
    $region24: #{forward.1} parent=1 // pred_region
      %s68 = ssub.s32 2048, 2048
      %69 = vsyncadd [#allocation11], %s68
      %s70 = sshll.u32 [#allocation12], 4
      %s71 = int_to_ptr.vmem [resolvable:$true] %s70
      %76 = dma.hbm_to_vmem [thread:$0]  %s5, 2048, %s71, [#allocation11], 64, 64, 4
    $region25: #{forward.1} parent=1 // pred_fallthru
      _
    // Predicated region
    $region26: #{forward.1} parent=1 // pred_check
      _
    $region27: #{forward.1} parent=1 // pred_check_branch
      %78 = sbr.rel (0) target = $region29
    $region28: #{forward.1} parent=1 // pred_region
      %s80 = ssub.s32 16, 16
      %81 = vsyncadd [#allocation14], %s80
      %s83 = sshll.u32 [#allocation13], 4
      %s84 = int_to_ptr.vmem [resolvable:$true] %s83
      %86 = dma.hbm_to_vmem [thread:$0]  %s6, 16, %s84, [#allocation14]
    $region29: #{forward.1} parent=1 // pred_fallthru
      _
    // Predicated region
    $region30: #{forward.1} parent=1 // pred_check
      _
    $region31: #{forward.1} parent=1 // pred_check_branch
      %88 = sbr.rel (0) target = $region33
    $region32: #{forward.1} parent=1 // pred_region
      _
    $region33: #{forward.1} parent=1 // pred_fallthru
      _
    // Predicated region
    $region34: #{forward.1} parent=1 // pred_check
      _
    $region35: #{forward.1} parent=1 // pred_check_branch
      %90 = sbr.rel (0) target = $region37
    $region36: #{forward.1} parent=1 // pred_region
      %s92 = ssub.s32 16, 16
      %93 = vsyncadd [#allocation14], %s92
      %s95 = sshll.u32 [#allocation15], 4
      %s96 = int_to_ptr.vmem [resolvable:$true] %s95
      %98 = dma.hbm_to_vmem [thread:$0]  %s8, 16, %s96, [#allocation14]
    $region37: #{forward.1} parent=1 // pred_fallthru
      _
    // Predicated region
    $region38: #{forward.1} parent=1 // pred_check
      _
    $region39: #{forward.1} parent=1 // pred_check_branch
      %100 = sbr.rel (0) target = $region41
    $region40: #{forward.1} parent=1 // pred_region
      %101 = dma.done [#allocation5], 147456
    $region41: #{forward.1} parent=1 // pred_fallthru
      _
    // Predicated region
    $region42: #{forward.1} parent=1 // pred_check
      _
    $region43: #{forward.1} parent=1 // pred_check_branch
      %103 = sbr.rel (0) target = $region45
    $region44: #{forward.1} parent=1 // pred_region
      %104 = dma.done [#allocation8], 144
    $region45: #{forward.1} parent=1 // pred_fallthru
      _
    // Predicated region
    $region46: #{forward.1} parent=1 // pred_check
      _
    $region47: #{forward.1} parent=1 // pred_check_branch
      %106 = sbr.rel (0) target = $region49
    $region48: #{forward.1} parent=1 // pred_region
      %107 = dma.done [#allocation8], 73728
    $region49: #{forward.1} parent=1 // pred_fallthru
      _
    // Predicated region
    $region50: #{forward.1} parent=1 // pred_check
      _
    $region51: #{forward.1} parent=1 // pred_check_branch
      %109 = sbr.rel (0) target = $region53
    $region52: #{forward.1} parent=1 // pred_region
      %110 = dma.done [#allocation11], 32
    $region53: #{forward.1} parent=1 // pred_fallthru
      _
    // Predicated region
    $region54: #{forward.1} parent=1 // pred_check
      _
    $region55: #{forward.1} parent=1 // pred_check_branch
      %112 = sbr.rel (0) target = $region57
    $region56: #{forward.1} parent=1 // pred_region
      %113 = dma.done [#allocation11], 2048
    $region57: #{forward.1} parent=1 // pred_fallthru
      _
    // Predicated region
    $region58: #{forward.1} parent=1 // pred_check
      _
    $region59: #{forward.1} parent=1 // pred_check_branch
      %115 = sbr.rel (0) target = $region61
    $region60: #{forward.1} parent=1 // pred_region
      %116 = dma.done [#allocation14], 16
    $region61: #{forward.1} parent=1 // pred_fallthru
      _
    // Predicated region
    $region62: #{forward.1} parent=1 // pred_check
      _
    $region63: #{forward.1} parent=1 // pred_check_branch
      %118 = sbr.rel (0) target = $region65
    $region64: #{forward.1} parent=1 // pred_region
      %119 = dma.done [#allocation14], 16
    $region65: #{forward.1} parent=1 // pred_fallthru
      _
    %v121 = vld [vmem:[%s0] sm:$0xf]
    %v122 = vld [vmem:[#allocation4] sm:$0xff]
    %v123 = vld [vmem:[#allocation4 + $0x8] sm:$0xff]
    %v124 = vld [vmem:[#allocation4 + $0x10] sm:$0xff]
    %v125 = vld [vmem:[#allocation4 + $0x18] sm:$0xff]
    %v126 = vld [vmem:[#allocation4 + $0x20] sm:$0xf]
    %v127 = vld [vmem:[#allocation4 + $0x24] sm:$0xff]
    %v128 = vld [vmem:[#allocation4 + $0x2c] sm:$0xff]
    %v129 = vld [vmem:[#allocation4 + $0x34] sm:$0xff]
    %v130 = vld [vmem:[#allocation4 + $0x3c] sm:$0xff]
    %v131 = vld [vmem:[#allocation4 + $0x44] sm:$0xf]
    %v132 = vld [vmem:[#allocation4 + $0x48] sm:$0xff]
    %v133 = vld [vmem:[#allocation4 + $0x50] sm:$0xff]
    %v134 = vld [vmem:[#allocation4 + $0x58] sm:$0xff]
    %v135 = vld [vmem:[#allocation4 + $0x60] sm:$0xff]
    %v136 = vld [vmem:[#allocation4 + $0x68] sm:$0xf]
    %v137 = vld [vmem:[#allocation4 + $0x6c] sm:$0xff]
    %v138 = vld [vmem:[#allocation4 + $0x74] sm:$0xff]
    %v139 = vld [vmem:[#allocation4 + $0x7c] sm:$0xff]
    %v140 = vld [vmem:[#allocation4 + $0x84] sm:$0xff]
    %v141 = vld [vmem:[#allocation4 + $0x8c] sm:$0xf]
    %v142 = vld [vmem:[#allocation4 + $0x90] sm:$0xff]
    %v143 = vld [vmem:[#allocation4 + $0x98] sm:$0xff]
    %v144 = vld [vmem:[#allocation4 + $0xa0] sm:$0xff]
    %v145 = vld [vmem:[#allocation4 + $0xa8] sm:$0xff]
    %v146 = vld [vmem:[#allocation4 + $0xb0] sm:$0xf]
    %v147 = vld [vmem:[#allocation4 + $0xb4] sm:$0xff]
    %v148 = vld [vmem:[#allocation4 + $0xbc] sm:$0xff]
    %v149 = vld [vmem:[#allocation4 + $0xc4] sm:$0xff]
    %v150 = vld [vmem:[#allocation4 + $0xcc] sm:$0xff]
    %v151 = vld [vmem:[#allocation4 + $0xd4] sm:$0xf]
    %v152 = vld [vmem:[#allocation4 + $0xd8] sm:$0xff]
    %v153 = vld [vmem:[#allocation4 + $0xe0] sm:$0xff]
    %v154 = vld [vmem:[#allocation4 + $0xe8] sm:$0xff]
    %v155 = vld [vmem:[#allocation4 + $0xf0] sm:$0xff]
    %v156 = vld [vmem:[#allocation4 + $0xf8] sm:$0xf]
    %v157 = vld [vmem:[#allocation4 + $0xfc] sm:$0xff]
    %v158 = vld [vmem:[#allocation4 + $0x104] sm:$0xff]
    %v159 = vld [vmem:[#allocation4 + $0x10c] sm:$0xff]
    %v160 = vld [vmem:[#allocation4 + $0x114] sm:$0xff]
    %v161 = vld [vmem:[#allocation4 + $0x11c] sm:$0xf]
    %v162 = vld [vmem:[#allocation4 + $0x120] sm:$0xff]
    %v163 = vld [vmem:[#allocation4 + $0x128] sm:$0xff]
    %v164 = vld [vmem:[#allocation4 + $0x130] sm:$0xff]
    %v165 = vld [vmem:[#allocation4 + $0x138] sm:$0xff]
    %v166 = vld [vmem:[#allocation4 + $0x140] sm:$0xf]
    %v167 = vld [vmem:[#allocation4 + $0x144] sm:$0xff]
    %v168 = vld [vmem:[#allocation4 + $0x14c] sm:$0xff]
    %v169 = vld [vmem:[#allocation4 + $0x154] sm:$0xff]
    %v170 = vld [vmem:[#allocation4 + $0x15c] sm:$0xff]
    %v171 = vld [vmem:[#allocation4 + $0x164] sm:$0xf]
    %v172 = vld [vmem:[#allocation4 + $0x168] sm:$0xff]
    %v173 = vld [vmem:[#allocation4 + $0x170] sm:$0xff]
    %v174 = vld [vmem:[#allocation4 + $0x178] sm:$0xff]
    %v175 = vld [vmem:[#allocation4 + $0x180] sm:$0xff]
    %v176 = vld [vmem:[#allocation4 + $0x188] sm:$0xf]
    %v177 = vld [vmem:[#allocation4 + $0x18c] sm:$0xff]
    %v178 = vld [vmem:[#allocation4 + $0x194] sm:$0xff]
    %v179 = vld [vmem:[#allocation4 + $0x19c] sm:$0xff]
    %v180 = vld [vmem:[#allocation4 + $0x1a4] sm:$0xff]
    %v181 = vld [vmem:[#allocation4 + $0x1ac] sm:$0xf]
    %v182 = vld [vmem:[#allocation4 + $0x1b0] sm:$0xff]
    %v183 = vld [vmem:[#allocation4 + $0x1b8] sm:$0xff]
    %v184 = vld [vmem:[#allocation4 + $0x1c0] sm:$0xff]
    %v185 = vld [vmem:[#allocation4 + $0x1c8] sm:$0xff]
    %v186 = vld [vmem:[#allocation4 + $0x1d0] sm:$0xf]
    %v187 = vld [vmem:[#allocation4 + $0x1d4] sm:$0xff]
    %v188 = vld [vmem:[#allocation4 + $0x1dc] sm:$0xff]
    %v189 = vld [vmem:[#allocation4 + $0x1e4] sm:$0xff]
    %v190 = vld [vmem:[#allocation4 + $0x1ec] sm:$0xff]
    %v191 = vld [vmem:[#allocation4 + $0x1f4] sm:$0xf]
    %v192 = vld [vmem:[#allocation4 + $0x1f8] sm:$0xff]
    %v193 = vld [vmem:[#allocation4 + $0x200] sm:$0xff]
    %v194 = vld [vmem:[#allocation4 + $0x208] sm:$0xff]
    %v195 = vld [vmem:[#allocation4 + $0x210] sm:$0xff]
    %v196 = vld [vmem:[#allocation4 + $0x218] sm:$0xf]
    %v197 = vld [vmem:[#allocation4 + $0x21c] sm:$0xff]
    %v198 = vld [vmem:[#allocation4 + $0x224] sm:$0xff]
    %v199 = vld [vmem:[#allocation4 + $0x22c] sm:$0xff]
    %v200 = vld [vmem:[#allocation4 + $0x234] sm:$0xff]
    %v201 = vld [vmem:[#allocation4 + $0x23c] sm:$0xf]
    %v202 = vld [vmem:[#allocation4 + $0x240] sm:$0xff]
    %v203 = vld [vmem:[#allocation4 + $0x248] sm:$0xff]
    %v204 = vld [vmem:[#allocation4 + $0x250] sm:$0xff]
    %v205 = vld [vmem:[#allocation4 + $0x258] sm:$0xff]
    %v206 = vld [vmem:[#allocation4 + $0x260] sm:$0xf]
    %v207 = vld [vmem:[#allocation4 + $0x264] sm:$0xff]
    %v208 = vld [vmem:[#allocation4 + $0x26c] sm:$0xff]
    %v209 = vld [vmem:[#allocation4 + $0x274] sm:$0xff]
    %v210 = vld [vmem:[#allocation4 + $0x27c] sm:$0xff]
    %v211 = vld [vmem:[#allocation4 + $0x284] sm:$0xf]
    %v212 = vld [vmem:[#allocation4 + $0x288] sm:$0xff]
    %v213 = vld [vmem:[#allocation4 + $0x290] sm:$0xff]
    %v214 = vld [vmem:[#allocation4 + $0x298] sm:$0xff]
    %v215 = vld [vmem:[#allocation4 + $0x2a0] sm:$0xff]
    %v216 = vld [vmem:[#allocation4 + $0x2a8] sm:$0xf]
    %v217 = vld [vmem:[#allocation4 + $0x2ac] sm:$0xff]
    %v218 = vld [vmem:[#allocation4 + $0x2b4] sm:$0xff]
    %v219 = vld [vmem:[#allocation4 + $0x2bc] sm:$0xff]
    %v220 = vld [vmem:[#allocation4 + $0x2c4] sm:$0xff]
    %v221 = vld [vmem:[#allocation4 + $0x2cc] sm:$0xf]
    %v222 = vld [vmem:[#allocation4 + $0x2d0] sm:$0xff]
    %v223 = vld [vmem:[#allocation4 + $0x2d8] sm:$0xff]
    %v224 = vld [vmem:[#allocation4 + $0x2e0] sm:$0xff]
    %v225 = vld [vmem:[#allocation4 + $0x2e8] sm:$0xff]
    %v226 = vld [vmem:[#allocation4 + $0x2f0] sm:$0xf]
    %v227 = vld [vmem:[#allocation4 + $0x2f4] sm:$0xff]
    %v228 = vld [vmem:[#allocation4 + $0x2fc] sm:$0xff]
    %v229 = vld [vmem:[#allocation4 + $0x304] sm:$0xff]
    %v230 = vld [vmem:[#allocation4 + $0x30c] sm:$0xff]
    %v231 = vld [vmem:[#allocation4 + $0x314] sm:$0xf]
    %v232 = vld [vmem:[#allocation4 + $0x318] sm:$0xff]
    %v233 = vld [vmem:[#allocation4 + $0x320] sm:$0xff]
    %v234 = vld [vmem:[#allocation4 + $0x328] sm:$0xff]
    %v235 = vld [vmem:[#allocation4 + $0x330] sm:$0xff]
    %v236 = vld [vmem:[#allocation4 + $0x338] sm:$0xf]
    %v237 = vld [vmem:[#allocation4 + $0x33c] sm:$0xff]
    %v238 = vld [vmem:[#allocation4 + $0x344] sm:$0xff]
    %v239 = vld [vmem:[#allocation4 + $0x34c] sm:$0xff]
    %v240 = vld [vmem:[#allocation4 + $0x354] sm:$0xff]
    %v241 = vld [vmem:[#allocation4 + $0x35c] sm:$0xf]
    %v242 = vld [vmem:[#allocation4 + $0x360] sm:$0xff]
    %v243 = vld [vmem:[#allocation4 + $0x368] sm:$0xff]
    %v244 = vld [vmem:[#allocation4 + $0x370] sm:$0xff]
    %v245 = vld [vmem:[#allocation4 + $0x378] sm:$0xff]
    %v246 = vld [vmem:[#allocation4 + $0x380] sm:$0xf]
    %v247 = vld [vmem:[#allocation4 + $0x384] sm:$0xff]
    %v248 = vld [vmem:[#allocation4 + $0x38c] sm:$0xff]
    %v249 = vld [vmem:[#allocation4 + $0x394] sm:$0xff]
    %v250 = vld [vmem:[#allocation4 + $0x39c] sm:$0xff]
    %v251 = vld [vmem:[#allocation4 + $0x3a4] sm:$0xf]
    %v252 = vld [vmem:[#allocation4 + $0x3a8] sm:$0xff]
    %v253 = vld [vmem:[#allocation4 + $0x3b0] sm:$0xff]
    %v254 = vld [vmem:[#allocation4 + $0x3b8] sm:$0xff]
    %v255 = vld [vmem:[#allocation4 + $0x3c0] sm:$0xff]
    %v256 = vld [vmem:[#allocation4 + $0x3c8] sm:$0xf]
    %v257 = vld [vmem:[#allocation4 + $0x3cc] sm:$0xff]
    %v258 = vld [vmem:[#allocation4 + $0x3d4] sm:$0xff]
    %v259 = vld [vmem:[#allocation4 + $0x3dc] sm:$0xff]
    %v260 = vld [vmem:[#allocation4 + $0x3e4] sm:$0xff]
    %v261 = vld [vmem:[#allocation4 + $0x3ec] sm:$0xf]
    %v262 = vld [vmem:[#allocation4 + $0x3f0] sm:$0xff]
    %v263 = vld [vmem:[#allocation4 + $0x3f8] sm:$0xff]
    %v264 = vld [vmem:[#allocation4 + $0x400] sm:$0xff]
    %v265 = vld [vmem:[#allocation4 + $0x408] sm:$0xff]
    %v266 = vld [vmem:[#allocation4 + $0x410] sm:$0xf]
    %v267 = vld [vmem:[#allocation4 + $0x414] sm:$0xff]
    %v268 = vld [vmem:[#allocation4 + $0x41c] sm:$0xff]
    %v269 = vld [vmem:[#allocation4 + $0x424] sm:$0xff]
    %v270 = vld [vmem:[#allocation4 + $0x42c] sm:$0xff]
    %v271 = vld [vmem:[#allocation4 + $0x434] sm:$0xf]
    %v272 = vld [vmem:[#allocation4 + $0x438] sm:$0xff]
    %v273 = vld [vmem:[#allocation4 + $0x440] sm:$0xff]
    %v274 = vld [vmem:[#allocation4 + $0x448] sm:$0xff]
    %v275 = vld [vmem:[#allocation4 + $0x450] sm:$0xff]
    %v276 = vld [vmem:[#allocation4 + $0x458] sm:$0xf]
    %v277 = vld [vmem:[#allocation4 + $0x45c] sm:$0xff]
    %v278 = vld [vmem:[#allocation4 + $0x464] sm:$0xff]
    %v279 = vld [vmem:[#allocation4 + $0x46c] sm:$0xff]
    %v280 = vld [vmem:[#allocation4 + $0x474] sm:$0xff]
    %v281 = vld [vmem:[#allocation4 + $0x47c] sm:$0xf]
    %v282 = vld [vmem:[#allocation4 + $0x480] sm:$0xff]
    %v283 = vld [vmem:[#allocation4 + $0x488] sm:$0xff]
    %v284 = vld [vmem:[#allocation4 + $0x490] sm:$0xff]
    %v285 = vld [vmem:[#allocation4 + $0x498] sm:$0xff]
    %v286 = vld [vmem:[#allocation4 + $0x4a0] sm:$0xf]
    %v287 = vld [vmem:[#allocation4 + $0x4a4] sm:$0xff]
    %v288 = vld [vmem:[#allocation4 + $0x4ac] sm:$0xff]
    %v289 = vld [vmem:[#allocation4 + $0x4b4] sm:$0xff]
    %v290 = vld [vmem:[#allocation4 + $0x4bc] sm:$0xff]
    %v291 = vld [vmem:[#allocation4 + $0x4c4] sm:$0xf]
    %v292 = vld [vmem:[#allocation4 + $0x4c8] sm:$0xff]
    %v293 = vld [vmem:[#allocation4 + $0x4d0] sm:$0xff]
    %v294 = vld [vmem:[#allocation4 + $0x4d8] sm:$0xff]
    %v295 = vld [vmem:[#allocation4 + $0x4e0] sm:$0xff]
    %v296 = vld [vmem:[#allocation4 + $0x4e8] sm:$0xf]
    %v297 = vld [vmem:[#allocation4 + $0x4ec] sm:$0xff]
    %v298 = vld [vmem:[#allocation4 + $0x4f4] sm:$0xff]
    %v299 = vld [vmem:[#allocation4 + $0x4fc] sm:$0xff]
    %v300 = vld [vmem:[#allocation4 + $0x504] sm:$0xff]
    %v301 = vld [vmem:[#allocation4 + $0x50c] sm:$0xf]
    %v302 = vld [vmem:[#allocation4 + $0x510] sm:$0xff]
    %v303 = vld [vmem:[#allocation4 + $0x518] sm:$0xff]
    %v304 = vld [vmem:[#allocation4 + $0x520] sm:$0xff]
    %v305 = vld [vmem:[#allocation4 + $0x528] sm:$0xff]
    %v306 = vld [vmem:[#allocation4 + $0x530] sm:$0xf]
    %v307 = vld [vmem:[#allocation4 + $0x534] sm:$0xff]
    %v308 = vld [vmem:[#allocation4 + $0x53c] sm:$0xff]
    %v309 = vld [vmem:[#allocation4 + $0x544] sm:$0xff]
    %v310 = vld [vmem:[#allocation4 + $0x54c] sm:$0xff]
    %v311 = vld [vmem:[#allocation4 + $0x554] sm:$0xf]
    %v312 = vld [vmem:[#allocation4 + $0x558] sm:$0xff]
    %v313 = vld [vmem:[#allocation4 + $0x560] sm:$0xff]
    %v314 = vld [vmem:[#allocation4 + $0x568] sm:$0xff]
    %v315 = vld [vmem:[#allocation4 + $0x570] sm:$0xff]
    %v316 = vld [vmem:[#allocation4 + $0x578] sm:$0xf]
    %v317 = vld [vmem:[#allocation4 + $0x57c] sm:$0xff]
    %v318 = vld [vmem:[#allocation4 + $0x584] sm:$0xff]
    %v319 = vld [vmem:[#allocation4 + $0x58c] sm:$0xff]
    %v320 = vld [vmem:[#allocation4 + $0x594] sm:$0xff]
    %v321 = vld [vmem:[#allocation4 + $0x59c] sm:$0xf]
    %v322 = vld [vmem:[#allocation4 + $0x5a0] sm:$0xff]
    %v323 = vld [vmem:[#allocation4 + $0x5a8] sm:$0xff]
    %v324 = vld [vmem:[#allocation4 + $0x5b0] sm:$0xff]
    %v325 = vld [vmem:[#allocation4 + $0x5b8] sm:$0xff]
    %v326 = vld [vmem:[#allocation4 + $0x5c0] sm:$0xf]
    %v327 = vld [vmem:[#allocation4 + $0x5c4] sm:$0xff]
    %v328 = vld [vmem:[#allocation4 + $0x5cc] sm:$0xff]
    %v329 = vld [vmem:[#allocation4 + $0x5d4] sm:$0xff]
    %v330 = vld [vmem:[#allocation4 + $0x5dc] sm:$0xff]
    %v331 = vld [vmem:[#allocation4 + $0x5e4] sm:$0xf]
    %v332 = vld [vmem:[#allocation4 + $0x5e8] sm:$0xff]
    %v333 = vld [vmem:[#allocation4 + $0x5f0] sm:$0xff]
    %v334 = vld [vmem:[#allocation4 + $0x5f8] sm:$0xff]
    %v335 = vld [vmem:[#allocation4 + $0x600] sm:$0xff]
    %v336 = vld [vmem:[#allocation4 + $0x608] sm:$0xf]
    %v337 = vld [vmem:[#allocation4 + $0x60c] sm:$0xff]
    %v338 = vld [vmem:[#allocation4 + $0x614] sm:$0xff]
    %v339 = vld [vmem:[#allocation4 + $0x61c] sm:$0xff]
    %v340 = vld [vmem:[#allocation4 + $0x624] sm:$0xff]
    %v341 = vld [vmem:[#allocation4 + $0x62c] sm:$0xf]
    %v342 = vld [vmem:[#allocation4 + $0x630] sm:$0xff]
    %v343 = vld [vmem:[#allocation4 + $0x638] sm:$0xff]
    %v344 = vld [vmem:[#allocation4 + $0x640] sm:$0xff]
    %v345 = vld [vmem:[#allocation4 + $0x648] sm:$0xff]
    %v346 = vld [vmem:[#allocation4 + $0x650] sm:$0xf]
    %v347 = vld [vmem:[#allocation4 + $0x654] sm:$0xff]
    %v348 = vld [vmem:[#allocation4 + $0x65c] sm:$0xff]
    %v349 = vld [vmem:[#allocation4 + $0x664] sm:$0xff]
    %v350 = vld [vmem:[#allocation4 + $0x66c] sm:$0xff]
    %v351 = vld [vmem:[#allocation4 + $0x674] sm:$0xf]
    %v352 = vld [vmem:[#allocation4 + $0x678] sm:$0xff]
    %v353 = vld [vmem:[#allocation4 + $0x680] sm:$0xff]
    %v354 = vld [vmem:[#allocation4 + $0x688] sm:$0xff]
    %v355 = vld [vmem:[#allocation4 + $0x690] sm:$0xff]
    %v356 = vld [vmem:[#allocation4 + $0x698] sm:$0xf]
    %v357 = vld [vmem:[#allocation4 + $0x69c] sm:$0xff]
    %v358 = vld [vmem:[#allocation4 + $0x6a4] sm:$0xff]
    %v359 = vld [vmem:[#allocation4 + $0x6ac] sm:$0xff]
    %v360 = vld [vmem:[#allocation4 + $0x6b4] sm:$0xff]
    %v361 = vld [vmem:[#allocation4 + $0x6bc] sm:$0xf]
    %v362 = vld [vmem:[#allocation4 + $0x6c0] sm:$0xff]
    %v363 = vld [vmem:[#allocation4 + $0x6c8] sm:$0xff]
    %v364 = vld [vmem:[#allocation4 + $0x6d0] sm:$0xff]
    %v365 = vld [vmem:[#allocation4 + $0x6d8] sm:$0xff]
    %v366 = vld [vmem:[#allocation4 + $0x6e0] sm:$0xf]
    %v367 = vld [vmem:[#allocation4 + $0x6e4] sm:$0xff]
    %v368 = vld [vmem:[#allocation4 + $0x6ec] sm:$0xff]
    %v369 = vld [vmem:[#allocation4 + $0x6f4] sm:$0xff]
    %v370 = vld [vmem:[#allocation4 + $0x6fc] sm:$0xff]
    %v371 = vld [vmem:[#allocation4 + $0x704] sm:$0xf]
    %v372 = vld [vmem:[#allocation4 + $0x708] sm:$0xff]
    %v373 = vld [vmem:[#allocation4 + $0x710] sm:$0xff]
    %v374 = vld [vmem:[#allocation4 + $0x718] sm:$0xff]
    %v375 = vld [vmem:[#allocation4 + $0x720] sm:$0xff]
    %v376 = vld [vmem:[#allocation4 + $0x728] sm:$0xf]
    %v377 = vld [vmem:[#allocation4 + $0x72c] sm:$0xff]
    %v378 = vld [vmem:[#allocation4 + $0x734] sm:$0xff]
    %v379 = vld [vmem:[#allocation4 + $0x73c] sm:$0xff]
    %v380 = vld [vmem:[#allocation4 + $0x744] sm:$0xff]
    %v381 = vld [vmem:[#allocation4 + $0x74c] sm:$0xf]
    %v382 = vld [vmem:[#allocation4 + $0x750] sm:$0xff]
    %v383 = vld [vmem:[#allocation4 + $0x758] sm:$0xff]
    %v384 = vld [vmem:[#allocation4 + $0x760] sm:$0xff]
    %v385 = vld [vmem:[#allocation4 + $0x768] sm:$0xff]
    %v386 = vld [vmem:[#allocation4 + $0x770] sm:$0xf]
    %v387 = vld [vmem:[#allocation4 + $0x774] sm:$0xff]
    %v388 = vld [vmem:[#allocation4 + $0x77c] sm:$0xff]
    %v389 = vld [vmem:[#allocation4 + $0x784] sm:$0xff]
    %v390 = vld [vmem:[#allocation4 + $0x78c] sm:$0xff]
    %v391 = vld [vmem:[#allocation4 + $0x794] sm:$0xf]
    %v392 = vld [vmem:[#allocation4 + $0x798] sm:$0xff]
    %v393 = vld [vmem:[#allocation4 + $0x7a0] sm:$0xff]
    %v394 = vld [vmem:[#allocation4 + $0x7a8] sm:$0xff]
    %v395 = vld [vmem:[#allocation4 + $0x7b0] sm:$0xff]
    %v396 = vld [vmem:[#allocation4 + $0x7b8] sm:$0xf]
    %v397 = vld [vmem:[#allocation4 + $0x7bc] sm:$0xff]
    %v398 = vld [vmem:[#allocation4 + $0x7c4] sm:$0xff]
    %v399 = vld [vmem:[#allocation4 + $0x7cc] sm:$0xff]
    %v400 = vld [vmem:[#allocation4 + $0x7d4] sm:$0xff]
    %v401 = vld [vmem:[#allocation4 + $0x7dc] sm:$0xf]
    %v402 = vld [vmem:[#allocation4 + $0x7e0] sm:$0xff]
    %v403 = vld [vmem:[#allocation4 + $0x7e8] sm:$0xff]
    %v404 = vld [vmem:[#allocation4 + $0x7f0] sm:$0xff]
    %v405 = vld [vmem:[#allocation4 + $0x7f8] sm:$0xff]
    %v406 = vld [vmem:[#allocation4 + $0x800] sm:$0xf]
    %v407 = vld [vmem:[#allocation4 + $0x804] sm:$0xff]
    %v408 = vld [vmem:[#allocation4 + $0x80c] sm:$0xff]
    %v409 = vld [vmem:[#allocation4 + $0x814] sm:$0xff]
    %v410 = vld [vmem:[#allocation4 + $0x81c] sm:$0xff]
    %v411 = vld [vmem:[#allocation4 + $0x824] sm:$0xf]
    %v412 = vld [vmem:[#allocation4 + $0x828] sm:$0xff]
    %v413 = vld [vmem:[#allocation4 + $0x830] sm:$0xff]
    %v414 = vld [vmem:[#allocation4 + $0x838] sm:$0xff]
    %v415 = vld [vmem:[#allocation4 + $0x840] sm:$0xff]
    %v416 = vld [vmem:[#allocation4 + $0x848] sm:$0xf]
    %v417 = vld [vmem:[#allocation4 + $0x84c] sm:$0xff]
    %v418 = vld [vmem:[#allocation4 + $0x854] sm:$0xff]
    %v419 = vld [vmem:[#allocation4 + $0x85c] sm:$0xff]
    %v420 = vld [vmem:[#allocation4 + $0x864] sm:$0xff]
    %v421 = vld [vmem:[#allocation4 + $0x86c] sm:$0xf]
    %v422 = vld [vmem:[#allocation4 + $0x870] sm:$0xff]
    %v423 = vld [vmem:[#allocation4 + $0x878] sm:$0xff]
    %v424 = vld [vmem:[#allocation4 + $0x880] sm:$0xff]
    %v425 = vld [vmem:[#allocation4 + $0x888] sm:$0xff]
    %v426 = vld [vmem:[#allocation4 + $0x890] sm:$0xf]
    %v427 = vld [vmem:[#allocation4 + $0x894] sm:$0xff]
    %v428 = vld [vmem:[#allocation4 + $0x89c] sm:$0xff]
    %v429 = vld [vmem:[#allocation4 + $0x8a4] sm:$0xff]
    %v430 = vld [vmem:[#allocation4 + $0x8ac] sm:$0xff]
    %v431 = vld [vmem:[#allocation4 + $0x8b4] sm:$0xf]
    %v432 = vld [vmem:[#allocation4 + $0x8b8] sm:$0xff]
    %v433 = vld [vmem:[#allocation4 + $0x8c0] sm:$0xff]
    %v434 = vld [vmem:[#allocation4 + $0x8c8] sm:$0xff]
    %v435 = vld [vmem:[#allocation4 + $0x8d0] sm:$0xff]
    %v436 = vld [vmem:[#allocation4 + $0x8d8] sm:$0xf]
    %v437 = vld [vmem:[#allocation4 + $0x8dc] sm:$0xff]
    %v438 = vld [vmem:[#allocation4 + $0x8e4] sm:$0xff]
    %v439 = vld [vmem:[#allocation4 + $0x8ec] sm:$0xff]
    %v440 = vld [vmem:[#allocation4 + $0x8f4] sm:$0xff]
    %v441 = vld [vmem:[#allocation4 + $0x8fc] sm:$0xf]
    %v444 = vunpack.c.l.s4 1966171168
    %v445 = vunpack.c.0.s8 %v444
    %v446 = vlaneseq
    %v447 = vshrl.u32 %v446, 7
    %v448 = vsub.s32 %v445, %v447
    %v449 = vrot.slane %v121, %v448
    %v450 = vcombine.high %v449, %v449
    %v452 = vunpack.c.l.s4 1966171168
    %v453 = vunpack.c.0.s8 %v452
    %v454 = vlaneseq
    %v455 = vshrl.u32 %v454, 7
    %v456 = vsub.s32 %v453, %v455
    %v457 = vrot.slane %v449, %v456
    %v459 = vunpack.c.l.s4 1966171168
    %v460 = vunpack.c.0.s8 %v459
    %v461 = vlaneseq
    %v462 = vshrl.u32 %v461, 7
    %v463 = vsub.s32 %v460, %v462
    %v464 = vrot.slane %v450, %v463
    %v465 = vcombine.high %v457, %v457
    %v466 = vcombine.high %v464, %v464
    %v791 = vunpack.c.l.b16 %v122
    %v792 = vunpack.c.h.b16 %v122
    %v793 = vunpack.c.l.b16 %v123
    %v794 = vunpack.c.h.b16 %v123
    %v795 = vunpack.c.l.b16 %v124
    %v796 = vunpack.c.h.b16 %v124
    %v797 = vunpack.c.l.b16 %v125
    %v798 = vunpack.c.h.b16 %v125
    %v799 = vunpack.c.l.b16 %v126
    %v800 = vunpack.c.l.b16 %v127
    %v801 = vunpack.c.h.b16 %v127
    %v802 = vunpack.c.l.b16 %v128
    %v803 = vunpack.c.h.b16 %v128
    %v804 = vunpack.c.l.b16 %v129
    %v805 = vunpack.c.h.b16 %v129
    %v806 = vunpack.c.l.b16 %v130
    %v807 = vunpack.c.h.b16 %v130
    %v808 = vunpack.c.l.b16 %v131
    %v809 = vunpack.c.l.b16 %v132
    %v810 = vunpack.c.h.b16 %v132
    %v811 = vunpack.c.l.b16 %v133
    %v812 = vunpack.c.h.b16 %v133
    %v813 = vunpack.c.l.b16 %v134
    %v814 = vunpack.c.h.b16 %v134
    %v815 = vunpack.c.l.b16 %v135
    %v816 = vunpack.c.h.b16 %v135
    %v817 = vunpack.c.l.b16 %v136
    %v818 = vunpack.c.l.b16 %v137
    %v819 = vunpack.c.h.b16 %v137
    %v820 = vunpack.c.l.b16 %v138
    %v821 = vunpack.c.h.b16 %v138
    %v822 = vunpack.c.l.b16 %v139
    %v823 = vunpack.c.h.b16 %v139
    %v824 = vunpack.c.l.b16 %v140
    %v825 = vunpack.c.h.b16 %v140
    %v826 = vunpack.c.l.b16 %v141
    %v827 = vunpack.c.l.b16 %v142
    %v828 = vunpack.c.h.b16 %v142
    %v829 = vunpack.c.l.b16 %v143
    %v830 = vunpack.c.h.b16 %v143
    %v831 = vunpack.c.l.b16 %v144
    %v832 = vunpack.c.h.b16 %v144
    %v833 = vunpack.c.l.b16 %v145
    %v834 = vunpack.c.h.b16 %v145
    %v835 = vunpack.c.l.b16 %v146
    %v836 = vunpack.c.l.b16 %v147
    %v837 = vunpack.c.h.b16 %v147
    %v838 = vunpack.c.l.b16 %v148
    %v839 = vunpack.c.h.b16 %v148
    %v840 = vunpack.c.l.b16 %v149
    %v841 = vunpack.c.h.b16 %v149
    %v842 = vunpack.c.l.b16 %v150
    %v843 = vunpack.c.h.b16 %v150
    %v844 = vunpack.c.l.b16 %v151
    %v845 = vunpack.c.l.b16 %v152
    %v846 = vunpack.c.h.b16 %v152
    %v847 = vunpack.c.l.b16 %v153
    %v848 = vunpack.c.h.b16 %v153
    %v849 = vunpack.c.l.b16 %v154
    %v850 = vunpack.c.h.b16 %v154
    %v851 = vunpack.c.l.b16 %v155
    %v852 = vunpack.c.h.b16 %v155
    %v853 = vunpack.c.l.b16 %v156
    %v854 = vunpack.c.l.b16 %v157
    %v855 = vunpack.c.h.b16 %v157
    %v856 = vunpack.c.l.b16 %v158
    %v857 = vunpack.c.h.b16 %v158
    %v858 = vunpack.c.l.b16 %v159
    %v859 = vunpack.c.h.b16 %v159
    %v860 = vunpack.c.l.b16 %v160
    %v861 = vunpack.c.h.b16 %v160
    %v862 = vunpack.c.l.b16 %v161
    %v863 = vunpack.c.l.b16 %v162
    %v864 = vunpack.c.h.b16 %v162
    %v865 = vunpack.c.l.b16 %v163
    %v866 = vunpack.c.h.b16 %v163
    %v867 = vunpack.c.l.b16 %v164
    %v868 = vunpack.c.h.b16 %v164
    %v869 = vunpack.c.l.b16 %v165
    %v870 = vunpack.c.h.b16 %v165
    %v871 = vunpack.c.l.b16 %v166
    %v872 = vunpack.c.l.b16 %v167
    %v873 = vunpack.c.h.b16 %v167
    %v874 = vunpack.c.l.b16 %v168
    %v875 = vunpack.c.h.b16 %v168
    %v876 = vunpack.c.l.b16 %v169
    %v877 = vunpack.c.h.b16 %v169
    %v878 = vunpack.c.l.b16 %v170
    %v879 = vunpack.c.h.b16 %v170
    %v880 = vunpack.c.l.b16 %v171
    %v881 = vunpack.c.l.b16 %v172
    %v882 = vunpack.c.h.b16 %v172
    %v883 = vunpack.c.l.b16 %v173
    %v884 = vunpack.c.h.b16 %v173
    %v885 = vunpack.c.l.b16 %v174
    %v886 = vunpack.c.h.b16 %v174
    %v887 = vunpack.c.l.b16 %v175
    %v888 = vunpack.c.h.b16 %v175
    %v889 = vunpack.c.l.b16 %v176
    %v890 = vunpack.c.l.b16 %v177
    %v891 = vunpack.c.h.b16 %v177
    %v892 = vunpack.c.l.b16 %v178
    %v893 = vunpack.c.h.b16 %v178
    %v894 = vunpack.c.l.b16 %v179
    %v895 = vunpack.c.h.b16 %v179
    %v896 = vunpack.c.l.b16 %v180
    %v897 = vunpack.c.h.b16 %v180
    %v898 = vunpack.c.l.b16 %v181
    %v899 = vunpack.c.l.b16 %v182
    %v900 = vunpack.c.h.b16 %v182
    %v901 = vunpack.c.l.b16 %v183
    %v902 = vunpack.c.h.b16 %v183
    %v903 = vunpack.c.l.b16 %v184
    %v904 = vunpack.c.h.b16 %v184
    %v905 = vunpack.c.l.b16 %v185
    %v906 = vunpack.c.h.b16 %v185
    %v907 = vunpack.c.l.b16 %v186
    %v908 = vunpack.c.l.b16 %v187
    %v909 = vunpack.c.h.b16 %v187
    %v910 = vunpack.c.l.b16 %v188
    %v911 = vunpack.c.h.b16 %v188
    %v912 = vunpack.c.l.b16 %v189
    %v913 = vunpack.c.h.b16 %v189
    %v914 = vunpack.c.l.b16 %v190
    %v915 = vunpack.c.h.b16 %v190
    %v916 = vunpack.c.l.b16 %v191
    %v917 = vunpack.c.l.b16 %v192
    %v918 = vunpack.c.h.b16 %v192
    %v919 = vunpack.c.l.b16 %v193
    %v920 = vunpack.c.h.b16 %v193
    %v921 = vunpack.c.l.b16 %v194
    %v922 = vunpack.c.h.b16 %v194
    %v923 = vunpack.c.l.b16 %v195
    %v924 = vunpack.c.h.b16 %v195
    %v925 = vunpack.c.l.b16 %v196
    %v926 = vunpack.c.l.b16 %v197
    %v927 = vunpack.c.h.b16 %v197
    %v928 = vunpack.c.l.b16 %v198
    %v929 = vunpack.c.h.b16 %v198
    %v930 = vunpack.c.l.b16 %v199
    %v931 = vunpack.c.h.b16 %v199
    %v932 = vunpack.c.l.b16 %v200
    %v933 = vunpack.c.h.b16 %v200
    %v934 = vunpack.c.l.b16 %v201
    %v935 = vunpack.c.l.b16 %v202
    %v936 = vunpack.c.h.b16 %v202
    %v937 = vunpack.c.l.b16 %v203
    %v938 = vunpack.c.h.b16 %v203
    %v939 = vunpack.c.l.b16 %v204
    %v940 = vunpack.c.h.b16 %v204
    %v941 = vunpack.c.l.b16 %v205
    %v942 = vunpack.c.h.b16 %v205
    %v943 = vunpack.c.l.b16 %v206
    %v944 = vunpack.c.l.b16 %v207
    %v945 = vunpack.c.h.b16 %v207
    %v946 = vunpack.c.l.b16 %v208
    %v947 = vunpack.c.h.b16 %v208
    %v948 = vunpack.c.l.b16 %v209
    %v949 = vunpack.c.h.b16 %v209
    %v950 = vunpack.c.l.b16 %v210
    %v951 = vunpack.c.h.b16 %v210
    %v952 = vunpack.c.l.b16 %v211
    %v953 = vunpack.c.l.b16 %v212
    %v954 = vunpack.c.h.b16 %v212
    %v955 = vunpack.c.l.b16 %v213
    %v956 = vunpack.c.h.b16 %v213
    %v957 = vunpack.c.l.b16 %v214
    %v958 = vunpack.c.h.b16 %v214
    %v959 = vunpack.c.l.b16 %v215
    %v960 = vunpack.c.h.b16 %v215
    %v961 = vunpack.c.l.b16 %v216
    %v962 = vunpack.c.l.b16 %v217
    %v963 = vunpack.c.h.b16 %v217
    %v964 = vunpack.c.l.b16 %v218
    %v965 = vunpack.c.h.b16 %v218
    %v966 = vunpack.c.l.b16 %v219
    %v967 = vunpack.c.h.b16 %v219
    %v968 = vunpack.c.l.b16 %v220
    %v969 = vunpack.c.h.b16 %v220
    %v970 = vunpack.c.l.b16 %v221
    %v971 = vunpack.c.l.b16 %v222
    %v972 = vunpack.c.h.b16 %v222
    %v973 = vunpack.c.l.b16 %v223
    %v974 = vunpack.c.h.b16 %v223
    %v975 = vunpack.c.l.b16 %v224
    %v976 = vunpack.c.h.b16 %v224
    %v977 = vunpack.c.l.b16 %v225
    %v978 = vunpack.c.h.b16 %v225
    %v979 = vunpack.c.l.b16 %v226
    %v980 = vunpack.c.l.b16 %v227
    %v981 = vunpack.c.h.b16 %v227
    %v982 = vunpack.c.l.b16 %v228
    %v983 = vunpack.c.h.b16 %v228
    %v984 = vunpack.c.l.b16 %v229
    %v985 = vunpack.c.h.b16 %v229
    %v986 = vunpack.c.l.b16 %v230
    %v987 = vunpack.c.h.b16 %v230
    %v988 = vunpack.c.l.b16 %v231
    %v989 = vunpack.c.l.b16 %v232
    %v990 = vunpack.c.h.b16 %v232
    %v991 = vunpack.c.l.b16 %v233
    %v992 = vunpack.c.h.b16 %v233
    %v993 = vunpack.c.l.b16 %v234
    %v994 = vunpack.c.h.b16 %v234
    %v995 = vunpack.c.l.b16 %v235
    %v996 = vunpack.c.h.b16 %v235
    %v997 = vunpack.c.l.b16 %v236
    %v998 = vunpack.c.l.b16 %v237
    %v999 = vunpack.c.h.b16 %v237
    %v1000 = vunpack.c.l.b16 %v238
    %v1001 = vunpack.c.h.b16 %v238
    %v1002 = vunpack.c.l.b16 %v239
    %v1003 = vunpack.c.h.b16 %v239
    %v1004 = vunpack.c.l.b16 %v240
    %v1005 = vunpack.c.h.b16 %v240
    %v1006 = vunpack.c.l.b16 %v241
    %v1007 = vunpack.c.l.b16 %v242
    %v1008 = vunpack.c.h.b16 %v242
    %v1009 = vunpack.c.l.b16 %v243
    %v1010 = vunpack.c.h.b16 %v243
    %v1011 = vunpack.c.l.b16 %v244
    %v1012 = vunpack.c.h.b16 %v244
    %v1013 = vunpack.c.l.b16 %v245
    %v1014 = vunpack.c.h.b16 %v245
    %v1015 = vunpack.c.l.b16 %v246
    %v1016 = vunpack.c.l.b16 %v247
    %v1017 = vunpack.c.h.b16 %v247
    %v1018 = vunpack.c.l.b16 %v248
    %v1019 = vunpack.c.h.b16 %v248
    %v1020 = vunpack.c.l.b16 %v249
    %v1021 = vunpack.c.h.b16 %v249
    %v1022 = vunpack.c.l.b16 %v250
    %v1023 = vunpack.c.h.b16 %v250
    %v1024 = vunpack.c.l.b16 %v251
    %v1025 = vunpack.c.l.b16 %v252
    %v1026 = vunpack.c.h.b16 %v252
    %v1027 = vunpack.c.l.b16 %v253
    %v1028 = vunpack.c.h.b16 %v253
    %v1029 = vunpack.c.l.b16 %v254
    %v1030 = vunpack.c.h.b16 %v254
    %v1031 = vunpack.c.l.b16 %v255
    %v1032 = vunpack.c.h.b16 %v255
    %v1033 = vunpack.c.l.b16 %v256
    %v1034 = vunpack.c.l.b16 %v257
    %v1035 = vunpack.c.h.b16 %v257
    %v1036 = vunpack.c.l.b16 %v258
    %v1037 = vunpack.c.h.b16 %v258
    %v1038 = vunpack.c.l.b16 %v259
    %v1039 = vunpack.c.h.b16 %v259
    %v1040 = vunpack.c.l.b16 %v260
    %v1041 = vunpack.c.h.b16 %v260
    %v1042 = vunpack.c.l.b16 %v261
    %v1043 = vunpack.c.l.b16 %v262
    %v1044 = vunpack.c.h.b16 %v262
    %v1045 = vunpack.c.l.b16 %v263
    %v1046 = vunpack.c.h.b16 %v263
    %v1047 = vunpack.c.l.b16 %v264
    %v1048 = vunpack.c.h.b16 %v264
    %v1049 = vunpack.c.l.b16 %v265
    %v1050 = vunpack.c.h.b16 %v265
    %v1051 = vunpack.c.l.b16 %v266
    %v1052 = vunpack.c.l.b16 %v267
    %v1053 = vunpack.c.h.b16 %v267
    %v1054 = vunpack.c.l.b16 %v268
    %v1055 = vunpack.c.h.b16 %v268
    %v1056 = vunpack.c.l.b16 %v269
    %v1057 = vunpack.c.h.b16 %v269
    %v1058 = vunpack.c.l.b16 %v270
    %v1059 = vunpack.c.h.b16 %v270
    %v1060 = vunpack.c.l.b16 %v271
    %v1061 = vunpack.c.l.b16 %v272
    %v1062 = vunpack.c.h.b16 %v272
    %v1063 = vunpack.c.l.b16 %v273
    %v1064 = vunpack.c.h.b16 %v273
    %v1065 = vunpack.c.l.b16 %v274
    %v1066 = vunpack.c.h.b16 %v274
    %v1067 = vunpack.c.l.b16 %v275
    %v1068 = vunpack.c.h.b16 %v275
    %v1069 = vunpack.c.l.b16 %v276
    %v1070 = vunpack.c.l.b16 %v277
    %v1071 = vunpack.c.h.b16 %v277
    %v1072 = vunpack.c.l.b16 %v278
    %v1073 = vunpack.c.h.b16 %v278
    %v1074 = vunpack.c.l.b16 %v279
    %v1075 = vunpack.c.h.b16 %v279
    %v1076 = vunpack.c.l.b16 %v280
    %v1077 = vunpack.c.h.b16 %v280
    %v1078 = vunpack.c.l.b16 %v281
    %v1079 = vunpack.c.l.b16 %v282
    %v1080 = vunpack.c.h.b16 %v282
    %v1081 = vunpack.c.l.b16 %v283
    %v1082 = vunpack.c.h.b16 %v283
    %v1083 = vunpack.c.l.b16 %v284
    %v1084 = vunpack.c.h.b16 %v284
    %v1085 = vunpack.c.l.b16 %v285
    %v1086 = vunpack.c.h.b16 %v285
    %v1087 = vunpack.c.l.b16 %v286
    %v1088 = vunpack.c.l.b16 %v287
    %v1089 = vunpack.c.h.b16 %v287
    %v1090 = vunpack.c.l.b16 %v288
    %v1091 = vunpack.c.h.b16 %v288
    %v1092 = vunpack.c.l.b16 %v289
    %v1093 = vunpack.c.h.b16 %v289
    %v1094 = vunpack.c.l.b16 %v290
    %v1095 = vunpack.c.h.b16 %v290
    %v1096 = vunpack.c.l.b16 %v291
    %v1097 = vunpack.c.l.b16 %v292
    %v1098 = vunpack.c.h.b16 %v292
    %v1099 = vunpack.c.l.b16 %v293
    %v1100 = vunpack.c.h.b16 %v293
    %v1101 = vunpack.c.l.b16 %v294
    %v1102 = vunpack.c.h.b16 %v294
    %v1103 = vunpack.c.l.b16 %v295
    %v1104 = vunpack.c.h.b16 %v295
    %v1105 = vunpack.c.l.b16 %v296
    %v1106 = vunpack.c.l.b16 %v297
    %v1107 = vunpack.c.h.b16 %v297
    %v1108 = vunpack.c.l.b16 %v298
    %v1109 = vunpack.c.h.b16 %v298
    %v1110 = vunpack.c.l.b16 %v299
    %v1111 = vunpack.c.h.b16 %v299
    %v1112 = vunpack.c.l.b16 %v300
    %v1113 = vunpack.c.h.b16 %v300
    %v1114 = vunpack.c.l.b16 %v301
    %v1115 = vunpack.c.l.b16 %v302
    %v1116 = vunpack.c.h.b16 %v302
    %v1117 = vunpack.c.l.b16 %v303
    %v1118 = vunpack.c.h.b16 %v303
    %v1119 = vunpack.c.l.b16 %v304
    %v1120 = vunpack.c.h.b16 %v304
    %v1121 = vunpack.c.l.b16 %v305
    %v1122 = vunpack.c.h.b16 %v305
    %v1123 = vunpack.c.l.b16 %v306
    %v1124 = vunpack.c.l.b16 %v307
    %v1125 = vunpack.c.h.b16 %v307
    %v1126 = vunpack.c.l.b16 %v308
    %v1127 = vunpack.c.h.b16 %v308
    %v1128 = vunpack.c.l.b16 %v309
    %v1129 = vunpack.c.h.b16 %v309
    %v1130 = vunpack.c.l.b16 %v310
    %v1131 = vunpack.c.h.b16 %v310
    %v1132 = vunpack.c.l.b16 %v311
    %v1133 = vunpack.c.l.b16 %v312
    %v1134 = vunpack.c.h.b16 %v312
    %v1135 = vunpack.c.l.b16 %v313
    %v1136 = vunpack.c.h.b16 %v313
    %v1137 = vunpack.c.l.b16 %v314
    %v1138 = vunpack.c.h.b16 %v314
    %v1139 = vunpack.c.l.b16 %v315
    %v1140 = vunpack.c.h.b16 %v315
    %v1141 = vunpack.c.l.b16 %v316
    %v1142 = vunpack.c.l.b16 %v317
    %v1143 = vunpack.c.h.b16 %v317
    %v1144 = vunpack.c.l.b16 %v318
    %v1145 = vunpack.c.h.b16 %v318
    %v1146 = vunpack.c.l.b16 %v319
    %v1147 = vunpack.c.h.b16 %v319
    %v1148 = vunpack.c.l.b16 %v320
    %v1149 = vunpack.c.h.b16 %v320
    %v1150 = vunpack.c.l.b16 %v321
    %v1151 = vunpack.c.l.b16 %v322
    %v1152 = vunpack.c.h.b16 %v322
    %v1153 = vunpack.c.l.b16 %v323
    %v1154 = vunpack.c.h.b16 %v323
    %v1155 = vunpack.c.l.b16 %v324
    %v1156 = vunpack.c.h.b16 %v324
    %v1157 = vunpack.c.l.b16 %v325
    %v1158 = vunpack.c.h.b16 %v325
    %v1159 = vunpack.c.l.b16 %v326
    %v1160 = vunpack.c.l.b16 %v327
    %v1161 = vunpack.c.h.b16 %v327
    %v1162 = vunpack.c.l.b16 %v328
    %v1163 = vunpack.c.h.b16 %v328
    %v1164 = vunpack.c.l.b16 %v329
    %v1165 = vunpack.c.h.b16 %v329
    %v1166 = vunpack.c.l.b16 %v330
    %v1167 = vunpack.c.h.b16 %v330
    %v1168 = vunpack.c.l.b16 %v331
    %v1169 = vunpack.c.l.b16 %v332
    %v1170 = vunpack.c.h.b16 %v332
    %v1171 = vunpack.c.l.b16 %v333
    %v1172 = vunpack.c.h.b16 %v333
    %v1173 = vunpack.c.l.b16 %v334
    %v1174 = vunpack.c.h.b16 %v334
    %v1175 = vunpack.c.l.b16 %v335
    %v1176 = vunpack.c.h.b16 %v335
    %v1177 = vunpack.c.l.b16 %v336
    %v1178 = vunpack.c.l.b16 %v337
    %v1179 = vunpack.c.h.b16 %v337
    %v1180 = vunpack.c.l.b16 %v338
    %v1181 = vunpack.c.h.b16 %v338
    %v1182 = vunpack.c.l.b16 %v339
    %v1183 = vunpack.c.h.b16 %v339
    %v1184 = vunpack.c.l.b16 %v340
    %v1185 = vunpack.c.h.b16 %v340
    %v1186 = vunpack.c.l.b16 %v341
    %v1187 = vunpack.c.l.b16 %v342
    %v1188 = vunpack.c.h.b16 %v342
    %v1189 = vunpack.c.l.b16 %v343
    %v1190 = vunpack.c.h.b16 %v343
    %v1191 = vunpack.c.l.b16 %v344
    %v1192 = vunpack.c.h.b16 %v344
    %v1193 = vunpack.c.l.b16 %v345
    %v1194 = vunpack.c.h.b16 %v345
    %v1195 = vunpack.c.l.b16 %v346
    %v1196 = vunpack.c.l.b16 %v347
    %v1197 = vunpack.c.h.b16 %v347
    %v1198 = vunpack.c.l.b16 %v348
    %v1199 = vunpack.c.h.b16 %v348
    %v1200 = vunpack.c.l.b16 %v349
    %v1201 = vunpack.c.h.b16 %v349
    %v1202 = vunpack.c.l.b16 %v350
    %v1203 = vunpack.c.h.b16 %v350
    %v1204 = vunpack.c.l.b16 %v351
    %v1205 = vunpack.c.l.b16 %v352
    %v1206 = vunpack.c.h.b16 %v352
    %v1207 = vunpack.c.l.b16 %v353
    %v1208 = vunpack.c.h.b16 %v353
    %v1209 = vunpack.c.l.b16 %v354
    %v1210 = vunpack.c.h.b16 %v354
    %v1211 = vunpack.c.l.b16 %v355
    %v1212 = vunpack.c.h.b16 %v355
    %v1213 = vunpack.c.l.b16 %v356
    %v1214 = vunpack.c.l.b16 %v357
    %v1215 = vunpack.c.h.b16 %v357
    %v1216 = vunpack.c.l.b16 %v358
    %v1217 = vunpack.c.h.b16 %v358
    %v1218 = vunpack.c.l.b16 %v359
    %v1219 = vunpack.c.h.b16 %v359
    %v1220 = vunpack.c.l.b16 %v360
    %v1221 = vunpack.c.h.b16 %v360
    %v1222 = vunpack.c.l.b16 %v361
    %v1223 = vunpack.c.l.b16 %v362
    %v1224 = vunpack.c.h.b16 %v362
    %v1225 = vunpack.c.l.b16 %v363
    %v1226 = vunpack.c.h.b16 %v363
    %v1227 = vunpack.c.l.b16 %v364
    %v1228 = vunpack.c.h.b16 %v364
    %v1229 = vunpack.c.l.b16 %v365
    %v1230 = vunpack.c.h.b16 %v365
    %v1231 = vunpack.c.l.b16 %v366
    %v1232 = vunpack.c.l.b16 %v367
    %v1233 = vunpack.c.h.b16 %v367
    %v1234 = vunpack.c.l.b16 %v368
    %v1235 = vunpack.c.h.b16 %v368
    %v1236 = vunpack.c.l.b16 %v369
    %v1237 = vunpack.c.h.b16 %v369
    %v1238 = vunpack.c.l.b16 %v370
    %v1239 = vunpack.c.h.b16 %v370
    %v1240 = vunpack.c.l.b16 %v371
    %v1241 = vunpack.c.l.b16 %v372
    %v1242 = vunpack.c.h.b16 %v372
    %v1243 = vunpack.c.l.b16 %v373
    %v1244 = vunpack.c.h.b16 %v373
    %v1245 = vunpack.c.l.b16 %v374
    %v1246 = vunpack.c.h.b16 %v374
    %v1247 = vunpack.c.l.b16 %v375
    %v1248 = vunpack.c.h.b16 %v375
    %v1249 = vunpack.c.l.b16 %v376
    %v1250 = vunpack.c.l.b16 %v377
    %v1251 = vunpack.c.h.b16 %v377
    %v1252 = vunpack.c.l.b16 %v378
    %v1253 = vunpack.c.h.b16 %v378
    %v1254 = vunpack.c.l.b16 %v379
    %v1255 = vunpack.c.h.b16 %v379
    %v1256 = vunpack.c.l.b16 %v380
    %v1257 = vunpack.c.h.b16 %v380
    %v1258 = vunpack.c.l.b16 %v381
    %v1259 = vunpack.c.l.b16 %v382
    %v1260 = vunpack.c.h.b16 %v382
    %v1261 = vunpack.c.l.b16 %v383
    %v1262 = vunpack.c.h.b16 %v383
    %v1263 = vunpack.c.l.b16 %v384
    %v1264 = vunpack.c.h.b16 %v384
    %v1265 = vunpack.c.l.b16 %v385
    %v1266 = vunpack.c.h.b16 %v385
    %v1267 = vunpack.c.l.b16 %v386
    %v1268 = vunpack.c.l.b16 %v387
    %v1269 = vunpack.c.h.b16 %v387
    %v1270 = vunpack.c.l.b16 %v388
    %v1271 = vunpack.c.h.b16 %v388
    %v1272 = vunpack.c.l.b16 %v389
    %v1273 = vunpack.c.h.b16 %v389
    %v1274 = vunpack.c.l.b16 %v390
    %v1275 = vunpack.c.h.b16 %v390
    %v1276 = vunpack.c.l.b16 %v391
    %v1277 = vunpack.c.l.b16 %v392
    %v1278 = vunpack.c.h.b16 %v392
    %v1279 = vunpack.c.l.b16 %v393
    %v1280 = vunpack.c.h.b16 %v393
    %v1281 = vunpack.c.l.b16 %v394
    %v1282 = vunpack.c.h.b16 %v394
    %v1283 = vunpack.c.l.b16 %v395
    %v1284 = vunpack.c.h.b16 %v395
    %v1285 = vunpack.c.l.b16 %v396
    %v1286 = vunpack.c.l.b16 %v397
    %v1287 = vunpack.c.h.b16 %v397
    %v1288 = vunpack.c.l.b16 %v398
    %v1289 = vunpack.c.h.b16 %v398
    %v1290 = vunpack.c.l.b16 %v399
    %v1291 = vunpack.c.h.b16 %v399
    %v1292 = vunpack.c.l.b16 %v400
    %v1293 = vunpack.c.h.b16 %v400
    %v1294 = vunpack.c.l.b16 %v401
    %v1295 = vunpack.c.l.b16 %v402
    %v1296 = vunpack.c.h.b16 %v402
    %v1297 = vunpack.c.l.b16 %v403
    %v1298 = vunpack.c.h.b16 %v403
    %v1299 = vunpack.c.l.b16 %v404
    %v1300 = vunpack.c.h.b16 %v404
    %v1301 = vunpack.c.l.b16 %v405
    %v1302 = vunpack.c.h.b16 %v405
    %v1303 = vunpack.c.l.b16 %v406
    %v1304 = vunpack.c.l.b16 %v407
    %v1305 = vunpack.c.h.b16 %v407
    %v1306 = vunpack.c.l.b16 %v408
    %v1307 = vunpack.c.h.b16 %v408
    %v1308 = vunpack.c.l.b16 %v409
    %v1309 = vunpack.c.h.b16 %v409
    %v1310 = vunpack.c.l.b16 %v410
    %v1311 = vunpack.c.h.b16 %v410
    %v1312 = vunpack.c.l.b16 %v411
    %v1313 = vunpack.c.l.b16 %v412
    %v1314 = vunpack.c.h.b16 %v412
    %v1315 = vunpack.c.l.b16 %v413
    %v1316 = vunpack.c.h.b16 %v413
    %v1317 = vunpack.c.l.b16 %v414
    %v1318 = vunpack.c.h.b16 %v414
    %v1319 = vunpack.c.l.b16 %v415
    %v1320 = vunpack.c.h.b16 %v415
    %v1321 = vunpack.c.l.b16 %v416
    %v1322 = vunpack.c.l.b16 %v417
    %v1323 = vunpack.c.h.b16 %v417
    %v1324 = vunpack.c.l.b16 %v418
    %v1325 = vunpack.c.h.b16 %v418
    %v1326 = vunpack.c.l.b16 %v419
    %v1327 = vunpack.c.h.b16 %v419
    %v1328 = vunpack.c.l.b16 %v420
    %v1329 = vunpack.c.h.b16 %v420
    %v1330 = vunpack.c.l.b16 %v421
    %v1331 = vunpack.c.l.b16 %v422
    %v1332 = vunpack.c.h.b16 %v422
    %v1333 = vunpack.c.l.b16 %v423
    %v1334 = vunpack.c.h.b16 %v423
    %v1335 = vunpack.c.l.b16 %v424
    %v1336 = vunpack.c.h.b16 %v424
    %v1337 = vunpack.c.l.b16 %v425
    %v1338 = vunpack.c.h.b16 %v425
    %v1339 = vunpack.c.l.b16 %v426
    %v1340 = vunpack.c.l.b16 %v427
    %v1341 = vunpack.c.h.b16 %v427
    %v1342 = vunpack.c.l.b16 %v428
    %v1343 = vunpack.c.h.b16 %v428
    %v1344 = vunpack.c.l.b16 %v429
    %v1345 = vunpack.c.h.b16 %v429
    %v1346 = vunpack.c.l.b16 %v430
    %v1347 = vunpack.c.h.b16 %v430
    %v1348 = vunpack.c.l.b16 %v431
    %v1349 = vunpack.c.l.b16 %v432
    %v1350 = vunpack.c.h.b16 %v432
    %v1351 = vunpack.c.l.b16 %v433
    %v1352 = vunpack.c.h.b16 %v433
    %v1353 = vunpack.c.l.b16 %v434
    %v1354 = vunpack.c.h.b16 %v434
    %v1355 = vunpack.c.l.b16 %v435
    %v1356 = vunpack.c.h.b16 %v435
    %v1357 = vunpack.c.l.b16 %v436
    %v1358 = vunpack.c.l.b16 %v437
    %v1359 = vunpack.c.h.b16 %v437
    %v1360 = vunpack.c.l.b16 %v438
    %v1361 = vunpack.c.h.b16 %v438
    %v1362 = vunpack.c.l.b16 %v439
    %v1363 = vunpack.c.h.b16 %v439
    %v1364 = vunpack.c.l.b16 %v440
    %v1365 = vunpack.c.h.b16 %v440
    %v1366 = vunpack.c.l.b16 %v441
    %v1367 = vpack.c.b16 %v800, %v791
    %v1368 = vpack.c.b16 %v801, %v792
    %v1369 = vpack.c.b16 %v802, %v793
    %v1370 = vpack.c.b16 %v803, %v794
    %v1371 = vpack.c.b16 %v804, %v795
    %v1372 = vpack.c.b16 %v805, %v796
    %v1373 = vpack.c.b16 %v806, %v797
    %v1374 = vpack.c.b16 %v807, %v798
    %v1375 = vpack.c.b16 %v808, %v799
    %v1376 = vpack.c.b16 %v818, %v809
    %v1377 = vpack.c.b16 %v819, %v810
    %v1378 = vpack.c.b16 %v820, %v811
    %v1379 = vpack.c.b16 %v821, %v812
    %v1380 = vpack.c.b16 %v822, %v813
    %v1381 = vpack.c.b16 %v823, %v814
    %v1382 = vpack.c.b16 %v824, %v815
    %v1383 = vpack.c.b16 %v825, %v816
    %v1384 = vpack.c.b16 %v826, %v817
    %v1385 = vpack.c.b16 %v836, %v827
    %v1386 = vpack.c.b16 %v837, %v828
    %v1387 = vpack.c.b16 %v838, %v829
    %v1388 = vpack.c.b16 %v839, %v830
    %v1389 = vpack.c.b16 %v840, %v831
    %v1390 = vpack.c.b16 %v841, %v832
    %v1391 = vpack.c.b16 %v842, %v833
    %v1392 = vpack.c.b16 %v843, %v834
    %v1393 = vpack.c.b16 %v844, %v835
    %v1394 = vpack.c.b16 %v854, %v845
    %v1395 = vpack.c.b16 %v855, %v846
    %v1396 = vpack.c.b16 %v856, %v847
    %v1397 = vpack.c.b16 %v857, %v848
    %v1398 = vpack.c.b16 %v858, %v849
    %v1399 = vpack.c.b16 %v859, %v850
    %v1400 = vpack.c.b16 %v860, %v851
    %v1401 = vpack.c.b16 %v861, %v852
    %v1402 = vpack.c.b16 %v862, %v853
    %v1403 = vpack.c.b16 %v872, %v863
    %v1404 = vpack.c.b16 %v873, %v864
    %v1405 = vpack.c.b16 %v874, %v865
    %v1406 = vpack.c.b16 %v875, %v866
    %v1407 = vpack.c.b16 %v876, %v867
    %v1408 = vpack.c.b16 %v877, %v868
    %v1409 = vpack.c.b16 %v878, %v869
    %v1410 = vpack.c.b16 %v879, %v870
    %v1411 = vpack.c.b16 %v880, %v871
    %v1412 = vpack.c.b16 %v890, %v881
    %v1413 = vpack.c.b16 %v891, %v882
    %v1414 = vpack.c.b16 %v892, %v883
    %v1415 = vpack.c.b16 %v893, %v884
    %v1416 = vpack.c.b16 %v894, %v885
    %v1417 = vpack.c.b16 %v895, %v886
    %v1418 = vpack.c.b16 %v896, %v887
    %v1419 = vpack.c.b16 %v897, %v888
    %v1420 = vpack.c.b16 %v898, %v889
    %v1421 = vpack.c.b16 %v908, %v899
    %v1422 = vpack.c.b16 %v909, %v900
    %v1423 = vpack.c.b16 %v910, %v901
    %v1424 = vpack.c.b16 %v911, %v902
    %v1425 = vpack.c.b16 %v912, %v903
    %v1426 = vpack.c.b16 %v913, %v904
    %v1427 = vpack.c.b16 %v914, %v905
    %v1428 = vpack.c.b16 %v915, %v906
    %v1429 = vpack.c.b16 %v916, %v907
    %v1430 = vpack.c.b16 %v926, %v917
    %v1431 = vpack.c.b16 %v927, %v918
    %v1432 = vpack.c.b16 %v928, %v919
    %v1433 = vpack.c.b16 %v929, %v920
    %v1434 = vpack.c.b16 %v930, %v921
    %v1435 = vpack.c.b16 %v931, %v922
    %v1436 = vpack.c.b16 %v932, %v923
    %v1437 = vpack.c.b16 %v933, %v924
    %v1438 = vpack.c.b16 %v934, %v925
    %v1439 = vpack.c.b16 %v944, %v935
    %v1440 = vpack.c.b16 %v945, %v936
    %v1441 = vpack.c.b16 %v946, %v937
    %v1442 = vpack.c.b16 %v947, %v938
    %v1443 = vpack.c.b16 %v948, %v939
    %v1444 = vpack.c.b16 %v949, %v940
    %v1445 = vpack.c.b16 %v950, %v941
    %v1446 = vpack.c.b16 %v951, %v942
    %v1447 = vpack.c.b16 %v952, %v943
    %v1448 = vpack.c.b16 %v962, %v953
    %v1449 = vpack.c.b16 %v963, %v954
    %v1450 = vpack.c.b16 %v964, %v955
    %v1451 = vpack.c.b16 %v965, %v956
    %v1452 = vpack.c.b16 %v966, %v957
    %v1453 = vpack.c.b16 %v967, %v958
    %v1454 = vpack.c.b16 %v968, %v959
    %v1455 = vpack.c.b16 %v969, %v960
    %v1456 = vpack.c.b16 %v970, %v961
    %v1457 = vpack.c.b16 %v980, %v971
    %v1458 = vpack.c.b16 %v981, %v972
    %v1459 = vpack.c.b16 %v982, %v973
    %v1460 = vpack.c.b16 %v983, %v974
    %v1461 = vpack.c.b16 %v984, %v975
    %v1462 = vpack.c.b16 %v985, %v976
    %v1463 = vpack.c.b16 %v986, %v977
    %v1464 = vpack.c.b16 %v987, %v978
    %v1465 = vpack.c.b16 %v988, %v979
    %v1466 = vpack.c.b16 %v998, %v989
    %v1467 = vpack.c.b16 %v999, %v990
    %v1468 = vpack.c.b16 %v1000, %v991
    %v1469 = vpack.c.b16 %v1001, %v992
    %v1470 = vpack.c.b16 %v1002, %v993
    %v1471 = vpack.c.b16 %v1003, %v994
    %v1472 = vpack.c.b16 %v1004, %v995
    %v1473 = vpack.c.b16 %v1005, %v996
    %v1474 = vpack.c.b16 %v1006, %v997
    %v1475 = vpack.c.b16 %v1016, %v1007
    %v1476 = vpack.c.b16 %v1017, %v1008
    %v1477 = vpack.c.b16 %v1018, %v1009
    %v1478 = vpack.c.b16 %v1019, %v1010
    %v1479 = vpack.c.b16 %v1020, %v1011
    %v1480 = vpack.c.b16 %v1021, %v1012
    %v1481 = vpack.c.b16 %v1022, %v1013
    %v1482 = vpack.c.b16 %v1023, %v1014
    %v1483 = vpack.c.b16 %v1024, %v1015
    %v1484 = vpack.c.b16 %v1034, %v1025
    %v1485 = vpack.c.b16 %v1035, %v1026
    %v1486 = vpack.c.b16 %v1036, %v1027
    %v1487 = vpack.c.b16 %v1037, %v1028
    %v1488 = vpack.c.b16 %v1038, %v1029
    %v1489 = vpack.c.b16 %v1039, %v1030
    %v1490 = vpack.c.b16 %v1040, %v1031
    %v1491 = vpack.c.b16 %v1041, %v1032
    %v1492 = vpack.c.b16 %v1042, %v1033
    %v1493 = vpack.c.b16 %v1052, %v1043
    %v1494 = vpack.c.b16 %v1053, %v1044
    %v1495 = vpack.c.b16 %v1054, %v1045
    %v1496 = vpack.c.b16 %v1055, %v1046
    %v1497 = vpack.c.b16 %v1056, %v1047
    %v1498 = vpack.c.b16 %v1057, %v1048
    %v1499 = vpack.c.b16 %v1058, %v1049
    %v1500 = vpack.c.b16 %v1059, %v1050
    %v1501 = vpack.c.b16 %v1060, %v1051
    %v1502 = vpack.c.b16 %v1070, %v1061
    %v1503 = vpack.c.b16 %v1071, %v1062
    %v1504 = vpack.c.b16 %v1072, %v1063
    %v1505 = vpack.c.b16 %v1073, %v1064
    %v1506 = vpack.c.b16 %v1074, %v1065
    %v1507 = vpack.c.b16 %v1075, %v1066
    %v1508 = vpack.c.b16 %v1076, %v1067
    %v1509 = vpack.c.b16 %v1077, %v1068
    %v1510 = vpack.c.b16 %v1078, %v1069
    %v1511 = vpack.c.b16 %v1088, %v1079
    %v1512 = vpack.c.b16 %v1089, %v1080
    %v1513 = vpack.c.b16 %v1090, %v1081
    %v1514 = vpack.c.b16 %v1091, %v1082
    %v1515 = vpack.c.b16 %v1092, %v1083
    %v1516 = vpack.c.b16 %v1093, %v1084
    %v1517 = vpack.c.b16 %v1094, %v1085
    %v1518 = vpack.c.b16 %v1095, %v1086
    %v1519 = vpack.c.b16 %v1096, %v1087
    %v1520 = vpack.c.b16 %v1106, %v1097
    %v1521 = vpack.c.b16 %v1107, %v1098
    %v1522 = vpack.c.b16 %v1108, %v1099
    %v1523 = vpack.c.b16 %v1109, %v1100
    %v1524 = vpack.c.b16 %v1110, %v1101
    %v1525 = vpack.c.b16 %v1111, %v1102
    %v1526 = vpack.c.b16 %v1112, %v1103
    %v1527 = vpack.c.b16 %v1113, %v1104
    %v1528 = vpack.c.b16 %v1114, %v1105
    %v1529 = vpack.c.b16 %v1124, %v1115
    %v1530 = vpack.c.b16 %v1125, %v1116
    %v1531 = vpack.c.b16 %v1126, %v1117
    %v1532 = vpack.c.b16 %v1127, %v1118
    %v1533 = vpack.c.b16 %v1128, %v1119
    %v1534 = vpack.c.b16 %v1129, %v1120
    %v1535 = vpack.c.b16 %v1130, %v1121
    %v1536 = vpack.c.b16 %v1131, %v1122
    %v1537 = vpack.c.b16 %v1132, %v1123
    %v1538 = vpack.c.b16 %v1142, %v1133
    %v1539 = vpack.c.b16 %v1143, %v1134
    %v1540 = vpack.c.b16 %v1144, %v1135
    %v1541 = vpack.c.b16 %v1145, %v1136
    %v1542 = vpack.c.b16 %v1146, %v1137
    %v1543 = vpack.c.b16 %v1147, %v1138
    %v1544 = vpack.c.b16 %v1148, %v1139
    %v1545 = vpack.c.b16 %v1149, %v1140
    %v1546 = vpack.c.b16 %v1150, %v1141
    %v1547 = vpack.c.b16 %v1160, %v1151
    %v1548 = vpack.c.b16 %v1161, %v1152
    %v1549 = vpack.c.b16 %v1162, %v1153
    %v1550 = vpack.c.b16 %v1163, %v1154
    %v1551 = vpack.c.b16 %v1164, %v1155
    %v1552 = vpack.c.b16 %v1165, %v1156
    %v1553 = vpack.c.b16 %v1166, %v1157
    %v1554 = vpack.c.b16 %v1167, %v1158
    %v1555 = vpack.c.b16 %v1168, %v1159
    %v1556 = vpack.c.b16 %v1178, %v1169
    %v1557 = vpack.c.b16 %v1179, %v1170
    %v1558 = vpack.c.b16 %v1180, %v1171
    %v1559 = vpack.c.b16 %v1181, %v1172
    %v1560 = vpack.c.b16 %v1182, %v1173
    %v1561 = vpack.c.b16 %v1183, %v1174
    %v1562 = vpack.c.b16 %v1184, %v1175
    %v1563 = vpack.c.b16 %v1185, %v1176
    %v1564 = vpack.c.b16 %v1186, %v1177
    %v1565 = vpack.c.b16 %v1196, %v1187
    %v1566 = vpack.c.b16 %v1197, %v1188
    %v1567 = vpack.c.b16 %v1198, %v1189
    %v1568 = vpack.c.b16 %v1199, %v1190
    %v1569 = vpack.c.b16 %v1200, %v1191
    %v1570 = vpack.c.b16 %v1201, %v1192
    %v1571 = vpack.c.b16 %v1202, %v1193
    %v1572 = vpack.c.b16 %v1203, %v1194
    %v1573 = vpack.c.b16 %v1204, %v1195
    %v1574 = vpack.c.b16 %v1214, %v1205
    %v1575 = vpack.c.b16 %v1215, %v1206
    %v1576 = vpack.c.b16 %v1216, %v1207
    %v1577 = vpack.c.b16 %v1217, %v1208
    %v1578 = vpack.c.b16 %v1218, %v1209
    %v1579 = vpack.c.b16 %v1219, %v1210
    %v1580 = vpack.c.b16 %v1220, %v1211
    %v1581 = vpack.c.b16 %v1221, %v1212
    %v1582 = vpack.c.b16 %v1222, %v1213
    %v1583 = vpack.c.b16 %v1232, %v1223
    %v1584 = vpack.c.b16 %v1233, %v1224
    %v1585 = vpack.c.b16 %v1234, %v1225
    %v1586 = vpack.c.b16 %v1235, %v1226
    %v1587 = vpack.c.b16 %v1236, %v1227
    %v1588 = vpack.c.b16 %v1237, %v1228
    %v1589 = vpack.c.b16 %v1238, %v1229
    %v1590 = vpack.c.b16 %v1239, %v1230
    %v1591 = vpack.c.b16 %v1240, %v1231
    %v1592 = vpack.c.b16 %v1250, %v1241
    %v1593 = vpack.c.b16 %v1251, %v1242
    %v1594 = vpack.c.b16 %v1252, %v1243
    %v1595 = vpack.c.b16 %v1253, %v1244
    %v1596 = vpack.c.b16 %v1254, %v1245
    %v1597 = vpack.c.b16 %v1255, %v1246
    %v1598 = vpack.c.b16 %v1256, %v1247
    %v1599 = vpack.c.b16 %v1257, %v1248
    %v1600 = vpack.c.b16 %v1258, %v1249
    %v1601 = vpack.c.b16 %v1268, %v1259
    %v1602 = vpack.c.b16 %v1269, %v1260
    %v1603 = vpack.c.b16 %v1270, %v1261
    %v1604 = vpack.c.b16 %v1271, %v1262
    %v1605 = vpack.c.b16 %v1272, %v1263
    %v1606 = vpack.c.b16 %v1273, %v1264
    %v1607 = vpack.c.b16 %v1274, %v1265
    %v1608 = vpack.c.b16 %v1275, %v1266
    %v1609 = vpack.c.b16 %v1276, %v1267
    %v1610 = vpack.c.b16 %v1286, %v1277
    %v1611 = vpack.c.b16 %v1287, %v1278
    %v1612 = vpack.c.b16 %v1288, %v1279
    %v1613 = vpack.c.b16 %v1289, %v1280
    %v1614 = vpack.c.b16 %v1290, %v1281
    %v1615 = vpack.c.b16 %v1291, %v1282
    %v1616 = vpack.c.b16 %v1292, %v1283
    %v1617 = vpack.c.b16 %v1293, %v1284
    %v1618 = vpack.c.b16 %v1294, %v1285
    %v1619 = vpack.c.b16 %v1304, %v1295
    %v1620 = vpack.c.b16 %v1305, %v1296
    %v1621 = vpack.c.b16 %v1306, %v1297
    %v1622 = vpack.c.b16 %v1307, %v1298
    %v1623 = vpack.c.b16 %v1308, %v1299
    %v1624 = vpack.c.b16 %v1309, %v1300
    %v1625 = vpack.c.b16 %v1310, %v1301
    %v1626 = vpack.c.b16 %v1311, %v1302
    %v1627 = vpack.c.b16 %v1312, %v1303
    %v1628 = vpack.c.b16 %v1322, %v1313
    %v1629 = vpack.c.b16 %v1323, %v1314
    %v1630 = vpack.c.b16 %v1324, %v1315
    %v1631 = vpack.c.b16 %v1325, %v1316
    %v1632 = vpack.c.b16 %v1326, %v1317
    %v1633 = vpack.c.b16 %v1327, %v1318
    %v1634 = vpack.c.b16 %v1328, %v1319
    %v1635 = vpack.c.b16 %v1329, %v1320
    %v1636 = vpack.c.b16 %v1330, %v1321
    %v1637 = vpack.c.b16 %v1340, %v1331
    %v1638 = vpack.c.b16 %v1341, %v1332
    %v1639 = vpack.c.b16 %v1342, %v1333
    %v1640 = vpack.c.b16 %v1343, %v1334
    %v1641 = vpack.c.b16 %v1344, %v1335
    %v1642 = vpack.c.b16 %v1345, %v1336
    %v1643 = vpack.c.b16 %v1346, %v1337
    %v1644 = vpack.c.b16 %v1347, %v1338
    %v1645 = vpack.c.b16 %v1348, %v1339
    %v1646 = vpack.c.b16 %v1358, %v1349
    %v1647 = vpack.c.b16 %v1359, %v1350
    %v1648 = vpack.c.b16 %v1360, %v1351
    %v1649 = vpack.c.b16 %v1361, %v1352
    %v1650 = vpack.c.b16 %v1362, %v1353
    %v1651 = vpack.c.b16 %v1363, %v1354
    %v1652 = vpack.c.b16 %v1364, %v1355
    %v1653 = vpack.c.b16 %v1365, %v1356
    %v1654 = vpack.c.b16 %v1366, %v1357
    %1943 = vmatprep.subr.bf16.mxu0 %v1431
    %1944 = vmatpush1.bf16.msra.mxu0 %v1430
    %1945 = vmatprep.subr.bf16.mxu0 %v1422
    %1946 = vmatpush1.bf16.msra.mxu0 %v1421
    %1947 = vmatprep.subr.bf16.mxu0 %v1413
    %1948 = vmatpush1.bf16.msra.mxu0 %v1412
    %1949 = vmatprep.subr.bf16.mxu0 %v1404
    %1950 = vmatpush1.bf16.msra.mxu0 %v1403
    %1951 = vmatprep.subr.bf16.mxu0 %v1395
    %1952 = vmatpush1.bf16.msra.mxu0 %v1394
    %1953 = vmatprep.subr.bf16.mxu0 %v1386
    %1954 = vmatpush1.bf16.msra.mxu0 %v1385
    %1955 = vmatprep.subr.bf16.mxu0 %v1377
    %1956 = vmatpush1.bf16.msra.mxu0 %v1376
    %1957 = vmatprep.subr.bf16.mxu0 %v1368
    %1958 = vmatpush1.bf16.msra.mxu0 %v1367
    %1959 = vmatprep.subr.bf16.mxu0 %v1503
    %1960 = vmatpush2.bf16.msra.mxu0 %v1502
    %1961 = vmatprep.subr.bf16.mxu0 %v1494
    %1962 = vmatpush2.bf16.msra.mxu0 %v1493
    %1963 = vmatprep.subr.bf16.mxu0 %v1485
    %1964 = vmatpush2.bf16.msra.mxu0 %v1484
    %1965 = vmatprep.subr.bf16.mxu0 %v1476
    %1966 = vmatpush2.bf16.msra.mxu0 %v1475
    %1967 = vmatprep.subr.bf16.mxu0 %v1467
    %1968 = vmatpush2.bf16.msra.mxu0 %v1466
    %1969 = vmatprep.subr.bf16.mxu0 %v1458
    %1970 = vmatpush2.bf16.msra.mxu0 %v1457
    %1971 = vmatprep.subr.bf16.mxu0 %v1449
    %1972 = vmatpush2.bf16.msra.mxu0 %v1448
    %1973 = vmatprep.subr.bf16.mxu0 %v1440
    %1974 = vmatpush2.bf16.msra.mxu0 %v1439
    %1975 = vmatprep.mubr.bf16.mxu0 %v464
    %1976 = vmatmul.mubr.bf16.gmra.mxu0 %v457
    %v1977 = vpop.f32.mrf.mxu0
    %v1978 = vadd.f32 0.0, %v1977
    %v1979 = vpop.f32.mrf.mxu0
    %v1980 = vadd.f32 0.0, %v1979
    %v1981 = vpop.f32.mrf.mxu0
    %v1982 = vpop.f32.mrf.mxu0
    %1983 = vdwg.mxu0
    %1984 = vmatprep.subr.bf16.mxu0 %v1575
    %1985 = vmatpush1.bf16.msra.mxu0 %v1574
    %1986 = vmatprep.subr.bf16.mxu0 %v1566
    %1987 = vmatpush1.bf16.msra.mxu0 %v1565
    %1988 = vmatprep.subr.bf16.mxu0 %v1557
    %1989 = vmatpush1.bf16.msra.mxu0 %v1556
    %1990 = vmatprep.subr.bf16.mxu0 %v1548
    %1991 = vmatpush1.bf16.msra.mxu0 %v1547
    %1992 = vmatprep.subr.bf16.mxu0 %v1539
    %1993 = vmatpush1.bf16.msra.mxu0 %v1538
    %1994 = vmatprep.subr.bf16.mxu0 %v1530
    %1995 = vmatpush1.bf16.msra.mxu0 %v1529
    %1996 = vmatprep.subr.bf16.mxu0 %v1521
    %1997 = vmatpush1.bf16.msra.mxu0 %v1520
    %1998 = vmatprep.subr.bf16.mxu0 %v1512
    %1999 = vmatpush1.bf16.msra.mxu0 %v1511
    %2000 = vmatprep.subr.bf16.mxu0 %v1647
    %2001 = vmatpush2.bf16.msra.mxu0 %v1646
    %2002 = vmatprep.subr.bf16.mxu0 %v1638
    %2003 = vmatpush2.bf16.msra.mxu0 %v1637
    %2004 = vmatprep.subr.bf16.mxu0 %v1629
    %2005 = vmatpush2.bf16.msra.mxu0 %v1628
    %2006 = vmatprep.subr.bf16.mxu0 %v1620
    %2007 = vmatpush2.bf16.msra.mxu0 %v1619
    %2008 = vmatprep.subr.bf16.mxu0 %v1611
    %2009 = vmatpush2.bf16.msra.mxu0 %v1610
    %2010 = vmatprep.subr.bf16.mxu0 %v1602
    %2011 = vmatpush2.bf16.msra.mxu0 %v1601
    %2012 = vmatprep.subr.bf16.mxu0 %v1593
    %2013 = vmatpush2.bf16.msra.mxu0 %v1592
    %2014 = vmatprep.subr.bf16.mxu0 %v1584
    %2015 = vmatpush2.bf16.msra.mxu0 %v1583
    %2016 = vmatprep.mubr.bf16.mxu0 %v466
    %2017 = vmatmul.mubr.bf16.gmra.mxu0 %v465
    %v2018 = vpop.f32.mrf.mxu0
    %v2019 = vadd.f32 %v1978, %v2018
    %v2020 = vpop.f32.mrf.mxu0
    %v2021 = vadd.f32 %v1980, %v2020
    %v2022 = vpop.f32.mrf.mxu0
    %v2023 = vpop.f32.mrf.mxu0
    %2024 = vdwg.mxu0
    %2025 = vmatprep.subr.bf16.mxu0 %v1433
    %2026 = vmatpush1.bf16.msra.mxu0 %v1432
    %2027 = vmatprep.subr.bf16.mxu0 %v1424
    %2028 = vmatpush1.bf16.msra.mxu0 %v1423
    %2029 = vmatprep.subr.bf16.mxu0 %v1415
    %2030 = vmatpush1.bf16.msra.mxu0 %v1414
    %2031 = vmatprep.subr.bf16.mxu0 %v1406
    %2032 = vmatpush1.bf16.msra.mxu0 %v1405
    %2033 = vmatprep.subr.bf16.mxu0 %v1397
    %2034 = vmatpush1.bf16.msra.mxu0 %v1396
    %2035 = vmatprep.subr.bf16.mxu0 %v1388
    %2036 = vmatpush1.bf16.msra.mxu0 %v1387
    %2037 = vmatprep.subr.bf16.mxu0 %v1379
    %2038 = vmatpush1.bf16.msra.mxu0 %v1378
    %2039 = vmatprep.subr.bf16.mxu0 %v1370
    %2040 = vmatpush1.bf16.msra.mxu0 %v1369
    %2041 = vmatprep.subr.bf16.mxu0 %v1505
    %2042 = vmatpush2.bf16.msra.mxu0 %v1504
    %2043 = vmatprep.subr.bf16.mxu0 %v1496
    %2044 = vmatpush2.bf16.msra.mxu0 %v1495
    %2045 = vmatprep.subr.bf16.mxu0 %v1487
    %2046 = vmatpush2.bf16.msra.mxu0 %v1486
    %2047 = vmatprep.subr.bf16.mxu0 %v1478
    %2048 = vmatpush2.bf16.msra.mxu0 %v1477
    %2049 = vmatprep.subr.bf16.mxu0 %v1469
    %2050 = vmatpush2.bf16.msra.mxu0 %v1468
    %2051 = vmatprep.subr.bf16.mxu0 %v1460
    %2052 = vmatpush2.bf16.msra.mxu0 %v1459
    %2053 = vmatprep.subr.bf16.mxu0 %v1451
    %2054 = vmatpush2.bf16.msra.mxu0 %v1450
    %2055 = vmatprep.subr.bf16.mxu0 %v1442
    %2056 = vmatpush2.bf16.msra.mxu0 %v1441
    %2057 = vmatprep.mubr.bf16.mxu0 %v464
    %2058 = vmatmul.mubr.bf16.gmra.mxu0 %v457
    %v2059 = vpop.f32.mrf.mxu0
    %v2060 = vadd.f32 0.0, %v2059
    %v2061 = vpop.f32.mrf.mxu0
    %v2062 = vadd.f32 0.0, %v2061
    %v2063 = vpop.f32.mrf.mxu0
    %v2064 = vpop.f32.mrf.mxu0
    %2065 = vdwg.mxu0
    %2066 = vmatprep.subr.bf16.mxu0 %v1577
    %2067 = vmatpush1.bf16.msra.mxu0 %v1576
    %2068 = vmatprep.subr.bf16.mxu0 %v1568
    %2069 = vmatpush1.bf16.msra.mxu0 %v1567
    %2070 = vmatprep.subr.bf16.mxu0 %v1559
    %2071 = vmatpush1.bf16.msra.mxu0 %v1558
    %2072 = vmatprep.subr.bf16.mxu0 %v1550
    %2073 = vmatpush1.bf16.msra.mxu0 %v1549
    %2074 = vmatprep.subr.bf16.mxu0 %v1541
    %2075 = vmatpush1.bf16.msra.mxu0 %v1540
    %2076 = vmatprep.subr.bf16.mxu0 %v1532
    %2077 = vmatpush1.bf16.msra.mxu0 %v1531
    %2078 = vmatprep.subr.bf16.mxu0 %v1523
    %2079 = vmatpush1.bf16.msra.mxu0 %v1522
    %2080 = vmatprep.subr.bf16.mxu0 %v1514
    %2081 = vmatpush1.bf16.msra.mxu0 %v1513
    %2082 = vmatprep.subr.bf16.mxu0 %v1649
    %2083 = vmatpush2.bf16.msra.mxu0 %v1648
    %2084 = vmatprep.subr.bf16.mxu0 %v1640
    %2085 = vmatpush2.bf16.msra.mxu0 %v1639
    %2086 = vmatprep.subr.bf16.mxu0 %v1631
    %2087 = vmatpush2.bf16.msra.mxu0 %v1630
    %2088 = vmatprep.subr.bf16.mxu0 %v1622
    %2089 = vmatpush2.bf16.msra.mxu0 %v1621
    %2090 = vmatprep.subr.bf16.mxu0 %v1613
    %2091 = vmatpush2.bf16.msra.mxu0 %v1612
    %2092 = vmatprep.subr.bf16.mxu0 %v1604
    %2093 = vmatpush2.bf16.msra.mxu0 %v1603
    %2094 = vmatprep.subr.bf16.mxu0 %v1595
    %2095 = vmatpush2.bf16.msra.mxu0 %v1594
    %2096 = vmatprep.subr.bf16.mxu0 %v1586
    %2097 = vmatpush2.bf16.msra.mxu0 %v1585
    %2098 = vmatprep.mubr.bf16.mxu0 %v466
    %2099 = vmatmul.mubr.bf16.gmra.mxu0 %v465
    %v2100 = vpop.f32.mrf.mxu0
    %v2101 = vadd.f32 %v2060, %v2100
    %v2102 = vpop.f32.mrf.mxu0
    %v2103 = vadd.f32 %v2062, %v2102
    %v2104 = vpop.f32.mrf.mxu0
    %v2105 = vpop.f32.mrf.mxu0
    %2106 = vdwg.mxu0
    %2107 = vmatprep.subr.bf16.mxu0 %v1435
    %2108 = vmatpush1.bf16.msra.mxu0 %v1434
    %2109 = vmatprep.subr.bf16.mxu0 %v1426
    %2110 = vmatpush1.bf16.msra.mxu0 %v1425
    %2111 = vmatprep.subr.bf16.mxu0 %v1417
    %2112 = vmatpush1.bf16.msra.mxu0 %v1416
    %2113 = vmatprep.subr.bf16.mxu0 %v1408
    %2114 = vmatpush1.bf16.msra.mxu0 %v1407
    %2115 = vmatprep.subr.bf16.mxu0 %v1399
    %2116 = vmatpush1.bf16.msra.mxu0 %v1398
    %2117 = vmatprep.subr.bf16.mxu0 %v1390
    %2118 = vmatpush1.bf16.msra.mxu0 %v1389
    %2119 = vmatprep.subr.bf16.mxu0 %v1381
    %2120 = vmatpush1.bf16.msra.mxu0 %v1380
    %2121 = vmatprep.subr.bf16.mxu0 %v1372
    %2122 = vmatpush1.bf16.msra.mxu0 %v1371
    %2123 = vmatprep.subr.bf16.mxu0 %v1507
    %2124 = vmatpush2.bf16.msra.mxu0 %v1506
    %2125 = vmatprep.subr.bf16.mxu0 %v1498
    %2126 = vmatpush2.bf16.msra.mxu0 %v1497
    %2127 = vmatprep.subr.bf16.mxu0 %v1489
    %2128 = vmatpush2.bf16.msra.mxu0 %v1488
    %2129 = vmatprep.subr.bf16.mxu0 %v1480
    %2130 = vmatpush2.bf16.msra.mxu0 %v1479
    %2131 = vmatprep.subr.bf16.mxu0 %v1471
    %2132 = vmatpush2.bf16.msra.mxu0 %v1470
    %2133 = vmatprep.subr.bf16.mxu0 %v1462
    %2134 = vmatpush2.bf16.msra.mxu0 %v1461
    %2135 = vmatprep.subr.bf16.mxu0 %v1453
    %2136 = vmatpush2.bf16.msra.mxu0 %v1452
    %2137 = vmatprep.subr.bf16.mxu0 %v1444
    %2138 = vmatpush2.bf16.msra.mxu0 %v1443
    %2139 = vmatprep.mubr.bf16.mxu0 %v464
    %2140 = vmatmul.mubr.bf16.gmra.mxu0 %v457
    %v2141 = vpop.f32.mrf.mxu0
    %v2142 = vadd.f32 0.0, %v2141
    %v2143 = vpop.f32.mrf.mxu0
    %v2144 = vadd.f32 0.0, %v2143
    %v2145 = vpop.f32.mrf.mxu0
    %v2146 = vpop.f32.mrf.mxu0
    %2147 = vdwg.mxu0
    %2148 = vmatprep.subr.bf16.mxu0 %v1579
    %2149 = vmatpush1.bf16.msra.mxu0 %v1578
    %2150 = vmatprep.subr.bf16.mxu0 %v1570
    %2151 = vmatpush1.bf16.msra.mxu0 %v1569
    %2152 = vmatprep.subr.bf16.mxu0 %v1561
    %2153 = vmatpush1.bf16.msra.mxu0 %v1560
    %2154 = vmatprep.subr.bf16.mxu0 %v1552
    %2155 = vmatpush1.bf16.msra.mxu0 %v1551
    %2156 = vmatprep.subr.bf16.mxu0 %v1543
    %2157 = vmatpush1.bf16.msra.mxu0 %v1542
    %2158 = vmatprep.subr.bf16.mxu0 %v1534
    %2159 = vmatpush1.bf16.msra.mxu0 %v1533
    %2160 = vmatprep.subr.bf16.mxu0 %v1525
    %2161 = vmatpush1.bf16.msra.mxu0 %v1524
    %2162 = vmatprep.subr.bf16.mxu0 %v1516
    %2163 = vmatpush1.bf16.msra.mxu0 %v1515
    %2164 = vmatprep.subr.bf16.mxu0 %v1651
    %2165 = vmatpush2.bf16.msra.mxu0 %v1650
    %2166 = vmatprep.subr.bf16.mxu0 %v1642
    %2167 = vmatpush2.bf16.msra.mxu0 %v1641
    %2168 = vmatprep.subr.bf16.mxu0 %v1633
    %2169 = vmatpush2.bf16.msra.mxu0 %v1632
    %2170 = vmatprep.subr.bf16.mxu0 %v1624
    %2171 = vmatpush2.bf16.msra.mxu0 %v1623
    %2172 = vmatprep.subr.bf16.mxu0 %v1615
    %2173 = vmatpush2.bf16.msra.mxu0 %v1614
    %2174 = vmatprep.subr.bf16.mxu0 %v1606
    %2175 = vmatpush2.bf16.msra.mxu0 %v1605
    %2176 = vmatprep.subr.bf16.mxu0 %v1597
    %2177 = vmatpush2.bf16.msra.mxu0 %v1596
    %2178 = vmatprep.subr.bf16.mxu0 %v1588
    %2179 = vmatpush2.bf16.msra.mxu0 %v1587
    %2180 = vmatprep.mubr.bf16.mxu0 %v466
    %2181 = vmatmul.mubr.bf16.gmra.mxu0 %v465
    %v2182 = vpop.f32.mrf.mxu0
    %v2183 = vadd.f32 %v2142, %v2182
    %v2184 = vpop.f32.mrf.mxu0
    %v2185 = vadd.f32 %v2144, %v2184
    %v2186 = vpop.f32.mrf.mxu0
    %v2187 = vpop.f32.mrf.mxu0
    %2188 = vdwg.mxu0
    %2189 = vmatprep.subr.bf16.mxu0 %v1437
    %2190 = vmatpush1.bf16.msra.mxu0 %v1436
    %2191 = vmatprep.subr.bf16.mxu0 %v1428
    %2192 = vmatpush1.bf16.msra.mxu0 %v1427
    %2193 = vmatprep.subr.bf16.mxu0 %v1419
    %2194 = vmatpush1.bf16.msra.mxu0 %v1418
    %2195 = vmatprep.subr.bf16.mxu0 %v1410
    %2196 = vmatpush1.bf16.msra.mxu0 %v1409
    %2197 = vmatprep.subr.bf16.mxu0 %v1401
    %2198 = vmatpush1.bf16.msra.mxu0 %v1400
    %2199 = vmatprep.subr.bf16.mxu0 %v1392
    %2200 = vmatpush1.bf16.msra.mxu0 %v1391
    %2201 = vmatprep.subr.bf16.mxu0 %v1383
    %2202 = vmatpush1.bf16.msra.mxu0 %v1382
    %2203 = vmatprep.subr.bf16.mxu0 %v1374
    %2204 = vmatpush1.bf16.msra.mxu0 %v1373
    %2205 = vmatprep.subr.bf16.mxu0 %v1509
    %2206 = vmatpush2.bf16.msra.mxu0 %v1508
    %2207 = vmatprep.subr.bf16.mxu0 %v1500
    %2208 = vmatpush2.bf16.msra.mxu0 %v1499
    %2209 = vmatprep.subr.bf16.mxu0 %v1491
    %2210 = vmatpush2.bf16.msra.mxu0 %v1490
    %2211 = vmatprep.subr.bf16.mxu0 %v1482
    %2212 = vmatpush2.bf16.msra.mxu0 %v1481
    %2213 = vmatprep.subr.bf16.mxu0 %v1473
    %2214 = vmatpush2.bf16.msra.mxu0 %v1472
    %2215 = vmatprep.subr.bf16.mxu0 %v1464
    %2216 = vmatpush2.bf16.msra.mxu0 %v1463
    %2217 = vmatprep.subr.bf16.mxu0 %v1455
    %2218 = vmatpush2.bf16.msra.mxu0 %v1454
    %2219 = vmatprep.subr.bf16.mxu0 %v1446
    %2220 = vmatpush2.bf16.msra.mxu0 %v1445
    %2221 = vmatprep.mubr.bf16.mxu0 %v464
    %2222 = vmatmul.mubr.bf16.gmra.mxu0 %v457
    %v2223 = vpop.f32.mrf.mxu0
    %v2224 = vadd.f32 0.0, %v2223
    %v2225 = vpop.f32.mrf.mxu0
    %v2226 = vadd.f32 0.0, %v2225
    %v2227 = vpop.f32.mrf.mxu0
    %v2228 = vpop.f32.mrf.mxu0
    %2229 = vdwg.mxu0
    %2230 = vmatprep.subr.bf16.mxu0 %v1581
    %2231 = vmatpush1.bf16.msra.mxu0 %v1580
    %2232 = vmatprep.subr.bf16.mxu0 %v1572
    %2233 = vmatpush1.bf16.msra.mxu0 %v1571
    %2234 = vmatprep.subr.bf16.mxu0 %v1563
    %2235 = vmatpush1.bf16.msra.mxu0 %v1562
    %2236 = vmatprep.subr.bf16.mxu0 %v1554
    %2237 = vmatpush1.bf16.msra.mxu0 %v1553
    %2238 = vmatprep.subr.bf16.mxu0 %v1545
    %2239 = vmatpush1.bf16.msra.mxu0 %v1544
    %2240 = vmatprep.subr.bf16.mxu0 %v1536
    %2241 = vmatpush1.bf16.msra.mxu0 %v1535
    %2242 = vmatprep.subr.bf16.mxu0 %v1527
    %2243 = vmatpush1.bf16.msra.mxu0 %v1526
    %2244 = vmatprep.subr.bf16.mxu0 %v1518
    %2245 = vmatpush1.bf16.msra.mxu0 %v1517
    %2246 = vmatprep.subr.bf16.mxu0 %v1653
    %2247 = vmatpush2.bf16.msra.mxu0 %v1652
    %2248 = vmatprep.subr.bf16.mxu0 %v1644
    %2249 = vmatpush2.bf16.msra.mxu0 %v1643
    %2250 = vmatprep.subr.bf16.mxu0 %v1635
    %2251 = vmatpush2.bf16.msra.mxu0 %v1634
    %2252 = vmatprep.subr.bf16.mxu0 %v1626
    %2253 = vmatpush2.bf16.msra.mxu0 %v1625
    %2254 = vmatprep.subr.bf16.mxu0 %v1617
    %2255 = vmatpush2.bf16.msra.mxu0 %v1616
    %2256 = vmatprep.subr.bf16.mxu0 %v1608
    %2257 = vmatpush2.bf16.msra.mxu0 %v1607
    %2258 = vmatprep.subr.bf16.mxu0 %v1599
    %2259 = vmatpush2.bf16.msra.mxu0 %v1598
    %2260 = vmatprep.subr.bf16.mxu0 %v1590
    %2261 = vmatpush2.bf16.msra.mxu0 %v1589
    %2262 = vmatprep.mubr.bf16.mxu0 %v466
    %2263 = vmatmul.mubr.bf16.gmra.mxu0 %v465
    %v2264 = vpop.f32.mrf.mxu0
    %v2265 = vadd.f32 %v2224, %v2264
    %v2266 = vpop.f32.mrf.mxu0
    %v2267 = vadd.f32 %v2226, %v2266
    %v2268 = vpop.f32.mrf.mxu0
    %v2269 = vpop.f32.mrf.mxu0
    %2270 = vdwg.mxu0
    %2271 = vmatprep.subr.bf16.mxu0 0
    %2272 = vmatpush1.bf16.msra.mxu0 %v1438
    %2273 = vmatprep.subr.bf16.mxu0 0
    %2274 = vmatpush1.bf16.msra.mxu0 %v1429
    %2275 = vmatprep.subr.bf16.mxu0 0
    %2276 = vmatpush1.bf16.msra.mxu0 %v1420
    %2277 = vmatprep.subr.bf16.mxu0 0
    %2278 = vmatpush1.bf16.msra.mxu0 %v1411
    %2279 = vmatprep.subr.bf16.mxu0 0
    %2280 = vmatpush1.bf16.msra.mxu0 %v1402
    %2281 = vmatprep.subr.bf16.mxu0 0
    %2282 = vmatpush1.bf16.msra.mxu0 %v1393
    %2283 = vmatprep.subr.bf16.mxu0 0
    %2284 = vmatpush1.bf16.msra.mxu0 %v1384
    %2285 = vmatprep.subr.bf16.mxu0 0
    %2286 = vmatpush1.bf16.msra.mxu0 %v1375
    %2287 = vmatprep.subr.bf16.mxu0 0
    %2288 = vmatpush2.bf16.msra.mxu0 %v1510
    %2289 = vmatprep.subr.bf16.mxu0 0
    %2290 = vmatpush2.bf16.msra.mxu0 %v1501
    %2291 = vmatprep.subr.bf16.mxu0 0
    %2292 = vmatpush2.bf16.msra.mxu0 %v1492
    %2293 = vmatprep.subr.bf16.mxu0 0
    %2294 = vmatpush2.bf16.msra.mxu0 %v1483
    %2295 = vmatprep.subr.bf16.mxu0 0
    %2296 = vmatpush2.bf16.msra.mxu0 %v1474
    %2297 = vmatprep.subr.bf16.mxu0 0
    %2298 = vmatpush2.bf16.msra.mxu0 %v1465
    %2299 = vmatprep.subr.bf16.mxu0 0
    %2300 = vmatpush2.bf16.msra.mxu0 %v1456
    %2301 = vmatprep.subr.bf16.mxu0 0
    %2302 = vmatpush2.bf16.msra.mxu0 %v1447
    %2303 = vmatprep.mubr.bf16.mxu0 %v464
    %2304 = vmatmul.mubr.bf16.gmra.mxu0 %v457
    %v2305 = vpop.f32.mrf.mxu0
    %v2306 = vadd.f32 0.0, %v2305
    %v2307 = vpop.f32.mrf.mxu0
    %v2308 = vpop.f32.mrf.mxu0
    %v2309 = vpop.f32.mrf.mxu0
    %2310 = vdwg.mxu0
    %2311 = vmatprep.subr.bf16.mxu0 0
    %2312 = vmatpush1.bf16.msra.mxu0 %v1582
    %2313 = vmatprep.subr.bf16.mxu0 0
    %2314 = vmatpush1.bf16.msra.mxu0 %v1573
    %2315 = vmatprep.subr.bf16.mxu0 0
    %2316 = vmatpush1.bf16.msra.mxu0 %v1564
    %2317 = vmatprep.subr.bf16.mxu0 0
    %2318 = vmatpush1.bf16.msra.mxu0 %v1555
    %2319 = vmatprep.subr.bf16.mxu0 0
    %2320 = vmatpush1.bf16.msra.mxu0 %v1546
    %2321 = vmatprep.subr.bf16.mxu0 0
    %2322 = vmatpush1.bf16.msra.mxu0 %v1537
    %2323 = vmatprep.subr.bf16.mxu0 0
    %2324 = vmatpush1.bf16.msra.mxu0 %v1528
    %2325 = vmatprep.subr.bf16.mxu0 0
    %2326 = vmatpush1.bf16.msra.mxu0 %v1519
    %2327 = vmatprep.subr.bf16.mxu0 0
    %2328 = vmatpush2.bf16.msra.mxu0 %v1654
    %2329 = vmatprep.subr.bf16.mxu0 0
    %2330 = vmatpush2.bf16.msra.mxu0 %v1645
    %2331 = vmatprep.subr.bf16.mxu0 0
    %2332 = vmatpush2.bf16.msra.mxu0 %v1636
    %2333 = vmatprep.subr.bf16.mxu0 0
    %2334 = vmatpush2.bf16.msra.mxu0 %v1627
    %2335 = vmatprep.subr.bf16.mxu0 0
    %2336 = vmatpush2.bf16.msra.mxu0 %v1618
    %2337 = vmatprep.subr.bf16.mxu0 0
    %2338 = vmatpush2.bf16.msra.mxu0 %v1609
    %2339 = vmatprep.subr.bf16.mxu0 0
    %2340 = vmatpush2.bf16.msra.mxu0 %v1600
    %2341 = vmatprep.subr.bf16.mxu0 0
    %2342 = vmatpush2.bf16.msra.mxu0 %v1591
    %2343 = vmatprep.mubr.bf16.mxu0 %v466
    %2344 = vmatmul.mubr.bf16.gmra.mxu0 %v465
    %v2345 = vpop.f32.mrf.mxu0
    %v2346 = vadd.f32 %v2306, %v2345
    %v2347 = vpop.f32.mrf.mxu0
    %v2348 = vpop.f32.mrf.mxu0
    %v2349 = vpop.f32.mrf.mxu0
    %2350 = vdwg.mxu0
    %s2351 = scalar_lea.vmem [#allocation4], 2304
    %v2352 = vld [vmem:[%s2351] sm:$0xff]
    %v2353 = vld [vmem:[%s2351 + $0x8] sm:$0xff]
    %v2354 = vld [vmem:[%s2351 + $0x10] sm:$0xff]
    %v2355 = vld [vmem:[%s2351 + $0x18] sm:$0xff]
    %v2356 = vld [vmem:[%s2351 + $0x20] sm:$0xf]
    %v2357 = vld [vmem:[%s2351 + $0x24] sm:$0xff]
    %v2358 = vld [vmem:[%s2351 + $0x2c] sm:$0xff]
    %v2359 = vld [vmem:[%s2351 + $0x34] sm:$0xff]
    %v2360 = vld [vmem:[%s2351 + $0x3c] sm:$0xff]
    %v2361 = vld [vmem:[%s2351 + $0x44] sm:$0xf]
    %v2362 = vld [vmem:[%s2351 + $0x48] sm:$0xff]
    %v2363 = vld [vmem:[%s2351 + $0x50] sm:$0xff]
    %v2364 = vld [vmem:[%s2351 + $0x58] sm:$0xff]
    %v2365 = vld [vmem:[%s2351 + $0x60] sm:$0xff]
    %v2366 = vld [vmem:[%s2351 + $0x68] sm:$0xf]
    %v2367 = vld [vmem:[%s2351 + $0x6c] sm:$0xff]
    %v2368 = vld [vmem:[%s2351 + $0x74] sm:$0xff]
    %v2369 = vld [vmem:[%s2351 + $0x7c] sm:$0xff]
    %v2370 = vld [vmem:[%s2351 + $0x84] sm:$0xff]
    %v2371 = vld [vmem:[%s2351 + $0x8c] sm:$0xf]
    %v2372 = vld [vmem:[%s2351 + $0x90] sm:$0xff]
    %v2373 = vld [vmem:[%s2351 + $0x98] sm:$0xff]
    %v2374 = vld [vmem:[%s2351 + $0xa0] sm:$0xff]
    %v2375 = vld [vmem:[%s2351 + $0xa8] sm:$0xff]
    %v2376 = vld [vmem:[%s2351 + $0xb0] sm:$0xf]
    %v2377 = vld [vmem:[%s2351 + $0xb4] sm:$0xff]
    %v2378 = vld [vmem:[%s2351 + $0xbc] sm:$0xff]
    %v2379 = vld [vmem:[%s2351 + $0xc4] sm:$0xff]
    %v2380 = vld [vmem:[%s2351 + $0xcc] sm:$0xff]
    %v2381 = vld [vmem:[%s2351 + $0xd4] sm:$0xf]
    %v2382 = vld [vmem:[%s2351 + $0xd8] sm:$0xff]
    %v2383 = vld [vmem:[%s2351 + $0xe0] sm:$0xff]
    %v2384 = vld [vmem:[%s2351 + $0xe8] sm:$0xff]
    %v2385 = vld [vmem:[%s2351 + $0xf0] sm:$0xff]
    %v2386 = vld [vmem:[%s2351 + $0xf8] sm:$0xf]
    %v2387 = vld [vmem:[%s2351 + $0xfc] sm:$0xff]
    %v2388 = vld [vmem:[%s2351 + $0x104] sm:$0xff]
    %v2389 = vld [vmem:[%s2351 + $0x10c] sm:$0xff]
    %v2390 = vld [vmem:[%s2351 + $0x114] sm:$0xff]
    %v2391 = vld [vmem:[%s2351 + $0x11c] sm:$0xf]
    %v2392 = vld [vmem:[%s2351 + $0x120] sm:$0xff]
    %v2393 = vld [vmem:[%s2351 + $0x128] sm:$0xff]
    %v2394 = vld [vmem:[%s2351 + $0x130] sm:$0xff]
    %v2395 = vld [vmem:[%s2351 + $0x138] sm:$0xff]
    %v2396 = vld [vmem:[%s2351 + $0x140] sm:$0xf]
    %v2397 = vld [vmem:[%s2351 + $0x144] sm:$0xff]
    %v2398 = vld [vmem:[%s2351 + $0x14c] sm:$0xff]
    %v2399 = vld [vmem:[%s2351 + $0x154] sm:$0xff]
    %v2400 = vld [vmem:[%s2351 + $0x15c] sm:$0xff]
    %v2401 = vld [vmem:[%s2351 + $0x164] sm:$0xf]
    %v2402 = vld [vmem:[%s2351 + $0x168] sm:$0xff]
    %v2403 = vld [vmem:[%s2351 + $0x170] sm:$0xff]
    %v2404 = vld [vmem:[%s2351 + $0x178] sm:$0xff]
    %v2405 = vld [vmem:[%s2351 + $0x180] sm:$0xff]
    %v2406 = vld [vmem:[%s2351 + $0x188] sm:$0xf]
    %v2407 = vld [vmem:[%s2351 + $0x18c] sm:$0xff]
    %v2408 = vld [vmem:[%s2351 + $0x194] sm:$0xff]
    %v2409 = vld [vmem:[%s2351 + $0x19c] sm:$0xff]
    %v2410 = vld [vmem:[%s2351 + $0x1a4] sm:$0xff]
    %v2411 = vld [vmem:[%s2351 + $0x1ac] sm:$0xf]
    %v2412 = vld [vmem:[%s2351 + $0x1b0] sm:$0xff]
    %v2413 = vld [vmem:[%s2351 + $0x1b8] sm:$0xff]
    %v2414 = vld [vmem:[%s2351 + $0x1c0] sm:$0xff]
    %v2415 = vld [vmem:[%s2351 + $0x1c8] sm:$0xff]
    %v2416 = vld [vmem:[%s2351 + $0x1d0] sm:$0xf]
    %v2417 = vld [vmem:[%s2351 + $0x1d4] sm:$0xff]
    %v2418 = vld [vmem:[%s2351 + $0x1dc] sm:$0xff]
    %v2419 = vld [vmem:[%s2351 + $0x1e4] sm:$0xff]
    %v2420 = vld [vmem:[%s2351 + $0x1ec] sm:$0xff]
    %v2421 = vld [vmem:[%s2351 + $0x1f4] sm:$0xf]
    %v2422 = vld [vmem:[%s2351 + $0x1f8] sm:$0xff]
    %v2423 = vld [vmem:[%s2351 + $0x200] sm:$0xff]
    %v2424 = vld [vmem:[%s2351 + $0x208] sm:$0xff]
    %v2425 = vld [vmem:[%s2351 + $0x210] sm:$0xff]
    %v2426 = vld [vmem:[%s2351 + $0x218] sm:$0xf]
    %v2427 = vld [vmem:[%s2351 + $0x21c] sm:$0xff]
    %v2428 = vld [vmem:[%s2351 + $0x224] sm:$0xff]
    %v2429 = vld [vmem:[%s2351 + $0x22c] sm:$0xff]
    %v2430 = vld [vmem:[%s2351 + $0x234] sm:$0xff]
    %v2431 = vld [vmem:[%s2351 + $0x23c] sm:$0xf]
    %v2432 = vld [vmem:[%s2351 + $0x240] sm:$0xff]
    %v2433 = vld [vmem:[%s2351 + $0x248] sm:$0xff]
    %v2434 = vld [vmem:[%s2351 + $0x250] sm:$0xff]
    %v2435 = vld [vmem:[%s2351 + $0x258] sm:$0xff]
    %v2436 = vld [vmem:[%s2351 + $0x260] sm:$0xf]
    %v2437 = vld [vmem:[%s2351 + $0x264] sm:$0xff]
    %v2438 = vld [vmem:[%s2351 + $0x26c] sm:$0xff]
    %v2439 = vld [vmem:[%s2351 + $0x274] sm:$0xff]
    %v2440 = vld [vmem:[%s2351 + $0x27c] sm:$0xff]
    %v2441 = vld [vmem:[%s2351 + $0x284] sm:$0xf]
    %v2442 = vld [vmem:[%s2351 + $0x288] sm:$0xff]
    %v2443 = vld [vmem:[%s2351 + $0x290] sm:$0xff]
    %v2444 = vld [vmem:[%s2351 + $0x298] sm:$0xff]
    %v2445 = vld [vmem:[%s2351 + $0x2a0] sm:$0xff]
    %v2446 = vld [vmem:[%s2351 + $0x2a8] sm:$0xf]
    %v2447 = vld [vmem:[%s2351 + $0x2ac] sm:$0xff]
    %v2448 = vld [vmem:[%s2351 + $0x2b4] sm:$0xff]
    %v2449 = vld [vmem:[%s2351 + $0x2bc] sm:$0xff]
    %v2450 = vld [vmem:[%s2351 + $0x2c4] sm:$0xff]
    %v2451 = vld [vmem:[%s2351 + $0x2cc] sm:$0xf]
    %v2452 = vld [vmem:[%s2351 + $0x2d0] sm:$0xff]
    %v2453 = vld [vmem:[%s2351 + $0x2d8] sm:$0xff]
    %v2454 = vld [vmem:[%s2351 + $0x2e0] sm:$0xff]
    %v2455 = vld [vmem:[%s2351 + $0x2e8] sm:$0xff]
    %v2456 = vld [vmem:[%s2351 + $0x2f0] sm:$0xf]
    %v2457 = vld [vmem:[%s2351 + $0x2f4] sm:$0xff]
    %v2458 = vld [vmem:[%s2351 + $0x2fc] sm:$0xff]
    %v2459 = vld [vmem:[%s2351 + $0x304] sm:$0xff]
    %v2460 = vld [vmem:[%s2351 + $0x30c] sm:$0xff]
    %v2461 = vld [vmem:[%s2351 + $0x314] sm:$0xf]
    %v2462 = vld [vmem:[%s2351 + $0x318] sm:$0xff]
    %v2463 = vld [vmem:[%s2351 + $0x320] sm:$0xff]
    %v2464 = vld [vmem:[%s2351 + $0x328] sm:$0xff]
    %v2465 = vld [vmem:[%s2351 + $0x330] sm:$0xff]
    %v2466 = vld [vmem:[%s2351 + $0x338] sm:$0xf]
    %v2467 = vld [vmem:[%s2351 + $0x33c] sm:$0xff]
    %v2468 = vld [vmem:[%s2351 + $0x344] sm:$0xff]
    %v2469 = vld [vmem:[%s2351 + $0x34c] sm:$0xff]
    %v2470 = vld [vmem:[%s2351 + $0x354] sm:$0xff]
    %v2471 = vld [vmem:[%s2351 + $0x35c] sm:$0xf]
    %v2472 = vld [vmem:[%s2351 + $0x360] sm:$0xff]
    %v2473 = vld [vmem:[%s2351 + $0x368] sm:$0xff]
    %v2474 = vld [vmem:[%s2351 + $0x370] sm:$0xff]
    %v2475 = vld [vmem:[%s2351 + $0x378] sm:$0xff]
    %v2476 = vld [vmem:[%s2351 + $0x380] sm:$0xf]
    %v2477 = vld [vmem:[%s2351 + $0x384] sm:$0xff]
    %v2478 = vld [vmem:[%s2351 + $0x38c] sm:$0xff]
    %v2479 = vld [vmem:[%s2351 + $0x394] sm:$0xff]
    %v2480 = vld [vmem:[%s2351 + $0x39c] sm:$0xff]
    %v2481 = vld [vmem:[%s2351 + $0x3a4] sm:$0xf]
    %v2482 = vld [vmem:[%s2351 + $0x3a8] sm:$0xff]
    %v2483 = vld [vmem:[%s2351 + $0x3b0] sm:$0xff]
    %v2484 = vld [vmem:[%s2351 + $0x3b8] sm:$0xff]
    %v2485 = vld [vmem:[%s2351 + $0x3c0] sm:$0xff]
    %v2486 = vld [vmem:[%s2351 + $0x3c8] sm:$0xf]
    %v2487 = vld [vmem:[%s2351 + $0x3cc] sm:$0xff]
    %v2488 = vld [vmem:[%s2351 + $0x3d4] sm:$0xff]
    %v2489 = vld [vmem:[%s2351 + $0x3dc] sm:$0xff]
    %v2490 = vld [vmem:[%s2351 + $0x3e4] sm:$0xff]
    %v2491 = vld [vmem:[%s2351 + $0x3ec] sm:$0xf]
    %v2492 = vld [vmem:[%s2351 + $0x3f0] sm:$0xff]
    %v2493 = vld [vmem:[%s2351 + $0x3f8] sm:$0xff]
    %v2494 = vld [vmem:[%s2351 + $0x400] sm:$0xff]
    %v2495 = vld [vmem:[%s2351 + $0x408] sm:$0xff]
    %v2496 = vld [vmem:[%s2351 + $0x410] sm:$0xf]
    %v2497 = vld [vmem:[%s2351 + $0x414] sm:$0xff]
    %v2498 = vld [vmem:[%s2351 + $0x41c] sm:$0xff]
    %v2499 = vld [vmem:[%s2351 + $0x424] sm:$0xff]
    %v2500 = vld [vmem:[%s2351 + $0x42c] sm:$0xff]
    %v2501 = vld [vmem:[%s2351 + $0x434] sm:$0xf]
    %v2502 = vld [vmem:[%s2351 + $0x438] sm:$0xff]
    %v2503 = vld [vmem:[%s2351 + $0x440] sm:$0xff]
    %v2504 = vld [vmem:[%s2351 + $0x448] sm:$0xff]
    %v2505 = vld [vmem:[%s2351 + $0x450] sm:$0xff]
    %v2506 = vld [vmem:[%s2351 + $0x458] sm:$0xf]
    %v2507 = vld [vmem:[%s2351 + $0x45c] sm:$0xff]
    %v2508 = vld [vmem:[%s2351 + $0x464] sm:$0xff]
    %v2509 = vld [vmem:[%s2351 + $0x46c] sm:$0xff]
    %v2510 = vld [vmem:[%s2351 + $0x474] sm:$0xff]
    %v2511 = vld [vmem:[%s2351 + $0x47c] sm:$0xf]
    %v2512 = vld [vmem:[%s2351 + $0x480] sm:$0xff]
    %v2513 = vld [vmem:[%s2351 + $0x488] sm:$0xff]
    %v2514 = vld [vmem:[%s2351 + $0x490] sm:$0xff]
    %v2515 = vld [vmem:[%s2351 + $0x498] sm:$0xff]
    %v2516 = vld [vmem:[%s2351 + $0x4a0] sm:$0xf]
    %v2517 = vld [vmem:[%s2351 + $0x4a4] sm:$0xff]
    %v2518 = vld [vmem:[%s2351 + $0x4ac] sm:$0xff]
    %v2519 = vld [vmem:[%s2351 + $0x4b4] sm:$0xff]
    %v2520 = vld [vmem:[%s2351 + $0x4bc] sm:$0xff]
    %v2521 = vld [vmem:[%s2351 + $0x4c4] sm:$0xf]
    %v2522 = vld [vmem:[%s2351 + $0x4c8] sm:$0xff]
    %v2523 = vld [vmem:[%s2351 + $0x4d0] sm:$0xff]
    %v2524 = vld [vmem:[%s2351 + $0x4d8] sm:$0xff]
    %v2525 = vld [vmem:[%s2351 + $0x4e0] sm:$0xff]
    %v2526 = vld [vmem:[%s2351 + $0x4e8] sm:$0xf]
    %v2527 = vld [vmem:[%s2351 + $0x4ec] sm:$0xff]
    %v2528 = vld [vmem:[%s2351 + $0x4f4] sm:$0xff]
    %v2529 = vld [vmem:[%s2351 + $0x4fc] sm:$0xff]
    %v2530 = vld [vmem:[%s2351 + $0x504] sm:$0xff]
    %v2531 = vld [vmem:[%s2351 + $0x50c] sm:$0xf]
    %v2532 = vld [vmem:[%s2351 + $0x510] sm:$0xff]
    %v2533 = vld [vmem:[%s2351 + $0x518] sm:$0xff]
    %v2534 = vld [vmem:[%s2351 + $0x520] sm:$0xff]
    %v2535 = vld [vmem:[%s2351 + $0x528] sm:$0xff]
    %v2536 = vld [vmem:[%s2351 + $0x530] sm:$0xf]
    %v2537 = vld [vmem:[%s2351 + $0x534] sm:$0xff]
    %v2538 = vld [vmem:[%s2351 + $0x53c] sm:$0xff]
    %v2539 = vld [vmem:[%s2351 + $0x544] sm:$0xff]
    %v2540 = vld [vmem:[%s2351 + $0x54c] sm:$0xff]
    %v2541 = vld [vmem:[%s2351 + $0x554] sm:$0xf]
    %v2542 = vld [vmem:[%s2351 + $0x558] sm:$0xff]
    %v2543 = vld [vmem:[%s2351 + $0x560] sm:$0xff]
    %v2544 = vld [vmem:[%s2351 + $0x568] sm:$0xff]
    %v2545 = vld [vmem:[%s2351 + $0x570] sm:$0xff]
    %v2546 = vld [vmem:[%s2351 + $0x578] sm:$0xf]
    %v2547 = vld [vmem:[%s2351 + $0x57c] sm:$0xff]
    %v2548 = vld [vmem:[%s2351 + $0x584] sm:$0xff]
    %v2549 = vld [vmem:[%s2351 + $0x58c] sm:$0xff]
    %v2550 = vld [vmem:[%s2351 + $0x594] sm:$0xff]
    %v2551 = vld [vmem:[%s2351 + $0x59c] sm:$0xf]
    %v2552 = vld [vmem:[%s2351 + $0x5a0] sm:$0xff]
    %v2553 = vld [vmem:[%s2351 + $0x5a8] sm:$0xff]
    %v2554 = vld [vmem:[%s2351 + $0x5b0] sm:$0xff]
    %v2555 = vld [vmem:[%s2351 + $0x5b8] sm:$0xff]
    %v2556 = vld [vmem:[%s2351 + $0x5c0] sm:$0xf]
    %v2557 = vld [vmem:[%s2351 + $0x5c4] sm:$0xff]
    %v2558 = vld [vmem:[%s2351 + $0x5cc] sm:$0xff]
    %v2559 = vld [vmem:[%s2351 + $0x5d4] sm:$0xff]
    %v2560 = vld [vmem:[%s2351 + $0x5dc] sm:$0xff]
    %v2561 = vld [vmem:[%s2351 + $0x5e4] sm:$0xf]
    %v2562 = vld [vmem:[%s2351 + $0x5e8] sm:$0xff]
    %v2563 = vld [vmem:[%s2351 + $0x5f0] sm:$0xff]
    %v2564 = vld [vmem:[%s2351 + $0x5f8] sm:$0xff]
    %v2565 = vld [vmem:[%s2351 + $0x600] sm:$0xff]
    %v2566 = vld [vmem:[%s2351 + $0x608] sm:$0xf]
    %v2567 = vld [vmem:[%s2351 + $0x60c] sm:$0xff]
    %v2568 = vld [vmem:[%s2351 + $0x614] sm:$0xff]
    %v2569 = vld [vmem:[%s2351 + $0x61c] sm:$0xff]
    %v2570 = vld [vmem:[%s2351 + $0x624] sm:$0xff]
    %v2571 = vld [vmem:[%s2351 + $0x62c] sm:$0xf]
    %v2572 = vld [vmem:[%s2351 + $0x630] sm:$0xff]
    %v2573 = vld [vmem:[%s2351 + $0x638] sm:$0xff]
    %v2574 = vld [vmem:[%s2351 + $0x640] sm:$0xff]
    %v2575 = vld [vmem:[%s2351 + $0x648] sm:$0xff]
    %v2576 = vld [vmem:[%s2351 + $0x650] sm:$0xf]
    %v2577 = vld [vmem:[%s2351 + $0x654] sm:$0xff]
    %v2578 = vld [vmem:[%s2351 + $0x65c] sm:$0xff]
    %v2579 = vld [vmem:[%s2351 + $0x664] sm:$0xff]
    %v2580 = vld [vmem:[%s2351 + $0x66c] sm:$0xff]
    %v2581 = vld [vmem:[%s2351 + $0x674] sm:$0xf]
    %v2582 = vld [vmem:[%s2351 + $0x678] sm:$0xff]
    %v2583 = vld [vmem:[%s2351 + $0x680] sm:$0xff]
    %v2584 = vld [vmem:[%s2351 + $0x688] sm:$0xff]
    %v2585 = vld [vmem:[%s2351 + $0x690] sm:$0xff]
    %v2586 = vld [vmem:[%s2351 + $0x698] sm:$0xf]
    %v2587 = vld [vmem:[%s2351 + $0x69c] sm:$0xff]
    %v2588 = vld [vmem:[%s2351 + $0x6a4] sm:$0xff]
    %v2589 = vld [vmem:[%s2351 + $0x6ac] sm:$0xff]
    %v2590 = vld [vmem:[%s2351 + $0x6b4] sm:$0xff]
    %v2591 = vld [vmem:[%s2351 + $0x6bc] sm:$0xf]
    %v2592 = vld [vmem:[%s2351 + $0x6c0] sm:$0xff]
    %v2593 = vld [vmem:[%s2351 + $0x6c8] sm:$0xff]
    %v2594 = vld [vmem:[%s2351 + $0x6d0] sm:$0xff]
    %v2595 = vld [vmem:[%s2351 + $0x6d8] sm:$0xff]
    %v2596 = vld [vmem:[%s2351 + $0x6e0] sm:$0xf]
    %v2597 = vld [vmem:[%s2351 + $0x6e4] sm:$0xff]
    %v2598 = vld [vmem:[%s2351 + $0x6ec] sm:$0xff]
    %v2599 = vld [vmem:[%s2351 + $0x6f4] sm:$0xff]
    %v2600 = vld [vmem:[%s2351 + $0x6fc] sm:$0xff]
    %v2601 = vld [vmem:[%s2351 + $0x704] sm:$0xf]
    %v2602 = vld [vmem:[%s2351 + $0x708] sm:$0xff]
    %v2603 = vld [vmem:[%s2351 + $0x710] sm:$0xff]
    %v2604 = vld [vmem:[%s2351 + $0x718] sm:$0xff]
    %v2605 = vld [vmem:[%s2351 + $0x720] sm:$0xff]
    %v2606 = vld [vmem:[%s2351 + $0x728] sm:$0xf]
    %v2607 = vld [vmem:[%s2351 + $0x72c] sm:$0xff]
    %v2608 = vld [vmem:[%s2351 + $0x734] sm:$0xff]
    %v2609 = vld [vmem:[%s2351 + $0x73c] sm:$0xff]
    %v2610 = vld [vmem:[%s2351 + $0x744] sm:$0xff]
    %v2611 = vld [vmem:[%s2351 + $0x74c] sm:$0xf]
    %v2612 = vld [vmem:[%s2351 + $0x750] sm:$0xff]
    %v2613 = vld [vmem:[%s2351 + $0x758] sm:$0xff]
    %v2614 = vld [vmem:[%s2351 + $0x760] sm:$0xff]
    %v2615 = vld [vmem:[%s2351 + $0x768] sm:$0xff]
    %v2616 = vld [vmem:[%s2351 + $0x770] sm:$0xf]
    %v2617 = vld [vmem:[%s2351 + $0x774] sm:$0xff]
    %v2618 = vld [vmem:[%s2351 + $0x77c] sm:$0xff]
    %v2619 = vld [vmem:[%s2351 + $0x784] sm:$0xff]
    %v2620 = vld [vmem:[%s2351 + $0x78c] sm:$0xff]
    %v2621 = vld [vmem:[%s2351 + $0x794] sm:$0xf]
    %v2622 = vld [vmem:[%s2351 + $0x798] sm:$0xff]
    %v2623 = vld [vmem:[%s2351 + $0x7a0] sm:$0xff]
    %v2624 = vld [vmem:[%s2351 + $0x7a8] sm:$0xff]
    %v2625 = vld [vmem:[%s2351 + $0x7b0] sm:$0xff]
    %v2626 = vld [vmem:[%s2351 + $0x7b8] sm:$0xf]
    %v2627 = vld [vmem:[%s2351 + $0x7bc] sm:$0xff]
    %v2628 = vld [vmem:[%s2351 + $0x7c4] sm:$0xff]
    %v2629 = vld [vmem:[%s2351 + $0x7cc] sm:$0xff]
    %v2630 = vld [vmem:[%s2351 + $0x7d4] sm:$0xff]
    %v2631 = vld [vmem:[%s2351 + $0x7dc] sm:$0xf]
    %v2632 = vld [vmem:[%s2351 + $0x7e0] sm:$0xff]
    %v2633 = vld [vmem:[%s2351 + $0x7e8] sm:$0xff]
    %v2634 = vld [vmem:[%s2351 + $0x7f0] sm:$0xff]
    %v2635 = vld [vmem:[%s2351 + $0x7f8] sm:$0xff]
    %v2636 = vld [vmem:[%s2351 + $0x800] sm:$0xf]
    %v2637 = vld [vmem:[%s2351 + $0x804] sm:$0xff]
    %v2638 = vld [vmem:[%s2351 + $0x80c] sm:$0xff]
    %v2639 = vld [vmem:[%s2351 + $0x814] sm:$0xff]
    %v2640 = vld [vmem:[%s2351 + $0x81c] sm:$0xff]
    %v2641 = vld [vmem:[%s2351 + $0x824] sm:$0xf]
    %v2642 = vld [vmem:[%s2351 + $0x828] sm:$0xff]
    %v2643 = vld [vmem:[%s2351 + $0x830] sm:$0xff]
    %v2644 = vld [vmem:[%s2351 + $0x838] sm:$0xff]
    %v2645 = vld [vmem:[%s2351 + $0x840] sm:$0xff]
    %v2646 = vld [vmem:[%s2351 + $0x848] sm:$0xf]
    %v2647 = vld [vmem:[%s2351 + $0x84c] sm:$0xff]
    %v2648 = vld [vmem:[%s2351 + $0x854] sm:$0xff]
    %v2649 = vld [vmem:[%s2351 + $0x85c] sm:$0xff]
    %v2650 = vld [vmem:[%s2351 + $0x864] sm:$0xff]
    %v2651 = vld [vmem:[%s2351 + $0x86c] sm:$0xf]
    %v2652 = vld [vmem:[%s2351 + $0x870] sm:$0xff]
    %v2653 = vld [vmem:[%s2351 + $0x878] sm:$0xff]
    %v2654 = vld [vmem:[%s2351 + $0x880] sm:$0xff]
    %v2655 = vld [vmem:[%s2351 + $0x888] sm:$0xff]
    %v2656 = vld [vmem:[%s2351 + $0x890] sm:$0xf]
    %v2657 = vld [vmem:[%s2351 + $0x894] sm:$0xff]
    %v2658 = vld [vmem:[%s2351 + $0x89c] sm:$0xff]
    %v2659 = vld [vmem:[%s2351 + $0x8a4] sm:$0xff]
    %v2660 = vld [vmem:[%s2351 + $0x8ac] sm:$0xff]
    %v2661 = vld [vmem:[%s2351 + $0x8b4] sm:$0xf]
    %v2662 = vld [vmem:[%s2351 + $0x8b8] sm:$0xff]
    %v2663 = vld [vmem:[%s2351 + $0x8c0] sm:$0xff]
    %v2664 = vld [vmem:[%s2351 + $0x8c8] sm:$0xff]
    %v2665 = vld [vmem:[%s2351 + $0x8d0] sm:$0xff]
    %v2666 = vld [vmem:[%s2351 + $0x8d8] sm:$0xf]
    %v2667 = vld [vmem:[%s2351 + $0x8dc] sm:$0xff]
    %v2668 = vld [vmem:[%s2351 + $0x8e4] sm:$0xff]
    %v2669 = vld [vmem:[%s2351 + $0x8ec] sm:$0xff]
    %v2670 = vld [vmem:[%s2351 + $0x8f4] sm:$0xff]
    %v2671 = vld [vmem:[%s2351 + $0x8fc] sm:$0xf]
    %v2992 = vunpack.c.l.b16 %v2352
    %v2993 = vunpack.c.h.b16 %v2352
    %v2994 = vunpack.c.l.b16 %v2353
    %v2995 = vunpack.c.h.b16 %v2353
    %v2996 = vunpack.c.l.b16 %v2354
    %v2997 = vunpack.c.h.b16 %v2354
    %v2998 = vunpack.c.l.b16 %v2355
    %v2999 = vunpack.c.h.b16 %v2355
    %v3000 = vunpack.c.l.b16 %v2356
    %v3001 = vunpack.c.l.b16 %v2357
    %v3002 = vunpack.c.h.b16 %v2357
    %v3003 = vunpack.c.l.b16 %v2358
    %v3004 = vunpack.c.h.b16 %v2358
    %v3005 = vunpack.c.l.b16 %v2359
    %v3006 = vunpack.c.h.b16 %v2359
    %v3007 = vunpack.c.l.b16 %v2360
    %v3008 = vunpack.c.h.b16 %v2360
    %v3009 = vunpack.c.l.b16 %v2361
    %v3010 = vunpack.c.l.b16 %v2362
    %v3011 = vunpack.c.h.b16 %v2362
    %v3012 = vunpack.c.l.b16 %v2363
    %v3013 = vunpack.c.h.b16 %v2363
    %v3014 = vunpack.c.l.b16 %v2364
    %v3015 = vunpack.c.h.b16 %v2364
    %v3016 = vunpack.c.l.b16 %v2365
    %v3017 = vunpack.c.h.b16 %v2365
    %v3018 = vunpack.c.l.b16 %v2366
    %v3019 = vunpack.c.l.b16 %v2367
    %v3020 = vunpack.c.h.b16 %v2367
    %v3021 = vunpack.c.l.b16 %v2368
    %v3022 = vunpack.c.h.b16 %v2368
    %v3023 = vunpack.c.l.b16 %v2369
    %v3024 = vunpack.c.h.b16 %v2369
    %v3025 = vunpack.c.l.b16 %v2370
    %v3026 = vunpack.c.h.b16 %v2370
    %v3027 = vunpack.c.l.b16 %v2371
    %v3028 = vunpack.c.l.b16 %v2372
    %v3029 = vunpack.c.h.b16 %v2372
    %v3030 = vunpack.c.l.b16 %v2373
    %v3031 = vunpack.c.h.b16 %v2373
    %v3032 = vunpack.c.l.b16 %v2374
    %v3033 = vunpack.c.h.b16 %v2374
    %v3034 = vunpack.c.l.b16 %v2375
    %v3035 = vunpack.c.h.b16 %v2375
    %v3036 = vunpack.c.l.b16 %v2376
    %v3037 = vunpack.c.l.b16 %v2377
    %v3038 = vunpack.c.h.b16 %v2377
    %v3039 = vunpack.c.l.b16 %v2378
    %v3040 = vunpack.c.h.b16 %v2378
    %v3041 = vunpack.c.l.b16 %v2379
    %v3042 = vunpack.c.h.b16 %v2379
    %v3043 = vunpack.c.l.b16 %v2380
    %v3044 = vunpack.c.h.b16 %v2380
    %v3045 = vunpack.c.l.b16 %v2381
    %v3046 = vunpack.c.l.b16 %v2382
    %v3047 = vunpack.c.h.b16 %v2382
    %v3048 = vunpack.c.l.b16 %v2383
    %v3049 = vunpack.c.h.b16 %v2383
    %v3050 = vunpack.c.l.b16 %v2384
    %v3051 = vunpack.c.h.b16 %v2384
    %v3052 = vunpack.c.l.b16 %v2385
    %v3053 = vunpack.c.h.b16 %v2385
    %v3054 = vunpack.c.l.b16 %v2386
    %v3055 = vunpack.c.l.b16 %v2387
    %v3056 = vunpack.c.h.b16 %v2387
    %v3057 = vunpack.c.l.b16 %v2388
    %v3058 = vunpack.c.h.b16 %v2388
    %v3059 = vunpack.c.l.b16 %v2389
    %v3060 = vunpack.c.h.b16 %v2389
    %v3061 = vunpack.c.l.b16 %v2390
    %v3062 = vunpack.c.h.b16 %v2390
    %v3063 = vunpack.c.l.b16 %v2391
    %v3064 = vunpack.c.l.b16 %v2392
    %v3065 = vunpack.c.h.b16 %v2392
    %v3066 = vunpack.c.l.b16 %v2393
    %v3067 = vunpack.c.h.b16 %v2393
    %v3068 = vunpack.c.l.b16 %v2394
    %v3069 = vunpack.c.h.b16 %v2394
    %v3070 = vunpack.c.l.b16 %v2395
    %v3071 = vunpack.c.h.b16 %v2395
    %v3072 = vunpack.c.l.b16 %v2396
    %v3073 = vunpack.c.l.b16 %v2397
    %v3074 = vunpack.c.h.b16 %v2397
    %v3075 = vunpack.c.l.b16 %v2398
    %v3076 = vunpack.c.h.b16 %v2398
    %v3077 = vunpack.c.l.b16 %v2399
    %v3078 = vunpack.c.h.b16 %v2399
    %v3079 = vunpack.c.l.b16 %v2400
    %v3080 = vunpack.c.h.b16 %v2400
    %v3081 = vunpack.c.l.b16 %v2401
    %v3082 = vunpack.c.l.b16 %v2402
    %v3083 = vunpack.c.h.b16 %v2402
    %v3084 = vunpack.c.l.b16 %v2403
    %v3085 = vunpack.c.h.b16 %v2403
    %v3086 = vunpack.c.l.b16 %v2404
    %v3087 = vunpack.c.h.b16 %v2404
    %v3088 = vunpack.c.l.b16 %v2405
    %v3089 = vunpack.c.h.b16 %v2405
    %v3090 = vunpack.c.l.b16 %v2406
    %v3091 = vunpack.c.l.b16 %v2407
    %v3092 = vunpack.c.h.b16 %v2407
    %v3093 = vunpack.c.l.b16 %v2408
    %v3094 = vunpack.c.h.b16 %v2408
    %v3095 = vunpack.c.l.b16 %v2409
    %v3096 = vunpack.c.h.b16 %v2409
    %v3097 = vunpack.c.l.b16 %v2410
    %v3098 = vunpack.c.h.b16 %v2410
    %v3099 = vunpack.c.l.b16 %v2411
    %v3100 = vunpack.c.l.b16 %v2412
    %v3101 = vunpack.c.h.b16 %v2412
    %v3102 = vunpack.c.l.b16 %v2413
    %v3103 = vunpack.c.h.b16 %v2413
    %v3104 = vunpack.c.l.b16 %v2414
    %v3105 = vunpack.c.h.b16 %v2414
    %v3106 = vunpack.c.l.b16 %v2415
    %v3107 = vunpack.c.h.b16 %v2415
    %v3108 = vunpack.c.l.b16 %v2416
    %v3109 = vunpack.c.l.b16 %v2417
    %v3110 = vunpack.c.h.b16 %v2417
    %v3111 = vunpack.c.l.b16 %v2418
    %v3112 = vunpack.c.h.b16 %v2418
    %v3113 = vunpack.c.l.b16 %v2419
    %v3114 = vunpack.c.h.b16 %v2419
    %v3115 = vunpack.c.l.b16 %v2420
    %v3116 = vunpack.c.h.b16 %v2420
    %v3117 = vunpack.c.l.b16 %v2421
    %v3118 = vunpack.c.l.b16 %v2422
    %v3119 = vunpack.c.h.b16 %v2422
    %v3120 = vunpack.c.l.b16 %v2423
    %v3121 = vunpack.c.h.b16 %v2423
    %v3122 = vunpack.c.l.b16 %v2424
    %v3123 = vunpack.c.h.b16 %v2424
    %v3124 = vunpack.c.l.b16 %v2425
    %v3125 = vunpack.c.h.b16 %v2425
    %v3126 = vunpack.c.l.b16 %v2426
    %v3127 = vunpack.c.l.b16 %v2427
    %v3128 = vunpack.c.h.b16 %v2427
    %v3129 = vunpack.c.l.b16 %v2428
    %v3130 = vunpack.c.h.b16 %v2428
    %v3131 = vunpack.c.l.b16 %v2429
    %v3132 = vunpack.c.h.b16 %v2429
    %v3133 = vunpack.c.l.b16 %v2430
    %v3134 = vunpack.c.h.b16 %v2430
    %v3135 = vunpack.c.l.b16 %v2431
    %v3136 = vunpack.c.l.b16 %v2432
    %v3137 = vunpack.c.h.b16 %v2432
    %v3138 = vunpack.c.l.b16 %v2433
    %v3139 = vunpack.c.h.b16 %v2433
    %v3140 = vunpack.c.l.b16 %v2434
    %v3141 = vunpack.c.h.b16 %v2434
    %v3142 = vunpack.c.l.b16 %v2435
    %v3143 = vunpack.c.h.b16 %v2435
    %v3144 = vunpack.c.l.b16 %v2436
    %v3145 = vunpack.c.l.b16 %v2437
    %v3146 = vunpack.c.h.b16 %v2437
    %v3147 = vunpack.c.l.b16 %v2438
    %v3148 = vunpack.c.h.b16 %v2438
    %v3149 = vunpack.c.l.b16 %v2439
    %v3150 = vunpack.c.h.b16 %v2439
    %v3151 = vunpack.c.l.b16 %v2440
    %v3152 = vunpack.c.h.b16 %v2440
    %v3153 = vunpack.c.l.b16 %v2441
    %v3154 = vunpack.c.l.b16 %v2442
    %v3155 = vunpack.c.h.b16 %v2442
    %v3156 = vunpack.c.l.b16 %v2443
    %v3157 = vunpack.c.h.b16 %v2443
    %v3158 = vunpack.c.l.b16 %v2444
    %v3159 = vunpack.c.h.b16 %v2444
    %v3160 = vunpack.c.l.b16 %v2445
    %v3161 = vunpack.c.h.b16 %v2445
    %v3162 = vunpack.c.l.b16 %v2446
    %v3163 = vunpack.c.l.b16 %v2447
    %v3164 = vunpack.c.h.b16 %v2447
    %v3165 = vunpack.c.l.b16 %v2448
    %v3166 = vunpack.c.h.b16 %v2448
    %v3167 = vunpack.c.l.b16 %v2449
    %v3168 = vunpack.c.h.b16 %v2449
    %v3169 = vunpack.c.l.b16 %v2450
    %v3170 = vunpack.c.h.b16 %v2450
    %v3171 = vunpack.c.l.b16 %v2451
    %v3172 = vunpack.c.l.b16 %v2452
    %v3173 = vunpack.c.h.b16 %v2452
    %v3174 = vunpack.c.l.b16 %v2453
    %v3175 = vunpack.c.h.b16 %v2453
    %v3176 = vunpack.c.l.b16 %v2454
    %v3177 = vunpack.c.h.b16 %v2454
    %v3178 = vunpack.c.l.b16 %v2455
    %v3179 = vunpack.c.h.b16 %v2455
    %v3180 = vunpack.c.l.b16 %v2456
    %v3181 = vunpack.c.l.b16 %v2457
    %v3182 = vunpack.c.h.b16 %v2457
    %v3183 = vunpack.c.l.b16 %v2458
    %v3184 = vunpack.c.h.b16 %v2458
    %v3185 = vunpack.c.l.b16 %v2459
    %v3186 = vunpack.c.h.b16 %v2459
    %v3187 = vunpack.c.l.b16 %v2460
    %v3188 = vunpack.c.h.b16 %v2460
    %v3189 = vunpack.c.l.b16 %v2461
    %v3190 = vunpack.c.l.b16 %v2462
    %v3191 = vunpack.c.h.b16 %v2462
    %v3192 = vunpack.c.l.b16 %v2463
    %v3193 = vunpack.c.h.b16 %v2463
    %v3194 = vunpack.c.l.b16 %v2464
    %v3195 = vunpack.c.h.b16 %v2464
    %v3196 = vunpack.c.l.b16 %v2465
    %v3197 = vunpack.c.h.b16 %v2465
    %v3198 = vunpack.c.l.b16 %v2466
    %v3199 = vunpack.c.l.b16 %v2467
    %v3200 = vunpack.c.h.b16 %v2467
    %v3201 = vunpack.c.l.b16 %v2468
    %v3202 = vunpack.c.h.b16 %v2468
    %v3203 = vunpack.c.l.b16 %v2469
    %v3204 = vunpack.c.h.b16 %v2469
    %v3205 = vunpack.c.l.b16 %v2470
    %v3206 = vunpack.c.h.b16 %v2470
    %v3207 = vunpack.c.l.b16 %v2471
    %v3208 = vunpack.c.l.b16 %v2472
    %v3209 = vunpack.c.h.b16 %v2472
    %v3210 = vunpack.c.l.b16 %v2473
    %v3211 = vunpack.c.h.b16 %v2473
    %v3212 = vunpack.c.l.b16 %v2474
    %v3213 = vunpack.c.h.b16 %v2474
    %v3214 = vunpack.c.l.b16 %v2475
    %v3215 = vunpack.c.h.b16 %v2475
    %v3216 = vunpack.c.l.b16 %v2476
    %v3217 = vunpack.c.l.b16 %v2477
    %v3218 = vunpack.c.h.b16 %v2477
    %v3219 = vunpack.c.l.b16 %v2478
    %v3220 = vunpack.c.h.b16 %v2478
    %v3221 = vunpack.c.l.b16 %v2479
    %v3222 = vunpack.c.h.b16 %v2479
    %v3223 = vunpack.c.l.b16 %v2480
    %v3224 = vunpack.c.h.b16 %v2480
    %v3225 = vunpack.c.l.b16 %v2481
    %v3226 = vunpack.c.l.b16 %v2482
    %v3227 = vunpack.c.h.b16 %v2482
    %v3228 = vunpack.c.l.b16 %v2483
    %v3229 = vunpack.c.h.b16 %v2483
    %v3230 = vunpack.c.l.b16 %v2484
    %v3231 = vunpack.c.h.b16 %v2484
    %v3232 = vunpack.c.l.b16 %v2485
    %v3233 = vunpack.c.h.b16 %v2485
    %v3234 = vunpack.c.l.b16 %v2486
    %v3235 = vunpack.c.l.b16 %v2487
    %v3236 = vunpack.c.h.b16 %v2487
    %v3237 = vunpack.c.l.b16 %v2488
    %v3238 = vunpack.c.h.b16 %v2488
    %v3239 = vunpack.c.l.b16 %v2489
    %v3240 = vunpack.c.h.b16 %v2489
    %v3241 = vunpack.c.l.b16 %v2490
    %v3242 = vunpack.c.h.b16 %v2490
    %v3243 = vunpack.c.l.b16 %v2491
    %v3244 = vunpack.c.l.b16 %v2492
    %v3245 = vunpack.c.h.b16 %v2492
    %v3246 = vunpack.c.l.b16 %v2493
    %v3247 = vunpack.c.h.b16 %v2493
    %v3248 = vunpack.c.l.b16 %v2494
    %v3249 = vunpack.c.h.b16 %v2494
    %v3250 = vunpack.c.l.b16 %v2495
    %v3251 = vunpack.c.h.b16 %v2495
    %v3252 = vunpack.c.l.b16 %v2496
    %v3253 = vunpack.c.l.b16 %v2497
    %v3254 = vunpack.c.h.b16 %v2497
    %v3255 = vunpack.c.l.b16 %v2498
    %v3256 = vunpack.c.h.b16 %v2498
    %v3257 = vunpack.c.l.b16 %v2499
    %v3258 = vunpack.c.h.b16 %v2499
    %v3259 = vunpack.c.l.b16 %v2500
    %v3260 = vunpack.c.h.b16 %v2500
    %v3261 = vunpack.c.l.b16 %v2501
    %v3262 = vunpack.c.l.b16 %v2502
    %v3263 = vunpack.c.h.b16 %v2502
    %v3264 = vunpack.c.l.b16 %v2503
    %v3265 = vunpack.c.h.b16 %v2503
    %v3266 = vunpack.c.l.b16 %v2504
    %v3267 = vunpack.c.h.b16 %v2504
    %v3268 = vunpack.c.l.b16 %v2505
    %v3269 = vunpack.c.h.b16 %v2505
    %v3270 = vunpack.c.l.b16 %v2506
    %v3271 = vunpack.c.l.b16 %v2507
    %v3272 = vunpack.c.h.b16 %v2507
    %v3273 = vunpack.c.l.b16 %v2508
    %v3274 = vunpack.c.h.b16 %v2508
    %v3275 = vunpack.c.l.b16 %v2509
    %v3276 = vunpack.c.h.b16 %v2509
    %v3277 = vunpack.c.l.b16 %v2510
    %v3278 = vunpack.c.h.b16 %v2510
    %v3279 = vunpack.c.l.b16 %v2511
    %v3280 = vunpack.c.l.b16 %v2512
    %v3281 = vunpack.c.h.b16 %v2512
    %v3282 = vunpack.c.l.b16 %v2513
    %v3283 = vunpack.c.h.b16 %v2513
    %v3284 = vunpack.c.l.b16 %v2514
    %v3285 = vunpack.c.h.b16 %v2514
    %v3286 = vunpack.c.l.b16 %v2515
    %v3287 = vunpack.c.h.b16 %v2515
    %v3288 = vunpack.c.l.b16 %v2516
    %v3289 = vunpack.c.l.b16 %v2517
    %v3290 = vunpack.c.h.b16 %v2517
    %v3291 = vunpack.c.l.b16 %v2518
    %v3292 = vunpack.c.h.b16 %v2518
    %v3293 = vunpack.c.l.b16 %v2519
    %v3294 = vunpack.c.h.b16 %v2519
    %v3295 = vunpack.c.l.b16 %v2520
    %v3296 = vunpack.c.h.b16 %v2520
    %v3297 = vunpack.c.l.b16 %v2521
    %v3298 = vunpack.c.l.b16 %v2522
    %v3299 = vunpack.c.h.b16 %v2522
    %v3300 = vunpack.c.l.b16 %v2523
    %v3301 = vunpack.c.h.b16 %v2523
    %v3302 = vunpack.c.l.b16 %v2524
    %v3303 = vunpack.c.h.b16 %v2524
    %v3304 = vunpack.c.l.b16 %v2525
    %v3305 = vunpack.c.h.b16 %v2525
    %v3306 = vunpack.c.l.b16 %v2526
    %v3307 = vunpack.c.l.b16 %v2527
    %v3308 = vunpack.c.h.b16 %v2527
    %v3309 = vunpack.c.l.b16 %v2528
    %v3310 = vunpack.c.h.b16 %v2528
    %v3311 = vunpack.c.l.b16 %v2529
    %v3312 = vunpack.c.h.b16 %v2529
    %v3313 = vunpack.c.l.b16 %v2530
    %v3314 = vunpack.c.h.b16 %v2530
    %v3315 = vunpack.c.l.b16 %v2531
    %v3316 = vunpack.c.l.b16 %v2532
    %v3317 = vunpack.c.h.b16 %v2532
    %v3318 = vunpack.c.l.b16 %v2533
    %v3319 = vunpack.c.h.b16 %v2533
    %v3320 = vunpack.c.l.b16 %v2534
    %v3321 = vunpack.c.h.b16 %v2534
    %v3322 = vunpack.c.l.b16 %v2535
    %v3323 = vunpack.c.h.b16 %v2535
    %v3324 = vunpack.c.l.b16 %v2536
    %v3325 = vunpack.c.l.b16 %v2537
    %v3326 = vunpack.c.h.b16 %v2537
    %v3327 = vunpack.c.l.b16 %v2538
    %v3328 = vunpack.c.h.b16 %v2538
    %v3329 = vunpack.c.l.b16 %v2539
    %v3330 = vunpack.c.h.b16 %v2539
    %v3331 = vunpack.c.l.b16 %v2540
    %v3332 = vunpack.c.h.b16 %v2540
    %v3333 = vunpack.c.l.b16 %v2541
    %v3334 = vunpack.c.l.b16 %v2542
    %v3335 = vunpack.c.h.b16 %v2542
    %v3336 = vunpack.c.l.b16 %v2543
    %v3337 = vunpack.c.h.b16 %v2543
    %v3338 = vunpack.c.l.b16 %v2544
    %v3339 = vunpack.c.h.b16 %v2544
    %v3340 = vunpack.c.l.b16 %v2545
    %v3341 = vunpack.c.h.b16 %v2545
    %v3342 = vunpack.c.l.b16 %v2546
    %v3343 = vunpack.c.l.b16 %v2547
    %v3344 = vunpack.c.h.b16 %v2547
    %v3345 = vunpack.c.l.b16 %v2548
    %v3346 = vunpack.c.h.b16 %v2548
    %v3347 = vunpack.c.l.b16 %v2549
    %v3348 = vunpack.c.h.b16 %v2549
    %v3349 = vunpack.c.l.b16 %v2550
    %v3350 = vunpack.c.h.b16 %v2550
    %v3351 = vunpack.c.l.b16 %v2551
    %v3352 = vunpack.c.l.b16 %v2552
    %v3353 = vunpack.c.h.b16 %v2552
    %v3354 = vunpack.c.l.b16 %v2553
    %v3355 = vunpack.c.h.b16 %v2553
    %v3356 = vunpack.c.l.b16 %v2554
    %v3357 = vunpack.c.h.b16 %v2554
    %v3358 = vunpack.c.l.b16 %v2555
    %v3359 = vunpack.c.h.b16 %v2555
    %v3360 = vunpack.c.l.b16 %v2556
    %v3361 = vunpack.c.l.b16 %v2557
    %v3362 = vunpack.c.h.b16 %v2557
    %v3363 = vunpack.c.l.b16 %v2558
    %v3364 = vunpack.c.h.b16 %v2558
    %v3365 = vunpack.c.l.b16 %v2559
    %v3366 = vunpack.c.h.b16 %v2559
    %v3367 = vunpack.c.l.b16 %v2560
    %v3368 = vunpack.c.h.b16 %v2560
    %v3369 = vunpack.c.l.b16 %v2561
    %v3370 = vunpack.c.l.b16 %v2562
    %v3371 = vunpack.c.h.b16 %v2562
    %v3372 = vunpack.c.l.b16 %v2563
    %v3373 = vunpack.c.h.b16 %v2563
    %v3374 = vunpack.c.l.b16 %v2564
    %v3375 = vunpack.c.h.b16 %v2564
    %v3376 = vunpack.c.l.b16 %v2565
    %v3377 = vunpack.c.h.b16 %v2565
    %v3378 = vunpack.c.l.b16 %v2566
    %v3379 = vunpack.c.l.b16 %v2567
    %v3380 = vunpack.c.h.b16 %v2567
    %v3381 = vunpack.c.l.b16 %v2568
    %v3382 = vunpack.c.h.b16 %v2568
    %v3383 = vunpack.c.l.b16 %v2569
    %v3384 = vunpack.c.h.b16 %v2569
    %v3385 = vunpack.c.l.b16 %v2570
    %v3386 = vunpack.c.h.b16 %v2570
    %v3387 = vunpack.c.l.b16 %v2571
    %v3388 = vunpack.c.l.b16 %v2572
    %v3389 = vunpack.c.h.b16 %v2572
    %v3390 = vunpack.c.l.b16 %v2573
    %v3391 = vunpack.c.h.b16 %v2573
    %v3392 = vunpack.c.l.b16 %v2574
    %v3393 = vunpack.c.h.b16 %v2574
    %v3394 = vunpack.c.l.b16 %v2575
    %v3395 = vunpack.c.h.b16 %v2575
    %v3396 = vunpack.c.l.b16 %v2576
    %v3397 = vunpack.c.l.b16 %v2577
    %v3398 = vunpack.c.h.b16 %v2577
    %v3399 = vunpack.c.l.b16 %v2578
    %v3400 = vunpack.c.h.b16 %v2578
    %v3401 = vunpack.c.l.b16 %v2579
    %v3402 = vunpack.c.h.b16 %v2579
    %v3403 = vunpack.c.l.b16 %v2580
    %v3404 = vunpack.c.h.b16 %v2580
    %v3405 = vunpack.c.l.b16 %v2581
    %v3406 = vunpack.c.l.b16 %v2582
    %v3407 = vunpack.c.h.b16 %v2582
    %v3408 = vunpack.c.l.b16 %v2583
    %v3409 = vunpack.c.h.b16 %v2583
    %v3410 = vunpack.c.l.b16 %v2584
    %v3411 = vunpack.c.h.b16 %v2584
    %v3412 = vunpack.c.l.b16 %v2585
    %v3413 = vunpack.c.h.b16 %v2585
    %v3414 = vunpack.c.l.b16 %v2586
    %v3415 = vunpack.c.l.b16 %v2587
    %v3416 = vunpack.c.h.b16 %v2587
    %v3417 = vunpack.c.l.b16 %v2588
    %v3418 = vunpack.c.h.b16 %v2588
    %v3419 = vunpack.c.l.b16 %v2589
    %v3420 = vunpack.c.h.b16 %v2589
    %v3421 = vunpack.c.l.b16 %v2590
    %v3422 = vunpack.c.h.b16 %v2590
    %v3423 = vunpack.c.l.b16 %v2591
    %v3424 = vunpack.c.l.b16 %v2592
    %v3425 = vunpack.c.h.b16 %v2592
    %v3426 = vunpack.c.l.b16 %v2593
    %v3427 = vunpack.c.h.b16 %v2593
    %v3428 = vunpack.c.l.b16 %v2594
    %v3429 = vunpack.c.h.b16 %v2594
    %v3430 = vunpack.c.l.b16 %v2595
    %v3431 = vunpack.c.h.b16 %v2595
    %v3432 = vunpack.c.l.b16 %v2596
    %v3433 = vunpack.c.l.b16 %v2597
    %v3434 = vunpack.c.h.b16 %v2597
    %v3435 = vunpack.c.l.b16 %v2598
    %v3436 = vunpack.c.h.b16 %v2598
    %v3437 = vunpack.c.l.b16 %v2599
    %v3438 = vunpack.c.h.b16 %v2599
    %v3439 = vunpack.c.l.b16 %v2600
    %v3440 = vunpack.c.h.b16 %v2600
    %v3441 = vunpack.c.l.b16 %v2601
    %v3442 = vunpack.c.l.b16 %v2602
    %v3443 = vunpack.c.h.b16 %v2602
    %v3444 = vunpack.c.l.b16 %v2603
    %v3445 = vunpack.c.h.b16 %v2603
    %v3446 = vunpack.c.l.b16 %v2604
    %v3447 = vunpack.c.h.b16 %v2604
    %v3448 = vunpack.c.l.b16 %v2605
    %v3449 = vunpack.c.h.b16 %v2605
    %v3450 = vunpack.c.l.b16 %v2606
    %v3451 = vunpack.c.l.b16 %v2607
    %v3452 = vunpack.c.h.b16 %v2607
    %v3453 = vunpack.c.l.b16 %v2608
    %v3454 = vunpack.c.h.b16 %v2608
    %v3455 = vunpack.c.l.b16 %v2609
    %v3456 = vunpack.c.h.b16 %v2609
    %v3457 = vunpack.c.l.b16 %v2610
    %v3458 = vunpack.c.h.b16 %v2610
    %v3459 = vunpack.c.l.b16 %v2611
    %v3460 = vunpack.c.l.b16 %v2612
    %v3461 = vunpack.c.h.b16 %v2612
    %v3462 = vunpack.c.l.b16 %v2613
    %v3463 = vunpack.c.h.b16 %v2613
    %v3464 = vunpack.c.l.b16 %v2614
    %v3465 = vunpack.c.h.b16 %v2614
    %v3466 = vunpack.c.l.b16 %v2615
    %v3467 = vunpack.c.h.b16 %v2615
    %v3468 = vunpack.c.l.b16 %v2616
    %v3469 = vunpack.c.l.b16 %v2617
    %v3470 = vunpack.c.h.b16 %v2617
    %v3471 = vunpack.c.l.b16 %v2618
    %v3472 = vunpack.c.h.b16 %v2618
    %v3473 = vunpack.c.l.b16 %v2619
    %v3474 = vunpack.c.h.b16 %v2619
    %v3475 = vunpack.c.l.b16 %v2620
    %v3476 = vunpack.c.h.b16 %v2620
    %v3477 = vunpack.c.l.b16 %v2621
    %v3478 = vunpack.c.l.b16 %v2622
    %v3479 = vunpack.c.h.b16 %v2622
    %v3480 = vunpack.c.l.b16 %v2623
    %v3481 = vunpack.c.h.b16 %v2623
    %v3482 = vunpack.c.l.b16 %v2624
    %v3483 = vunpack.c.h.b16 %v2624
    %v3484 = vunpack.c.l.b16 %v2625
    %v3485 = vunpack.c.h.b16 %v2625
    %v3486 = vunpack.c.l.b16 %v2626
    %v3487 = vunpack.c.l.b16 %v2627
    %v3488 = vunpack.c.h.b16 %v2627
    %v3489 = vunpack.c.l.b16 %v2628
    %v3490 = vunpack.c.h.b16 %v2628
    %v3491 = vunpack.c.l.b16 %v2629
    %v3492 = vunpack.c.h.b16 %v2629
    %v3493 = vunpack.c.l.b16 %v2630
    %v3494 = vunpack.c.h.b16 %v2630
    %v3495 = vunpack.c.l.b16 %v2631
    %v3496 = vunpack.c.l.b16 %v2632
    %v3497 = vunpack.c.h.b16 %v2632
    %v3498 = vunpack.c.l.b16 %v2633
    %v3499 = vunpack.c.h.b16 %v2633
    %v3500 = vunpack.c.l.b16 %v2634
    %v3501 = vunpack.c.h.b16 %v2634
    %v3502 = vunpack.c.l.b16 %v2635
    %v3503 = vunpack.c.h.b16 %v2635
    %v3504 = vunpack.c.l.b16 %v2636
    %v3505 = vunpack.c.l.b16 %v2637
    %v3506 = vunpack.c.h.b16 %v2637
    %v3507 = vunpack.c.l.b16 %v2638
    %v3508 = vunpack.c.h.b16 %v2638
    %v3509 = vunpack.c.l.b16 %v2639
    %v3510 = vunpack.c.h.b16 %v2639
    %v3511 = vunpack.c.l.b16 %v2640
    %v3512 = vunpack.c.h.b16 %v2640
    %v3513 = vunpack.c.l.b16 %v2641
    %v3514 = vunpack.c.l.b16 %v2642
    %v3515 = vunpack.c.h.b16 %v2642
    %v3516 = vunpack.c.l.b16 %v2643
    %v3517 = vunpack.c.h.b16 %v2643
    %v3518 = vunpack.c.l.b16 %v2644
    %v3519 = vunpack.c.h.b16 %v2644
    %v3520 = vunpack.c.l.b16 %v2645
    %v3521 = vunpack.c.h.b16 %v2645
    %v3522 = vunpack.c.l.b16 %v2646
    %v3523 = vunpack.c.l.b16 %v2647
    %v3524 = vunpack.c.h.b16 %v2647
    %v3525 = vunpack.c.l.b16 %v2648
    %v3526 = vunpack.c.h.b16 %v2648
    %v3527 = vunpack.c.l.b16 %v2649
    %v3528 = vunpack.c.h.b16 %v2649
    %v3529 = vunpack.c.l.b16 %v2650
    %v3530 = vunpack.c.h.b16 %v2650
    %v3531 = vunpack.c.l.b16 %v2651
    %v3532 = vunpack.c.l.b16 %v2652
    %v3533 = vunpack.c.h.b16 %v2652
    %v3534 = vunpack.c.l.b16 %v2653
    %v3535 = vunpack.c.h.b16 %v2653
    %v3536 = vunpack.c.l.b16 %v2654
    %v3537 = vunpack.c.h.b16 %v2654
    %v3538 = vunpack.c.l.b16 %v2655
    %v3539 = vunpack.c.h.b16 %v2655
    %v3540 = vunpack.c.l.b16 %v2656
    %v3541 = vunpack.c.l.b16 %v2657
    %v3542 = vunpack.c.h.b16 %v2657
    %v3543 = vunpack.c.l.b16 %v2658
    %v3544 = vunpack.c.h.b16 %v2658
    %v3545 = vunpack.c.l.b16 %v2659
    %v3546 = vunpack.c.h.b16 %v2659
    %v3547 = vunpack.c.l.b16 %v2660
    %v3548 = vunpack.c.h.b16 %v2660
    %v3549 = vunpack.c.l.b16 %v2661
    %v3550 = vunpack.c.l.b16 %v2662
    %v3551 = vunpack.c.h.b16 %v2662
    %v3552 = vunpack.c.l.b16 %v2663
    %v3553 = vunpack.c.h.b16 %v2663
    %v3554 = vunpack.c.l.b16 %v2664
    %v3555 = vunpack.c.h.b16 %v2664
    %v3556 = vunpack.c.l.b16 %v2665
    %v3557 = vunpack.c.h.b16 %v2665
    %v3558 = vunpack.c.l.b16 %v2666
    %v3559 = vunpack.c.l.b16 %v2667
    %v3560 = vunpack.c.h.b16 %v2667
    %v3561 = vunpack.c.l.b16 %v2668
    %v3562 = vunpack.c.h.b16 %v2668
    %v3563 = vunpack.c.l.b16 %v2669
    %v3564 = vunpack.c.h.b16 %v2669
    %v3565 = vunpack.c.l.b16 %v2670
    %v3566 = vunpack.c.h.b16 %v2670
    %v3567 = vunpack.c.l.b16 %v2671
    %v3568 = vpack.c.b16 %v3001, %v2992
    %v3569 = vpack.c.b16 %v3002, %v2993
    %v3570 = vpack.c.b16 %v3003, %v2994
    %v3571 = vpack.c.b16 %v3004, %v2995
    %v3572 = vpack.c.b16 %v3005, %v2996
    %v3573 = vpack.c.b16 %v3006, %v2997
    %v3574 = vpack.c.b16 %v3007, %v2998
    %v3575 = vpack.c.b16 %v3008, %v2999
    %v3576 = vpack.c.b16 %v3009, %v3000
    %v3577 = vpack.c.b16 %v3019, %v3010
    %v3578 = vpack.c.b16 %v3020, %v3011
    %v3579 = vpack.c.b16 %v3021, %v3012
    %v3580 = vpack.c.b16 %v3022, %v3013
    %v3581 = vpack.c.b16 %v3023, %v3014
    %v3582 = vpack.c.b16 %v3024, %v3015
    %v3583 = vpack.c.b16 %v3025, %v3016
    %v3584 = vpack.c.b16 %v3026, %v3017
    %v3585 = vpack.c.b16 %v3027, %v3018
    %v3586 = vpack.c.b16 %v3037, %v3028
    %v3587 = vpack.c.b16 %v3038, %v3029
    %v3588 = vpack.c.b16 %v3039, %v3030
    %v3589 = vpack.c.b16 %v3040, %v3031
    %v3590 = vpack.c.b16 %v3041, %v3032
    %v3591 = vpack.c.b16 %v3042, %v3033
    %v3592 = vpack.c.b16 %v3043, %v3034
    %v3593 = vpack.c.b16 %v3044, %v3035
    %v3594 = vpack.c.b16 %v3045, %v3036
    %v3595 = vpack.c.b16 %v3055, %v3046
    %v3596 = vpack.c.b16 %v3056, %v3047
    %v3597 = vpack.c.b16 %v3057, %v3048
    %v3598 = vpack.c.b16 %v3058, %v3049
    %v3599 = vpack.c.b16 %v3059, %v3050
    %v3600 = vpack.c.b16 %v3060, %v3051
    %v3601 = vpack.c.b16 %v3061, %v3052
    %v3602 = vpack.c.b16 %v3062, %v3053
    %v3603 = vpack.c.b16 %v3063, %v3054
    %v3604 = vpack.c.b16 %v3073, %v3064
    %v3605 = vpack.c.b16 %v3074, %v3065
    %v3606 = vpack.c.b16 %v3075, %v3066
    %v3607 = vpack.c.b16 %v3076, %v3067
    %v3608 = vpack.c.b16 %v3077, %v3068
    %v3609 = vpack.c.b16 %v3078, %v3069
    %v3610 = vpack.c.b16 %v3079, %v3070
    %v3611 = vpack.c.b16 %v3080, %v3071
    %v3612 = vpack.c.b16 %v3081, %v3072
    %v3613 = vpack.c.b16 %v3091, %v3082
    %v3614 = vpack.c.b16 %v3092, %v3083
    %v3615 = vpack.c.b16 %v3093, %v3084
    %v3616 = vpack.c.b16 %v3094, %v3085
    %v3617 = vpack.c.b16 %v3095, %v3086
    %v3618 = vpack.c.b16 %v3096, %v3087
    %v3619 = vpack.c.b16 %v3097, %v3088
    %v3620 = vpack.c.b16 %v3098, %v3089
    %v3621 = vpack.c.b16 %v3099, %v3090
    %v3622 = vpack.c.b16 %v3109, %v3100
    %v3623 = vpack.c.b16 %v3110, %v3101
    %v3624 = vpack.c.b16 %v3111, %v3102
    %v3625 = vpack.c.b16 %v3112, %v3103
    %v3626 = vpack.c.b16 %v3113, %v3104
    %v3627 = vpack.c.b16 %v3114, %v3105
    %v3628 = vpack.c.b16 %v3115, %v3106
    %v3629 = vpack.c.b16 %v3116, %v3107
    %v3630 = vpack.c.b16 %v3117, %v3108
    %v3631 = vpack.c.b16 %v3127, %v3118
    %v3632 = vpack.c.b16 %v3128, %v3119
    %v3633 = vpack.c.b16 %v3129, %v3120
    %v3634 = vpack.c.b16 %v3130, %v3121
    %v3635 = vpack.c.b16 %v3131, %v3122
    %v3636 = vpack.c.b16 %v3132, %v3123
    %v3637 = vpack.c.b16 %v3133, %v3124
    %v3638 = vpack.c.b16 %v3134, %v3125
    %v3639 = vpack.c.b16 %v3135, %v3126
    %v3640 = vpack.c.b16 %v3145, %v3136
    %v3641 = vpack.c.b16 %v3146, %v3137
    %v3642 = vpack.c.b16 %v3147, %v3138
    %v3643 = vpack.c.b16 %v3148, %v3139
    %v3644 = vpack.c.b16 %v3149, %v3140
    %v3645 = vpack.c.b16 %v3150, %v3141
    %v3646 = vpack.c.b16 %v3151, %v3142
    %v3647 = vpack.c.b16 %v3152, %v3143
    %v3648 = vpack.c.b16 %v3153, %v3144
    %v3649 = vpack.c.b16 %v3163, %v3154
    %v3650 = vpack.c.b16 %v3164, %v3155
    %v3651 = vpack.c.b16 %v3165, %v3156
    %v3652 = vpack.c.b16 %v3166, %v3157
    %v3653 = vpack.c.b16 %v3167, %v3158
    %v3654 = vpack.c.b16 %v3168, %v3159
    %v3655 = vpack.c.b16 %v3169, %v3160
    %v3656 = vpack.c.b16 %v3170, %v3161
    %v3657 = vpack.c.b16 %v3171, %v3162
    %v3658 = vpack.c.b16 %v3181, %v3172
    %v3659 = vpack.c.b16 %v3182, %v3173
    %v3660 = vpack.c.b16 %v3183, %v3174
    %v3661 = vpack.c.b16 %v3184, %v3175
    %v3662 = vpack.c.b16 %v3185, %v3176
    %v3663 = vpack.c.b16 %v3186, %v3177
    %v3664 = vpack.c.b16 %v3187, %v3178
    %v3665 = vpack.c.b16 %v3188, %v3179
    %v3666 = vpack.c.b16 %v3189, %v3180
    %v3667 = vpack.c.b16 %v3199, %v3190
    %v3668 = vpack.c.b16 %v3200, %v3191
    %v3669 = vpack.c.b16 %v3201, %v3192
    %v3670 = vpack.c.b16 %v3202, %v3193
    %v3671 = vpack.c.b16 %v3203, %v3194
    %v3672 = vpack.c.b16 %v3204, %v3195
    %v3673 = vpack.c.b16 %v3205, %v3196
    %v3674 = vpack.c.b16 %v3206, %v3197
    %v3675 = vpack.c.b16 %v3207, %v3198
    %v3676 = vpack.c.b16 %v3217, %v3208
    %v3677 = vpack.c.b16 %v3218, %v3209
    %v3678 = vpack.c.b16 %v3219, %v3210
    %v3679 = vpack.c.b16 %v3220, %v3211
    %v3680 = vpack.c.b16 %v3221, %v3212
    %v3681 = vpack.c.b16 %v3222, %v3213
    %v3682 = vpack.c.b16 %v3223, %v3214
    %v3683 = vpack.c.b16 %v3224, %v3215
    %v3684 = vpack.c.b16 %v3225, %v3216
    %v3685 = vpack.c.b16 %v3235, %v3226
    %v3686 = vpack.c.b16 %v3236, %v3227
    %v3687 = vpack.c.b16 %v3237, %v3228
    %v3688 = vpack.c.b16 %v3238, %v3229
    %v3689 = vpack.c.b16 %v3239, %v3230
    %v3690 = vpack.c.b16 %v3240, %v3231
    %v3691 = vpack.c.b16 %v3241, %v3232
    %v3692 = vpack.c.b16 %v3242, %v3233
    %v3693 = vpack.c.b16 %v3243, %v3234
    %v3694 = vpack.c.b16 %v3253, %v3244
    %v3695 = vpack.c.b16 %v3254, %v3245
    %v3696 = vpack.c.b16 %v3255, %v3246
    %v3697 = vpack.c.b16 %v3256, %v3247
    %v3698 = vpack.c.b16 %v3257, %v3248
    %v3699 = vpack.c.b16 %v3258, %v3249
    %v3700 = vpack.c.b16 %v3259, %v3250
    %v3701 = vpack.c.b16 %v3260, %v3251
    %v3702 = vpack.c.b16 %v3261, %v3252
    %v3703 = vpack.c.b16 %v3271, %v3262
    %v3704 = vpack.c.b16 %v3272, %v3263
    %v3705 = vpack.c.b16 %v3273, %v3264
    %v3706 = vpack.c.b16 %v3274, %v3265
    %v3707 = vpack.c.b16 %v3275, %v3266
    %v3708 = vpack.c.b16 %v3276, %v3267
    %v3709 = vpack.c.b16 %v3277, %v3268
    %v3710 = vpack.c.b16 %v3278, %v3269
    %v3711 = vpack.c.b16 %v3279, %v3270
    %v3712 = vpack.c.b16 %v3289, %v3280
    %v3713 = vpack.c.b16 %v3290, %v3281
    %v3714 = vpack.c.b16 %v3291, %v3282
    %v3715 = vpack.c.b16 %v3292, %v3283
    %v3716 = vpack.c.b16 %v3293, %v3284
    %v3717 = vpack.c.b16 %v3294, %v3285
    %v3718 = vpack.c.b16 %v3295, %v3286
    %v3719 = vpack.c.b16 %v3296, %v3287
    %v3720 = vpack.c.b16 %v3297, %v3288
    %v3721 = vpack.c.b16 %v3307, %v3298
    %v3722 = vpack.c.b16 %v3308, %v3299
    %v3723 = vpack.c.b16 %v3309, %v3300
    %v3724 = vpack.c.b16 %v3310, %v3301
    %v3725 = vpack.c.b16 %v3311, %v3302
    %v3726 = vpack.c.b16 %v3312, %v3303
    %v3727 = vpack.c.b16 %v3313, %v3304
    %v3728 = vpack.c.b16 %v3314, %v3305
    %v3729 = vpack.c.b16 %v3315, %v3306
    %v3730 = vpack.c.b16 %v3325, %v3316
    %v3731 = vpack.c.b16 %v3326, %v3317
    %v3732 = vpack.c.b16 %v3327, %v3318
    %v3733 = vpack.c.b16 %v3328, %v3319
    %v3734 = vpack.c.b16 %v3329, %v3320
    %v3735 = vpack.c.b16 %v3330, %v3321
    %v3736 = vpack.c.b16 %v3331, %v3322
    %v3737 = vpack.c.b16 %v3332, %v3323
    %v3738 = vpack.c.b16 %v3333, %v3324
    %v3739 = vpack.c.b16 %v3343, %v3334
    %v3740 = vpack.c.b16 %v3344, %v3335
    %v3741 = vpack.c.b16 %v3345, %v3336
    %v3742 = vpack.c.b16 %v3346, %v3337
    %v3743 = vpack.c.b16 %v3347, %v3338
    %v3744 = vpack.c.b16 %v3348, %v3339
    %v3745 = vpack.c.b16 %v3349, %v3340
    %v3746 = vpack.c.b16 %v3350, %v3341
    %v3747 = vpack.c.b16 %v3351, %v3342
    %v3748 = vpack.c.b16 %v3361, %v3352
    %v3749 = vpack.c.b16 %v3362, %v3353
    %v3750 = vpack.c.b16 %v3363, %v3354
    %v3751 = vpack.c.b16 %v3364, %v3355
    %v3752 = vpack.c.b16 %v3365, %v3356
    %v3753 = vpack.c.b16 %v3366, %v3357
    %v3754 = vpack.c.b16 %v3367, %v3358
    %v3755 = vpack.c.b16 %v3368, %v3359
    %v3756 = vpack.c.b16 %v3369, %v3360
    %v3757 = vpack.c.b16 %v3379, %v3370
    %v3758 = vpack.c.b16 %v3380, %v3371
    %v3759 = vpack.c.b16 %v3381, %v3372
    %v3760 = vpack.c.b16 %v3382, %v3373
    %v3761 = vpack.c.b16 %v3383, %v3374
    %v3762 = vpack.c.b16 %v3384, %v3375
    %v3763 = vpack.c.b16 %v3385, %v3376
    %v3764 = vpack.c.b16 %v3386, %v3377
    %v3765 = vpack.c.b16 %v3387, %v3378
    %v3766 = vpack.c.b16 %v3397, %v3388
    %v3767 = vpack.c.b16 %v3398, %v3389
    %v3768 = vpack.c.b16 %v3399, %v3390
    %v3769 = vpack.c.b16 %v3400, %v3391
    %v3770 = vpack.c.b16 %v3401, %v3392
    %v3771 = vpack.c.b16 %v3402, %v3393
    %v3772 = vpack.c.b16 %v3403, %v3394
    %v3773 = vpack.c.b16 %v3404, %v3395
    %v3774 = vpack.c.b16 %v3405, %v3396
    %v3775 = vpack.c.b16 %v3415, %v3406
    %v3776 = vpack.c.b16 %v3416, %v3407
    %v3777 = vpack.c.b16 %v3417, %v3408
    %v3778 = vpack.c.b16 %v3418, %v3409
    %v3779 = vpack.c.b16 %v3419, %v3410
    %v3780 = vpack.c.b16 %v3420, %v3411
    %v3781 = vpack.c.b16 %v3421, %v3412
    %v3782 = vpack.c.b16 %v3422, %v3413
    %v3783 = vpack.c.b16 %v3423, %v3414
    %v3784 = vpack.c.b16 %v3433, %v3424
    %v3785 = vpack.c.b16 %v3434, %v3425
    %v3786 = vpack.c.b16 %v3435, %v3426
    %v3787 = vpack.c.b16 %v3436, %v3427
    %v3788 = vpack.c.b16 %v3437, %v3428
    %v3789 = vpack.c.b16 %v3438, %v3429
    %v3790 = vpack.c.b16 %v3439, %v3430
    %v3791 = vpack.c.b16 %v3440, %v3431
    %v3792 = vpack.c.b16 %v3441, %v3432
    %v3793 = vpack.c.b16 %v3451, %v3442
    %v3794 = vpack.c.b16 %v3452, %v3443
    %v3795 = vpack.c.b16 %v3453, %v3444
    %v3796 = vpack.c.b16 %v3454, %v3445
    %v3797 = vpack.c.b16 %v3455, %v3446
    %v3798 = vpack.c.b16 %v3456, %v3447
    %v3799 = vpack.c.b16 %v3457, %v3448
    %v3800 = vpack.c.b16 %v3458, %v3449
    %v3801 = vpack.c.b16 %v3459, %v3450
    %v3802 = vpack.c.b16 %v3469, %v3460
    %v3803 = vpack.c.b16 %v3470, %v3461
    %v3804 = vpack.c.b16 %v3471, %v3462
    %v3805 = vpack.c.b16 %v3472, %v3463
    %v3806 = vpack.c.b16 %v3473, %v3464
    %v3807 = vpack.c.b16 %v3474, %v3465
    %v3808 = vpack.c.b16 %v3475, %v3466
    %v3809 = vpack.c.b16 %v3476, %v3467
    %v3810 = vpack.c.b16 %v3477, %v3468
    %v3811 = vpack.c.b16 %v3487, %v3478
    %v3812 = vpack.c.b16 %v3488, %v3479
    %v3813 = vpack.c.b16 %v3489, %v3480
    %v3814 = vpack.c.b16 %v3490, %v3481
    %v3815 = vpack.c.b16 %v3491, %v3482
    %v3816 = vpack.c.b16 %v3492, %v3483
    %v3817 = vpack.c.b16 %v3493, %v3484
    %v3818 = vpack.c.b16 %v3494, %v3485
    %v3819 = vpack.c.b16 %v3495, %v3486
    %v3820 = vpack.c.b16 %v3505, %v3496
    %v3821 = vpack.c.b16 %v3506, %v3497
    %v3822 = vpack.c.b16 %v3507, %v3498
    %v3823 = vpack.c.b16 %v3508, %v3499
    %v3824 = vpack.c.b16 %v3509, %v3500
    %v3825 = vpack.c.b16 %v3510, %v3501
    %v3826 = vpack.c.b16 %v3511, %v3502
    %v3827 = vpack.c.b16 %v3512, %v3503
    %v3828 = vpack.c.b16 %v3513, %v3504
    %v3829 = vpack.c.b16 %v3523, %v3514
    %v3830 = vpack.c.b16 %v3524, %v3515
    %v3831 = vpack.c.b16 %v3525, %v3516
    %v3832 = vpack.c.b16 %v3526, %v3517
    %v3833 = vpack.c.b16 %v3527, %v3518
    %v3834 = vpack.c.b16 %v3528, %v3519
    %v3835 = vpack.c.b16 %v3529, %v3520
    %v3836 = vpack.c.b16 %v3530, %v3521
    %v3837 = vpack.c.b16 %v3531, %v3522
    %v3838 = vpack.c.b16 %v3541, %v3532
    %v3839 = vpack.c.b16 %v3542, %v3533
    %v3840 = vpack.c.b16 %v3543, %v3534
    %v3841 = vpack.c.b16 %v3544, %v3535
    %v3842 = vpack.c.b16 %v3545, %v3536
    %v3843 = vpack.c.b16 %v3546, %v3537
    %v3844 = vpack.c.b16 %v3547, %v3538
    %v3845 = vpack.c.b16 %v3548, %v3539
    %v3846 = vpack.c.b16 %v3549, %v3540
    %v3847 = vpack.c.b16 %v3559, %v3550
    %v3848 = vpack.c.b16 %v3560, %v3551
    %v3849 = vpack.c.b16 %v3561, %v3552
    %v3850 = vpack.c.b16 %v3562, %v3553
    %v3851 = vpack.c.b16 %v3563, %v3554
    %v3852 = vpack.c.b16 %v3564, %v3555
    %v3853 = vpack.c.b16 %v3565, %v3556
    %v3854 = vpack.c.b16 %v3566, %v3557
    %v3855 = vpack.c.b16 %v3567, %v3558
    %4144 = vmatprep.subr.bf16.mxu0 %v3632
    %4145 = vmatpush1.bf16.msra.mxu0 %v3631
    %4146 = vmatprep.subr.bf16.mxu0 %v3623
    %4147 = vmatpush1.bf16.msra.mxu0 %v3622
    %4148 = vmatprep.subr.bf16.mxu0 %v3614
    %4149 = vmatpush1.bf16.msra.mxu0 %v3613
    %4150 = vmatprep.subr.bf16.mxu0 %v3605
    %4151 = vmatpush1.bf16.msra.mxu0 %v3604
    %4152 = vmatprep.subr.bf16.mxu0 %v3596
    %4153 = vmatpush1.bf16.msra.mxu0 %v3595
    %4154 = vmatprep.subr.bf16.mxu0 %v3587
    %4155 = vmatpush1.bf16.msra.mxu0 %v3586
    %4156 = vmatprep.subr.bf16.mxu0 %v3578
    %4157 = vmatpush1.bf16.msra.mxu0 %v3577
    %4158 = vmatprep.subr.bf16.mxu0 %v3569
    %4159 = vmatpush1.bf16.msra.mxu0 %v3568
    %4160 = vmatprep.subr.bf16.mxu0 %v3704
    %4161 = vmatpush2.bf16.msra.mxu0 %v3703
    %4162 = vmatprep.subr.bf16.mxu0 %v3695
    %4163 = vmatpush2.bf16.msra.mxu0 %v3694
    %4164 = vmatprep.subr.bf16.mxu0 %v3686
    %4165 = vmatpush2.bf16.msra.mxu0 %v3685
    %4166 = vmatprep.subr.bf16.mxu0 %v3677
    %4167 = vmatpush2.bf16.msra.mxu0 %v3676
    %4168 = vmatprep.subr.bf16.mxu0 %v3668
    %4169 = vmatpush2.bf16.msra.mxu0 %v3667
    %4170 = vmatprep.subr.bf16.mxu0 %v3659
    %4171 = vmatpush2.bf16.msra.mxu0 %v3658
    %4172 = vmatprep.subr.bf16.mxu0 %v3650
    %4173 = vmatpush2.bf16.msra.mxu0 %v3649
    %4174 = vmatprep.subr.bf16.mxu0 %v3641
    %4175 = vmatpush2.bf16.msra.mxu0 %v3640
    %4176 = vmatprep.mubr.bf16.mxu0 %v464
    %4177 = vmatmul.mubr.bf16.gmra.mxu0 %v457
    %v4178 = vpop.f32.mrf.mxu0
    %v4179 = vadd.f32 0.0, %v4178
    %v4180 = vpop.f32.mrf.mxu0
    %v4181 = vadd.f32 0.0, %v4180
    %v4182 = vpop.f32.mrf.mxu0
    %v4183 = vpop.f32.mrf.mxu0
    %4184 = vdwg.mxu0
    %4185 = vmatprep.subr.bf16.mxu0 %v3776
    %4186 = vmatpush1.bf16.msra.mxu0 %v3775
    %4187 = vmatprep.subr.bf16.mxu0 %v3767
    %4188 = vmatpush1.bf16.msra.mxu0 %v3766
    %4189 = vmatprep.subr.bf16.mxu0 %v3758
    %4190 = vmatpush1.bf16.msra.mxu0 %v3757
    %4191 = vmatprep.subr.bf16.mxu0 %v3749
    %4192 = vmatpush1.bf16.msra.mxu0 %v3748
    %4193 = vmatprep.subr.bf16.mxu0 %v3740
    %4194 = vmatpush1.bf16.msra.mxu0 %v3739
    %4195 = vmatprep.subr.bf16.mxu0 %v3731
    %4196 = vmatpush1.bf16.msra.mxu0 %v3730
    %4197 = vmatprep.subr.bf16.mxu0 %v3722
    %4198 = vmatpush1.bf16.msra.mxu0 %v3721
    %4199 = vmatprep.subr.bf16.mxu0 %v3713
    %4200 = vmatpush1.bf16.msra.mxu0 %v3712
    %4201 = vmatprep.subr.bf16.mxu0 %v3848
    %4202 = vmatpush2.bf16.msra.mxu0 %v3847
    %4203 = vmatprep.subr.bf16.mxu0 %v3839
    %4204 = vmatpush2.bf16.msra.mxu0 %v3838
    %4205 = vmatprep.subr.bf16.mxu0 %v3830
    %4206 = vmatpush2.bf16.msra.mxu0 %v3829
    %4207 = vmatprep.subr.bf16.mxu0 %v3821
    %4208 = vmatpush2.bf16.msra.mxu0 %v3820
    %4209 = vmatprep.subr.bf16.mxu0 %v3812
    %4210 = vmatpush2.bf16.msra.mxu0 %v3811
    %4211 = vmatprep.subr.bf16.mxu0 %v3803
    %4212 = vmatpush2.bf16.msra.mxu0 %v3802
    %4213 = vmatprep.subr.bf16.mxu0 %v3794
    %4214 = vmatpush2.bf16.msra.mxu0 %v3793
    %4215 = vmatprep.subr.bf16.mxu0 %v3785
    %4216 = vmatpush2.bf16.msra.mxu0 %v3784
    %4217 = vmatprep.mubr.bf16.mxu0 %v466
    %4218 = vmatmul.mubr.bf16.gmra.mxu0 %v465
    %v4219 = vpop.f32.mrf.mxu0
    %v4220 = vadd.f32 %v4179, %v4219
    %v4221 = vpop.f32.mrf.mxu0
    %v4222 = vadd.f32 %v4181, %v4221
    %v4223 = vpop.f32.mrf.mxu0
    %v4224 = vpop.f32.mrf.mxu0
    %4225 = vdwg.mxu0
    %4226 = vmatprep.subr.bf16.mxu0 %v3634
    %4227 = vmatpush1.bf16.msra.mxu0 %v3633
    %4228 = vmatprep.subr.bf16.mxu0 %v3625
    %4229 = vmatpush1.bf16.msra.mxu0 %v3624
    %4230 = vmatprep.subr.bf16.mxu0 %v3616
    %4231 = vmatpush1.bf16.msra.mxu0 %v3615
    %4232 = vmatprep.subr.bf16.mxu0 %v3607
    %4233 = vmatpush1.bf16.msra.mxu0 %v3606
    %4234 = vmatprep.subr.bf16.mxu0 %v3598
    %4235 = vmatpush1.bf16.msra.mxu0 %v3597
    %4236 = vmatprep.subr.bf16.mxu0 %v3589
    %4237 = vmatpush1.bf16.msra.mxu0 %v3588
    %4238 = vmatprep.subr.bf16.mxu0 %v3580
    %4239 = vmatpush1.bf16.msra.mxu0 %v3579
    %4240 = vmatprep.subr.bf16.mxu0 %v3571
    %4241 = vmatpush1.bf16.msra.mxu0 %v3570
    %4242 = vmatprep.subr.bf16.mxu0 %v3706
    %4243 = vmatpush2.bf16.msra.mxu0 %v3705
    %4244 = vmatprep.subr.bf16.mxu0 %v3697
    %4245 = vmatpush2.bf16.msra.mxu0 %v3696
    %4246 = vmatprep.subr.bf16.mxu0 %v3688
    %4247 = vmatpush2.bf16.msra.mxu0 %v3687
    %4248 = vmatprep.subr.bf16.mxu0 %v3679
    %4249 = vmatpush2.bf16.msra.mxu0 %v3678
    %4250 = vmatprep.subr.bf16.mxu0 %v3670
    %4251 = vmatpush2.bf16.msra.mxu0 %v3669
    %4252 = vmatprep.subr.bf16.mxu0 %v3661
    %4253 = vmatpush2.bf16.msra.mxu0 %v3660
    %4254 = vmatprep.subr.bf16.mxu0 %v3652
    %4255 = vmatpush2.bf16.msra.mxu0 %v3651
    %4256 = vmatprep.subr.bf16.mxu0 %v3643
    %4257 = vmatpush2.bf16.msra.mxu0 %v3642
    %4258 = vmatprep.mubr.bf16.mxu0 %v464
    %4259 = vmatmul.mubr.bf16.gmra.mxu0 %v457
    %v4260 = vpop.f32.mrf.mxu0
    %v4261 = vadd.f32 0.0, %v4260
    %v4262 = vpop.f32.mrf.mxu0
    %v4263 = vadd.f32 0.0, %v4262
    %v4264 = vpop.f32.mrf.mxu0
    %v4265 = vpop.f32.mrf.mxu0
    %4266 = vdwg.mxu0
    %4267 = vmatprep.subr.bf16.mxu0 %v3778
    %4268 = vmatpush1.bf16.msra.mxu0 %v3777
    %4269 = vmatprep.subr.bf16.mxu0 %v3769
    %4270 = vmatpush1.bf16.msra.mxu0 %v3768
    %4271 = vmatprep.subr.bf16.mxu0 %v3760
    %4272 = vmatpush1.bf16.msra.mxu0 %v3759
    %4273 = vmatprep.subr.bf16.mxu0 %v3751
    %4274 = vmatpush1.bf16.msra.mxu0 %v3750
    %4275 = vmatprep.subr.bf16.mxu0 %v3742
    %4276 = vmatpush1.bf16.msra.mxu0 %v3741
    %4277 = vmatprep.subr.bf16.mxu0 %v3733
    %4278 = vmatpush1.bf16.msra.mxu0 %v3732
    %4279 = vmatprep.subr.bf16.mxu0 %v3724
    %4280 = vmatpush1.bf16.msra.mxu0 %v3723
    %4281 = vmatprep.subr.bf16.mxu0 %v3715
    %4282 = vmatpush1.bf16.msra.mxu0 %v3714
    %4283 = vmatprep.subr.bf16.mxu0 %v3850
    %4284 = vmatpush2.bf16.msra.mxu0 %v3849
    %4285 = vmatprep.subr.bf16.mxu0 %v3841
    %4286 = vmatpush2.bf16.msra.mxu0 %v3840
    %4287 = vmatprep.subr.bf16.mxu0 %v3832
    %4288 = vmatpush2.bf16.msra.mxu0 %v3831
    %4289 = vmatprep.subr.bf16.mxu0 %v3823
    %4290 = vmatpush2.bf16.msra.mxu0 %v3822
    %4291 = vmatprep.subr.bf16.mxu0 %v3814
    %4292 = vmatpush2.bf16.msra.mxu0 %v3813
    %4293 = vmatprep.subr.bf16.mxu0 %v3805
    %4294 = vmatpush2.bf16.msra.mxu0 %v3804
    %4295 = vmatprep.subr.bf16.mxu0 %v3796
    %4296 = vmatpush2.bf16.msra.mxu0 %v3795
    %4297 = vmatprep.subr.bf16.mxu0 %v3787
    %4298 = vmatpush2.bf16.msra.mxu0 %v3786
    %4299 = vmatprep.mubr.bf16.mxu0 %v466
    %4300 = vmatmul.mubr.bf16.gmra.mxu0 %v465
    %v4301 = vpop.f32.mrf.mxu0
    %v4302 = vadd.f32 %v4261, %v4301
    %v4303 = vpop.f32.mrf.mxu0
    %v4304 = vadd.f32 %v4263, %v4303
    %v4305 = vpop.f32.mrf.mxu0
    %v4306 = vpop.f32.mrf.mxu0
    %4307 = vdwg.mxu0
    %4308 = vmatprep.subr.bf16.mxu0 %v3636
    %4309 = vmatpush1.bf16.msra.mxu0 %v3635
    %4310 = vmatprep.subr.bf16.mxu0 %v3627
    %4311 = vmatpush1.bf16.msra.mxu0 %v3626
    %4312 = vmatprep.subr.bf16.mxu0 %v3618
    %4313 = vmatpush1.bf16.msra.mxu0 %v3617
    %4314 = vmatprep.subr.bf16.mxu0 %v3609
    %4315 = vmatpush1.bf16.msra.mxu0 %v3608
    %4316 = vmatprep.subr.bf16.mxu0 %v3600
    %4317 = vmatpush1.bf16.msra.mxu0 %v3599
    %4318 = vmatprep.subr.bf16.mxu0 %v3591
    %4319 = vmatpush1.bf16.msra.mxu0 %v3590
    %4320 = vmatprep.subr.bf16.mxu0 %v3582
    %4321 = vmatpush1.bf16.msra.mxu0 %v3581
    %4322 = vmatprep.subr.bf16.mxu0 %v3573
    %4323 = vmatpush1.bf16.msra.mxu0 %v3572
    %4324 = vmatprep.subr.bf16.mxu0 %v3708
    %4325 = vmatpush2.bf16.msra.mxu0 %v3707
    %4326 = vmatprep.subr.bf16.mxu0 %v3699
    %4327 = vmatpush2.bf16.msra.mxu0 %v3698
    %4328 = vmatprep.subr.bf16.mxu0 %v3690
    %4329 = vmatpush2.bf16.msra.mxu0 %v3689
    %4330 = vmatprep.subr.bf16.mxu0 %v3681
    %4331 = vmatpush2.bf16.msra.mxu0 %v3680
    %4332 = vmatprep.subr.bf16.mxu0 %v3672
    %4333 = vmatpush2.bf16.msra.mxu0 %v3671
    %4334 = vmatprep.subr.bf16.mxu0 %v3663
    %4335 = vmatpush2.bf16.msra.mxu0 %v3662
    %4336 = vmatprep.subr.bf16.mxu0 %v3654
    %4337 = vmatpush2.bf16.msra.mxu0 %v3653
    %4338 = vmatprep.subr.bf16.mxu0 %v3645
    %4339 = vmatpush2.bf16.msra.mxu0 %v3644
    %4340 = vmatprep.mubr.bf16.mxu0 %v464
    %4341 = vmatmul.mubr.bf16.gmra.mxu0 %v457
    %v4342 = vpop.f32.mrf.mxu0
    %v4343 = vadd.f32 0.0, %v4342
    %v4344 = vpop.f32.mrf.mxu0
    %v4345 = vadd.f32 0.0, %v4344
    %v4346 = vpop.f32.mrf.mxu0
    %v4347 = vpop.f32.mrf.mxu0
    %4348 = vdwg.mxu0
    %4349 = vmatprep.subr.bf16.mxu0 %v3780
    %4350 = vmatpush1.bf16.msra.mxu0 %v3779
    %4351 = vmatprep.subr.bf16.mxu0 %v3771
    %4352 = vmatpush1.bf16.msra.mxu0 %v3770
    %4353 = vmatprep.subr.bf16.mxu0 %v3762
    %4354 = vmatpush1.bf16.msra.mxu0 %v3761
    %4355 = vmatprep.subr.bf16.mxu0 %v3753
    %4356 = vmatpush1.bf16.msra.mxu0 %v3752
    %4357 = vmatprep.subr.bf16.mxu0 %v3744
    %4358 = vmatpush1.bf16.msra.mxu0 %v3743
    %4359 = vmatprep.subr.bf16.mxu0 %v3735
    %4360 = vmatpush1.bf16.msra.mxu0 %v3734
    %4361 = vmatprep.subr.bf16.mxu0 %v3726
    %4362 = vmatpush1.bf16.msra.mxu0 %v3725
    %4363 = vmatprep.subr.bf16.mxu0 %v3717
    %4364 = vmatpush1.bf16.msra.mxu0 %v3716
    %4365 = vmatprep.subr.bf16.mxu0 %v3852
    %4366 = vmatpush2.bf16.msra.mxu0 %v3851
    %4367 = vmatprep.subr.bf16.mxu0 %v3843
    %4368 = vmatpush2.bf16.msra.mxu0 %v3842
    %4369 = vmatprep.subr.bf16.mxu0 %v3834
    %4370 = vmatpush2.bf16.msra.mxu0 %v3833
    %4371 = vmatprep.subr.bf16.mxu0 %v3825
    %4372 = vmatpush2.bf16.msra.mxu0 %v3824
    %4373 = vmatprep.subr.bf16.mxu0 %v3816
    %4374 = vmatpush2.bf16.msra.mxu0 %v3815
    %4375 = vmatprep.subr.bf16.mxu0 %v3807
    %4376 = vmatpush2.bf16.msra.mxu0 %v3806
    %4377 = vmatprep.subr.bf16.mxu0 %v3798
    %4378 = vmatpush2.bf16.msra.mxu0 %v3797
    %4379 = vmatprep.subr.bf16.mxu0 %v3789
    %4380 = vmatpush2.bf16.msra.mxu0 %v3788
    %4381 = vmatprep.mubr.bf16.mxu0 %v466
    %4382 = vmatmul.mubr.bf16.gmra.mxu0 %v465
    %v4383 = vpop.f32.mrf.mxu0
    %v4384 = vadd.f32 %v4343, %v4383
    %v4385 = vpop.f32.mrf.mxu0
    %v4386 = vadd.f32 %v4345, %v4385
    %v4387 = vpop.f32.mrf.mxu0
    %v4388 = vpop.f32.mrf.mxu0
    %4389 = vdwg.mxu0
    %4390 = vmatprep.subr.bf16.mxu0 %v3638
    %4391 = vmatpush1.bf16.msra.mxu0 %v3637
    %4392 = vmatprep.subr.bf16.mxu0 %v3629
    %4393 = vmatpush1.bf16.msra.mxu0 %v3628
    %4394 = vmatprep.subr.bf16.mxu0 %v3620
    %4395 = vmatpush1.bf16.msra.mxu0 %v3619
    %4396 = vmatprep.subr.bf16.mxu0 %v3611
    %4397 = vmatpush1.bf16.msra.mxu0 %v3610
    %4398 = vmatprep.subr.bf16.mxu0 %v3602
    %4399 = vmatpush1.bf16.msra.mxu0 %v3601
    %4400 = vmatprep.subr.bf16.mxu0 %v3593
    %4401 = vmatpush1.bf16.msra.mxu0 %v3592
    %4402 = vmatprep.subr.bf16.mxu0 %v3584
    %4403 = vmatpush1.bf16.msra.mxu0 %v3583
    %4404 = vmatprep.subr.bf16.mxu0 %v3575
    %4405 = vmatpush1.bf16.msra.mxu0 %v3574
    %4406 = vmatprep.subr.bf16.mxu0 %v3710
    %4407 = vmatpush2.bf16.msra.mxu0 %v3709
    %4408 = vmatprep.subr.bf16.mxu0 %v3701
    %4409 = vmatpush2.bf16.msra.mxu0 %v3700
    %4410 = vmatprep.subr.bf16.mxu0 %v3692
    %4411 = vmatpush2.bf16.msra.mxu0 %v3691
    %4412 = vmatprep.subr.bf16.mxu0 %v3683
    %4413 = vmatpush2.bf16.msra.mxu0 %v3682
    %4414 = vmatprep.subr.bf16.mxu0 %v3674
    %4415 = vmatpush2.bf16.msra.mxu0 %v3673
    %4416 = vmatprep.subr.bf16.mxu0 %v3665
    %4417 = vmatpush2.bf16.msra.mxu0 %v3664
    %4418 = vmatprep.subr.bf16.mxu0 %v3656
    %4419 = vmatpush2.bf16.msra.mxu0 %v3655
    %4420 = vmatprep.subr.bf16.mxu0 %v3647
    %4421 = vmatpush2.bf16.msra.mxu0 %v3646
    %4422 = vmatprep.mubr.bf16.mxu0 %v464
    %4423 = vmatmul.mubr.bf16.gmra.mxu0 %v457
    %v4424 = vpop.f32.mrf.mxu0
    %v4425 = vadd.f32 0.0, %v4424
    %v4426 = vpop.f32.mrf.mxu0
    %v4427 = vadd.f32 0.0, %v4426
    %v4428 = vpop.f32.mrf.mxu0
    %v4429 = vpop.f32.mrf.mxu0
    %4430 = vdwg.mxu0
    %4431 = vmatprep.subr.bf16.mxu0 %v3782
    %4432 = vmatpush1.bf16.msra.mxu0 %v3781
    %4433 = vmatprep.subr.bf16.mxu0 %v3773
    %4434 = vmatpush1.bf16.msra.mxu0 %v3772
    %4435 = vmatprep.subr.bf16.mxu0 %v3764
    %4436 = vmatpush1.bf16.msra.mxu0 %v3763
    %4437 = vmatprep.subr.bf16.mxu0 %v3755
    %4438 = vmatpush1.bf16.msra.mxu0 %v3754
    %4439 = vmatprep.subr.bf16.mxu0 %v3746
    %4440 = vmatpush1.bf16.msra.mxu0 %v3745
    %4441 = vmatprep.subr.bf16.mxu0 %v3737
    %4442 = vmatpush1.bf16.msra.mxu0 %v3736
    %4443 = vmatprep.subr.bf16.mxu0 %v3728
    %4444 = vmatpush1.bf16.msra.mxu0 %v3727
    %4445 = vmatprep.subr.bf16.mxu0 %v3719
    %4446 = vmatpush1.bf16.msra.mxu0 %v3718
    %4447 = vmatprep.subr.bf16.mxu0 %v3854
    %4448 = vmatpush2.bf16.msra.mxu0 %v3853
    %4449 = vmatprep.subr.bf16.mxu0 %v3845
    %4450 = vmatpush2.bf16.msra.mxu0 %v3844
    %4451 = vmatprep.subr.bf16.mxu0 %v3836
    %4452 = vmatpush2.bf16.msra.mxu0 %v3835
    %4453 = vmatprep.subr.bf16.mxu0 %v3827
    %4454 = vmatpush2.bf16.msra.mxu0 %v3826
    %4455 = vmatprep.subr.bf16.mxu0 %v3818
    %4456 = vmatpush2.bf16.msra.mxu0 %v3817
    %4457 = vmatprep.subr.bf16.mxu0 %v3809
    %4458 = vmatpush2.bf16.msra.mxu0 %v3808
    %4459 = vmatprep.subr.bf16.mxu0 %v3800
    %4460 = vmatpush2.bf16.msra.mxu0 %v3799
    %4461 = vmatprep.subr.bf16.mxu0 %v3791
    %4462 = vmatpush2.bf16.msra.mxu0 %v3790
    %4463 = vmatprep.mubr.bf16.mxu0 %v466
    %4464 = vmatmul.mubr.bf16.gmra.mxu0 %v465
    %v4465 = vpop.f32.mrf.mxu0
    %v4466 = vadd.f32 %v4425, %v4465
    %v4467 = vpop.f32.mrf.mxu0
    %v4468 = vadd.f32 %v4427, %v4467
    %v4469 = vpop.f32.mrf.mxu0
    %v4470 = vpop.f32.mrf.mxu0
    %4471 = vdwg.mxu0
    %4472 = vmatprep.subr.bf16.mxu0 0
    %4473 = vmatpush1.bf16.msra.mxu0 %v3639
    %4474 = vmatprep.subr.bf16.mxu0 0
    %4475 = vmatpush1.bf16.msra.mxu0 %v3630
    %4476 = vmatprep.subr.bf16.mxu0 0
    %4477 = vmatpush1.bf16.msra.mxu0 %v3621
    %4478 = vmatprep.subr.bf16.mxu0 0
    %4479 = vmatpush1.bf16.msra.mxu0 %v3612
    %4480 = vmatprep.subr.bf16.mxu0 0
    %4481 = vmatpush1.bf16.msra.mxu0 %v3603
    %4482 = vmatprep.subr.bf16.mxu0 0
    %4483 = vmatpush1.bf16.msra.mxu0 %v3594
    %4484 = vmatprep.subr.bf16.mxu0 0
    %4485 = vmatpush1.bf16.msra.mxu0 %v3585
    %4486 = vmatprep.subr.bf16.mxu0 0
    %4487 = vmatpush1.bf16.msra.mxu0 %v3576
    %4488 = vmatprep.subr.bf16.mxu0 0
    %4489 = vmatpush2.bf16.msra.mxu0 %v3711
    %4490 = vmatprep.subr.bf16.mxu0 0
    %4491 = vmatpush2.bf16.msra.mxu0 %v3702
    %4492 = vmatprep.subr.bf16.mxu0 0
    %4493 = vmatpush2.bf16.msra.mxu0 %v3693
    %4494 = vmatprep.subr.bf16.mxu0 0
    %4495 = vmatpush2.bf16.msra.mxu0 %v3684
    %4496 = vmatprep.subr.bf16.mxu0 0
    %4497 = vmatpush2.bf16.msra.mxu0 %v3675
    %4498 = vmatprep.subr.bf16.mxu0 0
    %4499 = vmatpush2.bf16.msra.mxu0 %v3666
    %4500 = vmatprep.subr.bf16.mxu0 0
    %4501 = vmatpush2.bf16.msra.mxu0 %v3657
    %4502 = vmatprep.subr.bf16.mxu0 0
    %4503 = vmatpush2.bf16.msra.mxu0 %v3648
    %4504 = vmatprep.mubr.bf16.mxu0 %v464
    %4505 = vmatmul.mubr.bf16.gmra.mxu0 %v457
    %v4506 = vpop.f32.mrf.mxu0
    %v4507 = vadd.f32 0.0, %v4506
    %v4508 = vpop.f32.mrf.mxu0
    %v4509 = vpop.f32.mrf.mxu0
    %v4510 = vpop.f32.mrf.mxu0
    %4511 = vdwg.mxu0
    %4512 = vmatprep.subr.bf16.mxu0 0
    %4513 = vmatpush1.bf16.msra.mxu0 %v3783
    %4514 = vmatprep.subr.bf16.mxu0 0
    %4515 = vmatpush1.bf16.msra.mxu0 %v3774
    %4516 = vmatprep.subr.bf16.mxu0 0
    %4517 = vmatpush1.bf16.msra.mxu0 %v3765
    %4518 = vmatprep.subr.bf16.mxu0 0
    %4519 = vmatpush1.bf16.msra.mxu0 %v3756
    %4520 = vmatprep.subr.bf16.mxu0 0
    %4521 = vmatpush1.bf16.msra.mxu0 %v3747
    %4522 = vmatprep.subr.bf16.mxu0 0
    %4523 = vmatpush1.bf16.msra.mxu0 %v3738
    %4524 = vmatprep.subr.bf16.mxu0 0
    %4525 = vmatpush1.bf16.msra.mxu0 %v3729
    %4526 = vmatprep.subr.bf16.mxu0 0
    %4527 = vmatpush1.bf16.msra.mxu0 %v3720
    %4528 = vmatprep.subr.bf16.mxu0 0
    %4529 = vmatpush2.bf16.msra.mxu0 %v3855
    %4530 = vmatprep.subr.bf16.mxu0 0
    %4531 = vmatpush2.bf16.msra.mxu0 %v3846
    %4532 = vmatprep.subr.bf16.mxu0 0
    %4533 = vmatpush2.bf16.msra.mxu0 %v3837
    %4534 = vmatprep.subr.bf16.mxu0 0
    %4535 = vmatpush2.bf16.msra.mxu0 %v3828
    %4536 = vmatprep.subr.bf16.mxu0 0
    %4537 = vmatpush2.bf16.msra.mxu0 %v3819
    %4538 = vmatprep.subr.bf16.mxu0 0
    %4539 = vmatpush2.bf16.msra.mxu0 %v3810
    %4540 = vmatprep.subr.bf16.mxu0 0
    %4541 = vmatpush2.bf16.msra.mxu0 %v3801
    %4542 = vmatprep.subr.bf16.mxu0 0
    %4543 = vmatpush2.bf16.msra.mxu0 %v3792
    %4544 = vmatprep.mubr.bf16.mxu0 %v466
    %4545 = vmatmul.mubr.bf16.gmra.mxu0 %v465
    %v4546 = vpop.f32.mrf.mxu0
    %v4547 = vadd.f32 %v4507, %v4546
    %v4548 = vpop.f32.mrf.mxu0
    %v4549 = vpop.f32.mrf.mxu0
    %v4550 = vpop.f32.mrf.mxu0
    %4551 = vdwg.mxu0
    %v4552 = vmax.f32 %v2019, %v4220
    %v4553 = vmax.f32 %v2021, %v4222
    %v4554 = vmax.f32 %v2101, %v4302
    %v4555 = vmax.f32 %v2103, %v4304
    %v4556 = vmax.f32 %v2183, %v4384
    %v4557 = vmax.f32 %v2185, %v4386
    %v4558 = vmax.f32 %v2265, %v4466
    %v4559 = vmax.f32 %v2267, %v4468
    %v4560 = vmax.f32 %v2346, %v4547
    %s4561 = scalar_lea.vmem [#allocation4], 4608
    %v4562 = vld [vmem:[%s4561] sm:$0xff]
    %v4563 = vld [vmem:[%s4561 + $0x8] sm:$0xff]
    %v4564 = vld [vmem:[%s4561 + $0x10] sm:$0xff]
    %v4565 = vld [vmem:[%s4561 + $0x18] sm:$0xff]
    %v4566 = vld [vmem:[%s4561 + $0x20] sm:$0xf]
    %v4567 = vld [vmem:[%s4561 + $0x24] sm:$0xff]
    %v4568 = vld [vmem:[%s4561 + $0x2c] sm:$0xff]
    %v4569 = vld [vmem:[%s4561 + $0x34] sm:$0xff]
    %v4570 = vld [vmem:[%s4561 + $0x3c] sm:$0xff]
    %v4571 = vld [vmem:[%s4561 + $0x44] sm:$0xf]
    %v4572 = vld [vmem:[%s4561 + $0x48] sm:$0xff]
    %v4573 = vld [vmem:[%s4561 + $0x50] sm:$0xff]
    %v4574 = vld [vmem:[%s4561 + $0x58] sm:$0xff]
    %v4575 = vld [vmem:[%s4561 + $0x60] sm:$0xff]
    %v4576 = vld [vmem:[%s4561 + $0x68] sm:$0xf]
    %v4577 = vld [vmem:[%s4561 + $0x6c] sm:$0xff]
    %v4578 = vld [vmem:[%s4561 + $0x74] sm:$0xff]
    %v4579 = vld [vmem:[%s4561 + $0x7c] sm:$0xff]
    %v4580 = vld [vmem:[%s4561 + $0x84] sm:$0xff]
    %v4581 = vld [vmem:[%s4561 + $0x8c] sm:$0xf]
    %v4582 = vld [vmem:[%s4561 + $0x90] sm:$0xff]
    %v4583 = vld [vmem:[%s4561 + $0x98] sm:$0xff]
    %v4584 = vld [vmem:[%s4561 + $0xa0] sm:$0xff]
    %v4585 = vld [vmem:[%s4561 + $0xa8] sm:$0xff]
    %v4586 = vld [vmem:[%s4561 + $0xb0] sm:$0xf]
    %v4587 = vld [vmem:[%s4561 + $0xb4] sm:$0xff]
    %v4588 = vld [vmem:[%s4561 + $0xbc] sm:$0xff]
    %v4589 = vld [vmem:[%s4561 + $0xc4] sm:$0xff]
    %v4590 = vld [vmem:[%s4561 + $0xcc] sm:$0xff]
    %v4591 = vld [vmem:[%s4561 + $0xd4] sm:$0xf]
    %v4592 = vld [vmem:[%s4561 + $0xd8] sm:$0xff]
    %v4593 = vld [vmem:[%s4561 + $0xe0] sm:$0xff]
    %v4594 = vld [vmem:[%s4561 + $0xe8] sm:$0xff]
    %v4595 = vld [vmem:[%s4561 + $0xf0] sm:$0xff]
    %v4596 = vld [vmem:[%s4561 + $0xf8] sm:$0xf]
    %v4597 = vld [vmem:[%s4561 + $0xfc] sm:$0xff]
    %v4598 = vld [vmem:[%s4561 + $0x104] sm:$0xff]
    %v4599 = vld [vmem:[%s4561 + $0x10c] sm:$0xff]
    %v4600 = vld [vmem:[%s4561 + $0x114] sm:$0xff]
    %v4601 = vld [vmem:[%s4561 + $0x11c] sm:$0xf]
    %v4602 = vld [vmem:[%s4561 + $0x120] sm:$0xff]
    %v4603 = vld [vmem:[%s4561 + $0x128] sm:$0xff]
    %v4604 = vld [vmem:[%s4561 + $0x130] sm:$0xff]
    %v4605 = vld [vmem:[%s4561 + $0x138] sm:$0xff]
    %v4606 = vld [vmem:[%s4561 + $0x140] sm:$0xf]
    %v4607 = vld [vmem:[%s4561 + $0x144] sm:$0xff]
    %v4608 = vld [vmem:[%s4561 + $0x14c] sm:$0xff]
    %v4609 = vld [vmem:[%s4561 + $0x154] sm:$0xff]
    %v4610 = vld [vmem:[%s4561 + $0x15c] sm:$0xff]
    %v4611 = vld [vmem:[%s4561 + $0x164] sm:$0xf]
    %v4612 = vld [vmem:[%s4561 + $0x168] sm:$0xff]
    %v4613 = vld [vmem:[%s4561 + $0x170] sm:$0xff]
    %v4614 = vld [vmem:[%s4561 + $0x178] sm:$0xff]
    %v4615 = vld [vmem:[%s4561 + $0x180] sm:$0xff]
    %v4616 = vld [vmem:[%s4561 + $0x188] sm:$0xf]
    %v4617 = vld [vmem:[%s4561 + $0x18c] sm:$0xff]
    %v4618 = vld [vmem:[%s4561 + $0x194] sm:$0xff]
    %v4619 = vld [vmem:[%s4561 + $0x19c] sm:$0xff]
    %v4620 = vld [vmem:[%s4561 + $0x1a4] sm:$0xff]
    %v4621 = vld [vmem:[%s4561 + $0x1ac] sm:$0xf]
    %v4622 = vld [vmem:[%s4561 + $0x1b0] sm:$0xff]
    %v4623 = vld [vmem:[%s4561 + $0x1b8] sm:$0xff]
    %v4624 = vld [vmem:[%s4561 + $0x1c0] sm:$0xff]
    %v4625 = vld [vmem:[%s4561 + $0x1c8] sm:$0xff]
    %v4626 = vld [vmem:[%s4561 + $0x1d0] sm:$0xf]
    %v4627 = vld [vmem:[%s4561 + $0x1d4] sm:$0xff]
    %v4628 = vld [vmem:[%s4561 + $0x1dc] sm:$0xff]
    %v4629 = vld [vmem:[%s4561 + $0x1e4] sm:$0xff]
    %v4630 = vld [vmem:[%s4561 + $0x1ec] sm:$0xff]
    %v4631 = vld [vmem:[%s4561 + $0x1f4] sm:$0xf]
    %v4632 = vld [vmem:[%s4561 + $0x1f8] sm:$0xff]
    %v4633 = vld [vmem:[%s4561 + $0x200] sm:$0xff]
    %v4634 = vld [vmem:[%s4561 + $0x208] sm:$0xff]
    %v4635 = vld [vmem:[%s4561 + $0x210] sm:$0xff]
    %v4636 = vld [vmem:[%s4561 + $0x218] sm:$0xf]
    %v4637 = vld [vmem:[%s4561 + $0x21c] sm:$0xff]
    %v4638 = vld [vmem:[%s4561 + $0x224] sm:$0xff]
    %v4639 = vld [vmem:[%s4561 + $0x22c] sm:$0xff]
    %v4640 = vld [vmem:[%s4561 + $0x234] sm:$0xff]
    %v4641 = vld [vmem:[%s4561 + $0x23c] sm:$0xf]
    %v4642 = vld [vmem:[%s4561 + $0x240] sm:$0xff]
    %v4643 = vld [vmem:[%s4561 + $0x248] sm:$0xff]
    %v4644 = vld [vmem:[%s4561 + $0x250] sm:$0xff]
    %v4645 = vld [vmem:[%s4561 + $0x258] sm:$0xff]
    %v4646 = vld [vmem:[%s4561 + $0x260] sm:$0xf]
    %v4647 = vld [vmem:[%s4561 + $0x264] sm:$0xff]
    %v4648 = vld [vmem:[%s4561 + $0x26c] sm:$0xff]
    %v4649 = vld [vmem:[%s4561 + $0x274] sm:$0xff]
    %v4650 = vld [vmem:[%s4561 + $0x27c] sm:$0xff]
    %v4651 = vld [vmem:[%s4561 + $0x284] sm:$0xf]
    %v4652 = vld [vmem:[%s4561 + $0x288] sm:$0xff]
    %v4653 = vld [vmem:[%s4561 + $0x290] sm:$0xff]
    %v4654 = vld [vmem:[%s4561 + $0x298] sm:$0xff]
    %v4655 = vld [vmem:[%s4561 + $0x2a0] sm:$0xff]
    %v4656 = vld [vmem:[%s4561 + $0x2a8] sm:$0xf]
    %v4657 = vld [vmem:[%s4561 + $0x2ac] sm:$0xff]
    %v4658 = vld [vmem:[%s4561 + $0x2b4] sm:$0xff]
    %v4659 = vld [vmem:[%s4561 + $0x2bc] sm:$0xff]
    %v4660 = vld [vmem:[%s4561 + $0x2c4] sm:$0xff]
    %v4661 = vld [vmem:[%s4561 + $0x2cc] sm:$0xf]
    %v4662 = vld [vmem:[%s4561 + $0x2d0] sm:$0xff]
    %v4663 = vld [vmem:[%s4561 + $0x2d8] sm:$0xff]
    %v4664 = vld [vmem:[%s4561 + $0x2e0] sm:$0xff]
    %v4665 = vld [vmem:[%s4561 + $0x2e8] sm:$0xff]
    %v4666 = vld [vmem:[%s4561 + $0x2f0] sm:$0xf]
    %v4667 = vld [vmem:[%s4561 + $0x2f4] sm:$0xff]
    %v4668 = vld [vmem:[%s4561 + $0x2fc] sm:$0xff]
    %v4669 = vld [vmem:[%s4561 + $0x304] sm:$0xff]
    %v4670 = vld [vmem:[%s4561 + $0x30c] sm:$0xff]
    %v4671 = vld [vmem:[%s4561 + $0x314] sm:$0xf]
    %v4672 = vld [vmem:[%s4561 + $0x318] sm:$0xff]
    %v4673 = vld [vmem:[%s4561 + $0x320] sm:$0xff]
    %v4674 = vld [vmem:[%s4561 + $0x328] sm:$0xff]
    %v4675 = vld [vmem:[%s4561 + $0x330] sm:$0xff]
    %v4676 = vld [vmem:[%s4561 + $0x338] sm:$0xf]
    %v4677 = vld [vmem:[%s4561 + $0x33c] sm:$0xff]
    %v4678 = vld [vmem:[%s4561 + $0x344] sm:$0xff]
    %v4679 = vld [vmem:[%s4561 + $0x34c] sm:$0xff]
    %v4680 = vld [vmem:[%s4561 + $0x354] sm:$0xff]
    %v4681 = vld [vmem:[%s4561 + $0x35c] sm:$0xf]
    %v4682 = vld [vmem:[%s4561 + $0x360] sm:$0xff]
    %v4683 = vld [vmem:[%s4561 + $0x368] sm:$0xff]
    %v4684 = vld [vmem:[%s4561 + $0x370] sm:$0xff]
    %v4685 = vld [vmem:[%s4561 + $0x378] sm:$0xff]
    %v4686 = vld [vmem:[%s4561 + $0x380] sm:$0xf]
    %v4687 = vld [vmem:[%s4561 + $0x384] sm:$0xff]
    %v4688 = vld [vmem:[%s4561 + $0x38c] sm:$0xff]
    %v4689 = vld [vmem:[%s4561 + $0x394] sm:$0xff]
    %v4690 = vld [vmem:[%s4561 + $0x39c] sm:$0xff]
    %v4691 = vld [vmem:[%s4561 + $0x3a4] sm:$0xf]
    %v4692 = vld [vmem:[%s4561 + $0x3a8] sm:$0xff]
    %v4693 = vld [vmem:[%s4561 + $0x3b0] sm:$0xff]
    %v4694 = vld [vmem:[%s4561 + $0x3b8] sm:$0xff]
    %v4695 = vld [vmem:[%s4561 + $0x3c0] sm:$0xff]
    %v4696 = vld [vmem:[%s4561 + $0x3c8] sm:$0xf]
    %v4697 = vld [vmem:[%s4561 + $0x3cc] sm:$0xff]
    %v4698 = vld [vmem:[%s4561 + $0x3d4] sm:$0xff]
    %v4699 = vld [vmem:[%s4561 + $0x3dc] sm:$0xff]
    %v4700 = vld [vmem:[%s4561 + $0x3e4] sm:$0xff]
    %v4701 = vld [vmem:[%s4561 + $0x3ec] sm:$0xf]
    %v4702 = vld [vmem:[%s4561 + $0x3f0] sm:$0xff]
    %v4703 = vld [vmem:[%s4561 + $0x3f8] sm:$0xff]
    %v4704 = vld [vmem:[%s4561 + $0x400] sm:$0xff]
    %v4705 = vld [vmem:[%s4561 + $0x408] sm:$0xff]
    %v4706 = vld [vmem:[%s4561 + $0x410] sm:$0xf]
    %v4707 = vld [vmem:[%s4561 + $0x414] sm:$0xff]
    %v4708 = vld [vmem:[%s4561 + $0x41c] sm:$0xff]
    %v4709 = vld [vmem:[%s4561 + $0x424] sm:$0xff]
    %v4710 = vld [vmem:[%s4561 + $0x42c] sm:$0xff]
    %v4711 = vld [vmem:[%s4561 + $0x434] sm:$0xf]
    %v4712 = vld [vmem:[%s4561 + $0x438] sm:$0xff]
    %v4713 = vld [vmem:[%s4561 + $0x440] sm:$0xff]
    %v4714 = vld [vmem:[%s4561 + $0x448] sm:$0xff]
    %v4715 = vld [vmem:[%s4561 + $0x450] sm:$0xff]
    %v4716 = vld [vmem:[%s4561 + $0x458] sm:$0xf]
    %v4717 = vld [vmem:[%s4561 + $0x45c] sm:$0xff]
    %v4718 = vld [vmem:[%s4561 + $0x464] sm:$0xff]
    %v4719 = vld [vmem:[%s4561 + $0x46c] sm:$0xff]
    %v4720 = vld [vmem:[%s4561 + $0x474] sm:$0xff]
    %v4721 = vld [vmem:[%s4561 + $0x47c] sm:$0xf]
    %v4722 = vld [vmem:[%s4561 + $0x480] sm:$0xff]
    %v4723 = vld [vmem:[%s4561 + $0x488] sm:$0xff]
    %v4724 = vld [vmem:[%s4561 + $0x490] sm:$0xff]
    %v4725 = vld [vmem:[%s4561 + $0x498] sm:$0xff]
    %v4726 = vld [vmem:[%s4561 + $0x4a0] sm:$0xf]
    %v4727 = vld [vmem:[%s4561 + $0x4a4] sm:$0xff]
    %v4728 = vld [vmem:[%s4561 + $0x4ac] sm:$0xff]
    %v4729 = vld [vmem:[%s4561 + $0x4b4] sm:$0xff]
    %v4730 = vld [vmem:[%s4561 + $0x4bc] sm:$0xff]
    %v4731 = vld [vmem:[%s4561 + $0x4c4] sm:$0xf]
    %v4732 = vld [vmem:[%s4561 + $0x4c8] sm:$0xff]
    %v4733 = vld [vmem:[%s4561 + $0x4d0] sm:$0xff]
    %v4734 = vld [vmem:[%s4561 + $0x4d8] sm:$0xff]
    %v4735 = vld [vmem:[%s4561 + $0x4e0] sm:$0xff]
    %v4736 = vld [vmem:[%s4561 + $0x4e8] sm:$0xf]
    %v4737 = vld [vmem:[%s4561 + $0x4ec] sm:$0xff]
    %v4738 = vld [vmem:[%s4561 + $0x4f4] sm:$0xff]
    %v4739 = vld [vmem:[%s4561 + $0x4fc] sm:$0xff]
    %v4740 = vld [vmem:[%s4561 + $0x504] sm:$0xff]
    %v4741 = vld [vmem:[%s4561 + $0x50c] sm:$0xf]
    %v4742 = vld [vmem:[%s4561 + $0x510] sm:$0xff]
    %v4743 = vld [vmem:[%s4561 + $0x518] sm:$0xff]
    %v4744 = vld [vmem:[%s4561 + $0x520] sm:$0xff]
    %v4745 = vld [vmem:[%s4561 + $0x528] sm:$0xff]
    %v4746 = vld [vmem:[%s4561 + $0x530] sm:$0xf]
    %v4747 = vld [vmem:[%s4561 + $0x534] sm:$0xff]
    %v4748 = vld [vmem:[%s4561 + $0x53c] sm:$0xff]
    %v4749 = vld [vmem:[%s4561 + $0x544] sm:$0xff]
    %v4750 = vld [vmem:[%s4561 + $0x54c] sm:$0xff]
    %v4751 = vld [vmem:[%s4561 + $0x554] sm:$0xf]
    %v4752 = vld [vmem:[%s4561 + $0x558] sm:$0xff]
    %v4753 = vld [vmem:[%s4561 + $0x560] sm:$0xff]
    %v4754 = vld [vmem:[%s4561 + $0x568] sm:$0xff]
    %v4755 = vld [vmem:[%s4561 + $0x570] sm:$0xff]
    %v4756 = vld [vmem:[%s4561 + $0x578] sm:$0xf]
    %v4757 = vld [vmem:[%s4561 + $0x57c] sm:$0xff]
    %v4758 = vld [vmem:[%s4561 + $0x584] sm:$0xff]
    %v4759 = vld [vmem:[%s4561 + $0x58c] sm:$0xff]
    %v4760 = vld [vmem:[%s4561 + $0x594] sm:$0xff]
    %v4761 = vld [vmem:[%s4561 + $0x59c] sm:$0xf]
    %v4762 = vld [vmem:[%s4561 + $0x5a0] sm:$0xff]
    %v4763 = vld [vmem:[%s4561 + $0x5a8] sm:$0xff]
    %v4764 = vld [vmem:[%s4561 + $0x5b0] sm:$0xff]
    %v4765 = vld [vmem:[%s4561 + $0x5b8] sm:$0xff]
    %v4766 = vld [vmem:[%s4561 + $0x5c0] sm:$0xf]
    %v4767 = vld [vmem:[%s4561 + $0x5c4] sm:$0xff]
    %v4768 = vld [vmem:[%s4561 + $0x5cc] sm:$0xff]
    %v4769 = vld [vmem:[%s4561 + $0x5d4] sm:$0xff]
    %v4770 = vld [vmem:[%s4561 + $0x5dc] sm:$0xff]
    %v4771 = vld [vmem:[%s4561 + $0x5e4] sm:$0xf]
    %v4772 = vld [vmem:[%s4561 + $0x5e8] sm:$0xff]
    %v4773 = vld [vmem:[%s4561 + $0x5f0] sm:$0xff]
    %v4774 = vld [vmem:[%s4561 + $0x5f8] sm:$0xff]
    %v4775 = vld [vmem:[%s4561 + $0x600] sm:$0xff]
    %v4776 = vld [vmem:[%s4561 + $0x608] sm:$0xf]
    %v4777 = vld [vmem:[%s4561 + $0x60c] sm:$0xff]
    %v4778 = vld [vmem:[%s4561 + $0x614] sm:$0xff]
    %v4779 = vld [vmem:[%s4561 + $0x61c] sm:$0xff]
    %v4780 = vld [vmem:[%s4561 + $0x624] sm:$0xff]
    %v4781 = vld [vmem:[%s4561 + $0x62c] sm:$0xf]
    %v4782 = vld [vmem:[%s4561 + $0x630] sm:$0xff]
    %v4783 = vld [vmem:[%s4561 + $0x638] sm:$0xff]
    %v4784 = vld [vmem:[%s4561 + $0x640] sm:$0xff]
    %v4785 = vld [vmem:[%s4561 + $0x648] sm:$0xff]
    %v4786 = vld [vmem:[%s4561 + $0x650] sm:$0xf]
    %v4787 = vld [vmem:[%s4561 + $0x654] sm:$0xff]
    %v4788 = vld [vmem:[%s4561 + $0x65c] sm:$0xff]
    %v4789 = vld [vmem:[%s4561 + $0x664] sm:$0xff]
    %v4790 = vld [vmem:[%s4561 + $0x66c] sm:$0xff]
    %v4791 = vld [vmem:[%s4561 + $0x674] sm:$0xf]
    %v4792 = vld [vmem:[%s4561 + $0x678] sm:$0xff]
    %v4793 = vld [vmem:[%s4561 + $0x680] sm:$0xff]
    %v4794 = vld [vmem:[%s4561 + $0x688] sm:$0xff]
    %v4795 = vld [vmem:[%s4561 + $0x690] sm:$0xff]
    %v4796 = vld [vmem:[%s4561 + $0x698] sm:$0xf]
    %v4797 = vld [vmem:[%s4561 + $0x69c] sm:$0xff]
    %v4798 = vld [vmem:[%s4561 + $0x6a4] sm:$0xff]
    %v4799 = vld [vmem:[%s4561 + $0x6ac] sm:$0xff]
    %v4800 = vld [vmem:[%s4561 + $0x6b4] sm:$0xff]
    %v4801 = vld [vmem:[%s4561 + $0x6bc] sm:$0xf]
    %v4802 = vld [vmem:[%s4561 + $0x6c0] sm:$0xff]
    %v4803 = vld [vmem:[%s4561 + $0x6c8] sm:$0xff]
    %v4804 = vld [vmem:[%s4561 + $0x6d0] sm:$0xff]
    %v4805 = vld [vmem:[%s4561 + $0x6d8] sm:$0xff]
    %v4806 = vld [vmem:[%s4561 + $0x6e0] sm:$0xf]
    %v4807 = vld [vmem:[%s4561 + $0x6e4] sm:$0xff]
    %v4808 = vld [vmem:[%s4561 + $0x6ec] sm:$0xff]
    %v4809 = vld [vmem:[%s4561 + $0x6f4] sm:$0xff]
    %v4810 = vld [vmem:[%s4561 + $0x6fc] sm:$0xff]
    %v4811 = vld [vmem:[%s4561 + $0x704] sm:$0xf]
    %v4812 = vld [vmem:[%s4561 + $0x708] sm:$0xff]
    %v4813 = vld [vmem:[%s4561 + $0x710] sm:$0xff]
    %v4814 = vld [vmem:[%s4561 + $0x718] sm:$0xff]
    %v4815 = vld [vmem:[%s4561 + $0x720] sm:$0xff]
    %v4816 = vld [vmem:[%s4561 + $0x728] sm:$0xf]
    %v4817 = vld [vmem:[%s4561 + $0x72c] sm:$0xff]
    %v4818 = vld [vmem:[%s4561 + $0x734] sm:$0xff]
    %v4819 = vld [vmem:[%s4561 + $0x73c] sm:$0xff]
    %v4820 = vld [vmem:[%s4561 + $0x744] sm:$0xff]
    %v4821 = vld [vmem:[%s4561 + $0x74c] sm:$0xf]
    %v4822 = vld [vmem:[%s4561 + $0x750] sm:$0xff]
    %v4823 = vld [vmem:[%s4561 + $0x758] sm:$0xff]
    %v4824 = vld [vmem:[%s4561 + $0x760] sm:$0xff]
    %v4825 = vld [vmem:[%s4561 + $0x768] sm:$0xff]
    %v4826 = vld [vmem:[%s4561 + $0x770] sm:$0xf]
    %v4827 = vld [vmem:[%s4561 + $0x774] sm:$0xff]
    %v4828 = vld [vmem:[%s4561 + $0x77c] sm:$0xff]
    %v4829 = vld [vmem:[%s4561 + $0x784] sm:$0xff]
    %v4830 = vld [vmem:[%s4561 + $0x78c] sm:$0xff]
    %v4831 = vld [vmem:[%s4561 + $0x794] sm:$0xf]
    %v4832 = vld [vmem:[%s4561 + $0x798] sm:$0xff]
    %v4833 = vld [vmem:[%s4561 + $0x7a0] sm:$0xff]
    %v4834 = vld [vmem:[%s4561 + $0x7a8] sm:$0xff]
    %v4835 = vld [vmem:[%s4561 + $0x7b0] sm:$0xff]
    %v4836 = vld [vmem:[%s4561 + $0x7b8] sm:$0xf]
    %v4837 = vld [vmem:[%s4561 + $0x7bc] sm:$0xff]
    %v4838 = vld [vmem:[%s4561 + $0x7c4] sm:$0xff]
    %v4839 = vld [vmem:[%s4561 + $0x7cc] sm:$0xff]
    %v4840 = vld [vmem:[%s4561 + $0x7d4] sm:$0xff]
    %v4841 = vld [vmem:[%s4561 + $0x7dc] sm:$0xf]
    %v4842 = vld [vmem:[%s4561 + $0x7e0] sm:$0xff]
    %v4843 = vld [vmem:[%s4561 + $0x7e8] sm:$0xff]
    %v4844 = vld [vmem:[%s4561 + $0x7f0] sm:$0xff]
    %v4845 = vld [vmem:[%s4561 + $0x7f8] sm:$0xff]
    %v4846 = vld [vmem:[%s4561 + $0x800] sm:$0xf]
    %v4847 = vld [vmem:[%s4561 + $0x804] sm:$0xff]
    %v4848 = vld [vmem:[%s4561 + $0x80c] sm:$0xff]
    %v4849 = vld [vmem:[%s4561 + $0x814] sm:$0xff]
    %v4850 = vld [vmem:[%s4561 + $0x81c] sm:$0xff]
    %v4851 = vld [vmem:[%s4561 + $0x824] sm:$0xf]
    %v4852 = vld [vmem:[%s4561 + $0x828] sm:$0xff]
    %v4853 = vld [vmem:[%s4561 + $0x830] sm:$0xff]
    %v4854 = vld [vmem:[%s4561 + $0x838] sm:$0xff]
    %v4855 = vld [vmem:[%s4561 + $0x840] sm:$0xff]
    %v4856 = vld [vmem:[%s4561 + $0x848] sm:$0xf]
    %v4857 = vld [vmem:[%s4561 + $0x84c] sm:$0xff]
    %v4858 = vld [vmem:[%s4561 + $0x854] sm:$0xff]
    %v4859 = vld [vmem:[%s4561 + $0x85c] sm:$0xff]
    %v4860 = vld [vmem:[%s4561 + $0x864] sm:$0xff]
    %v4861 = vld [vmem:[%s4561 + $0x86c] sm:$0xf]
    %v4862 = vld [vmem:[%s4561 + $0x870] sm:$0xff]
    %v4863 = vld [vmem:[%s4561 + $0x878] sm:$0xff]
    %v4864 = vld [vmem:[%s4561 + $0x880] sm:$0xff]
    %v4865 = vld [vmem:[%s4561 + $0x888] sm:$0xff]
    %v4866 = vld [vmem:[%s4561 + $0x890] sm:$0xf]
    %v4867 = vld [vmem:[%s4561 + $0x894] sm:$0xff]
    %v4868 = vld [vmem:[%s4561 + $0x89c] sm:$0xff]
    %v4869 = vld [vmem:[%s4561 + $0x8a4] sm:$0xff]
    %v4870 = vld [vmem:[%s4561 + $0x8ac] sm:$0xff]
    %v4871 = vld [vmem:[%s4561 + $0x8b4] sm:$0xf]
    %v4872 = vld [vmem:[%s4561 + $0x8b8] sm:$0xff]
    %v4873 = vld [vmem:[%s4561 + $0x8c0] sm:$0xff]
    %v4874 = vld [vmem:[%s4561 + $0x8c8] sm:$0xff]
    %v4875 = vld [vmem:[%s4561 + $0x8d0] sm:$0xff]
    %v4876 = vld [vmem:[%s4561 + $0x8d8] sm:$0xf]
    %v4877 = vld [vmem:[%s4561 + $0x8dc] sm:$0xff]
    %v4878 = vld [vmem:[%s4561 + $0x8e4] sm:$0xff]
    %v4879 = vld [vmem:[%s4561 + $0x8ec] sm:$0xff]
    %v4880 = vld [vmem:[%s4561 + $0x8f4] sm:$0xff]
    %v4881 = vld [vmem:[%s4561 + $0x8fc] sm:$0xf]
    %v5202 = vunpack.c.l.b16 %v4562
    %v5203 = vunpack.c.h.b16 %v4562
    %v5204 = vunpack.c.l.b16 %v4563
    %v5205 = vunpack.c.h.b16 %v4563
    %v5206 = vunpack.c.l.b16 %v4564
    %v5207 = vunpack.c.h.b16 %v4564
    %v5208 = vunpack.c.l.b16 %v4565
    %v5209 = vunpack.c.h.b16 %v4565
    %v5210 = vunpack.c.l.b16 %v4566
    %v5211 = vunpack.c.l.b16 %v4567
    %v5212 = vunpack.c.h.b16 %v4567
    %v5213 = vunpack.c.l.b16 %v4568
    %v5214 = vunpack.c.h.b16 %v4568
    %v5215 = vunpack.c.l.b16 %v4569
    %v5216 = vunpack.c.h.b16 %v4569
    %v5217 = vunpack.c.l.b16 %v4570
    %v5218 = vunpack.c.h.b16 %v4570
    %v5219 = vunpack.c.l.b16 %v4571
    %v5220 = vunpack.c.l.b16 %v4572
    %v5221 = vunpack.c.h.b16 %v4572
    %v5222 = vunpack.c.l.b16 %v4573
    %v5223 = vunpack.c.h.b16 %v4573
    %v5224 = vunpack.c.l.b16 %v4574
    %v5225 = vunpack.c.h.b16 %v4574
    %v5226 = vunpack.c.l.b16 %v4575
    %v5227 = vunpack.c.h.b16 %v4575
    %v5228 = vunpack.c.l.b16 %v4576
    %v5229 = vunpack.c.l.b16 %v4577
    %v5230 = vunpack.c.h.b16 %v4577
    %v5231 = vunpack.c.l.b16 %v4578
    %v5232 = vunpack.c.h.b16 %v4578
    %v5233 = vunpack.c.l.b16 %v4579
    %v5234 = vunpack.c.h.b16 %v4579
    %v5235 = vunpack.c.l.b16 %v4580
    %v5236 = vunpack.c.h.b16 %v4580
    %v5237 = vunpack.c.l.b16 %v4581
    %v5238 = vunpack.c.l.b16 %v4582
    %v5239 = vunpack.c.h.b16 %v4582
    %v5240 = vunpack.c.l.b16 %v4583
    %v5241 = vunpack.c.h.b16 %v4583
    %v5242 = vunpack.c.l.b16 %v4584
    %v5243 = vunpack.c.h.b16 %v4584
    %v5244 = vunpack.c.l.b16 %v4585
    %v5245 = vunpack.c.h.b16 %v4585
    %v5246 = vunpack.c.l.b16 %v4586
    %v5247 = vunpack.c.l.b16 %v4587
    %v5248 = vunpack.c.h.b16 %v4587
    %v5249 = vunpack.c.l.b16 %v4588
    %v5250 = vunpack.c.h.b16 %v4588
    %v5251 = vunpack.c.l.b16 %v4589
    %v5252 = vunpack.c.h.b16 %v4589
    %v5253 = vunpack.c.l.b16 %v4590
    %v5254 = vunpack.c.h.b16 %v4590
    %v5255 = vunpack.c.l.b16 %v4591
    %v5256 = vunpack.c.l.b16 %v4592
    %v5257 = vunpack.c.h.b16 %v4592
    %v5258 = vunpack.c.l.b16 %v4593
    %v5259 = vunpack.c.h.b16 %v4593
    %v5260 = vunpack.c.l.b16 %v4594
    %v5261 = vunpack.c.h.b16 %v4594
    %v5262 = vunpack.c.l.b16 %v4595
    %v5263 = vunpack.c.h.b16 %v4595
    %v5264 = vunpack.c.l.b16 %v4596
    %v5265 = vunpack.c.l.b16 %v4597
    %v5266 = vunpack.c.h.b16 %v4597
    %v5267 = vunpack.c.l.b16 %v4598
    %v5268 = vunpack.c.h.b16 %v4598
    %v5269 = vunpack.c.l.b16 %v4599
    %v5270 = vunpack.c.h.b16 %v4599
    %v5271 = vunpack.c.l.b16 %v4600
    %v5272 = vunpack.c.h.b16 %v4600
    %v5273 = vunpack.c.l.b16 %v4601
    %v5274 = vunpack.c.l.b16 %v4602
    %v5275 = vunpack.c.h.b16 %v4602
    %v5276 = vunpack.c.l.b16 %v4603
    %v5277 = vunpack.c.h.b16 %v4603
    %v5278 = vunpack.c.l.b16 %v4604
    %v5279 = vunpack.c.h.b16 %v4604
    %v5280 = vunpack.c.l.b16 %v4605
    %v5281 = vunpack.c.h.b16 %v4605
    %v5282 = vunpack.c.l.b16 %v4606
    %v5283 = vunpack.c.l.b16 %v4607
    %v5284 = vunpack.c.h.b16 %v4607
    %v5285 = vunpack.c.l.b16 %v4608
    %v5286 = vunpack.c.h.b16 %v4608
    %v5287 = vunpack.c.l.b16 %v4609
    %v5288 = vunpack.c.h.b16 %v4609
    %v5289 = vunpack.c.l.b16 %v4610
    %v5290 = vunpack.c.h.b16 %v4610
    %v5291 = vunpack.c.l.b16 %v4611
    %v5292 = vunpack.c.l.b16 %v4612
    %v5293 = vunpack.c.h.b16 %v4612
    %v5294 = vunpack.c.l.b16 %v4613
    %v5295 = vunpack.c.h.b16 %v4613
    %v5296 = vunpack.c.l.b16 %v4614
    %v5297 = vunpack.c.h.b16 %v4614
    %v5298 = vunpack.c.l.b16 %v4615
    %v5299 = vunpack.c.h.b16 %v4615
    %v5300 = vunpack.c.l.b16 %v4616
    %v5301 = vunpack.c.l.b16 %v4617
    %v5302 = vunpack.c.h.b16 %v4617
    %v5303 = vunpack.c.l.b16 %v4618
    %v5304 = vunpack.c.h.b16 %v4618
    %v5305 = vunpack.c.l.b16 %v4619
    %v5306 = vunpack.c.h.b16 %v4619
    %v5307 = vunpack.c.l.b16 %v4620
    %v5308 = vunpack.c.h.b16 %v4620
    %v5309 = vunpack.c.l.b16 %v4621
    %v5310 = vunpack.c.l.b16 %v4622
    %v5311 = vunpack.c.h.b16 %v4622
    %v5312 = vunpack.c.l.b16 %v4623
    %v5313 = vunpack.c.h.b16 %v4623
    %v5314 = vunpack.c.l.b16 %v4624
    %v5315 = vunpack.c.h.b16 %v4624
    %v5316 = vunpack.c.l.b16 %v4625
    %v5317 = vunpack.c.h.b16 %v4625
    %v5318 = vunpack.c.l.b16 %v4626
    %v5319 = vunpack.c.l.b16 %v4627
    %v5320 = vunpack.c.h.b16 %v4627
    %v5321 = vunpack.c.l.b16 %v4628
    %v5322 = vunpack.c.h.b16 %v4628
    %v5323 = vunpack.c.l.b16 %v4629
    %v5324 = vunpack.c.h.b16 %v4629
    %v5325 = vunpack.c.l.b16 %v4630
    %v5326 = vunpack.c.h.b16 %v4630
    %v5327 = vunpack.c.l.b16 %v4631
    %v5328 = vunpack.c.l.b16 %v4632
    %v5329 = vunpack.c.h.b16 %v4632
    %v5330 = vunpack.c.l.b16 %v4633
    %v5331 = vunpack.c.h.b16 %v4633
    %v5332 = vunpack.c.l.b16 %v4634
    %v5333 = vunpack.c.h.b16 %v4634
    %v5334 = vunpack.c.l.b16 %v4635
    %v5335 = vunpack.c.h.b16 %v4635
    %v5336 = vunpack.c.l.b16 %v4636
    %v5337 = vunpack.c.l.b16 %v4637
    %v5338 = vunpack.c.h.b16 %v4637
    %v5339 = vunpack.c.l.b16 %v4638
    %v5340 = vunpack.c.h.b16 %v4638
    %v5341 = vunpack.c.l.b16 %v4639
    %v5342 = vunpack.c.h.b16 %v4639
    %v5343 = vunpack.c.l.b16 %v4640
    %v5344 = vunpack.c.h.b16 %v4640
    %v5345 = vunpack.c.l.b16 %v4641
    %v5346 = vunpack.c.l.b16 %v4642
    %v5347 = vunpack.c.h.b16 %v4642
    %v5348 = vunpack.c.l.b16 %v4643
    %v5349 = vunpack.c.h.b16 %v4643
    %v5350 = vunpack.c.l.b16 %v4644
    %v5351 = vunpack.c.h.b16 %v4644
    %v5352 = vunpack.c.l.b16 %v4645
    %v5353 = vunpack.c.h.b16 %v4645
    %v5354 = vunpack.c.l.b16 %v4646
    %v5355 = vunpack.c.l.b16 %v4647
    %v5356 = vunpack.c.h.b16 %v4647
    %v5357 = vunpack.c.l.b16 %v4648
    %v5358 = vunpack.c.h.b16 %v4648
    %v5359 = vunpack.c.l.b16 %v4649
    %v5360 = vunpack.c.h.b16 %v4649
    %v5361 = vunpack.c.l.b16 %v4650
    %v5362 = vunpack.c.h.b16 %v4650
    %v5363 = vunpack.c.l.b16 %v4651
    %v5364 = vunpack.c.l.b16 %v4652
    %v5365 = vunpack.c.h.b16 %v4652
    %v5366 = vunpack.c.l.b16 %v4653
    %v5367 = vunpack.c.h.b16 %v4653
    %v5368 = vunpack.c.l.b16 %v4654
    %v5369 = vunpack.c.h.b16 %v4654
    %v5370 = vunpack.c.l.b16 %v4655
    %v5371 = vunpack.c.h.b16 %v4655
    %v5372 = vunpack.c.l.b16 %v4656
    %v5373 = vunpack.c.l.b16 %v4657
    %v5374 = vunpack.c.h.b16 %v4657
    %v5375 = vunpack.c.l.b16 %v4658
    %v5376 = vunpack.c.h.b16 %v4658
    %v5377 = vunpack.c.l.b16 %v4659
    %v5378 = vunpack.c.h.b16 %v4659
    %v5379 = vunpack.c.l.b16 %v4660
    %v5380 = vunpack.c.h.b16 %v4660
    %v5381 = vunpack.c.l.b16 %v4661
    %v5382 = vunpack.c.l.b16 %v4662
    %v5383 = vunpack.c.h.b16 %v4662
    %v5384 = vunpack.c.l.b16 %v4663
    %v5385 = vunpack.c.h.b16 %v4663
    %v5386 = vunpack.c.l.b16 %v4664
    %v5387 = vunpack.c.h.b16 %v4664
    %v5388 = vunpack.c.l.b16 %v4665
    %v5389 = vunpack.c.h.b16 %v4665
    %v5390 = vunpack.c.l.b16 %v4666
    %v5391 = vunpack.c.l.b16 %v4667
    %v5392 = vunpack.c.h.b16 %v4667
    %v5393 = vunpack.c.l.b16 %v4668
    %v5394 = vunpack.c.h.b16 %v4668
    %v5395 = vunpack.c.l.b16 %v4669
    %v5396 = vunpack.c.h.b16 %v4669
    %v5397 = vunpack.c.l.b16 %v4670
    %v5398 = vunpack.c.h.b16 %v4670
    %v5399 = vunpack.c.l.b16 %v4671
    %v5400 = vunpack.c.l.b16 %v4672
    %v5401 = vunpack.c.h.b16 %v4672
    %v5402 = vunpack.c.l.b16 %v4673
    %v5403 = vunpack.c.h.b16 %v4673
    %v5404 = vunpack.c.l.b16 %v4674
    %v5405 = vunpack.c.h.b16 %v4674
    %v5406 = vunpack.c.l.b16 %v4675
    %v5407 = vunpack.c.h.b16 %v4675
    %v5408 = vunpack.c.l.b16 %v4676
    %v5409 = vunpack.c.l.b16 %v4677
    %v5410 = vunpack.c.h.b16 %v4677
    %v5411 = vunpack.c.l.b16 %v4678
    %v5412 = vunpack.c.h.b16 %v4678
    %v5413 = vunpack.c.l.b16 %v4679
    %v5414 = vunpack.c.h.b16 %v4679
    %v5415 = vunpack.c.l.b16 %v4680
    %v5416 = vunpack.c.h.b16 %v4680
    %v5417 = vunpack.c.l.b16 %v4681
    %v5418 = vunpack.c.l.b16 %v4682
    %v5419 = vunpack.c.h.b16 %v4682
    %v5420 = vunpack.c.l.b16 %v4683
    %v5421 = vunpack.c.h.b16 %v4683
    %v5422 = vunpack.c.l.b16 %v4684
    %v5423 = vunpack.c.h.b16 %v4684
    %v5424 = vunpack.c.l.b16 %v4685
    %v5425 = vunpack.c.h.b16 %v4685
    %v5426 = vunpack.c.l.b16 %v4686
    %v5427 = vunpack.c.l.b16 %v4687
    %v5428 = vunpack.c.h.b16 %v4687
    %v5429 = vunpack.c.l.b16 %v4688
    %v5430 = vunpack.c.h.b16 %v4688
    %v5431 = vunpack.c.l.b16 %v4689
    %v5432 = vunpack.c.h.b16 %v4689
    %v5433 = vunpack.c.l.b16 %v4690
    %v5434 = vunpack.c.h.b16 %v4690
    %v5435 = vunpack.c.l.b16 %v4691
    %v5436 = vunpack.c.l.b16 %v4692
    %v5437 = vunpack.c.h.b16 %v4692
    %v5438 = vunpack.c.l.b16 %v4693
    %v5439 = vunpack.c.h.b16 %v4693
    %v5440 = vunpack.c.l.b16 %v4694
    %v5441 = vunpack.c.h.b16 %v4694
    %v5442 = vunpack.c.l.b16 %v4695
    %v5443 = vunpack.c.h.b16 %v4695
    %v5444 = vunpack.c.l.b16 %v4696
    %v5445 = vunpack.c.l.b16 %v4697
    %v5446 = vunpack.c.h.b16 %v4697
    %v5447 = vunpack.c.l.b16 %v4698
    %v5448 = vunpack.c.h.b16 %v4698
    %v5449 = vunpack.c.l.b16 %v4699
    %v5450 = vunpack.c.h.b16 %v4699
    %v5451 = vunpack.c.l.b16 %v4700
    %v5452 = vunpack.c.h.b16 %v4700
    %v5453 = vunpack.c.l.b16 %v4701
    %v5454 = vunpack.c.l.b16 %v4702
    %v5455 = vunpack.c.h.b16 %v4702
    %v5456 = vunpack.c.l.b16 %v4703
    %v5457 = vunpack.c.h.b16 %v4703
    %v5458 = vunpack.c.l.b16 %v4704
    %v5459 = vunpack.c.h.b16 %v4704
    %v5460 = vunpack.c.l.b16 %v4705
    %v5461 = vunpack.c.h.b16 %v4705
    %v5462 = vunpack.c.l.b16 %v4706
    %v5463 = vunpack.c.l.b16 %v4707
    %v5464 = vunpack.c.h.b16 %v4707
    %v5465 = vunpack.c.l.b16 %v4708
    %v5466 = vunpack.c.h.b16 %v4708
    %v5467 = vunpack.c.l.b16 %v4709
    %v5468 = vunpack.c.h.b16 %v4709
    %v5469 = vunpack.c.l.b16 %v4710
    %v5470 = vunpack.c.h.b16 %v4710
    %v5471 = vunpack.c.l.b16 %v4711
    %v5472 = vunpack.c.l.b16 %v4712
    %v5473 = vunpack.c.h.b16 %v4712
    %v5474 = vunpack.c.l.b16 %v4713
    %v5475 = vunpack.c.h.b16 %v4713
    %v5476 = vunpack.c.l.b16 %v4714
    %v5477 = vunpack.c.h.b16 %v4714
    %v5478 = vunpack.c.l.b16 %v4715
    %v5479 = vunpack.c.h.b16 %v4715
    %v5480 = vunpack.c.l.b16 %v4716
    %v5481 = vunpack.c.l.b16 %v4717
    %v5482 = vunpack.c.h.b16 %v4717
    %v5483 = vunpack.c.l.b16 %v4718
    %v5484 = vunpack.c.h.b16 %v4718
    %v5485 = vunpack.c.l.b16 %v4719
    %v5486 = vunpack.c.h.b16 %v4719
    %v5487 = vunpack.c.l.b16 %v4720
    %v5488 = vunpack.c.h.b16 %v4720
    %v5489 = vunpack.c.l.b16 %v4721
    %v5490 = vunpack.c.l.b16 %v4722
    %v5491 = vunpack.c.h.b16 %v4722
    %v5492 = vunpack.c.l.b16 %v4723
    %v5493 = vunpack.c.h.b16 %v4723
    %v5494 = vunpack.c.l.b16 %v4724
    %v5495 = vunpack.c.h.b16 %v4724
    %v5496 = vunpack.c.l.b16 %v4725
    %v5497 = vunpack.c.h.b16 %v4725
    %v5498 = vunpack.c.l.b16 %v4726
    %v5499 = vunpack.c.l.b16 %v4727
    %v5500 = vunpack.c.h.b16 %v4727
    %v5501 = vunpack.c.l.b16 %v4728
    %v5502 = vunpack.c.h.b16 %v4728
    %v5503 = vunpack.c.l.b16 %v4729
    %v5504 = vunpack.c.h.b16 %v4729
    %v5505 = vunpack.c.l.b16 %v4730
    %v5506 = vunpack.c.h.b16 %v4730
    %v5507 = vunpack.c.l.b16 %v4731
    %v5508 = vunpack.c.l.b16 %v4732
    %v5509 = vunpack.c.h.b16 %v4732
    %v5510 = vunpack.c.l.b16 %v4733
    %v5511 = vunpack.c.h.b16 %v4733
    %v5512 = vunpack.c.l.b16 %v4734
    %v5513 = vunpack.c.h.b16 %v4734
    %v5514 = vunpack.c.l.b16 %v4735
    %v5515 = vunpack.c.h.b16 %v4735
    %v5516 = vunpack.c.l.b16 %v4736
    %v5517 = vunpack.c.l.b16 %v4737
    %v5518 = vunpack.c.h.b16 %v4737
    %v5519 = vunpack.c.l.b16 %v4738
    %v5520 = vunpack.c.h.b16 %v4738
    %v5521 = vunpack.c.l.b16 %v4739
    %v5522 = vunpack.c.h.b16 %v4739
    %v5523 = vunpack.c.l.b16 %v4740
    %v5524 = vunpack.c.h.b16 %v4740
    %v5525 = vunpack.c.l.b16 %v4741
    %v5526 = vunpack.c.l.b16 %v4742
    %v5527 = vunpack.c.h.b16 %v4742
    %v5528 = vunpack.c.l.b16 %v4743
    %v5529 = vunpack.c.h.b16 %v4743
    %v5530 = vunpack.c.l.b16 %v4744
    %v5531 = vunpack.c.h.b16 %v4744
    %v5532 = vunpack.c.l.b16 %v4745
    %v5533 = vunpack.c.h.b16 %v4745
    %v5534 = vunpack.c.l.b16 %v4746
    %v5535 = vunpack.c.l.b16 %v4747
    %v5536 = vunpack.c.h.b16 %v4747
    %v5537 = vunpack.c.l.b16 %v4748
    %v5538 = vunpack.c.h.b16 %v4748
    %v5539 = vunpack.c.l.b16 %v4749
    %v5540 = vunpack.c.h.b16 %v4749
    %v5541 = vunpack.c.l.b16 %v4750
    %v5542 = vunpack.c.h.b16 %v4750
    %v5543 = vunpack.c.l.b16 %v4751
    %v5544 = vunpack.c.l.b16 %v4752
    %v5545 = vunpack.c.h.b16 %v4752
    %v5546 = vunpack.c.l.b16 %v4753
    %v5547 = vunpack.c.h.b16 %v4753
    %v5548 = vunpack.c.l.b16 %v4754
    %v5549 = vunpack.c.h.b16 %v4754
    %v5550 = vunpack.c.l.b16 %v4755
    %v5551 = vunpack.c.h.b16 %v4755
    %v5552 = vunpack.c.l.b16 %v4756
    %v5553 = vunpack.c.l.b16 %v4757
    %v5554 = vunpack.c.h.b16 %v4757
    %v5555 = vunpack.c.l.b16 %v4758
    %v5556 = vunpack.c.h.b16 %v4758
    %v5557 = vunpack.c.l.b16 %v4759
    %v5558 = vunpack.c.h.b16 %v4759
    %v5559 = vunpack.c.l.b16 %v4760
    %v5560 = vunpack.c.h.b16 %v4760
    %v5561 = vunpack.c.l.b16 %v4761
    %v5562 = vunpack.c.l.b16 %v4762
    %v5563 = vunpack.c.h.b16 %v4762
    %v5564 = vunpack.c.l.b16 %v4763
    %v5565 = vunpack.c.h.b16 %v4763
    %v5566 = vunpack.c.l.b16 %v4764
    %v5567 = vunpack.c.h.b16 %v4764
    %v5568 = vunpack.c.l.b16 %v4765
    %v5569 = vunpack.c.h.b16 %v4765
    %v5570 = vunpack.c.l.b16 %v4766
    %v5571 = vunpack.c.l.b16 %v4767
    %v5572 = vunpack.c.h.b16 %v4767
    %v5573 = vunpack.c.l.b16 %v4768
    %v5574 = vunpack.c.h.b16 %v4768
    %v5575 = vunpack.c.l.b16 %v4769
    %v5576 = vunpack.c.h.b16 %v4769
    %v5577 = vunpack.c.l.b16 %v4770
    %v5578 = vunpack.c.h.b16 %v4770
    %v5579 = vunpack.c.l.b16 %v4771
    %v5580 = vunpack.c.l.b16 %v4772
    %v5581 = vunpack.c.h.b16 %v4772
    %v5582 = vunpack.c.l.b16 %v4773
    %v5583 = vunpack.c.h.b16 %v4773
    %v5584 = vunpack.c.l.b16 %v4774
    %v5585 = vunpack.c.h.b16 %v4774
    %v5586 = vunpack.c.l.b16 %v4775
    %v5587 = vunpack.c.h.b16 %v4775
    %v5588 = vunpack.c.l.b16 %v4776
    %v5589 = vunpack.c.l.b16 %v4777
    %v5590 = vunpack.c.h.b16 %v4777
    %v5591 = vunpack.c.l.b16 %v4778
    %v5592 = vunpack.c.h.b16 %v4778
    %v5593 = vunpack.c.l.b16 %v4779
    %v5594 = vunpack.c.h.b16 %v4779
    %v5595 = vunpack.c.l.b16 %v4780
    %v5596 = vunpack.c.h.b16 %v4780
    %v5597 = vunpack.c.l.b16 %v4781
    %v5598 = vunpack.c.l.b16 %v4782
    %v5599 = vunpack.c.h.b16 %v4782
    %v5600 = vunpack.c.l.b16 %v4783
    %v5601 = vunpack.c.h.b16 %v4783
    %v5602 = vunpack.c.l.b16 %v4784
    %v5603 = vunpack.c.h.b16 %v4784
    %v5604 = vunpack.c.l.b16 %v4785
    %v5605 = vunpack.c.h.b16 %v4785
    %v5606 = vunpack.c.l.b16 %v4786
    %v5607 = vunpack.c.l.b16 %v4787
    %v5608 = vunpack.c.h.b16 %v4787
    %v5609 = vunpack.c.l.b16 %v4788
    %v5610 = vunpack.c.h.b16 %v4788
    %v5611 = vunpack.c.l.b16 %v4789
    %v5612 = vunpack.c.h.b16 %v4789
    %v5613 = vunpack.c.l.b16 %v4790
    %v5614 = vunpack.c.h.b16 %v4790
    %v5615 = vunpack.c.l.b16 %v4791
    %v5616 = vunpack.c.l.b16 %v4792
    %v5617 = vunpack.c.h.b16 %v4792
    %v5618 = vunpack.c.l.b16 %v4793
    %v5619 = vunpack.c.h.b16 %v4793
    %v5620 = vunpack.c.l.b16 %v4794
    %v5621 = vunpack.c.h.b16 %v4794
    %v5622 = vunpack.c.l.b16 %v4795
    %v5623 = vunpack.c.h.b16 %v4795
    %v5624 = vunpack.c.l.b16 %v4796
    %v5625 = vunpack.c.l.b16 %v4797
    %v5626 = vunpack.c.h.b16 %v4797
    %v5627 = vunpack.c.l.b16 %v4798
    %v5628 = vunpack.c.h.b16 %v4798
    %v5629 = vunpack.c.l.b16 %v4799
    %v5630 = vunpack.c.h.b16 %v4799
    %v5631 = vunpack.c.l.b16 %v4800
    %v5632 = vunpack.c.h.b16 %v4800
    %v5633 = vunpack.c.l.b16 %v4801
    %v5634 = vunpack.c.l.b16 %v4802
    %v5635 = vunpack.c.h.b16 %v4802
    %v5636 = vunpack.c.l.b16 %v4803
    %v5637 = vunpack.c.h.b16 %v4803
    %v5638 = vunpack.c.l.b16 %v4804
    %v5639 = vunpack.c.h.b16 %v4804
    %v5640 = vunpack.c.l.b16 %v4805
    %v5641 = vunpack.c.h.b16 %v4805
    %v5642 = vunpack.c.l.b16 %v4806
    %v5643 = vunpack.c.l.b16 %v4807
    %v5644 = vunpack.c.h.b16 %v4807
    %v5645 = vunpack.c.l.b16 %v4808
    %v5646 = vunpack.c.h.b16 %v4808
    %v5647 = vunpack.c.l.b16 %v4809
    %v5648 = vunpack.c.h.b16 %v4809
    %v5649 = vunpack.c.l.b16 %v4810
    %v5650 = vunpack.c.h.b16 %v4810
    %v5651 = vunpack.c.l.b16 %v4811
    %v5652 = vunpack.c.l.b16 %v4812
    %v5653 = vunpack.c.h.b16 %v4812
    %v5654 = vunpack.c.l.b16 %v4813
    %v5655 = vunpack.c.h.b16 %v4813
    %v5656 = vunpack.c.l.b16 %v4814
    %v5657 = vunpack.c.h.b16 %v4814
    %v5658 = vunpack.c.l.b16 %v4815
    %v5659 = vunpack.c.h.b16 %v4815
    %v5660 = vunpack.c.l.b16 %v4816
    %v5661 = vunpack.c.l.b16 %v4817
    %v5662 = vunpack.c.h.b16 %v4817
    %v5663 = vunpack.c.l.b16 %v4818
    %v5664 = vunpack.c.h.b16 %v4818
    %v5665 = vunpack.c.l.b16 %v4819
    %v5666 = vunpack.c.h.b16 %v4819
    %v5667 = vunpack.c.l.b16 %v4820
    %v5668 = vunpack.c.h.b16 %v4820
    %v5669 = vunpack.c.l.b16 %v4821
    %v5670 = vunpack.c.l.b16 %v4822
    %v5671 = vunpack.c.h.b16 %v4822
    %v5672 = vunpack.c.l.b16 %v4823
    %v5673 = vunpack.c.h.b16 %v4823
    %v5674 = vunpack.c.l.b16 %v4824
    %v5675 = vunpack.c.h.b16 %v4824
    %v5676 = vunpack.c.l.b16 %v4825
    %v5677 = vunpack.c.h.b16 %v4825
    %v5678 = vunpack.c.l.b16 %v4826
    %v5679 = vunpack.c.l.b16 %v4827
    %v5680 = vunpack.c.h.b16 %v4827
    %v5681 = vunpack.c.l.b16 %v4828
    %v5682 = vunpack.c.h.b16 %v4828
    %v5683 = vunpack.c.l.b16 %v4829
    %v5684 = vunpack.c.h.b16 %v4829
    %v5685 = vunpack.c.l.b16 %v4830
    %v5686 = vunpack.c.h.b16 %v4830
    %v5687 = vunpack.c.l.b16 %v4831
    %v5688 = vunpack.c.l.b16 %v4832
    %v5689 = vunpack.c.h.b16 %v4832
    %v5690 = vunpack.c.l.b16 %v4833
    %v5691 = vunpack.c.h.b16 %v4833
    %v5692 = vunpack.c.l.b16 %v4834
    %v5693 = vunpack.c.h.b16 %v4834
    %v5694 = vunpack.c.l.b16 %v4835
    %v5695 = vunpack.c.h.b16 %v4835
    %v5696 = vunpack.c.l.b16 %v4836
    %v5697 = vunpack.c.l.b16 %v4837
    %v5698 = vunpack.c.h.b16 %v4837
    %v5699 = vunpack.c.l.b16 %v4838
    %v5700 = vunpack.c.h.b16 %v4838
    %v5701 = vunpack.c.l.b16 %v4839
    %v5702 = vunpack.c.h.b16 %v4839
    %v5703 = vunpack.c.l.b16 %v4840
    %v5704 = vunpack.c.h.b16 %v4840
    %v5705 = vunpack.c.l.b16 %v4841
    %v5706 = vunpack.c.l.b16 %v4842
    %v5707 = vunpack.c.h.b16 %v4842
    %v5708 = vunpack.c.l.b16 %v4843
    %v5709 = vunpack.c.h.b16 %v4843
    %v5710 = vunpack.c.l.b16 %v4844
    %v5711 = vunpack.c.h.b16 %v4844
    %v5712 = vunpack.c.l.b16 %v4845
    %v5713 = vunpack.c.h.b16 %v4845
    %v5714 = vunpack.c.l.b16 %v4846
    %v5715 = vunpack.c.l.b16 %v4847
    %v5716 = vunpack.c.h.b16 %v4847
    %v5717 = vunpack.c.l.b16 %v4848
    %v5718 = vunpack.c.h.b16 %v4848
    %v5719 = vunpack.c.l.b16 %v4849
    %v5720 = vunpack.c.h.b16 %v4849
    %v5721 = vunpack.c.l.b16 %v4850
    %v5722 = vunpack.c.h.b16 %v4850
    %v5723 = vunpack.c.l.b16 %v4851
    %v5724 = vunpack.c.l.b16 %v4852
    %v5725 = vunpack.c.h.b16 %v4852
    %v5726 = vunpack.c.l.b16 %v4853
    %v5727 = vunpack.c.h.b16 %v4853
    %v5728 = vunpack.c.l.b16 %v4854
    %v5729 = vunpack.c.h.b16 %v4854
    %v5730 = vunpack.c.l.b16 %v4855
    %v5731 = vunpack.c.h.b16 %v4855
    %v5732 = vunpack.c.l.b16 %v4856
    %v5733 = vunpack.c.l.b16 %v4857
    %v5734 = vunpack.c.h.b16 %v4857
    %v5735 = vunpack.c.l.b16 %v4858
    %v5736 = vunpack.c.h.b16 %v4858
    %v5737 = vunpack.c.l.b16 %v4859
    %v5738 = vunpack.c.h.b16 %v4859
    %v5739 = vunpack.c.l.b16 %v4860
    %v5740 = vunpack.c.h.b16 %v4860
    %v5741 = vunpack.c.l.b16 %v4861
    %v5742 = vunpack.c.l.b16 %v4862
    %v5743 = vunpack.c.h.b16 %v4862
    %v5744 = vunpack.c.l.b16 %v4863
    %v5745 = vunpack.c.h.b16 %v4863
    %v5746 = vunpack.c.l.b16 %v4864
    %v5747 = vunpack.c.h.b16 %v4864
    %v5748 = vunpack.c.l.b16 %v4865
    %v5749 = vunpack.c.h.b16 %v4865
    %v5750 = vunpack.c.l.b16 %v4866
    %v5751 = vunpack.c.l.b16 %v4867
    %v5752 = vunpack.c.h.b16 %v4867
    %v5753 = vunpack.c.l.b16 %v4868
    %v5754 = vunpack.c.h.b16 %v4868
    %v5755 = vunpack.c.l.b16 %v4869
    %v5756 = vunpack.c.h.b16 %v4869
    %v5757 = vunpack.c.l.b16 %v4870
    %v5758 = vunpack.c.h.b16 %v4870
    %v5759 = vunpack.c.l.b16 %v4871
    %v5760 = vunpack.c.l.b16 %v4872
    %v5761 = vunpack.c.h.b16 %v4872
    %v5762 = vunpack.c.l.b16 %v4873
    %v5763 = vunpack.c.h.b16 %v4873
    %v5764 = vunpack.c.l.b16 %v4874
    %v5765 = vunpack.c.h.b16 %v4874
    %v5766 = vunpack.c.l.b16 %v4875
    %v5767 = vunpack.c.h.b16 %v4875
    %v5768 = vunpack.c.l.b16 %v4876
    %v5769 = vunpack.c.l.b16 %v4877
    %v5770 = vunpack.c.h.b16 %v4877
    %v5771 = vunpack.c.l.b16 %v4878
    %v5772 = vunpack.c.h.b16 %v4878
    %v5773 = vunpack.c.l.b16 %v4879
    %v5774 = vunpack.c.h.b16 %v4879
    %v5775 = vunpack.c.l.b16 %v4880
    %v5776 = vunpack.c.h.b16 %v4880
    %v5777 = vunpack.c.l.b16 %v4881
    %v5778 = vpack.c.b16 %v5211, %v5202
    %v5779 = vpack.c.b16 %v5212, %v5203
    %v5780 = vpack.c.b16 %v5213, %v5204
    %v5781 = vpack.c.b16 %v5214, %v5205
    %v5782 = vpack.c.b16 %v5215, %v5206
    %v5783 = vpack.c.b16 %v5216, %v5207
    %v5784 = vpack.c.b16 %v5217, %v5208
    %v5785 = vpack.c.b16 %v5218, %v5209
    %v5786 = vpack.c.b16 %v5219, %v5210
    %v5787 = vpack.c.b16 %v5229, %v5220
    %v5788 = vpack.c.b16 %v5230, %v5221
    %v5789 = vpack.c.b16 %v5231, %v5222
    %v5790 = vpack.c.b16 %v5232, %v5223
    %v5791 = vpack.c.b16 %v5233, %v5224
    %v5792 = vpack.c.b16 %v5234, %v5225
    %v5793 = vpack.c.b16 %v5235, %v5226
    %v5794 = vpack.c.b16 %v5236, %v5227
    %v5795 = vpack.c.b16 %v5237, %v5228
    %v5796 = vpack.c.b16 %v5247, %v5238
    %v5797 = vpack.c.b16 %v5248, %v5239
    %v5798 = vpack.c.b16 %v5249, %v5240
    %v5799 = vpack.c.b16 %v5250, %v5241
    %v5800 = vpack.c.b16 %v5251, %v5242
    %v5801 = vpack.c.b16 %v5252, %v5243
    %v5802 = vpack.c.b16 %v5253, %v5244
    %v5803 = vpack.c.b16 %v5254, %v5245
    %v5804 = vpack.c.b16 %v5255, %v5246
    %v5805 = vpack.c.b16 %v5265, %v5256
    %v5806 = vpack.c.b16 %v5266, %v5257
    %v5807 = vpack.c.b16 %v5267, %v5258
    %v5808 = vpack.c.b16 %v5268, %v5259
    %v5809 = vpack.c.b16 %v5269, %v5260
    %v5810 = vpack.c.b16 %v5270, %v5261
    %v5811 = vpack.c.b16 %v5271, %v5262
    %v5812 = vpack.c.b16 %v5272, %v5263
    %v5813 = vpack.c.b16 %v5273, %v5264
    %v5814 = vpack.c.b16 %v5283, %v5274
    %v5815 = vpack.c.b16 %v5284, %v5275
    %v5816 = vpack.c.b16 %v5285, %v5276
    %v5817 = vpack.c.b16 %v5286, %v5277
    %v5818 = vpack.c.b16 %v5287, %v5278
    %v5819 = vpack.c.b16 %v5288, %v5279
    %v5820 = vpack.c.b16 %v5289, %v5280
    %v5821 = vpack.c.b16 %v5290, %v5281
    %v5822 = vpack.c.b16 %v5291, %v5282
    %v5823 = vpack.c.b16 %v5301, %v5292
    %v5824 = vpack.c.b16 %v5302, %v5293
    %v5825 = vpack.c.b16 %v5303, %v5294
    %v5826 = vpack.c.b16 %v5304, %v5295
    %v5827 = vpack.c.b16 %v5305, %v5296
    %v5828 = vpack.c.b16 %v5306, %v5297
    %v5829 = vpack.c.b16 %v5307, %v5298
    %v5830 = vpack.c.b16 %v5308, %v5299
    %v5831 = vpack.c.b16 %v5309, %v5300
    %v5832 = vpack.c.b16 %v5319, %v5310
    %v5833 = vpack.c.b16 %v5320, %v5311
    %v5834 = vpack.c.b16 %v5321, %v5312
    %v5835 = vpack.c.b16 %v5322, %v5313
    %v5836 = vpack.c.b16 %v5323, %v5314
    %v5837 = vpack.c.b16 %v5324, %v5315
    %v5838 = vpack.c.b16 %v5325, %v5316
    %v5839 = vpack.c.b16 %v5326, %v5317
    %v5840 = vpack.c.b16 %v5327, %v5318
    %v5841 = vpack.c.b16 %v5337, %v5328
    %v5842 = vpack.c.b16 %v5338, %v5329
    %v5843 = vpack.c.b16 %v5339, %v5330
    %v5844 = vpack.c.b16 %v5340, %v5331
    %v5845 = vpack.c.b16 %v5341, %v5332
    %v5846 = vpack.c.b16 %v5342, %v5333
    %v5847 = vpack.c.b16 %v5343, %v5334
    %v5848 = vpack.c.b16 %v5344, %v5335
    %v5849 = vpack.c.b16 %v5345, %v5336
    %v5850 = vpack.c.b16 %v5355, %v5346
    %v5851 = vpack.c.b16 %v5356, %v5347
    %v5852 = vpack.c.b16 %v5357, %v5348
    %v5853 = vpack.c.b16 %v5358, %v5349
    %v5854 = vpack.c.b16 %v5359, %v5350
    %v5855 = vpack.c.b16 %v5360, %v5351
    %v5856 = vpack.c.b16 %v5361, %v5352
    %v5857 = vpack.c.b16 %v5362, %v5353
    %v5858 = vpack.c.b16 %v5363, %v5354
    %v5859 = vpack.c.b16 %v5373, %v5364
    %v5860 = vpack.c.b16 %v5374, %v5365
    %v5861 = vpack.c.b16 %v5375, %v5366
    %v5862 = vpack.c.b16 %v5376, %v5367
    %v5863 = vpack.c.b16 %v5377, %v5368
    %v5864 = vpack.c.b16 %v5378, %v5369
    %v5865 = vpack.c.b16 %v5379, %v5370
    %v5866 = vpack.c.b16 %v5380, %v5371
    %v5867 = vpack.c.b16 %v5381, %v5372
    %v5868 = vpack.c.b16 %v5391, %v5382
    %v5869 = vpack.c.b16 %v5392, %v5383
    %v5870 = vpack.c.b16 %v5393, %v5384
    %v5871 = vpack.c.b16 %v5394, %v5385
    %v5872 = vpack.c.b16 %v5395, %v5386
    %v5873 = vpack.c.b16 %v5396, %v5387
    %v5874 = vpack.c.b16 %v5397, %v5388
    %v5875 = vpack.c.b16 %v5398, %v5389
    %v5876 = vpack.c.b16 %v5399, %v5390
    %v5877 = vpack.c.b16 %v5409, %v5400
    %v5878 = vpack.c.b16 %v5410, %v5401
    %v5879 = vpack.c.b16 %v5411, %v5402
    %v5880 = vpack.c.b16 %v5412, %v5403
    %v5881 = vpack.c.b16 %v5413, %v5404
    %v5882 = vpack.c.b16 %v5414, %v5405
    %v5883 = vpack.c.b16 %v5415, %v5406
    %v5884 = vpack.c.b16 %v5416, %v5407
    %v5885 = vpack.c.b16 %v5417, %v5408
    %v5886 = vpack.c.b16 %v5427, %v5418
    %v5887 = vpack.c.b16 %v5428, %v5419
    %v5888 = vpack.c.b16 %v5429, %v5420
    %v5889 = vpack.c.b16 %v5430, %v5421
    %v5890 = vpack.c.b16 %v5431, %v5422
    %v5891 = vpack.c.b16 %v5432, %v5423
    %v5892 = vpack.c.b16 %v5433, %v5424
    %v5893 = vpack.c.b16 %v5434, %v5425
    %v5894 = vpack.c.b16 %v5435, %v5426
    %v5895 = vpack.c.b16 %v5445, %v5436
    %v5896 = vpack.c.b16 %v5446, %v5437
    %v5897 = vpack.c.b16 %v5447, %v5438
    %v5898 = vpack.c.b16 %v5448, %v5439
    %v5899 = vpack.c.b16 %v5449, %v5440
    %v5900 = vpack.c.b16 %v5450, %v5441
    %v5901 = vpack.c.b16 %v5451, %v5442
    %v5902 = vpack.c.b16 %v5452, %v5443
    %v5903 = vpack.c.b16 %v5453, %v5444
    %v5904 = vpack.c.b16 %v5463, %v5454
    %v5905 = vpack.c.b16 %v5464, %v5455
    %v5906 = vpack.c.b16 %v5465, %v5456
    %v5907 = vpack.c.b16 %v5466, %v5457
    %v5908 = vpack.c.b16 %v5467, %v5458
    %v5909 = vpack.c.b16 %v5468, %v5459
    %v5910 = vpack.c.b16 %v5469, %v5460
    %v5911 = vpack.c.b16 %v5470, %v5461
    %v5912 = vpack.c.b16 %v5471, %v5462
    %v5913 = vpack.c.b16 %v5481, %v5472
    %v5914 = vpack.c.b16 %v5482, %v5473
    %v5915 = vpack.c.b16 %v5483, %v5474
    %v5916 = vpack.c.b16 %v5484, %v5475
    %v5917 = vpack.c.b16 %v5485, %v5476
    %v5918 = vpack.c.b16 %v5486, %v5477
    %v5919 = vpack.c.b16 %v5487, %v5478
    %v5920 = vpack.c.b16 %v5488, %v5479
    %v5921 = vpack.c.b16 %v5489, %v5480
    %v5922 = vpack.c.b16 %v5499, %v5490
    %v5923 = vpack.c.b16 %v5500, %v5491
    %v5924 = vpack.c.b16 %v5501, %v5492
    %v5925 = vpack.c.b16 %v5502, %v5493
    %v5926 = vpack.c.b16 %v5503, %v5494
    %v5927 = vpack.c.b16 %v5504, %v5495
    %v5928 = vpack.c.b16 %v5505, %v5496
    %v5929 = vpack.c.b16 %v5506, %v5497
    %v5930 = vpack.c.b16 %v5507, %v5498
    %v5931 = vpack.c.b16 %v5517, %v5508
    %v5932 = vpack.c.b16 %v5518, %v5509
    %v5933 = vpack.c.b16 %v5519, %v5510
    %v5934 = vpack.c.b16 %v5520, %v5511
    %v5935 = vpack.c.b16 %v5521, %v5512
    %v5936 = vpack.c.b16 %v5522, %v5513
    %v5937 = vpack.c.b16 %v5523, %v5514
    %v5938 = vpack.c.b16 %v5524, %v5515
    %v5939 = vpack.c.b16 %v5525, %v5516
    %v5940 = vpack.c.b16 %v5535, %v5526
    %v5941 = vpack.c.b16 %v5536, %v5527
    %v5942 = vpack.c.b16 %v5537, %v5528
    %v5943 = vpack.c.b16 %v5538, %v5529
    %v5944 = vpack.c.b16 %v5539, %v5530
    %v5945 = vpack.c.b16 %v5540, %v5531
    %v5946 = vpack.c.b16 %v5541, %v5532
    %v5947 = vpack.c.b16 %v5542, %v5533
    %v5948 = vpack.c.b16 %v5543, %v5534
    %v5949 = vpack.c.b16 %v5553, %v5544
    %v5950 = vpack.c.b16 %v5554, %v5545
    %v5951 = vpack.c.b16 %v5555, %v5546
    %v5952 = vpack.c.b16 %v5556, %v5547
    %v5953 = vpack.c.b16 %v5557, %v5548
    %v5954 = vpack.c.b16 %v5558, %v5549
    %v5955 = vpack.c.b16 %v5559, %v5550
    %v5956 = vpack.c.b16 %v5560, %v5551
    %v5957 = vpack.c.b16 %v5561, %v5552
    %v5958 = vpack.c.b16 %v5571, %v5562
    %v5959 = vpack.c.b16 %v5572, %v5563
    %v5960 = vpack.c.b16 %v5573, %v5564
    %v5961 = vpack.c.b16 %v5574, %v5565
    %v5962 = vpack.c.b16 %v5575, %v5566
    %v5963 = vpack.c.b16 %v5576, %v5567
    %v5964 = vpack.c.b16 %v5577, %v5568
    %v5965 = vpack.c.b16 %v5578, %v5569
    %v5966 = vpack.c.b16 %v5579, %v5570
    %v5967 = vpack.c.b16 %v5589, %v5580
    %v5968 = vpack.c.b16 %v5590, %v5581
    %v5969 = vpack.c.b16 %v5591, %v5582
    %v5970 = vpack.c.b16 %v5592, %v5583
    %v5971 = vpack.c.b16 %v5593, %v5584
    %v5972 = vpack.c.b16 %v5594, %v5585
    %v5973 = vpack.c.b16 %v5595, %v5586
    %v5974 = vpack.c.b16 %v5596, %v5587
    %v5975 = vpack.c.b16 %v5597, %v5588
    %v5976 = vpack.c.b16 %v5607, %v5598
    %v5977 = vpack.c.b16 %v5608, %v5599
    %v5978 = vpack.c.b16 %v5609, %v5600
    %v5979 = vpack.c.b16 %v5610, %v5601
    %v5980 = vpack.c.b16 %v5611, %v5602
    %v5981 = vpack.c.b16 %v5612, %v5603
    %v5982 = vpack.c.b16 %v5613, %v5604
    %v5983 = vpack.c.b16 %v5614, %v5605
    %v5984 = vpack.c.b16 %v5615, %v5606
    %v5985 = vpack.c.b16 %v5625, %v5616
    %v5986 = vpack.c.b16 %v5626, %v5617
    %v5987 = vpack.c.b16 %v5627, %v5618
    %v5988 = vpack.c.b16 %v5628, %v5619
    %v5989 = vpack.c.b16 %v5629, %v5620
    %v5990 = vpack.c.b16 %v5630, %v5621
    %v5991 = vpack.c.b16 %v5631, %v5622
    %v5992 = vpack.c.b16 %v5632, %v5623
    %v5993 = vpack.c.b16 %v5633, %v5624
    %v5994 = vpack.c.b16 %v5643, %v5634
    %v5995 = vpack.c.b16 %v5644, %v5635
    %v5996 = vpack.c.b16 %v5645, %v5636
    %v5997 = vpack.c.b16 %v5646, %v5637
    %v5998 = vpack.c.b16 %v5647, %v5638
    %v5999 = vpack.c.b16 %v5648, %v5639
    %v6000 = vpack.c.b16 %v5649, %v5640
    %v6001 = vpack.c.b16 %v5650, %v5641
    %v6002 = vpack.c.b16 %v5651, %v5642
    %v6003 = vpack.c.b16 %v5661, %v5652
    %v6004 = vpack.c.b16 %v5662, %v5653
    %v6005 = vpack.c.b16 %v5663, %v5654
    %v6006 = vpack.c.b16 %v5664, %v5655
    %v6007 = vpack.c.b16 %v5665, %v5656
    %v6008 = vpack.c.b16 %v5666, %v5657
    %v6009 = vpack.c.b16 %v5667, %v5658
    %v6010 = vpack.c.b16 %v5668, %v5659
    %v6011 = vpack.c.b16 %v5669, %v5660
    %v6012 = vpack.c.b16 %v5679, %v5670
    %v6013 = vpack.c.b16 %v5680, %v5671
    %v6014 = vpack.c.b16 %v5681, %v5672
    %v6015 = vpack.c.b16 %v5682, %v5673
    %v6016 = vpack.c.b16 %v5683, %v5674
    %v6017 = vpack.c.b16 %v5684, %v5675
    %v6018 = vpack.c.b16 %v5685, %v5676
    %v6019 = vpack.c.b16 %v5686, %v5677
    %v6020 = vpack.c.b16 %v5687, %v5678
    %v6021 = vpack.c.b16 %v5697, %v5688
    %v6022 = vpack.c.b16 %v5698, %v5689
    %v6023 = vpack.c.b16 %v5699, %v5690
    %v6024 = vpack.c.b16 %v5700, %v5691
    %v6025 = vpack.c.b16 %v5701, %v5692
    %v6026 = vpack.c.b16 %v5702, %v5693
    %v6027 = vpack.c.b16 %v5703, %v5694
    %v6028 = vpack.c.b16 %v5704, %v5695
    %v6029 = vpack.c.b16 %v5705, %v5696
    %v6030 = vpack.c.b16 %v5715, %v5706
    %v6031 = vpack.c.b16 %v5716, %v5707
    %v6032 = vpack.c.b16 %v5717, %v5708
    %v6033 = vpack.c.b16 %v5718, %v5709
    %v6034 = vpack.c.b16 %v5719, %v5710
    %v6035 = vpack.c.b16 %v5720, %v5711
    %v6036 = vpack.c.b16 %v5721, %v5712
    %v6037 = vpack.c.b16 %v5722, %v5713
    %v6038 = vpack.c.b16 %v5723, %v5714
    %v6039 = vpack.c.b16 %v5733, %v5724
    %v6040 = vpack.c.b16 %v5734, %v5725
    %v6041 = vpack.c.b16 %v5735, %v5726
    %v6042 = vpack.c.b16 %v5736, %v5727
    %v6043 = vpack.c.b16 %v5737, %v5728
    %v6044 = vpack.c.b16 %v5738, %v5729
    %v6045 = vpack.c.b16 %v5739, %v5730
    %v6046 = vpack.c.b16 %v5740, %v5731
    %v6047 = vpack.c.b16 %v5741, %v5732
    %v6048 = vpack.c.b16 %v5751, %v5742
    %v6049 = vpack.c.b16 %v5752, %v5743
    %v6050 = vpack.c.b16 %v5753, %v5744
    %v6051 = vpack.c.b16 %v5754, %v5745
    %v6052 = vpack.c.b16 %v5755, %v5746
    %v6053 = vpack.c.b16 %v5756, %v5747
    %v6054 = vpack.c.b16 %v5757, %v5748
    %v6055 = vpack.c.b16 %v5758, %v5749
    %v6056 = vpack.c.b16 %v5759, %v5750
    %v6057 = vpack.c.b16 %v5769, %v5760
    %v6058 = vpack.c.b16 %v5770, %v5761
    %v6059 = vpack.c.b16 %v5771, %v5762
    %v6060 = vpack.c.b16 %v5772, %v5763
    %v6061 = vpack.c.b16 %v5773, %v5764
    %v6062 = vpack.c.b16 %v5774, %v5765
    %v6063 = vpack.c.b16 %v5775, %v5766
    %v6064 = vpack.c.b16 %v5776, %v5767
    %v6065 = vpack.c.b16 %v5777, %v5768
    %6354 = vmatprep.subr.bf16.mxu0 %v5842
    %6355 = vmatpush1.bf16.msra.mxu0 %v5841
    %6356 = vmatprep.subr.bf16.mxu0 %v5833
    %6357 = vmatpush1.bf16.msra.mxu0 %v5832
    %6358 = vmatprep.subr.bf16.mxu0 %v5824
    %6359 = vmatpush1.bf16.msra.mxu0 %v5823
    %6360 = vmatprep.subr.bf16.mxu0 %v5815
    %6361 = vmatpush1.bf16.msra.mxu0 %v5814
    %6362 = vmatprep.subr.bf16.mxu0 %v5806
    %6363 = vmatpush1.bf16.msra.mxu0 %v5805
    %6364 = vmatprep.subr.bf16.mxu0 %v5797
    %6365 = vmatpush1.bf16.msra.mxu0 %v5796
    %6366 = vmatprep.subr.bf16.mxu0 %v5788
    %6367 = vmatpush1.bf16.msra.mxu0 %v5787
    %6368 = vmatprep.subr.bf16.mxu0 %v5779
    %6369 = vmatpush1.bf16.msra.mxu0 %v5778
    %6370 = vmatprep.subr.bf16.mxu0 %v5914
    %6371 = vmatpush2.bf16.msra.mxu0 %v5913
    %6372 = vmatprep.subr.bf16.mxu0 %v5905
    %6373 = vmatpush2.bf16.msra.mxu0 %v5904
    %6374 = vmatprep.subr.bf16.mxu0 %v5896
    %6375 = vmatpush2.bf16.msra.mxu0 %v5895
    %6376 = vmatprep.subr.bf16.mxu0 %v5887
    %6377 = vmatpush2.bf16.msra.mxu0 %v5886
    %6378 = vmatprep.subr.bf16.mxu0 %v5878
    %6379 = vmatpush2.bf16.msra.mxu0 %v5877
    %6380 = vmatprep.subr.bf16.mxu0 %v5869
    %6381 = vmatpush2.bf16.msra.mxu0 %v5868
    %6382 = vmatprep.subr.bf16.mxu0 %v5860
    %6383 = vmatpush2.bf16.msra.mxu0 %v5859
    %6384 = vmatprep.subr.bf16.mxu0 %v5851
    %6385 = vmatpush2.bf16.msra.mxu0 %v5850
    %6386 = vmatprep.mubr.bf16.mxu0 %v464
    %6387 = vmatmul.mubr.bf16.gmra.mxu0 %v457
    %v6388 = vpop.f32.mrf.mxu0
    %v6389 = vadd.f32 0.0, %v6388
    %v6390 = vpop.f32.mrf.mxu0
    %v6391 = vadd.f32 0.0, %v6390
    %v6392 = vpop.f32.mrf.mxu0
    %v6393 = vpop.f32.mrf.mxu0
    %6394 = vdwg.mxu0
    %6395 = vmatprep.subr.bf16.mxu0 %v5986
    %6396 = vmatpush1.bf16.msra.mxu0 %v5985
    %6397 = vmatprep.subr.bf16.mxu0 %v5977
    %6398 = vmatpush1.bf16.msra.mxu0 %v5976
    %6399 = vmatprep.subr.bf16.mxu0 %v5968
    %6400 = vmatpush1.bf16.msra.mxu0 %v5967
    %6401 = vmatprep.subr.bf16.mxu0 %v5959
    %6402 = vmatpush1.bf16.msra.mxu0 %v5958
    %6403 = vmatprep.subr.bf16.mxu0 %v5950
    %6404 = vmatpush1.bf16.msra.mxu0 %v5949
    %6405 = vmatprep.subr.bf16.mxu0 %v5941
    %6406 = vmatpush1.bf16.msra.mxu0 %v5940
    %6407 = vmatprep.subr.bf16.mxu0 %v5932
    %6408 = vmatpush1.bf16.msra.mxu0 %v5931
    %6409 = vmatprep.subr.bf16.mxu0 %v5923
    %6410 = vmatpush1.bf16.msra.mxu0 %v5922
    %6411 = vmatprep.subr.bf16.mxu0 %v6058
    %6412 = vmatpush2.bf16.msra.mxu0 %v6057
    %6413 = vmatprep.subr.bf16.mxu0 %v6049
    %6414 = vmatpush2.bf16.msra.mxu0 %v6048
    %6415 = vmatprep.subr.bf16.mxu0 %v6040
    %6416 = vmatpush2.bf16.msra.mxu0 %v6039
    %6417 = vmatprep.subr.bf16.mxu0 %v6031
    %6418 = vmatpush2.bf16.msra.mxu0 %v6030
    %6419 = vmatprep.subr.bf16.mxu0 %v6022
    %6420 = vmatpush2.bf16.msra.mxu0 %v6021
    %6421 = vmatprep.subr.bf16.mxu0 %v6013
    %6422 = vmatpush2.bf16.msra.mxu0 %v6012
    %6423 = vmatprep.subr.bf16.mxu0 %v6004
    %6424 = vmatpush2.bf16.msra.mxu0 %v6003
    %6425 = vmatprep.subr.bf16.mxu0 %v5995
    %6426 = vmatpush2.bf16.msra.mxu0 %v5994
    %6427 = vmatprep.mubr.bf16.mxu0 %v466
    %6428 = vmatmul.mubr.bf16.gmra.mxu0 %v465
    %v6429 = vpop.f32.mrf.mxu0
    %v6430 = vadd.f32 %v6389, %v6429
    %v6431 = vpop.f32.mrf.mxu0
    %v6432 = vadd.f32 %v6391, %v6431
    %v6433 = vpop.f32.mrf.mxu0
    %v6434 = vpop.f32.mrf.mxu0
    %6435 = vdwg.mxu0
    %6436 = vmatprep.subr.bf16.mxu0 %v5844
    %6437 = vmatpush1.bf16.msra.mxu0 %v5843
    %6438 = vmatprep.subr.bf16.mxu0 %v5835
    %6439 = vmatpush1.bf16.msra.mxu0 %v5834
    %6440 = vmatprep.subr.bf16.mxu0 %v5826
    %6441 = vmatpush1.bf16.msra.mxu0 %v5825
    %6442 = vmatprep.subr.bf16.mxu0 %v5817
    %6443 = vmatpush1.bf16.msra.mxu0 %v5816
    %6444 = vmatprep.subr.bf16.mxu0 %v5808
    %6445 = vmatpush1.bf16.msra.mxu0 %v5807
    %6446 = vmatprep.subr.bf16.mxu0 %v5799
    %6447 = vmatpush1.bf16.msra.mxu0 %v5798
    %6448 = vmatprep.subr.bf16.mxu0 %v5790
    %6449 = vmatpush1.bf16.msra.mxu0 %v5789
    %6450 = vmatprep.subr.bf16.mxu0 %v5781
    %6451 = vmatpush1.bf16.msra.mxu0 %v5780
    %6452 = vmatprep.subr.bf16.mxu0 %v5916
    %6453 = vmatpush2.bf16.msra.mxu0 %v5915
    %6454 = vmatprep.subr.bf16.mxu0 %v5907
    %6455 = vmatpush2.bf16.msra.mxu0 %v5906
    %6456 = vmatprep.subr.bf16.mxu0 %v5898
    %6457 = vmatpush2.bf16.msra.mxu0 %v5897
    %6458 = vmatprep.subr.bf16.mxu0 %v5889
    %6459 = vmatpush2.bf16.msra.mxu0 %v5888
    %6460 = vmatprep.subr.bf16.mxu0 %v5880
    %6461 = vmatpush2.bf16.msra.mxu0 %v5879
    %6462 = vmatprep.subr.bf16.mxu0 %v5871
    %6463 = vmatpush2.bf16.msra.mxu0 %v5870
    %6464 = vmatprep.subr.bf16.mxu0 %v5862
    %6465 = vmatpush2.bf16.msra.mxu0 %v5861
    %6466 = vmatprep.subr.bf16.mxu0 %v5853
    %6467 = vmatpush2.bf16.msra.mxu0 %v5852
    %6468 = vmatprep.mubr.bf16.mxu0 %v464
    %6469 = vmatmul.mubr.bf16.gmra.mxu0 %v457
    %v6470 = vpop.f32.mrf.mxu0
    %v6471 = vadd.f32 0.0, %v6470
    %v6472 = vpop.f32.mrf.mxu0
    %v6473 = vadd.f32 0.0, %v6472
    %v6474 = vpop.f32.mrf.mxu0
    %v6475 = vpop.f32.mrf.mxu0
    %6476 = vdwg.mxu0
    %6477 = vmatprep.subr.bf16.mxu0 %v5988
    %6478 = vmatpush1.bf16.msra.mxu0 %v5987
    %6479 = vmatprep.subr.bf16.mxu0 %v5979
    %6480 = vmatpush1.bf16.msra.mxu0 %v5978
    %6481 = vmatprep.subr.bf16.mxu0 %v5970
    %6482 = vmatpush1.bf16.msra.mxu0 %v5969
    %6483 = vmatprep.subr.bf16.mxu0 %v5961
    %6484 = vmatpush1.bf16.msra.mxu0 %v5960
    %6485 = vmatprep.subr.bf16.mxu0 %v5952
    %6486 = vmatpush1.bf16.msra.mxu0 %v5951
    %6487 = vmatprep.subr.bf16.mxu0 %v5943
    %6488 = vmatpush1.bf16.msra.mxu0 %v5942
    %6489 = vmatprep.subr.bf16.mxu0 %v5934
    %6490 = vmatpush1.bf16.msra.mxu0 %v5933
    %6491 = vmatprep.subr.bf16.mxu0 %v5925
    %6492 = vmatpush1.bf16.msra.mxu0 %v5924
    %6493 = vmatprep.subr.bf16.mxu0 %v6060
    %6494 = vmatpush2.bf16.msra.mxu0 %v6059
    %6495 = vmatprep.subr.bf16.mxu0 %v6051
    %6496 = vmatpush2.bf16.msra.mxu0 %v6050
    %6497 = vmatprep.subr.bf16.mxu0 %v6042
    %6498 = vmatpush2.bf16.msra.mxu0 %v6041
    %6499 = vmatprep.subr.bf16.mxu0 %v6033
    %6500 = vmatpush2.bf16.msra.mxu0 %v6032
    %6501 = vmatprep.subr.bf16.mxu0 %v6024
    %6502 = vmatpush2.bf16.msra.mxu0 %v6023
    %6503 = vmatprep.subr.bf16.mxu0 %v6015
    %6504 = vmatpush2.bf16.msra.mxu0 %v6014
    %6505 = vmatprep.subr.bf16.mxu0 %v6006
    %6506 = vmatpush2.bf16.msra.mxu0 %v6005
    %6507 = vmatprep.subr.bf16.mxu0 %v5997
    %6508 = vmatpush2.bf16.msra.mxu0 %v5996
    %6509 = vmatprep.mubr.bf16.mxu0 %v466
    %6510 = vmatmul.mubr.bf16.gmra.mxu0 %v465
    %v6511 = vpop.f32.mrf.mxu0
    %v6512 = vadd.f32 %v6471, %v6511
    %v6513 = vpop.f32.mrf.mxu0
    %v6514 = vadd.f32 %v6473, %v6513
    %v6515 = vpop.f32.mrf.mxu0
    %v6516 = vpop.f32.mrf.mxu0
    %6517 = vdwg.mxu0
    %6518 = vmatprep.subr.bf16.mxu0 %v5846
    %6519 = vmatpush1.bf16.msra.mxu0 %v5845
    %6520 = vmatprep.subr.bf16.mxu0 %v5837
    %6521 = vmatpush1.bf16.msra.mxu0 %v5836
    %6522 = vmatprep.subr.bf16.mxu0 %v5828
    %6523 = vmatpush1.bf16.msra.mxu0 %v5827
    %6524 = vmatprep.subr.bf16.mxu0 %v5819
    %6525 = vmatpush1.bf16.msra.mxu0 %v5818
    %6526 = vmatprep.subr.bf16.mxu0 %v5810
    %6527 = vmatpush1.bf16.msra.mxu0 %v5809
    %6528 = vmatprep.subr.bf16.mxu0 %v5801
    %6529 = vmatpush1.bf16.msra.mxu0 %v5800
    %6530 = vmatprep.subr.bf16.mxu0 %v5792
    %6531 = vmatpush1.bf16.msra.mxu0 %v5791
    %6532 = vmatprep.subr.bf16.mxu0 %v5783
    %6533 = vmatpush1.bf16.msra.mxu0 %v5782
    %6534 = vmatprep.subr.bf16.mxu0 %v5918
    %6535 = vmatpush2.bf16.msra.mxu0 %v5917
    %6536 = vmatprep.subr.bf16.mxu0 %v5909
    %6537 = vmatpush2.bf16.msra.mxu0 %v5908
    %6538 = vmatprep.subr.bf16.mxu0 %v5900
    %6539 = vmatpush2.bf16.msra.mxu0 %v5899
    %6540 = vmatprep.subr.bf16.mxu0 %v5891
    %6541 = vmatpush2.bf16.msra.mxu0 %v5890
    %6542 = vmatprep.subr.bf16.mxu0 %v5882
    %6543 = vmatpush2.bf16.msra.mxu0 %v5881
    %6544 = vmatprep.subr.bf16.mxu0 %v5873
    %6545 = vmatpush2.bf16.msra.mxu0 %v5872
    %6546 = vmatprep.subr.bf16.mxu0 %v5864
    %6547 = vmatpush2.bf16.msra.mxu0 %v5863
    %6548 = vmatprep.subr.bf16.mxu0 %v5855
    %6549 = vmatpush2.bf16.msra.mxu0 %v5854
    %6550 = vmatprep.mubr.bf16.mxu0 %v464
    %6551 = vmatmul.mubr.bf16.gmra.mxu0 %v457
    %v6552 = vpop.f32.mrf.mxu0
    %v6553 = vadd.f32 0.0, %v6552
    %v6554 = vpop.f32.mrf.mxu0
    %v6555 = vadd.f32 0.0, %v6554
    %v6556 = vpop.f32.mrf.mxu0
    %v6557 = vpop.f32.mrf.mxu0
    %6558 = vdwg.mxu0
    %6559 = vmatprep.subr.bf16.mxu0 %v5990
    %6560 = vmatpush1.bf16.msra.mxu0 %v5989
    %6561 = vmatprep.subr.bf16.mxu0 %v5981
    %6562 = vmatpush1.bf16.msra.mxu0 %v5980
    %6563 = vmatprep.subr.bf16.mxu0 %v5972
    %6564 = vmatpush1.bf16.msra.mxu0 %v5971
    %6565 = vmatprep.subr.bf16.mxu0 %v5963
    %6566 = vmatpush1.bf16.msra.mxu0 %v5962
    %6567 = vmatprep.subr.bf16.mxu0 %v5954
    %6568 = vmatpush1.bf16.msra.mxu0 %v5953
    %6569 = vmatprep.subr.bf16.mxu0 %v5945
    %6570 = vmatpush1.bf16.msra.mxu0 %v5944
    %6571 = vmatprep.subr.bf16.mxu0 %v5936
    %6572 = vmatpush1.bf16.msra.mxu0 %v5935
    %6573 = vmatprep.subr.bf16.mxu0 %v5927
    %6574 = vmatpush1.bf16.msra.mxu0 %v5926
    %6575 = vmatprep.subr.bf16.mxu0 %v6062
    %6576 = vmatpush2.bf16.msra.mxu0 %v6061
    %6577 = vmatprep.subr.bf16.mxu0 %v6053
    %6578 = vmatpush2.bf16.msra.mxu0 %v6052
    %6579 = vmatprep.subr.bf16.mxu0 %v6044
    %6580 = vmatpush2.bf16.msra.mxu0 %v6043
    %6581 = vmatprep.subr.bf16.mxu0 %v6035
    %6582 = vmatpush2.bf16.msra.mxu0 %v6034
    %6583 = vmatprep.subr.bf16.mxu0 %v6026
    %6584 = vmatpush2.bf16.msra.mxu0 %v6025
    %6585 = vmatprep.subr.bf16.mxu0 %v6017
    %6586 = vmatpush2.bf16.msra.mxu0 %v6016
    %6587 = vmatprep.subr.bf16.mxu0 %v6008
    %6588 = vmatpush2.bf16.msra.mxu0 %v6007
    %6589 = vmatprep.subr.bf16.mxu0 %v5999
    %6590 = vmatpush2.bf16.msra.mxu0 %v5998
    %6591 = vmatprep.mubr.bf16.mxu0 %v466
    %6592 = vmatmul.mubr.bf16.gmra.mxu0 %v465
    %v6593 = vpop.f32.mrf.mxu0
    %v6594 = vadd.f32 %v6553, %v6593
    %v6595 = vpop.f32.mrf.mxu0
    %v6596 = vadd.f32 %v6555, %v6595
    %v6597 = vpop.f32.mrf.mxu0
    %v6598 = vpop.f32.mrf.mxu0
    %6599 = vdwg.mxu0
    %6600 = vmatprep.subr.bf16.mxu0 %v5848
    %6601 = vmatpush1.bf16.msra.mxu0 %v5847
    %6602 = vmatprep.subr.bf16.mxu0 %v5839
    %6603 = vmatpush1.bf16.msra.mxu0 %v5838
    %6604 = vmatprep.subr.bf16.mxu0 %v5830
    %6605 = vmatpush1.bf16.msra.mxu0 %v5829
    %6606 = vmatprep.subr.bf16.mxu0 %v5821
    %6607 = vmatpush1.bf16.msra.mxu0 %v5820
    %6608 = vmatprep.subr.bf16.mxu0 %v5812
    %6609 = vmatpush1.bf16.msra.mxu0 %v5811
    %6610 = vmatprep.subr.bf16.mxu0 %v5803
    %6611 = vmatpush1.bf16.msra.mxu0 %v5802
    %6612 = vmatprep.subr.bf16.mxu0 %v5794
    %6613 = vmatpush1.bf16.msra.mxu0 %v5793
    %6614 = vmatprep.subr.bf16.mxu0 %v5785
    %6615 = vmatpush1.bf16.msra.mxu0 %v5784
    %6616 = vmatprep.subr.bf16.mxu0 %v5920
    %6617 = vmatpush2.bf16.msra.mxu0 %v5919
    %6618 = vmatprep.subr.bf16.mxu0 %v5911
    %6619 = vmatpush2.bf16.msra.mxu0 %v5910
    %6620 = vmatprep.subr.bf16.mxu0 %v5902
    %6621 = vmatpush2.bf16.msra.mxu0 %v5901
    %6622 = vmatprep.subr.bf16.mxu0 %v5893
    %6623 = vmatpush2.bf16.msra.mxu0 %v5892
    %6624 = vmatprep.subr.bf16.mxu0 %v5884
    %6625 = vmatpush2.bf16.msra.mxu0 %v5883
    %6626 = vmatprep.subr.bf16.mxu0 %v5875
    %6627 = vmatpush2.bf16.msra.mxu0 %v5874
    %6628 = vmatprep.subr.bf16.mxu0 %v5866
    %6629 = vmatpush2.bf16.msra.mxu0 %v5865
    %6630 = vmatprep.subr.bf16.mxu0 %v5857
    %6631 = vmatpush2.bf16.msra.mxu0 %v5856
    %6632 = vmatprep.mubr.bf16.mxu0 %v464
    %6633 = vmatmul.mubr.bf16.gmra.mxu0 %v457
    %v6634 = vpop.f32.mrf.mxu0
    %v6635 = vadd.f32 0.0, %v6634
    %v6636 = vpop.f32.mrf.mxu0
    %v6637 = vadd.f32 0.0, %v6636
    %v6638 = vpop.f32.mrf.mxu0
    %v6639 = vpop.f32.mrf.mxu0
    %6640 = vdwg.mxu0
    %6641 = vmatprep.subr.bf16.mxu0 %v5992
    %6642 = vmatpush1.bf16.msra.mxu0 %v5991
    %6643 = vmatprep.subr.bf16.mxu0 %v5983
    %6644 = vmatpush1.bf16.msra.mxu0 %v5982
    %6645 = vmatprep.subr.bf16.mxu0 %v5974
    %6646 = vmatpush1.bf16.msra.mxu0 %v5973
    %6647 = vmatprep.subr.bf16.mxu0 %v5965
    %6648 = vmatpush1.bf16.msra.mxu0 %v5964
    %6649 = vmatprep.subr.bf16.mxu0 %v5956
    %6650 = vmatpush1.bf16.msra.mxu0 %v5955
    %6651 = vmatprep.subr.bf16.mxu0 %v5947
    %6652 = vmatpush1.bf16.msra.mxu0 %v5946
    %6653 = vmatprep.subr.bf16.mxu0 %v5938
    %6654 = vmatpush1.bf16.msra.mxu0 %v5937
    %6655 = vmatprep.subr.bf16.mxu0 %v5929
    %6656 = vmatpush1.bf16.msra.mxu0 %v5928
    %6657 = vmatprep.subr.bf16.mxu0 %v6064
    %6658 = vmatpush2.bf16.msra.mxu0 %v6063
    %6659 = vmatprep.subr.bf16.mxu0 %v6055
    %6660 = vmatpush2.bf16.msra.mxu0 %v6054
    %6661 = vmatprep.subr.bf16.mxu0 %v6046
    %6662 = vmatpush2.bf16.msra.mxu0 %v6045
    %6663 = vmatprep.subr.bf16.mxu0 %v6037
    %6664 = vmatpush2.bf16.msra.mxu0 %v6036
    %6665 = vmatprep.subr.bf16.mxu0 %v6028
    %6666 = vmatpush2.bf16.msra.mxu0 %v6027
    %6667 = vmatprep.subr.bf16.mxu0 %v6019
    %6668 = vmatpush2.bf16.msra.mxu0 %v6018
    %6669 = vmatprep.subr.bf16.mxu0 %v6010
    %6670 = vmatpush2.bf16.msra.mxu0 %v6009
    %6671 = vmatprep.subr.bf16.mxu0 %v6001
    %6672 = vmatpush2.bf16.msra.mxu0 %v6000
    %6673 = vmatprep.mubr.bf16.mxu0 %v466
    %6674 = vmatmul.mubr.bf16.gmra.mxu0 %v465
    %v6675 = vpop.f32.mrf.mxu0
    %v6676 = vadd.f32 %v6635, %v6675
    %v6677 = vpop.f32.mrf.mxu0
    %v6678 = vadd.f32 %v6637, %v6677
    %v6679 = vpop.f32.mrf.mxu0
    %v6680 = vpop.f32.mrf.mxu0
    %6681 = vdwg.mxu0
    %6682 = vmatprep.subr.bf16.mxu0 0
    %6683 = vmatpush1.bf16.msra.mxu0 %v5849
    %6684 = vmatprep.subr.bf16.mxu0 0
    %6685 = vmatpush1.bf16.msra.mxu0 %v5840
    %6686 = vmatprep.subr.bf16.mxu0 0
    %6687 = vmatpush1.bf16.msra.mxu0 %v5831
    %6688 = vmatprep.subr.bf16.mxu0 0
    %6689 = vmatpush1.bf16.msra.mxu0 %v5822
    %6690 = vmatprep.subr.bf16.mxu0 0
    %6691 = vmatpush1.bf16.msra.mxu0 %v5813
    %6692 = vmatprep.subr.bf16.mxu0 0
    %6693 = vmatpush1.bf16.msra.mxu0 %v5804
    %6694 = vmatprep.subr.bf16.mxu0 0
    %6695 = vmatpush1.bf16.msra.mxu0 %v5795
    %6696 = vmatprep.subr.bf16.mxu0 0
    %6697 = vmatpush1.bf16.msra.mxu0 %v5786
    %6698 = vmatprep.subr.bf16.mxu0 0
    %6699 = vmatpush2.bf16.msra.mxu0 %v5921
    %6700 = vmatprep.subr.bf16.mxu0 0
    %6701 = vmatpush2.bf16.msra.mxu0 %v5912
    %6702 = vmatprep.subr.bf16.mxu0 0
    %6703 = vmatpush2.bf16.msra.mxu0 %v5903
    %6704 = vmatprep.subr.bf16.mxu0 0
    %6705 = vmatpush2.bf16.msra.mxu0 %v5894
    %6706 = vmatprep.subr.bf16.mxu0 0
    %6707 = vmatpush2.bf16.msra.mxu0 %v5885
    %6708 = vmatprep.subr.bf16.mxu0 0
    %6709 = vmatpush2.bf16.msra.mxu0 %v5876
    %6710 = vmatprep.subr.bf16.mxu0 0
    %6711 = vmatpush2.bf16.msra.mxu0 %v5867
    %6712 = vmatprep.subr.bf16.mxu0 0
    %6713 = vmatpush2.bf16.msra.mxu0 %v5858
    %6714 = vmatprep.mubr.bf16.mxu0 %v464
    %6715 = vmatmul.mubr.bf16.gmra.mxu0 %v457
    %v6716 = vpop.f32.mrf.mxu0
    %v6717 = vadd.f32 0.0, %v6716
    %v6718 = vpop.f32.mrf.mxu0
    %v6719 = vpop.f32.mrf.mxu0
    %v6720 = vpop.f32.mrf.mxu0
    %6721 = vdwg.mxu0
    %6722 = vmatprep.subr.bf16.mxu0 0
    %6723 = vmatpush1.bf16.msra.mxu0 %v5993
    %6724 = vmatprep.subr.bf16.mxu0 0
    %6725 = vmatpush1.bf16.msra.mxu0 %v5984
    %6726 = vmatprep.subr.bf16.mxu0 0
    %6727 = vmatpush1.bf16.msra.mxu0 %v5975
    %6728 = vmatprep.subr.bf16.mxu0 0
    %6729 = vmatpush1.bf16.msra.mxu0 %v5966
    %6730 = vmatprep.subr.bf16.mxu0 0
    %6731 = vmatpush1.bf16.msra.mxu0 %v5957
    %6732 = vmatprep.subr.bf16.mxu0 0
    %6733 = vmatpush1.bf16.msra.mxu0 %v5948
    %6734 = vmatprep.subr.bf16.mxu0 0
    %6735 = vmatpush1.bf16.msra.mxu0 %v5939
    %6736 = vmatprep.subr.bf16.mxu0 0
    %6737 = vmatpush1.bf16.msra.mxu0 %v5930
    %6738 = vmatprep.subr.bf16.mxu0 0
    %6739 = vmatpush2.bf16.msra.mxu0 %v6065
    %6740 = vmatprep.subr.bf16.mxu0 0
    %6741 = vmatpush2.bf16.msra.mxu0 %v6056
    %6742 = vmatprep.subr.bf16.mxu0 0
    %6743 = vmatpush2.bf16.msra.mxu0 %v6047
    %6744 = vmatprep.subr.bf16.mxu0 0
    %6745 = vmatpush2.bf16.msra.mxu0 %v6038
    %6746 = vmatprep.subr.bf16.mxu0 0
    %6747 = vmatpush2.bf16.msra.mxu0 %v6029
    %6748 = vmatprep.subr.bf16.mxu0 0
    %6749 = vmatpush2.bf16.msra.mxu0 %v6020
    %6750 = vmatprep.subr.bf16.mxu0 0
    %6751 = vmatpush2.bf16.msra.mxu0 %v6011
    %6752 = vmatprep.subr.bf16.mxu0 0
    %6753 = vmatpush2.bf16.msra.mxu0 %v6002
    %6754 = vmatprep.mubr.bf16.mxu0 %v466
    %6755 = vmatmul.mubr.bf16.gmra.mxu0 %v465
    %v6756 = vpop.f32.mrf.mxu0
    %v6757 = vadd.f32 %v6717, %v6756
    %v6758 = vpop.f32.mrf.mxu0
    %v6759 = vpop.f32.mrf.mxu0
    %v6760 = vpop.f32.mrf.mxu0
    %6761 = vdwg.mxu0
    %v6762 = vmax.f32 %v4552, %v6430
    %v6763 = vmax.f32 %v4553, %v6432
    %v6764 = vmax.f32 %v4554, %v6512
    %v6765 = vmax.f32 %v4555, %v6514
    %v6766 = vmax.f32 %v4556, %v6594
    %v6767 = vmax.f32 %v4557, %v6596
    %v6768 = vmax.f32 %v4558, %v6676
    %v6769 = vmax.f32 %v4559, %v6678
    %v6770 = vmax.f32 %v4560, %v6757
    %s6771 = scalar_lea.vmem [#allocation4], 6912
    %v6772 = vld [vmem:[%s6771] sm:$0xff]
    %v6773 = vld [vmem:[%s6771 + $0x8] sm:$0xff]
    %v6774 = vld [vmem:[%s6771 + $0x10] sm:$0xff]
    %v6775 = vld [vmem:[%s6771 + $0x18] sm:$0xff]
    %v6776 = vld [vmem:[%s6771 + $0x20] sm:$0xf]
    %v6777 = vld [vmem:[%s6771 + $0x24] sm:$0xff]
    %v6778 = vld [vmem:[%s6771 + $0x2c] sm:$0xff]
    %v6779 = vld [vmem:[%s6771 + $0x34] sm:$0xff]
    %v6780 = vld [vmem:[%s6771 + $0x3c] sm:$0xff]
    %v6781 = vld [vmem:[%s6771 + $0x44] sm:$0xf]
    %v6782 = vld [vmem:[%s6771 + $0x48] sm:$0xff]
    %v6783 = vld [vmem:[%s6771 + $0x50] sm:$0xff]
    %v6784 = vld [vmem:[%s6771 + $0x58] sm:$0xff]
    %v6785 = vld [vmem:[%s6771 + $0x60] sm:$0xff]
    %v6786 = vld [vmem:[%s6771 + $0x68] sm:$0xf]
    %v6787 = vld [vmem:[%s6771 + $0x6c] sm:$0xff]
    %v6788 = vld [vmem:[%s6771 + $0x74] sm:$0xff]
    %v6789 = vld [vmem:[%s6771 + $0x7c] sm:$0xff]
    %v6790 = vld [vmem:[%s6771 + $0x84] sm:$0xff]
    %v6791 = vld [vmem:[%s6771 + $0x8c] sm:$0xf]
    %v6792 = vld [vmem:[%s6771 + $0x90] sm:$0xff]
    %v6793 = vld [vmem:[%s6771 + $0x98] sm:$0xff]
    %v6794 = vld [vmem:[%s6771 + $0xa0] sm:$0xff]
    %v6795 = vld [vmem:[%s6771 + $0xa8] sm:$0xff]
    %v6796 = vld [vmem:[%s6771 + $0xb0] sm:$0xf]
    %v6797 = vld [vmem:[%s6771 + $0xb4] sm:$0xff]
    %v6798 = vld [vmem:[%s6771 + $0xbc] sm:$0xff]
    %v6799 = vld [vmem:[%s6771 + $0xc4] sm:$0xff]
    %v6800 = vld [vmem:[%s6771 + $0xcc] sm:$0xff]
    %v6801 = vld [vmem:[%s6771 + $0xd4] sm:$0xf]
    %v6802 = vld [vmem:[%s6771 + $0xd8] sm:$0xff]
    %v6803 = vld [vmem:[%s6771 + $0xe0] sm:$0xff]
    %v6804 = vld [vmem:[%s6771 + $0xe8] sm:$0xff]
    %v6805 = vld [vmem:[%s6771 + $0xf0] sm:$0xff]
    %v6806 = vld [vmem:[%s6771 + $0xf8] sm:$0xf]
    %v6807 = vld [vmem:[%s6771 + $0xfc] sm:$0xff]
    %v6808 = vld [vmem:[%s6771 + $0x104] sm:$0xff]
    %v6809 = vld [vmem:[%s6771 + $0x10c] sm:$0xff]
    %v6810 = vld [vmem:[%s6771 + $0x114] sm:$0xff]
    %v6811 = vld [vmem:[%s6771 + $0x11c] sm:$0xf]
    %v6812 = vld [vmem:[%s6771 + $0x120] sm:$0xff]
    %v6813 = vld [vmem:[%s6771 + $0x128] sm:$0xff]
    %v6814 = vld [vmem:[%s6771 + $0x130] sm:$0xff]
    %v6815 = vld [vmem:[%s6771 + $0x138] sm:$0xff]
    %v6816 = vld [vmem:[%s6771 + $0x140] sm:$0xf]
    %v6817 = vld [vmem:[%s6771 + $0x144] sm:$0xff]
    %v6818 = vld [vmem:[%s6771 + $0x14c] sm:$0xff]
    %v6819 = vld [vmem:[%s6771 + $0x154] sm:$0xff]
    %v6820 = vld [vmem:[%s6771 + $0x15c] sm:$0xff]
    %v6821 = vld [vmem:[%s6771 + $0x164] sm:$0xf]
    %v6822 = vld [vmem:[%s6771 + $0x168] sm:$0xff]
    %v6823 = vld [vmem:[%s6771 + $0x170] sm:$0xff]
    %v6824 = vld [vmem:[%s6771 + $0x178] sm:$0xff]
    %v6825 = vld [vmem:[%s6771 + $0x180] sm:$0xff]
    %v6826 = vld [vmem:[%s6771 + $0x188] sm:$0xf]
    %v6827 = vld [vmem:[%s6771 + $0x18c] sm:$0xff]
    %v6828 = vld [vmem:[%s6771 + $0x194] sm:$0xff]
    %v6829 = vld [vmem:[%s6771 + $0x19c] sm:$0xff]
    %v6830 = vld [vmem:[%s6771 + $0x1a4] sm:$0xff]
    %v6831 = vld [vmem:[%s6771 + $0x1ac] sm:$0xf]
    %v6832 = vld [vmem:[%s6771 + $0x1b0] sm:$0xff]
    %v6833 = vld [vmem:[%s6771 + $0x1b8] sm:$0xff]
    %v6834 = vld [vmem:[%s6771 + $0x1c0] sm:$0xff]
    %v6835 = vld [vmem:[%s6771 + $0x1c8] sm:$0xff]
    %v6836 = vld [vmem:[%s6771 + $0x1d0] sm:$0xf]
    %v6837 = vld [vmem:[%s6771 + $0x1d4] sm:$0xff]
    %v6838 = vld [vmem:[%s6771 + $0x1dc] sm:$0xff]
    %v6839 = vld [vmem:[%s6771 + $0x1e4] sm:$0xff]
    %v6840 = vld [vmem:[%s6771 + $0x1ec] sm:$0xff]
    %v6841 = vld [vmem:[%s6771 + $0x1f4] sm:$0xf]
    %v6842 = vld [vmem:[%s6771 + $0x1f8] sm:$0xff]
    %v6843 = vld [vmem:[%s6771 + $0x200] sm:$0xff]
    %v6844 = vld [vmem:[%s6771 + $0x208] sm:$0xff]
    %v6845 = vld [vmem:[%s6771 + $0x210] sm:$0xff]
    %v6846 = vld [vmem:[%s6771 + $0x218] sm:$0xf]
    %v6847 = vld [vmem:[%s6771 + $0x21c] sm:$0xff]
    %v6848 = vld [vmem:[%s6771 + $0x224] sm:$0xff]
    %v6849 = vld [vmem:[%s6771 + $0x22c] sm:$0xff]
    %v6850 = vld [vmem:[%s6771 + $0x234] sm:$0xff]
    %v6851 = vld [vmem:[%s6771 + $0x23c] sm:$0xf]
    %v6852 = vld [vmem:[%s6771 + $0x240] sm:$0xff]
    %v6853 = vld [vmem:[%s6771 + $0x248] sm:$0xff]
    %v6854 = vld [vmem:[%s6771 + $0x250] sm:$0xff]
    %v6855 = vld [vmem:[%s6771 + $0x258] sm:$0xff]
    %v6856 = vld [vmem:[%s6771 + $0x260] sm:$0xf]
    %v6857 = vld [vmem:[%s6771 + $0x264] sm:$0xff]
    %v6858 = vld [vmem:[%s6771 + $0x26c] sm:$0xff]
    %v6859 = vld [vmem:[%s6771 + $0x274] sm:$0xff]
    %v6860 = vld [vmem:[%s6771 + $0x27c] sm:$0xff]
    %v6861 = vld [vmem:[%s6771 + $0x284] sm:$0xf]
    %v6862 = vld [vmem:[%s6771 + $0x288] sm:$0xff]
    %v6863 = vld [vmem:[%s6771 + $0x290] sm:$0xff]
    %v6864 = vld [vmem:[%s6771 + $0x298] sm:$0xff]
    %v6865 = vld [vmem:[%s6771 + $0x2a0] sm:$0xff]
    %v6866 = vld [vmem:[%s6771 + $0x2a8] sm:$0xf]
    %v6867 = vld [vmem:[%s6771 + $0x2ac] sm:$0xff]
    %v6868 = vld [vmem:[%s6771 + $0x2b4] sm:$0xff]
    %v6869 = vld [vmem:[%s6771 + $0x2bc] sm:$0xff]
    %v6870 = vld [vmem:[%s6771 + $0x2c4] sm:$0xff]
    %v6871 = vld [vmem:[%s6771 + $0x2cc] sm:$0xf]
    %v6872 = vld [vmem:[%s6771 + $0x2d0] sm:$0xff]
    %v6873 = vld [vmem:[%s6771 + $0x2d8] sm:$0xff]
    %v6874 = vld [vmem:[%s6771 + $0x2e0] sm:$0xff]
    %v6875 = vld [vmem:[%s6771 + $0x2e8] sm:$0xff]
    %v6876 = vld [vmem:[%s6771 + $0x2f0] sm:$0xf]
    %v6877 = vld [vmem:[%s6771 + $0x2f4] sm:$0xff]
    %v6878 = vld [vmem:[%s6771 + $0x2fc] sm:$0xff]
    %v6879 = vld [vmem:[%s6771 + $0x304] sm:$0xff]
    %v6880 = vld [vmem:[%s6771 + $0x30c] sm:$0xff]
    %v6881 = vld [vmem:[%s6771 + $0x314] sm:$0xf]
    %v6882 = vld [vmem:[%s6771 + $0x318] sm:$0xff]
    %v6883 = vld [vmem:[%s6771 + $0x320] sm:$0xff]
    %v6884 = vld [vmem:[%s6771 + $0x328] sm:$0xff]
    %v6885 = vld [vmem:[%s6771 + $0x330] sm:$0xff]
    %v6886 = vld [vmem:[%s6771 + $0x338] sm:$0xf]
    %v6887 = vld [vmem:[%s6771 + $0x33c] sm:$0xff]
    %v6888 = vld [vmem:[%s6771 + $0x344] sm:$0xff]
    %v6889 = vld [vmem:[%s6771 + $0x34c] sm:$0xff]
    %v6890 = vld [vmem:[%s6771 + $0x354] sm:$0xff]
    %v6891 = vld [vmem:[%s6771 + $0x35c] sm:$0xf]
    %v6892 = vld [vmem:[%s6771 + $0x360] sm:$0xff]
    %v6893 = vld [vmem:[%s6771 + $0x368] sm:$0xff]
    %v6894 = vld [vmem:[%s6771 + $0x370] sm:$0xff]
    %v6895 = vld [vmem:[%s6771 + $0x378] sm:$0xff]
    %v6896 = vld [vmem:[%s6771 + $0x380] sm:$0xf]
    %v6897 = vld [vmem:[%s6771 + $0x384] sm:$0xff]
    %v6898 = vld [vmem:[%s6771 + $0x38c] sm:$0xff]
    %v6899 = vld [vmem:[%s6771 + $0x394] sm:$0xff]
    %v6900 = vld [vmem:[%s6771 + $0x39c] sm:$0xff]
    %v6901 = vld [vmem:[%s6771 + $0x3a4] sm:$0xf]
    %v6902 = vld [vmem:[%s6771 + $0x3a8] sm:$0xff]
    %v6903 = vld [vmem:[%s6771 + $0x3b0] sm:$0xff]
    %v6904 = vld [vmem:[%s6771 + $0x3b8] sm:$0xff]
    %v6905 = vld [vmem:[%s6771 + $0x3c0] sm:$0xff]
    %v6906 = vld [vmem:[%s6771 + $0x3c8] sm:$0xf]
    %v6907 = vld [vmem:[%s6771 + $0x3cc] sm:$0xff]
    %v6908 = vld [vmem:[%s6771 + $0x3d4] sm:$0xff]
    %v6909 = vld [vmem:[%s6771 + $0x3dc] sm:$0xff]
    %v6910 = vld [vmem:[%s6771 + $0x3e4] sm:$0xff]
    %v6911 = vld [vmem:[%s6771 + $0x3ec] sm:$0xf]
    %v6912 = vld [vmem:[%s6771 + $0x3f0] sm:$0xff]
    %v6913 = vld [vmem:[%s6771 + $0x3f8] sm:$0xff]
    %v6914 = vld [vmem:[%s6771 + $0x400] sm:$0xff]
    %v6915 = vld [vmem:[%s6771 + $0x408] sm:$0xff]
    %v6916 = vld [vmem:[%s6771 + $0x410] sm:$0xf]
    %v6917 = vld [vmem:[%s6771 + $0x414] sm:$0xff]
    %v6918 = vld [vmem:[%s6771 + $0x41c] sm:$0xff]
    %v6919 = vld [vmem:[%s6771 + $0x424] sm:$0xff]
    %v6920 = vld [vmem:[%s6771 + $0x42c] sm:$0xff]
    %v6921 = vld [vmem:[%s6771 + $0x434] sm:$0xf]
    %v6922 = vld [vmem:[%s6771 + $0x438] sm:$0xff]
    %v6923 = vld [vmem:[%s6771 + $0x440] sm:$0xff]
    %v6924 = vld [vmem:[%s6771 + $0x448] sm:$0xff]
    %v6925 = vld [vmem:[%s6771 + $0x450] sm:$0xff]
    %v6926 = vld [vmem:[%s6771 + $0x458] sm:$0xf]
    %v6927 = vld [vmem:[%s6771 + $0x45c] sm:$0xff]
    %v6928 = vld [vmem:[%s6771 + $0x464] sm:$0xff]
    %v6929 = vld [vmem:[%s6771 + $0x46c] sm:$0xff]
    %v6930 = vld [vmem:[%s6771 + $0x474] sm:$0xff]
    %v6931 = vld [vmem:[%s6771 + $0x47c] sm:$0xf]
    %v6932 = vld [vmem:[%s6771 + $0x480] sm:$0xff]
    %v6933 = vld [vmem:[%s6771 + $0x488] sm:$0xff]
    %v6934 = vld [vmem:[%s6771 + $0x490] sm:$0xff]
    %v6935 = vld [vmem:[%s6771 + $0x498] sm:$0xff]
    %v6936 = vld [vmem:[%s6771 + $0x4a0] sm:$0xf]
    %v6937 = vld [vmem:[%s6771 + $0x4a4] sm:$0xff]
    %v6938 = vld [vmem:[%s6771 + $0x4ac] sm:$0xff]
    %v6939 = vld [vmem:[%s6771 + $0x4b4] sm:$0xff]
    %v6940 = vld [vmem:[%s6771 + $0x4bc] sm:$0xff]
    %v6941 = vld [vmem:[%s6771 + $0x4c4] sm:$0xf]
    %v6942 = vld [vmem:[%s6771 + $0x4c8] sm:$0xff]
    %v6943 = vld [vmem:[%s6771 + $0x4d0] sm:$0xff]
    %v6944 = vld [vmem:[%s6771 + $0x4d8] sm:$0xff]
    %v6945 = vld [vmem:[%s6771 + $0x4e0] sm:$0xff]
    %v6946 = vld [vmem:[%s6771 + $0x4e8] sm:$0xf]
    %v6947 = vld [vmem:[%s6771 + $0x4ec] sm:$0xff]
    %v6948 = vld [vmem:[%s6771 + $0x4f4] sm:$0xff]
    %v6949 = vld [vmem:[%s6771 + $0x4fc] sm:$0xff]
    %v6950 = vld [vmem:[%s6771 + $0x504] sm:$0xff]
    %v6951 = vld [vmem:[%s6771 + $0x50c] sm:$0xf]
    %v6952 = vld [vmem:[%s6771 + $0x510] sm:$0xff]
    %v6953 = vld [vmem:[%s6771 + $0x518] sm:$0xff]
    %v6954 = vld [vmem:[%s6771 + $0x520] sm:$0xff]
    %v6955 = vld [vmem:[%s6771 + $0x528] sm:$0xff]
    %v6956 = vld [vmem:[%s6771 + $0x530] sm:$0xf]
    %v6957 = vld [vmem:[%s6771 + $0x534] sm:$0xff]
    %v6958 = vld [vmem:[%s6771 + $0x53c] sm:$0xff]
    %v6959 = vld [vmem:[%s6771 + $0x544] sm:$0xff]
    %v6960 = vld [vmem:[%s6771 + $0x54c] sm:$0xff]
    %v6961 = vld [vmem:[%s6771 + $0x554] sm:$0xf]
    %v6962 = vld [vmem:[%s6771 + $0x558] sm:$0xff]
    %v6963 = vld [vmem:[%s6771 + $0x560] sm:$0xff]
    %v6964 = vld [vmem:[%s6771 + $0x568] sm:$0xff]
    %v6965 = vld [vmem:[%s6771 + $0x570] sm:$0xff]
    %v6966 = vld [vmem:[%s6771 + $0x578] sm:$0xf]
    %v6967 = vld [vmem:[%s6771 + $0x57c] sm:$0xff]
    %v6968 = vld [vmem:[%s6771 + $0x584] sm:$0xff]
    %v6969 = vld [vmem:[%s6771 + $0x58c] sm:$0xff]
    %v6970 = vld [vmem:[%s6771 + $0x594] sm:$0xff]
    %v6971 = vld [vmem:[%s6771 + $0x59c] sm:$0xf]
    %v6972 = vld [vmem:[%s6771 + $0x5a0] sm:$0xff]
    %v6973 = vld [vmem:[%s6771 + $0x5a8] sm:$0xff]
    %v6974 = vld [vmem:[%s6771 + $0x5b0] sm:$0xff]
    %v6975 = vld [vmem:[%s6771 + $0x5b8] sm:$0xff]
    %v6976 = vld [vmem:[%s6771 + $0x5c0] sm:$0xf]
    %v6977 = vld [vmem:[%s6771 + $0x5c4] sm:$0xff]
    %v6978 = vld [vmem:[%s6771 + $0x5cc] sm:$0xff]
    %v6979 = vld [vmem:[%s6771 + $0x5d4] sm:$0xff]
    %v6980 = vld [vmem:[%s6771 + $0x5dc] sm:$0xff]
    %v6981 = vld [vmem:[%s6771 + $0x5e4] sm:$0xf]
    %v6982 = vld [vmem:[%s6771 + $0x5e8] sm:$0xff]
    %v6983 = vld [vmem:[%s6771 + $0x5f0] sm:$0xff]
    %v6984 = vld [vmem:[%s6771 + $0x5f8] sm:$0xff]
    %v6985 = vld [vmem:[%s6771 + $0x600] sm:$0xff]
    %v6986 = vld [vmem:[%s6771 + $0x608] sm:$0xf]
    %v6987 = vld [vmem:[%s6771 + $0x60c] sm:$0xff]
    %v6988 = vld [vmem:[%s6771 + $0x614] sm:$0xff]
    %v6989 = vld [vmem:[%s6771 + $0x61c] sm:$0xff]
    %v6990 = vld [vmem:[%s6771 + $0x624] sm:$0xff]
    %v6991 = vld [vmem:[%s6771 + $0x62c] sm:$0xf]
    %v6992 = vld [vmem:[%s6771 + $0x630] sm:$0xff]
    %v6993 = vld [vmem:[%s6771 + $0x638] sm:$0xff]
    %v6994 = vld [vmem:[%s6771 + $0x640] sm:$0xff]
    %v6995 = vld [vmem:[%s6771 + $0x648] sm:$0xff]
    %v6996 = vld [vmem:[%s6771 + $0x650] sm:$0xf]
    %v6997 = vld [vmem:[%s6771 + $0x654] sm:$0xff]
    %v6998 = vld [vmem:[%s6771 + $0x65c] sm:$0xff]
    %v6999 = vld [vmem:[%s6771 + $0x664] sm:$0xff]
    %v7000 = vld [vmem:[%s6771 + $0x66c] sm:$0xff]
    %v7001 = vld [vmem:[%s6771 + $0x674] sm:$0xf]
    %v7002 = vld [vmem:[%s6771 + $0x678] sm:$0xff]
    %v7003 = vld [vmem:[%s6771 + $0x680] sm:$0xff]
    %v7004 = vld [vmem:[%s6771 + $0x688] sm:$0xff]
    %v7005 = vld [vmem:[%s6771 + $0x690] sm:$0xff]
    %v7006 = vld [vmem:[%s6771 + $0x698] sm:$0xf]
    %v7007 = vld [vmem:[%s6771 + $0x69c] sm:$0xff]
    %v7008 = vld [vmem:[%s6771 + $0x6a4] sm:$0xff]
    %v7009 = vld [vmem:[%s6771 + $0x6ac] sm:$0xff]
    %v7010 = vld [vmem:[%s6771 + $0x6b4] sm:$0xff]
    %v7011 = vld [vmem:[%s6771 + $0x6bc] sm:$0xf]
    %v7012 = vld [vmem:[%s6771 + $0x6c0] sm:$0xff]
    %v7013 = vld [vmem:[%s6771 + $0x6c8] sm:$0xff]
    %v7014 = vld [vmem:[%s6771 + $0x6d0] sm:$0xff]
    %v7015 = vld [vmem:[%s6771 + $0x6d8] sm:$0xff]
    %v7016 = vld [vmem:[%s6771 + $0x6e0] sm:$0xf]
    %v7017 = vld [vmem:[%s6771 + $0x6e4] sm:$0xff]
    %v7018 = vld [vmem:[%s6771 + $0x6ec] sm:$0xff]
    %v7019 = vld [vmem:[%s6771 + $0x6f4] sm:$0xff]
    %v7020 = vld [vmem:[%s6771 + $0x6fc] sm:$0xff]
    %v7021 = vld [vmem:[%s6771 + $0x704] sm:$0xf]
    %v7022 = vld [vmem:[%s6771 + $0x708] sm:$0xff]
    %v7023 = vld [vmem:[%s6771 + $0x710] sm:$0xff]
    %v7024 = vld [vmem:[%s6771 + $0x718] sm:$0xff]
    %v7025 = vld [vmem:[%s6771 + $0x720] sm:$0xff]
    %v7026 = vld [vmem:[%s6771 + $0x728] sm:$0xf]
    %v7027 = vld [vmem:[%s6771 + $0x72c] sm:$0xff]
    %v7028 = vld [vmem:[%s6771 + $0x734] sm:$0xff]
    %v7029 = vld [vmem:[%s6771 + $0x73c] sm:$0xff]
    %v7030 = vld [vmem:[%s6771 + $0x744] sm:$0xff]
    %v7031 = vld [vmem:[%s6771 + $0x74c] sm:$0xf]
    %v7032 = vld [vmem:[%s6771 + $0x750] sm:$0xff]
    %v7033 = vld [vmem:[%s6771 + $0x758] sm:$0xff]
    %v7034 = vld [vmem:[%s6771 + $0x760] sm:$0xff]
    %v7035 = vld [vmem:[%s6771 + $0x768] sm:$0xff]
    %v7036 = vld [vmem:[%s6771 + $0x770] sm:$0xf]
    %v7037 = vld [vmem:[%s6771 + $0x774] sm:$0xff]
    %v7038 = vld [vmem:[%s6771 + $0x77c] sm:$0xff]
    %v7039 = vld [vmem:[%s6771 + $0x784] sm:$0xff]
    %v7040 = vld [vmem:[%s6771 + $0x78c] sm:$0xff]
    %v7041 = vld [vmem:[%s6771 + $0x794] sm:$0xf]
    %v7042 = vld [vmem:[%s6771 + $0x798] sm:$0xff]
    %v7043 = vld [vmem:[%s6771 + $0x7a0] sm:$0xff]
    %v7044 = vld [vmem:[%s6771 + $0x7a8] sm:$0xff]
    %v7045 = vld [vmem:[%s6771 + $0x7b0] sm:$0xff]
    %v7046 = vld [vmem:[%s6771 + $0x7b8] sm:$0xf]
    %v7047 = vld [vmem:[%s6771 + $0x7bc] sm:$0xff]
    %v7048 = vld [vmem:[%s6771 + $0x7c4] sm:$0xff]
    %v7049 = vld [vmem:[%s6771 + $0x7cc] sm:$0xff]
    %v7050 = vld [vmem:[%s6771 + $0x7d4] sm:$0xff]
    %v7051 = vld [vmem:[%s6771 + $0x7dc] sm:$0xf]
    %v7052 = vld [vmem:[%s6771 + $0x7e0] sm:$0xff]
    %v7053 = vld [vmem:[%s6771 + $0x7e8] sm:$0xff]
    %v7054 = vld [vmem:[%s6771 + $0x7f0] sm:$0xff]
    %v7055 = vld [vmem:[%s6771 + $0x7f8] sm:$0xff]
    %v7056 = vld [vmem:[%s6771 + $0x800] sm:$0xf]
    %v7057 = vld [vmem:[%s6771 + $0x804] sm:$0xff]
    %v7058 = vld [vmem:[%s6771 + $0x80c] sm:$0xff]
    %v7059 = vld [vmem:[%s6771 + $0x814] sm:$0xff]
    %v7060 = vld [vmem:[%s6771 + $0x81c] sm:$0xff]
    %v7061 = vld [vmem:[%s6771 + $0x824] sm:$0xf]
    %v7062 = vld [vmem:[%s6771 + $0x828] sm:$0xff]
    %v7063 = vld [vmem:[%s6771 + $0x830] sm:$0xff]
    %v7064 = vld [vmem:[%s6771 + $0x838] sm:$0xff]
    %v7065 = vld [vmem:[%s6771 + $0x840] sm:$0xff]
    %v7066 = vld [vmem:[%s6771 + $0x848] sm:$0xf]
    %v7067 = vld [vmem:[%s6771 + $0x84c] sm:$0xff]
    %v7068 = vld [vmem:[%s6771 + $0x854] sm:$0xff]
    %v7069 = vld [vmem:[%s6771 + $0x85c] sm:$0xff]
    %v7070 = vld [vmem:[%s6771 + $0x864] sm:$0xff]
    %v7071 = vld [vmem:[%s6771 + $0x86c] sm:$0xf]
    %v7072 = vld [vmem:[%s6771 + $0x870] sm:$0xff]
    %v7073 = vld [vmem:[%s6771 + $0x878] sm:$0xff]
    %v7074 = vld [vmem:[%s6771 + $0x880] sm:$0xff]
    %v7075 = vld [vmem:[%s6771 + $0x888] sm:$0xff]
    %v7076 = vld [vmem:[%s6771 + $0x890] sm:$0xf]
    %v7077 = vld [vmem:[%s6771 + $0x894] sm:$0xff]
    %v7078 = vld [vmem:[%s6771 + $0x89c] sm:$0xff]
    %v7079 = vld [vmem:[%s6771 + $0x8a4] sm:$0xff]
    %v7080 = vld [vmem:[%s6771 + $0x8ac] sm:$0xff]
    %v7081 = vld [vmem:[%s6771 + $0x8b4] sm:$0xf]
    %v7082 = vld [vmem:[%s6771 + $0x8b8] sm:$0xff]
    %v7083 = vld [vmem:[%s6771 + $0x8c0] sm:$0xff]
    %v7084 = vld [vmem:[%s6771 + $0x8c8] sm:$0xff]
    %v7085 = vld [vmem:[%s6771 + $0x8d0] sm:$0xff]
    %v7086 = vld [vmem:[%s6771 + $0x8d8] sm:$0xf]
    %v7087 = vld [vmem:[%s6771 + $0x8dc] sm:$0xff]
    %v7088 = vld [vmem:[%s6771 + $0x8e4] sm:$0xff]
    %v7089 = vld [vmem:[%s6771 + $0x8ec] sm:$0xff]
    %v7090 = vld [vmem:[%s6771 + $0x8f4] sm:$0xff]
    %v7091 = vld [vmem:[%s6771 + $0x8fc] sm:$0xf]
    %v7412 = vunpack.c.l.b16 %v6772
    %v7413 = vunpack.c.h.b16 %v6772
    %v7414 = vunpack.c.l.b16 %v6773
    %v7415 = vunpack.c.h.b16 %v6773
    %v7416 = vunpack.c.l.b16 %v6774
    %v7417 = vunpack.c.h.b16 %v6774
    %v7418 = vunpack.c.l.b16 %v6775
    %v7419 = vunpack.c.h.b16 %v6775
    %v7420 = vunpack.c.l.b16 %v6776
    %v7421 = vunpack.c.l.b16 %v6777
    %v7422 = vunpack.c.h.b16 %v6777
    %v7423 = vunpack.c.l.b16 %v6778
    %v7424 = vunpack.c.h.b16 %v6778
    %v7425 = vunpack.c.l.b16 %v6779
    %v7426 = vunpack.c.h.b16 %v6779
    %v7427 = vunpack.c.l.b16 %v6780
    %v7428 = vunpack.c.h.b16 %v6780
    %v7429 = vunpack.c.l.b16 %v6781
    %v7430 = vunpack.c.l.b16 %v6782
    %v7431 = vunpack.c.h.b16 %v6782
    %v7432 = vunpack.c.l.b16 %v6783
    %v7433 = vunpack.c.h.b16 %v6783
    %v7434 = vunpack.c.l.b16 %v6784
    %v7435 = vunpack.c.h.b16 %v6784
    %v7436 = vunpack.c.l.b16 %v6785
    %v7437 = vunpack.c.h.b16 %v6785
    %v7438 = vunpack.c.l.b16 %v6786
    %v7439 = vunpack.c.l.b16 %v6787
    %v7440 = vunpack.c.h.b16 %v6787
    %v7441 = vunpack.c.l.b16 %v6788
    %v7442 = vunpack.c.h.b16 %v6788
    %v7443 = vunpack.c.l.b16 %v6789
    %v7444 = vunpack.c.h.b16 %v6789
    %v7445 = vunpack.c.l.b16 %v6790
    %v7446 = vunpack.c.h.b16 %v6790
    %v7447 = vunpack.c.l.b16 %v6791
    %v7448 = vunpack.c.l.b16 %v6792
    %v7449 = vunpack.c.h.b16 %v6792
    %v7450 = vunpack.c.l.b16 %v6793
    %v7451 = vunpack.c.h.b16 %v6793
    %v7452 = vunpack.c.l.b16 %v6794
    %v7453 = vunpack.c.h.b16 %v6794
    %v7454 = vunpack.c.l.b16 %v6795
    %v7455 = vunpack.c.h.b16 %v6795
    %v7456 = vunpack.c.l.b16 %v6796
    %v7457 = vunpack.c.l.b16 %v6797
    %v7458 = vunpack.c.h.b16 %v6797
    %v7459 = vunpack.c.l.b16 %v6798
    %v7460 = vunpack.c.h.b16 %v6798
    %v7461 = vunpack.c.l.b16 %v6799
    %v7462 = vunpack.c.h.b16 %v6799
    %v7463 = vunpack.c.l.b16 %v6800
    %v7464 = vunpack.c.h.b16 %v6800
    %v7465 = vunpack.c.l.b16 %v6801
    %v7466 = vunpack.c.l.b16 %v6802
    %v7467 = vunpack.c.h.b16 %v6802
    %v7468 = vunpack.c.l.b16 %v6803
    %v7469 = vunpack.c.h.b16 %v6803
    %v7470 = vunpack.c.l.b16 %v6804
    %v7471 = vunpack.c.h.b16 %v6804
    %v7472 = vunpack.c.l.b16 %v6805
    %v7473 = vunpack.c.h.b16 %v6805
    %v7474 = vunpack.c.l.b16 %v6806
    %v7475 = vunpack.c.l.b16 %v6807
    %v7476 = vunpack.c.h.b16 %v6807
    %v7477 = vunpack.c.l.b16 %v6808
    %v7478 = vunpack.c.h.b16 %v6808
    %v7479 = vunpack.c.l.b16 %v6809
    %v7480 = vunpack.c.h.b16 %v6809
    %v7481 = vunpack.c.l.b16 %v6810
    %v7482 = vunpack.c.h.b16 %v6810
    %v7483 = vunpack.c.l.b16 %v6811
    %v7484 = vunpack.c.l.b16 %v6812
    %v7485 = vunpack.c.h.b16 %v6812
    %v7486 = vunpack.c.l.b16 %v6813
    %v7487 = vunpack.c.h.b16 %v6813
    %v7488 = vunpack.c.l.b16 %v6814
    %v7489 = vunpack.c.h.b16 %v6814
    %v7490 = vunpack.c.l.b16 %v6815
    %v7491 = vunpack.c.h.b16 %v6815
    %v7492 = vunpack.c.l.b16 %v6816
    %v7493 = vunpack.c.l.b16 %v6817
    %v7494 = vunpack.c.h.b16 %v6817
    %v7495 = vunpack.c.l.b16 %v6818
    %v7496 = vunpack.c.h.b16 %v6818
    %v7497 = vunpack.c.l.b16 %v6819
    %v7498 = vunpack.c.h.b16 %v6819
    %v7499 = vunpack.c.l.b16 %v6820
    %v7500 = vunpack.c.h.b16 %v6820
    %v7501 = vunpack.c.l.b16 %v6821
    %v7502 = vunpack.c.l.b16 %v6822
    %v7503 = vunpack.c.h.b16 %v6822
    %v7504 = vunpack.c.l.b16 %v6823
    %v7505 = vunpack.c.h.b16 %v6823
    %v7506 = vunpack.c.l.b16 %v6824
    %v7507 = vunpack.c.h.b16 %v6824
    %v7508 = vunpack.c.l.b16 %v6825
    %v7509 = vunpack.c.h.b16 %v6825
    %v7510 = vunpack.c.l.b16 %v6826
    %v7511 = vunpack.c.l.b16 %v6827
    %v7512 = vunpack.c.h.b16 %v6827
    %v7513 = vunpack.c.l.b16 %v6828
    %v7514 = vunpack.c.h.b16 %v6828
    %v7515 = vunpack.c.l.b16 %v6829
    %v7516 = vunpack.c.h.b16 %v6829
    %v7517 = vunpack.c.l.b16 %v6830
    %v7518 = vunpack.c.h.b16 %v6830
    %v7519 = vunpack.c.l.b16 %v6831
    %v7520 = vunpack.c.l.b16 %v6832
    %v7521 = vunpack.c.h.b16 %v6832
    %v7522 = vunpack.c.l.b16 %v6833
    %v7523 = vunpack.c.h.b16 %v6833
    %v7524 = vunpack.c.l.b16 %v6834
    %v7525 = vunpack.c.h.b16 %v6834
    %v7526 = vunpack.c.l.b16 %v6835
    %v7527 = vunpack.c.h.b16 %v6835
    %v7528 = vunpack.c.l.b16 %v6836
    %v7529 = vunpack.c.l.b16 %v6837
    %v7530 = vunpack.c.h.b16 %v6837
    %v7531 = vunpack.c.l.b16 %v6838
    %v7532 = vunpack.c.h.b16 %v6838
    %v7533 = vunpack.c.l.b16 %v6839
    %v7534 = vunpack.c.h.b16 %v6839
    %v7535 = vunpack.c.l.b16 %v6840
    %v7536 = vunpack.c.h.b16 %v6840
    %v7537 = vunpack.c.l.b16 %v6841
    %v7538 = vunpack.c.l.b16 %v6842
    %v7539 = vunpack.c.h.b16 %v6842
    %v7540 = vunpack.c.l.b16 %v6843
    %v7541 = vunpack.c.h.b16 %v6843
    %v7542 = vunpack.c.l.b16 %v6844
    %v7543 = vunpack.c.h.b16 %v6844
    %v7544 = vunpack.c.l.b16 %v6845
    %v7545 = vunpack.c.h.b16 %v6845
    %v7546 = vunpack.c.l.b16 %v6846
    %v7547 = vunpack.c.l.b16 %v6847
    %v7548 = vunpack.c.h.b16 %v6847
    %v7549 = vunpack.c.l.b16 %v6848
    %v7550 = vunpack.c.h.b16 %v6848
    %v7551 = vunpack.c.l.b16 %v6849
    %v7552 = vunpack.c.h.b16 %v6849
    %v7553 = vunpack.c.l.b16 %v6850
    %v7554 = vunpack.c.h.b16 %v6850
    %v7555 = vunpack.c.l.b16 %v6851
    %v7556 = vunpack.c.l.b16 %v6852
    %v7557 = vunpack.c.h.b16 %v6852
    %v7558 = vunpack.c.l.b16 %v6853
    %v7559 = vunpack.c.h.b16 %v6853
    %v7560 = vunpack.c.l.b16 %v6854
    %v7561 = vunpack.c.h.b16 %v6854
    %v7562 = vunpack.c.l.b16 %v6855
    %v7563 = vunpack.c.h.b16 %v6855
    %v7564 = vunpack.c.l.b16 %v6856
    %v7565 = vunpack.c.l.b16 %v6857
    %v7566 = vunpack.c.h.b16 %v6857
    %v7567 = vunpack.c.l.b16 %v6858
    %v7568 = vunpack.c.h.b16 %v6858
    %v7569 = vunpack.c.l.b16 %v6859
    %v7570 = vunpack.c.h.b16 %v6859
    %v7571 = vunpack.c.l.b16 %v6860
    %v7572 = vunpack.c.h.b16 %v6860
    %v7573 = vunpack.c.l.b16 %v6861
    %v7574 = vunpack.c.l.b16 %v6862
    %v7575 = vunpack.c.h.b16 %v6862
    %v7576 = vunpack.c.l.b16 %v6863
    %v7577 = vunpack.c.h.b16 %v6863
    %v7578 = vunpack.c.l.b16 %v6864
    %v7579 = vunpack.c.h.b16 %v6864
    %v7580 = vunpack.c.l.b16 %v6865
    %v7581 = vunpack.c.h.b16 %v6865
    %v7582 = vunpack.c.l.b16 %v6866
    %v7583 = vunpack.c.l.b16 %v6867
    %v7584 = vunpack.c.h.b16 %v6867
    %v7585 = vunpack.c.l.b16 %v6868
    %v7586 = vunpack.c.h.b16 %v6868
    %v7587 = vunpack.c.l.b16 %v6869
    %v7588 = vunpack.c.h.b16 %v6869
    %v7589 = vunpack.c.l.b16 %v6870
    %v7590 = vunpack.c.h.b16 %v6870
    %v7591 = vunpack.c.l.b16 %v6871
    %v7592 = vunpack.c.l.b16 %v6872
    %v7593 = vunpack.c.h.b16 %v6872
    %v7594 = vunpack.c.l.b16 %v6873
    %v7595 = vunpack.c.h.b16 %v6873
    %v7596 = vunpack.c.l.b16 %v6874
    %v7597 = vunpack.c.h.b16 %v6874
    %v7598 = vunpack.c.l.b16 %v6875
    %v7599 = vunpack.c.h.b16 %v6875
    %v7600 = vunpack.c.l.b16 %v6876
    %v7601 = vunpack.c.l.b16 %v6877
    %v7602 = vunpack.c.h.b16 %v6877
    %v7603 = vunpack.c.l.b16 %v6878
    %v7604 = vunpack.c.h.b16 %v6878
    %v7605 = vunpack.c.l.b16 %v6879
    %v7606 = vunpack.c.h.b16 %v6879
    %v7607 = vunpack.c.l.b16 %v6880
    %v7608 = vunpack.c.h.b16 %v6880
    %v7609 = vunpack.c.l.b16 %v6881
    %v7610 = vunpack.c.l.b16 %v6882
    %v7611 = vunpack.c.h.b16 %v6882
    %v7612 = vunpack.c.l.b16 %v6883
    %v7613 = vunpack.c.h.b16 %v6883
    %v7614 = vunpack.c.l.b16 %v6884
    %v7615 = vunpack.c.h.b16 %v6884
    %v7616 = vunpack.c.l.b16 %v6885
    %v7617 = vunpack.c.h.b16 %v6885
    %v7618 = vunpack.c.l.b16 %v6886
    %v7619 = vunpack.c.l.b16 %v6887
    %v7620 = vunpack.c.h.b16 %v6887
    %v7621 = vunpack.c.l.b16 %v6888
    %v7622 = vunpack.c.h.b16 %v6888
    %v7623 = vunpack.c.l.b16 %v6889
    %v7624 = vunpack.c.h.b16 %v6889
    %v7625 = vunpack.c.l.b16 %v6890
    %v7626 = vunpack.c.h.b16 %v6890
    %v7627 = vunpack.c.l.b16 %v6891
    %v7628 = vunpack.c.l.b16 %v6892
    %v7629 = vunpack.c.h.b16 %v6892
    %v7630 = vunpack.c.l.b16 %v6893
    %v7631 = vunpack.c.h.b16 %v6893
    %v7632 = vunpack.c.l.b16 %v6894
    %v7633 = vunpack.c.h.b16 %v6894
    %v7634 = vunpack.c.l.b16 %v6895
    %v7635 = vunpack.c.h.b16 %v6895
    %v7636 = vunpack.c.l.b16 %v6896
    %v7637 = vunpack.c.l.b16 %v6897
    %v7638 = vunpack.c.h.b16 %v6897
    %v7639 = vunpack.c.l.b16 %v6898
    %v7640 = vunpack.c.h.b16 %v6898
    %v7641 = vunpack.c.l.b16 %v6899
    %v7642 = vunpack.c.h.b16 %v6899
    %v7643 = vunpack.c.l.b16 %v6900
    %v7644 = vunpack.c.h.b16 %v6900
    %v7645 = vunpack.c.l.b16 %v6901
    %v7646 = vunpack.c.l.b16 %v6902
    %v7647 = vunpack.c.h.b16 %v6902
    %v7648 = vunpack.c.l.b16 %v6903
    %v7649 = vunpack.c.h.b16 %v6903
    %v7650 = vunpack.c.l.b16 %v6904
    %v7651 = vunpack.c.h.b16 %v6904
    %v7652 = vunpack.c.l.b16 %v6905
    %v7653 = vunpack.c.h.b16 %v6905
    %v7654 = vunpack.c.l.b16 %v6906
    %v7655 = vunpack.c.l.b16 %v6907
    %v7656 = vunpack.c.h.b16 %v6907
    %v7657 = vunpack.c.l.b16 %v6908
    %v7658 = vunpack.c.h.b16 %v6908
    %v7659 = vunpack.c.l.b16 %v6909
    %v7660 = vunpack.c.h.b16 %v6909
    %v7661 = vunpack.c.l.b16 %v6910
    %v7662 = vunpack.c.h.b16 %v6910
    %v7663 = vunpack.c.l.b16 %v6911
    %v7664 = vunpack.c.l.b16 %v6912
    %v7665 = vunpack.c.h.b16 %v6912
    %v7666 = vunpack.c.l.b16 %v6913
    %v7667 = vunpack.c.h.b16 %v6913
    %v7668 = vunpack.c.l.b16 %v6914
    %v7669 = vunpack.c.h.b16 %v6914
    %v7670 = vunpack.c.l.b16 %v6915
    %v7671 = vunpack.c.h.b16 %v6915
    %v7672 = vunpack.c.l.b16 %v6916
    %v7673 = vunpack.c.l.b16 %v6917
    %v7674 = vunpack.c.h.b16 %v6917
    %v7675 = vunpack.c.l.b16 %v6918
    %v7676 = vunpack.c.h.b16 %v6918
    %v7677 = vunpack.c.l.b16 %v6919
    %v7678 = vunpack.c.h.b16 %v6919
    %v7679 = vunpack.c.l.b16 %v6920
    %v7680 = vunpack.c.h.b16 %v6920
    %v7681 = vunpack.c.l.b16 %v6921
    %v7682 = vunpack.c.l.b16 %v6922
    %v7683 = vunpack.c.h.b16 %v6922
    %v7684 = vunpack.c.l.b16 %v6923
    %v7685 = vunpack.c.h.b16 %v6923
    %v7686 = vunpack.c.l.b16 %v6924
    %v7687 = vunpack.c.h.b16 %v6924
    %v7688 = vunpack.c.l.b16 %v6925
    %v7689 = vunpack.c.h.b16 %v6925
    %v7690 = vunpack.c.l.b16 %v6926
    %v7691 = vunpack.c.l.b16 %v6927
    %v7692 = vunpack.c.h.b16 %v6927
    %v7693 = vunpack.c.l.b16 %v6928
    %v7694 = vunpack.c.h.b16 %v6928
    %v7695 = vunpack.c.l.b16 %v6929
    %v7696 = vunpack.c.h.b16 %v6929
    %v7697 = vunpack.c.l.b16 %v6930
    %v7698 = vunpack.c.h.b16 %v6930
    %v7699 = vunpack.c.l.b16 %v6931
    %v7700 = vunpack.c.l.b16 %v6932
    %v7701 = vunpack.c.h.b16 %v6932
    %v7702 = vunpack.c.l.b16 %v6933
    %v7703 = vunpack.c.h.b16 %v6933
    %v7704 = vunpack.c.l.b16 %v6934
    %v7705 = vunpack.c.h.b16 %v6934
    %v7706 = vunpack.c.l.b16 %v6935
    %v7707 = vunpack.c.h.b16 %v6935
    %v7708 = vunpack.c.l.b16 %v6936
    %v7709 = vunpack.c.l.b16 %v6937
    %v7710 = vunpack.c.h.b16 %v6937
    %v7711 = vunpack.c.l.b16 %v6938
    %v7712 = vunpack.c.h.b16 %v6938
    %v7713 = vunpack.c.l.b16 %v6939
    %v7714 = vunpack.c.h.b16 %v6939
    %v7715 = vunpack.c.l.b16 %v6940
    %v7716 = vunpack.c.h.b16 %v6940
    %v7717 = vunpack.c.l.b16 %v6941
    %v7718 = vunpack.c.l.b16 %v6942
    %v7719 = vunpack.c.h.b16 %v6942
    %v7720 = vunpack.c.l.b16 %v6943
    %v7721 = vunpack.c.h.b16 %v6943
    %v7722 = vunpack.c.l.b16 %v6944
    %v7723 = vunpack.c.h.b16 %v6944
    %v7724 = vunpack.c.l.b16 %v6945
    %v7725 = vunpack.c.h.b16 %v6945
    %v7726 = vunpack.c.l.b16 %v6946
    %v7727 = vunpack.c.l.b16 %v6947
    %v7728 = vunpack.c.h.b16 %v6947
    %v7729 = vunpack.c.l.b16 %v6948
    %v7730 = vunpack.c.h.b16 %v6948
    %v7731 = vunpack.c.l.b16 %v6949
    %v7732 = vunpack.c.h.b16 %v6949
    %v7733 = vunpack.c.l.b16 %v6950
    %v7734 = vunpack.c.h.b16 %v6950
    %v7735 = vunpack.c.l.b16 %v6951
    %v7736 = vunpack.c.l.b16 %v6952
    %v7737 = vunpack.c.h.b16 %v6952
    %v7738 = vunpack.c.l.b16 %v6953
    %v7739 = vunpack.c.h.b16 %v6953
    %v7740 = vunpack.c.l.b16 %v6954
    %v7741 = vunpack.c.h.b16 %v6954
    %v7742 = vunpack.c.l.b16 %v6955
    %v7743 = vunpack.c.h.b16 %v6955
    %v7744 = vunpack.c.l.b16 %v6956
    %v7745 = vunpack.c.l.b16 %v6957
    %v7746 = vunpack.c.h.b16 %v6957
    %v7747 = vunpack.c.l.b16 %v6958
    %v7748 = vunpack.c.h.b16 %v6958
    %v7749 = vunpack.c.l.b16 %v6959
    %v7750 = vunpack.c.h.b16 %v6959
    %v7751 = vunpack.c.l.b16 %v6960
    %v7752 = vunpack.c.h.b16 %v6960
    %v7753 = vunpack.c.l.b16 %v6961
    %v7754 = vunpack.c.l.b16 %v6962
    %v7755 = vunpack.c.h.b16 %v6962
    %v7756 = vunpack.c.l.b16 %v6963
    %v7757 = vunpack.c.h.b16 %v6963
    %v7758 = vunpack.c.l.b16 %v6964
    %v7759 = vunpack.c.h.b16 %v6964
    %v7760 = vunpack.c.l.b16 %v6965
    %v7761 = vunpack.c.h.b16 %v6965
    %v7762 = vunpack.c.l.b16 %v6966
    %v7763 = vunpack.c.l.b16 %v6967
    %v7764 = vunpack.c.h.b16 %v6967
    %v7765 = vunpack.c.l.b16 %v6968
    %v7766 = vunpack.c.h.b16 %v6968
    %v7767 = vunpack.c.l.b16 %v6969
    %v7768 = vunpack.c.h.b16 %v6969
    %v7769 = vunpack.c.l.b16 %v6970
    %v7770 = vunpack.c.h.b16 %v6970
    %v7771 = vunpack.c.l.b16 %v6971
    %v7772 = vunpack.c.l.b16 %v6972
    %v7773 = vunpack.c.h.b16 %v6972
    %v7774 = vunpack.c.l.b16 %v6973
    %v7775 = vunpack.c.h.b16 %v6973
    %v7776 = vunpack.c.l.b16 %v6974
    %v7777 = vunpack.c.h.b16 %v6974
    %v7778 = vunpack.c.l.b16 %v6975
    %v7779 = vunpack.c.h.b16 %v6975
    %v7780 = vunpack.c.l.b16 %v6976
    %v7781 = vunpack.c.l.b16 %v6977
    %v7782 = vunpack.c.h.b16 %v6977
    %v7783 = vunpack.c.l.b16 %v6978
    %v7784 = vunpack.c.h.b16 %v6978
    %v7785 = vunpack.c.l.b16 %v6979
    %v7786 = vunpack.c.h.b16 %v6979
    %v7787 = vunpack.c.l.b16 %v6980
    %v7788 = vunpack.c.h.b16 %v6980
    %v7789 = vunpack.c.l.b16 %v6981
    %v7790 = vunpack.c.l.b16 %v6982
    %v7791 = vunpack.c.h.b16 %v6982
    %v7792 = vunpack.c.l.b16 %v6983
    %v7793 = vunpack.c.h.b16 %v6983
    %v7794 = vunpack.c.l.b16 %v6984
    %v7795 = vunpack.c.h.b16 %v6984
    %v7796 = vunpack.c.l.b16 %v6985
    %v7797 = vunpack.c.h.b16 %v6985
    %v7798 = vunpack.c.l.b16 %v6986
    %v7799 = vunpack.c.l.b16 %v6987
    %v7800 = vunpack.c.h.b16 %v6987
    %v7801 = vunpack.c.l.b16 %v6988
    %v7802 = vunpack.c.h.b16 %v6988
    %v7803 = vunpack.c.l.b16 %v6989
    %v7804 = vunpack.c.h.b16 %v6989
    %v7805 = vunpack.c.l.b16 %v6990
    %v7806 = vunpack.c.h.b16 %v6990
    %v7807 = vunpack.c.l.b16 %v6991
    %v7808 = vunpack.c.l.b16 %v6992
    %v7809 = vunpack.c.h.b16 %v6992
    %v7810 = vunpack.c.l.b16 %v6993
    %v7811 = vunpack.c.h.b16 %v6993
    %v7812 = vunpack.c.l.b16 %v6994
    %v7813 = vunpack.c.h.b16 %v6994
    %v7814 = vunpack.c.l.b16 %v6995
    %v7815 = vunpack.c.h.b16 %v6995
    %v7816 = vunpack.c.l.b16 %v6996
    %v7817 = vunpack.c.l.b16 %v6997
    %v7818 = vunpack.c.h.b16 %v6997
    %v7819 = vunpack.c.l.b16 %v6998
    %v7820 = vunpack.c.h.b16 %v6998
    %v7821 = vunpack.c.l.b16 %v6999
    %v7822 = vunpack.c.h.b16 %v6999
    %v7823 = vunpack.c.l.b16 %v7000
    %v7824 = vunpack.c.h.b16 %v7000
    %v7825 = vunpack.c.l.b16 %v7001
    %v7826 = vunpack.c.l.b16 %v7002
    %v7827 = vunpack.c.h.b16 %v7002
    %v7828 = vunpack.c.l.b16 %v7003
    %v7829 = vunpack.c.h.b16 %v7003
    %v7830 = vunpack.c.l.b16 %v7004
    %v7831 = vunpack.c.h.b16 %v7004
    %v7832 = vunpack.c.l.b16 %v7005
    %v7833 = vunpack.c.h.b16 %v7005
    %v7834 = vunpack.c.l.b16 %v7006
    %v7835 = vunpack.c.l.b16 %v7007
    %v7836 = vunpack.c.h.b16 %v7007
    %v7837 = vunpack.c.l.b16 %v7008
    %v7838 = vunpack.c.h.b16 %v7008
    %v7839 = vunpack.c.l.b16 %v7009
    %v7840 = vunpack.c.h.b16 %v7009
    %v7841 = vunpack.c.l.b16 %v7010
    %v7842 = vunpack.c.h.b16 %v7010
    %v7843 = vunpack.c.l.b16 %v7011
    %v7844 = vunpack.c.l.b16 %v7012
    %v7845 = vunpack.c.h.b16 %v7012
    %v7846 = vunpack.c.l.b16 %v7013
    %v7847 = vunpack.c.h.b16 %v7013
    %v7848 = vunpack.c.l.b16 %v7014
    %v7849 = vunpack.c.h.b16 %v7014
    %v7850 = vunpack.c.l.b16 %v7015
    %v7851 = vunpack.c.h.b16 %v7015
    %v7852 = vunpack.c.l.b16 %v7016
    %v7853 = vunpack.c.l.b16 %v7017
    %v7854 = vunpack.c.h.b16 %v7017
    %v7855 = vunpack.c.l.b16 %v7018
    %v7856 = vunpack.c.h.b16 %v7018
    %v7857 = vunpack.c.l.b16 %v7019
    %v7858 = vunpack.c.h.b16 %v7019
    %v7859 = vunpack.c.l.b16 %v7020
    %v7860 = vunpack.c.h.b16 %v7020
    %v7861 = vunpack.c.l.b16 %v7021
    %v7862 = vunpack.c.l.b16 %v7022
    %v7863 = vunpack.c.h.b16 %v7022
    %v7864 = vunpack.c.l.b16 %v7023
    %v7865 = vunpack.c.h.b16 %v7023
    %v7866 = vunpack.c.l.b16 %v7024
    %v7867 = vunpack.c.h.b16 %v7024
    %v7868 = vunpack.c.l.b16 %v7025
    %v7869 = vunpack.c.h.b16 %v7025
    %v7870 = vunpack.c.l.b16 %v7026
    %v7871 = vunpack.c.l.b16 %v7027
    %v7872 = vunpack.c.h.b16 %v7027
    %v7873 = vunpack.c.l.b16 %v7028
    %v7874 = vunpack.c.h.b16 %v7028
    %v7875 = vunpack.c.l.b16 %v7029
    %v7876 = vunpack.c.h.b16 %v7029
    %v7877 = vunpack.c.l.b16 %v7030
    %v7878 = vunpack.c.h.b16 %v7030
    %v7879 = vunpack.c.l.b16 %v7031
    %v7880 = vunpack.c.l.b16 %v7032
    %v7881 = vunpack.c.h.b16 %v7032
    %v7882 = vunpack.c.l.b16 %v7033
    %v7883 = vunpack.c.h.b16 %v7033
    %v7884 = vunpack.c.l.b16 %v7034
    %v7885 = vunpack.c.h.b16 %v7034
    %v7886 = vunpack.c.l.b16 %v7035
    %v7887 = vunpack.c.h.b16 %v7035
    %v7888 = vunpack.c.l.b16 %v7036
    %v7889 = vunpack.c.l.b16 %v7037
    %v7890 = vunpack.c.h.b16 %v7037
    %v7891 = vunpack.c.l.b16 %v7038
    %v7892 = vunpack.c.h.b16 %v7038
    %v7893 = vunpack.c.l.b16 %v7039
    %v7894 = vunpack.c.h.b16 %v7039
    %v7895 = vunpack.c.l.b16 %v7040
    %v7896 = vunpack.c.h.b16 %v7040
    %v7897 = vunpack.c.l.b16 %v7041
    %v7898 = vunpack.c.l.b16 %v7042
    %v7899 = vunpack.c.h.b16 %v7042
    %v7900 = vunpack.c.l.b16 %v7043
    %v7901 = vunpack.c.h.b16 %v7043
    %v7902 = vunpack.c.l.b16 %v7044
    %v7903 = vunpack.c.h.b16 %v7044
    %v7904 = vunpack.c.l.b16 %v7045
    %v7905 = vunpack.c.h.b16 %v7045
    %v7906 = vunpack.c.l.b16 %v7046
    %v7907 = vunpack.c.l.b16 %v7047
    %v7908 = vunpack.c.h.b16 %v7047
    %v7909 = vunpack.c.l.b16 %v7048
    %v7910 = vunpack.c.h.b16 %v7048
    %v7911 = vunpack.c.l.b16 %v7049
    %v7912 = vunpack.c.h.b16 %v7049
    %v7913 = vunpack.c.l.b16 %v7050
    %v7914 = vunpack.c.h.b16 %v7050
    %v7915 = vunpack.c.l.b16 %v7051
    %v7916 = vunpack.c.l.b16 %v7052
    %v7917 = vunpack.c.h.b16 %v7052
    %v7918 = vunpack.c.l.b16 %v7053
    %v7919 = vunpack.c.h.b16 %v7053
    %v7920 = vunpack.c.l.b16 %v7054
    %v7921 = vunpack.c.h.b16 %v7054
    %v7922 = vunpack.c.l.b16 %v7055
    %v7923 = vunpack.c.h.b16 %v7055
    %v7924 = vunpack.c.l.b16 %v7056
    %v7925 = vunpack.c.l.b16 %v7057
    %v7926 = vunpack.c.h.b16 %v7057
    %v7927 = vunpack.c.l.b16 %v7058
    %v7928 = vunpack.c.h.b16 %v7058
    %v7929 = vunpack.c.l.b16 %v7059
    %v7930 = vunpack.c.h.b16 %v7059
    %v7931 = vunpack.c.l.b16 %v7060
    %v7932 = vunpack.c.h.b16 %v7060
    %v7933 = vunpack.c.l.b16 %v7061
    %v7934 = vunpack.c.l.b16 %v7062
    %v7935 = vunpack.c.h.b16 %v7062
    %v7936 = vunpack.c.l.b16 %v7063
    %v7937 = vunpack.c.h.b16 %v7063
    %v7938 = vunpack.c.l.b16 %v7064
    %v7939 = vunpack.c.h.b16 %v7064
    %v7940 = vunpack.c.l.b16 %v7065
    %v7941 = vunpack.c.h.b16 %v7065
    %v7942 = vunpack.c.l.b16 %v7066
    %v7943 = vunpack.c.l.b16 %v7067
    %v7944 = vunpack.c.h.b16 %v7067
    %v7945 = vunpack.c.l.b16 %v7068
    %v7946 = vunpack.c.h.b16 %v7068
    %v7947 = vunpack.c.l.b16 %v7069
    %v7948 = vunpack.c.h.b16 %v7069
    %v7949 = vunpack.c.l.b16 %v7070
    %v7950 = vunpack.c.h.b16 %v7070
    %v7951 = vunpack.c.l.b16 %v7071
    %v7952 = vunpack.c.l.b16 %v7072
    %v7953 = vunpack.c.h.b16 %v7072
    %v7954 = vunpack.c.l.b16 %v7073
    %v7955 = vunpack.c.h.b16 %v7073
    %v7956 = vunpack.c.l.b16 %v7074
    %v7957 = vunpack.c.h.b16 %v7074
    %v7958 = vunpack.c.l.b16 %v7075
    %v7959 = vunpack.c.h.b16 %v7075
    %v7960 = vunpack.c.l.b16 %v7076
    %v7961 = vunpack.c.l.b16 %v7077
    %v7962 = vunpack.c.h.b16 %v7077
    %v7963 = vunpack.c.l.b16 %v7078
    %v7964 = vunpack.c.h.b16 %v7078
    %v7965 = vunpack.c.l.b16 %v7079
    %v7966 = vunpack.c.h.b16 %v7079
    %v7967 = vunpack.c.l.b16 %v7080
    %v7968 = vunpack.c.h.b16 %v7080
    %v7969 = vunpack.c.l.b16 %v7081
    %v7970 = vunpack.c.l.b16 %v7082
    %v7971 = vunpack.c.h.b16 %v7082
    %v7972 = vunpack.c.l.b16 %v7083
    %v7973 = vunpack.c.h.b16 %v7083
    %v7974 = vunpack.c.l.b16 %v7084
    %v7975 = vunpack.c.h.b16 %v7084
    %v7976 = vunpack.c.l.b16 %v7085
    %v7977 = vunpack.c.h.b16 %v7085
    %v7978 = vunpack.c.l.b16 %v7086
    %v7979 = vunpack.c.l.b16 %v7087
    %v7980 = vunpack.c.h.b16 %v7087
    %v7981 = vunpack.c.l.b16 %v7088
    %v7982 = vunpack.c.h.b16 %v7088
    %v7983 = vunpack.c.l.b16 %v7089
    %v7984 = vunpack.c.h.b16 %v7089
    %v7985 = vunpack.c.l.b16 %v7090
    %v7986 = vunpack.c.h.b16 %v7090
    %v7987 = vunpack.c.l.b16 %v7091
    %v7988 = vpack.c.b16 %v7421, %v7412
    %v7989 = vpack.c.b16 %v7422, %v7413
    %v7990 = vpack.c.b16 %v7423, %v7414
    %v7991 = vpack.c.b16 %v7424, %v7415
    %v7992 = vpack.c.b16 %v7425, %v7416
    %v7993 = vpack.c.b16 %v7426, %v7417
    %v7994 = vpack.c.b16 %v7427, %v7418
    %v7995 = vpack.c.b16 %v7428, %v7419
    %v7996 = vpack.c.b16 %v7429, %v7420
    %v7997 = vpack.c.b16 %v7439, %v7430
    %v7998 = vpack.c.b16 %v7440, %v7431
    %v7999 = vpack.c.b16 %v7441, %v7432
    %v8000 = vpack.c.b16 %v7442, %v7433
    %v8001 = vpack.c.b16 %v7443, %v7434
    %v8002 = vpack.c.b16 %v7444, %v7435
    %v8003 = vpack.c.b16 %v7445, %v7436
    %v8004 = vpack.c.b16 %v7446, %v7437
    %v8005 = vpack.c.b16 %v7447, %v7438
    %v8006 = vpack.c.b16 %v7457, %v7448
    %v8007 = vpack.c.b16 %v7458, %v7449
    %v8008 = vpack.c.b16 %v7459, %v7450
    %v8009 = vpack.c.b16 %v7460, %v7451
    %v8010 = vpack.c.b16 %v7461, %v7452
    %v8011 = vpack.c.b16 %v7462, %v7453
    %v8012 = vpack.c.b16 %v7463, %v7454
    %v8013 = vpack.c.b16 %v7464, %v7455
    %v8014 = vpack.c.b16 %v7465, %v7456
    %v8015 = vpack.c.b16 %v7475, %v7466
    %v8016 = vpack.c.b16 %v7476, %v7467
    %v8017 = vpack.c.b16 %v7477, %v7468
    %v8018 = vpack.c.b16 %v7478, %v7469
    %v8019 = vpack.c.b16 %v7479, %v7470
    %v8020 = vpack.c.b16 %v7480, %v7471
    %v8021 = vpack.c.b16 %v7481, %v7472
    %v8022 = vpack.c.b16 %v7482, %v7473
    %v8023 = vpack.c.b16 %v7483, %v7474
    %v8024 = vpack.c.b16 %v7493, %v7484
    %v8025 = vpack.c.b16 %v7494, %v7485
    %v8026 = vpack.c.b16 %v7495, %v7486
    %v8027 = vpack.c.b16 %v7496, %v7487
    %v8028 = vpack.c.b16 %v7497, %v7488
    %v8029 = vpack.c.b16 %v7498, %v7489
    %v8030 = vpack.c.b16 %v7499, %v7490
    %v8031 = vpack.c.b16 %v7500, %v7491
    %v8032 = vpack.c.b16 %v7501, %v7492
    %v8033 = vpack.c.b16 %v7511, %v7502
    %v8034 = vpack.c.b16 %v7512, %v7503
    %v8035 = vpack.c.b16 %v7513, %v7504
    %v8036 = vpack.c.b16 %v7514, %v7505
    %v8037 = vpack.c.b16 %v7515, %v7506
    %v8038 = vpack.c.b16 %v7516, %v7507
    %v8039 = vpack.c.b16 %v7517, %v7508
    %v8040 = vpack.c.b16 %v7518, %v7509
    %v8041 = vpack.c.b16 %v7519, %v7510
    %v8042 = vpack.c.b16 %v7529, %v7520
    %v8043 = vpack.c.b16 %v7530, %v7521
    %v8044 = vpack.c.b16 %v7531, %v7522
    %v8045 = vpack.c.b16 %v7532, %v7523
    %v8046 = vpack.c.b16 %v7533, %v7524
    %v8047 = vpack.c.b16 %v7534, %v7525
    %v8048 = vpack.c.b16 %v7535, %v7526
    %v8049 = vpack.c.b16 %v7536, %v7527
    %v8050 = vpack.c.b16 %v7537, %v7528
    %v8051 = vpack.c.b16 %v7547, %v7538
    %v8052 = vpack.c.b16 %v7548, %v7539
    %v8053 = vpack.c.b16 %v7549, %v7540
    %v8054 = vpack.c.b16 %v7550, %v7541
    %v8055 = vpack.c.b16 %v7551, %v7542
    %v8056 = vpack.c.b16 %v7552, %v7543
    %v8057 = vpack.c.b16 %v7553, %v7544
    %v8058 = vpack.c.b16 %v7554, %v7545
    %v8059 = vpack.c.b16 %v7555, %v7546
    %v8060 = vpack.c.b16 %v7565, %v7556
    %v8061 = vpack.c.b16 %v7566, %v7557
    %v8062 = vpack.c.b16 %v7567, %v7558
    %v8063 = vpack.c.b16 %v7568, %v7559
    %v8064 = vpack.c.b16 %v7569, %v7560
    %v8065 = vpack.c.b16 %v7570, %v7561
    %v8066 = vpack.c.b16 %v7571, %v7562
    %v8067 = vpack.c.b16 %v7572, %v7563
    %v8068 = vpack.c.b16 %v7573, %v7564
    %v8069 = vpack.c.b16 %v7583, %v7574
    %v8070 = vpack.c.b16 %v7584, %v7575
    %v8071 = vpack.c.b16 %v7585, %v7576
    %v8072 = vpack.c.b16 %v7586, %v7577
    %v8073 = vpack.c.b16 %v7587, %v7578
    %v8074 = vpack.c.b16 %v7588, %v7579
    %v8075 = vpack.c.b16 %v7589, %v7580
    %v8076 = vpack.c.b16 %v7590, %v7581
    %v8077 = vpack.c.b16 %v7591, %v7582
    %v8078 = vpack.c.b16 %v7601, %v7592
    %v8079 = vpack.c.b16 %v7602, %v7593
    %v8080 = vpack.c.b16 %v7603, %v7594
    %v8081 = vpack.c.b16 %v7604, %v7595
    %v8082 = vpack.c.b16 %v7605, %v7596
    %v8083 = vpack.c.b16 %v7606, %v7597
    %v8084 = vpack.c.b16 %v7607, %v7598
    %v8085 = vpack.c.b16 %v7608, %v7599
    %v8086 = vpack.c.b16 %v7609, %v7600
    %v8087 = vpack.c.b16 %v7619, %v7610
    %v8088 = vpack.c.b16 %v7620, %v7611
    %v8089 = vpack.c.b16 %v7621, %v7612
    %v8090 = vpack.c.b16 %v7622, %v7613
    %v8091 = vpack.c.b16 %v7623, %v7614
    %v8092 = vpack.c.b16 %v7624, %v7615
    %v8093 = vpack.c.b16 %v7625, %v7616
    %v8094 = vpack.c.b16 %v7626, %v7617
    %v8095 = vpack.c.b16 %v7627, %v7618
    %v8096 = vpack.c.b16 %v7637, %v7628
    %v8097 = vpack.c.b16 %v7638, %v7629
    %v8098 = vpack.c.b16 %v7639, %v7630
    %v8099 = vpack.c.b16 %v7640, %v7631
    %v8100 = vpack.c.b16 %v7641, %v7632
    %v8101 = vpack.c.b16 %v7642, %v7633
    %v8102 = vpack.c.b16 %v7643, %v7634
    %v8103 = vpack.c.b16 %v7644, %v7635
    %v8104 = vpack.c.b16 %v7645, %v7636
    %v8105 = vpack.c.b16 %v7655, %v7646
    %v8106 = vpack.c.b16 %v7656, %v7647
    %v8107 = vpack.c.b16 %v7657, %v7648
    %v8108 = vpack.c.b16 %v7658, %v7649
    %v8109 = vpack.c.b16 %v7659, %v7650
    %v8110 = vpack.c.b16 %v7660, %v7651
    %v8111 = vpack.c.b16 %v7661, %v7652
    %v8112 = vpack.c.b16 %v7662, %v7653
    %v8113 = vpack.c.b16 %v7663, %v7654
    %v8114 = vpack.c.b16 %v7673, %v7664
    %v8115 = vpack.c.b16 %v7674, %v7665
    %v8116 = vpack.c.b16 %v7675, %v7666
    %v8117 = vpack.c.b16 %v7676, %v7667
    %v8118 = vpack.c.b16 %v7677, %v7668
    %v8119 = vpack.c.b16 %v7678, %v7669
    %v8120 = vpack.c.b16 %v7679, %v7670
    %v8121 = vpack.c.b16 %v7680, %v7671
    %v8122 = vpack.c.b16 %v7681, %v7672
    %v8123 = vpack.c.b16 %v7691, %v7682
    %v8124 = vpack.c.b16 %v7692, %v7683
    %v8125 = vpack.c.b16 %v7693, %v7684
    %v8126 = vpack.c.b16 %v7694, %v7685
    %v8127 = vpack.c.b16 %v7695, %v7686
    %v8128 = vpack.c.b16 %v7696, %v7687
    %v8129 = vpack.c.b16 %v7697, %v7688
    %v8130 = vpack.c.b16 %v7698, %v7689
    %v8131 = vpack.c.b16 %v7699, %v7690
    %v8132 = vpack.c.b16 %v7709, %v7700
    %v8133 = vpack.c.b16 %v7710, %v7701
    %v8134 = vpack.c.b16 %v7711, %v7702
    %v8135 = vpack.c.b16 %v7712, %v7703
    %v8136 = vpack.c.b16 %v7713, %v7704
    %v8137 = vpack.c.b16 %v7714, %v7705
    %v8138 = vpack.c.b16 %v7715, %v7706
    %v8139 = vpack.c.b16 %v7716, %v7707
    %v8140 = vpack.c.b16 %v7717, %v7708
    %v8141 = vpack.c.b16 %v7727, %v7718
    %v8142 = vpack.c.b16 %v7728, %v7719
    %v8143 = vpack.c.b16 %v7729, %v7720
    %v8144 = vpack.c.b16 %v7730, %v7721
    %v8145 = vpack.c.b16 %v7731, %v7722
    %v8146 = vpack.c.b16 %v7732, %v7723
    %v8147 = vpack.c.b16 %v7733, %v7724
    %v8148 = vpack.c.b16 %v7734, %v7725
    %v8149 = vpack.c.b16 %v7735, %v7726
    %v8150 = vpack.c.b16 %v7745, %v7736
    %v8151 = vpack.c.b16 %v7746, %v7737
    %v8152 = vpack.c.b16 %v7747, %v7738
    %v8153 = vpack.c.b16 %v7748, %v7739
    %v8154 = vpack.c.b16 %v7749, %v7740
    %v8155 = vpack.c.b16 %v7750, %v7741
    %v8156 = vpack.c.b16 %v7751, %v7742
    %v8157 = vpack.c.b16 %v7752, %v7743
    %v8158 = vpack.c.b16 %v7753, %v7744
    %v8159 = vpack.c.b16 %v7763, %v7754
    %v8160 = vpack.c.b16 %v7764, %v7755
    %v8161 = vpack.c.b16 %v7765, %v7756
    %v8162 = vpack.c.b16 %v7766, %v7757
    %v8163 = vpack.c.b16 %v7767, %v7758
    %v8164 = vpack.c.b16 %v7768, %v7759
    %v8165 = vpack.c.b16 %v7769, %v7760
    %v8166 = vpack.c.b16 %v7770, %v7761
    %v8167 = vpack.c.b16 %v7771, %v7762
    %v8168 = vpack.c.b16 %v7781, %v7772
    %v8169 = vpack.c.b16 %v7782, %v7773
    %v8170 = vpack.c.b16 %v7783, %v7774
    %v8171 = vpack.c.b16 %v7784, %v7775
    %v8172 = vpack.c.b16 %v7785, %v7776
    %v8173 = vpack.c.b16 %v7786, %v7777
    %v8174 = vpack.c.b16 %v7787, %v7778
    %v8175 = vpack.c.b16 %v7788, %v7779
    %v8176 = vpack.c.b16 %v7789, %v7780
    %v8177 = vpack.c.b16 %v7799, %v7790
    %v8178 = vpack.c.b16 %v7800, %v7791
    %v8179 = vpack.c.b16 %v7801, %v7792
    %v8180 = vpack.c.b16 %v7802, %v7793
    %v8181 = vpack.c.b16 %v7803, %v7794
    %v8182 = vpack.c.b16 %v7804, %v7795
    %v8183 = vpack.c.b16 %v7805, %v7796
    %v8184 = vpack.c.b16 %v7806, %v7797
    %v8185 = vpack.c.b16 %v7807, %v7798
    %v8186 = vpack.c.b16 %v7817, %v7808
    %v8187 = vpack.c.b16 %v7818, %v7809
    %v8188 = vpack.c.b16 %v7819, %v7810
    %v8189 = vpack.c.b16 %v7820, %v7811
    %v8190 = vpack.c.b16 %v7821, %v7812
    %v8191 = vpack.c.b16 %v7822, %v7813
    %v8192 = vpack.c.b16 %v7823, %v7814
    %v8193 = vpack.c.b16 %v7824, %v7815
    %v8194 = vpack.c.b16 %v7825, %v7816
    %v8195 = vpack.c.b16 %v7835, %v7826
    %v8196 = vpack.c.b16 %v7836, %v7827
    %v8197 = vpack.c.b16 %v7837, %v7828
    %v8198 = vpack.c.b16 %v7838, %v7829
    %v8199 = vpack.c.b16 %v7839, %v7830
    %v8200 = vpack.c.b16 %v7840, %v7831
    %v8201 = vpack.c.b16 %v7841, %v7832
    %v8202 = vpack.c.b16 %v7842, %v7833
    %v8203 = vpack.c.b16 %v7843, %v7834
    %v8204 = vpack.c.b16 %v7853, %v7844
    %v8205 = vpack.c.b16 %v7854, %v7845
    %v8206 = vpack.c.b16 %v7855, %v7846
    %v8207 = vpack.c.b16 %v7856, %v7847
    %v8208 = vpack.c.b16 %v7857, %v7848
    %v8209 = vpack.c.b16 %v7858, %v7849
    %v8210 = vpack.c.b16 %v7859, %v7850
    %v8211 = vpack.c.b16 %v7860, %v7851
    %v8212 = vpack.c.b16 %v7861, %v7852
    %v8213 = vpack.c.b16 %v7871, %v7862
    %v8214 = vpack.c.b16 %v7872, %v7863
    %v8215 = vpack.c.b16 %v7873, %v7864
    %v8216 = vpack.c.b16 %v7874, %v7865
    %v8217 = vpack.c.b16 %v7875, %v7866
    %v8218 = vpack.c.b16 %v7876, %v7867
    %v8219 = vpack.c.b16 %v7877, %v7868
    %v8220 = vpack.c.b16 %v7878, %v7869
    %v8221 = vpack.c.b16 %v7879, %v7870
    %v8222 = vpack.c.b16 %v7889, %v7880
    %v8223 = vpack.c.b16 %v7890, %v7881
    %v8224 = vpack.c.b16 %v7891, %v7882
    %v8225 = vpack.c.b16 %v7892, %v7883
    %v8226 = vpack.c.b16 %v7893, %v7884
    %v8227 = vpack.c.b16 %v7894, %v7885
    %v8228 = vpack.c.b16 %v7895, %v7886
    %v8229 = vpack.c.b16 %v7896, %v7887
    %v8230 = vpack.c.b16 %v7897, %v7888
    %v8231 = vpack.c.b16 %v7907, %v7898
    %v8232 = vpack.c.b16 %v7908, %v7899
    %v8233 = vpack.c.b16 %v7909, %v7900
    %v8234 = vpack.c.b16 %v7910, %v7901
    %v8235 = vpack.c.b16 %v7911, %v7902
    %v8236 = vpack.c.b16 %v7912, %v7903
    %v8237 = vpack.c.b16 %v7913, %v7904
    %v8238 = vpack.c.b16 %v7914, %v7905
    %v8239 = vpack.c.b16 %v7915, %v7906
    %v8240 = vpack.c.b16 %v7925, %v7916
    %v8241 = vpack.c.b16 %v7926, %v7917
    %v8242 = vpack.c.b16 %v7927, %v7918
    %v8243 = vpack.c.b16 %v7928, %v7919
    %v8244 = vpack.c.b16 %v7929, %v7920
    %v8245 = vpack.c.b16 %v7930, %v7921
    %v8246 = vpack.c.b16 %v7931, %v7922
    %v8247 = vpack.c.b16 %v7932, %v7923
    %v8248 = vpack.c.b16 %v7933, %v7924
    %v8249 = vpack.c.b16 %v7943, %v7934
    %v8250 = vpack.c.b16 %v7944, %v7935
    %v8251 = vpack.c.b16 %v7945, %v7936
    %v8252 = vpack.c.b16 %v7946, %v7937
    %v8253 = vpack.c.b16 %v7947, %v7938
    %v8254 = vpack.c.b16 %v7948, %v7939
    %v8255 = vpack.c.b16 %v7949, %v7940
    %v8256 = vpack.c.b16 %v7950, %v7941
    %v8257 = vpack.c.b16 %v7951, %v7942
    %v8258 = vpack.c.b16 %v7961, %v7952
    %v8259 = vpack.c.b16 %v7962, %v7953
    %v8260 = vpack.c.b16 %v7963, %v7954
    %v8261 = vpack.c.b16 %v7964, %v7955
    %v8262 = vpack.c.b16 %v7965, %v7956
    %v8263 = vpack.c.b16 %v7966, %v7957
    %v8264 = vpack.c.b16 %v7967, %v7958
    %v8265 = vpack.c.b16 %v7968, %v7959
    %v8266 = vpack.c.b16 %v7969, %v7960
    %v8267 = vpack.c.b16 %v7979, %v7970
    %v8268 = vpack.c.b16 %v7980, %v7971
    %v8269 = vpack.c.b16 %v7981, %v7972
    %v8270 = vpack.c.b16 %v7982, %v7973
    %v8271 = vpack.c.b16 %v7983, %v7974
    %v8272 = vpack.c.b16 %v7984, %v7975
    %v8273 = vpack.c.b16 %v7985, %v7976
    %v8274 = vpack.c.b16 %v7986, %v7977
    %v8275 = vpack.c.b16 %v7987, %v7978
    %8564 = vmatprep.subr.bf16.mxu0 %v8052
    %8565 = vmatpush1.bf16.msra.mxu0 %v8051
    %8566 = vmatprep.subr.bf16.mxu0 %v8043
    %8567 = vmatpush1.bf16.msra.mxu0 %v8042
    %8568 = vmatprep.subr.bf16.mxu0 %v8034
    %8569 = vmatpush1.bf16.msra.mxu0 %v8033
    %8570 = vmatprep.subr.bf16.mxu0 %v8025
    %8571 = vmatpush1.bf16.msra.mxu0 %v8024
    %8572 = vmatprep.subr.bf16.mxu0 %v8016
    %8573 = vmatpush1.bf16.msra.mxu0 %v8015
    %8574 = vmatprep.subr.bf16.mxu0 %v8007
    %8575 = vmatpush1.bf16.msra.mxu0 %v8006
    %8576 = vmatprep.subr.bf16.mxu0 %v7998
    %8577 = vmatpush1.bf16.msra.mxu0 %v7997
    %8578 = vmatprep.subr.bf16.mxu0 %v7989
    %8579 = vmatpush1.bf16.msra.mxu0 %v7988
    %8580 = vmatprep.subr.bf16.mxu0 %v8124
    %8581 = vmatpush2.bf16.msra.mxu0 %v8123
    %8582 = vmatprep.subr.bf16.mxu0 %v8115
    %8583 = vmatpush2.bf16.msra.mxu0 %v8114
    %8584 = vmatprep.subr.bf16.mxu0 %v8106
    %8585 = vmatpush2.bf16.msra.mxu0 %v8105
    %8586 = vmatprep.subr.bf16.mxu0 %v8097
    %8587 = vmatpush2.bf16.msra.mxu0 %v8096
    %8588 = vmatprep.subr.bf16.mxu0 %v8088
    %8589 = vmatpush2.bf16.msra.mxu0 %v8087
    %8590 = vmatprep.subr.bf16.mxu0 %v8079
    %8591 = vmatpush2.bf16.msra.mxu0 %v8078
    %8592 = vmatprep.subr.bf16.mxu0 %v8070
    %8593 = vmatpush2.bf16.msra.mxu0 %v8069
    %8594 = vmatprep.subr.bf16.mxu0 %v8061
    %8595 = vmatpush2.bf16.msra.mxu0 %v8060
    %8596 = vmatprep.mubr.bf16.mxu0 %v464
    %8597 = vmatmul.mubr.bf16.gmra.mxu0 %v457
    %v8598 = vpop.f32.mrf.mxu0
    %v8599 = vadd.f32 0.0, %v8598
    %v8600 = vpop.f32.mrf.mxu0
    %v8601 = vadd.f32 0.0, %v8600
    %v8602 = vpop.f32.mrf.mxu0
    %v8603 = vpop.f32.mrf.mxu0
    %8604 = vdwg.mxu0
    %8605 = vmatprep.subr.bf16.mxu0 %v8196
    %8606 = vmatpush1.bf16.msra.mxu0 %v8195
    %8607 = vmatprep.subr.bf16.mxu0 %v8187
    %8608 = vmatpush1.bf16.msra.mxu0 %v8186
    %8609 = vmatprep.subr.bf16.mxu0 %v8178
    %8610 = vmatpush1.bf16.msra.mxu0 %v8177
    %8611 = vmatprep.subr.bf16.mxu0 %v8169
    %8612 = vmatpush1.bf16.msra.mxu0 %v8168
    %8613 = vmatprep.subr.bf16.mxu0 %v8160
    %8614 = vmatpush1.bf16.msra.mxu0 %v8159
    %8615 = vmatprep.subr.bf16.mxu0 %v8151
    %8616 = vmatpush1.bf16.msra.mxu0 %v8150
    %8617 = vmatprep.subr.bf16.mxu0 %v8142
    %8618 = vmatpush1.bf16.msra.mxu0 %v8141
    %8619 = vmatprep.subr.bf16.mxu0 %v8133
    %8620 = vmatpush1.bf16.msra.mxu0 %v8132
    %8621 = vmatprep.subr.bf16.mxu0 %v8268
    %8622 = vmatpush2.bf16.msra.mxu0 %v8267
    %8623 = vmatprep.subr.bf16.mxu0 %v8259
    %8624 = vmatpush2.bf16.msra.mxu0 %v8258
    %8625 = vmatprep.subr.bf16.mxu0 %v8250
    %8626 = vmatpush2.bf16.msra.mxu0 %v8249
    %8627 = vmatprep.subr.bf16.mxu0 %v8241
    %8628 = vmatpush2.bf16.msra.mxu0 %v8240
    %8629 = vmatprep.subr.bf16.mxu0 %v8232
    %8630 = vmatpush2.bf16.msra.mxu0 %v8231
    %8631 = vmatprep.subr.bf16.mxu0 %v8223
    %8632 = vmatpush2.bf16.msra.mxu0 %v8222
    %8633 = vmatprep.subr.bf16.mxu0 %v8214
    %8634 = vmatpush2.bf16.msra.mxu0 %v8213
    %8635 = vmatprep.subr.bf16.mxu0 %v8205
    %8636 = vmatpush2.bf16.msra.mxu0 %v8204
    %8637 = vmatprep.mubr.bf16.mxu0 %v466
    %8638 = vmatmul.mubr.bf16.gmra.mxu0 %v465
    %v8639 = vpop.f32.mrf.mxu0
    %v8640 = vadd.f32 %v8599, %v8639
    %v8641 = vpop.f32.mrf.mxu0
    %v8642 = vadd.f32 %v8601, %v8641
    %v8643 = vpop.f32.mrf.mxu0
    %v8644 = vpop.f32.mrf.mxu0
    %8645 = vdwg.mxu0
    %8646 = vmatprep.subr.bf16.mxu0 %v8054
    %8647 = vmatpush1.bf16.msra.mxu0 %v8053
    %8648 = vmatprep.subr.bf16.mxu0 %v8045
    %8649 = vmatpush1.bf16.msra.mxu0 %v8044
    %8650 = vmatprep.subr.bf16.mxu0 %v8036
    %8651 = vmatpush1.bf16.msra.mxu0 %v8035
    %8652 = vmatprep.subr.bf16.mxu0 %v8027
    %8653 = vmatpush1.bf16.msra.mxu0 %v8026
    %8654 = vmatprep.subr.bf16.mxu0 %v8018
    %8655 = vmatpush1.bf16.msra.mxu0 %v8017
    %8656 = vmatprep.subr.bf16.mxu0 %v8009
    %8657 = vmatpush1.bf16.msra.mxu0 %v8008
    %8658 = vmatprep.subr.bf16.mxu0 %v8000
    %8659 = vmatpush1.bf16.msra.mxu0 %v7999
    %8660 = vmatprep.subr.bf16.mxu0 %v7991
    %8661 = vmatpush1.bf16.msra.mxu0 %v7990
    %8662 = vmatprep.subr.bf16.mxu0 %v8126
    %8663 = vmatpush2.bf16.msra.mxu0 %v8125
    %8664 = vmatprep.subr.bf16.mxu0 %v8117
    %8665 = vmatpush2.bf16.msra.mxu0 %v8116
    %8666 = vmatprep.subr.bf16.mxu0 %v8108
    %8667 = vmatpush2.bf16.msra.mxu0 %v8107
    %8668 = vmatprep.subr.bf16.mxu0 %v8099
    %8669 = vmatpush2.bf16.msra.mxu0 %v8098
    %8670 = vmatprep.subr.bf16.mxu0 %v8090
    %8671 = vmatpush2.bf16.msra.mxu0 %v8089
    %8672 = vmatprep.subr.bf16.mxu0 %v8081
    %8673 = vmatpush2.bf16.msra.mxu0 %v8080
    %8674 = vmatprep.subr.bf16.mxu0 %v8072
    %8675 = vmatpush2.bf16.msra.mxu0 %v8071
    %8676 = vmatprep.subr.bf16.mxu0 %v8063
    %8677 = vmatpush2.bf16.msra.mxu0 %v8062
    %8678 = vmatprep.mubr.bf16.mxu0 %v464
    %8679 = vmatmul.mubr.bf16.gmra.mxu0 %v457
    %v8680 = vpop.f32.mrf.mxu0
    %v8681 = vadd.f32 0.0, %v8680
    %v8682 = vpop.f32.mrf.mxu0
    %v8683 = vadd.f32 0.0, %v8682
    %v8684 = vpop.f32.mrf.mxu0
    %v8685 = vpop.f32.mrf.mxu0
    %8686 = vdwg.mxu0
    %8687 = vmatprep.subr.bf16.mxu0 %v8198
    %8688 = vmatpush1.bf16.msra.mxu0 %v8197
    %8689 = vmatprep.subr.bf16.mxu0 %v8189
    %8690 = vmatpush1.bf16.msra.mxu0 %v8188
    %8691 = vmatprep.subr.bf16.mxu0 %v8180
    %8692 = vmatpush1.bf16.msra.mxu0 %v8179
    %8693 = vmatprep.subr.bf16.mxu0 %v8171
    %8694 = vmatpush1.bf16.msra.mxu0 %v8170
    %8695 = vmatprep.subr.bf16.mxu0 %v8162
    %8696 = vmatpush1.bf16.msra.mxu0 %v8161
    %8697 = vmatprep.subr.bf16.mxu0 %v8153
    %8698 = vmatpush1.bf16.msra.mxu0 %v8152
    %8699 = vmatprep.subr.bf16.mxu0 %v8144
    %8700 = vmatpush1.bf16.msra.mxu0 %v8143
    %8701 = vmatprep.subr.bf16.mxu0 %v8135
    %8702 = vmatpush1.bf16.msra.mxu0 %v8134
    %8703 = vmatprep.subr.bf16.mxu0 %v8270
    %8704 = vmatpush2.bf16.msra.mxu0 %v8269
    %8705 = vmatprep.subr.bf16.mxu0 %v8261
    %8706 = vmatpush2.bf16.msra.mxu0 %v8260
    %8707 = vmatprep.subr.bf16.mxu0 %v8252
    %8708 = vmatpush2.bf16.msra.mxu0 %v8251
    %8709 = vmatprep.subr.bf16.mxu0 %v8243
    %8710 = vmatpush2.bf16.msra.mxu0 %v8242
    %8711 = vmatprep.subr.bf16.mxu0 %v8234
    %8712 = vmatpush2.bf16.msra.mxu0 %v8233
    %8713 = vmatprep.subr.bf16.mxu0 %v8225
    %8714 = vmatpush2.bf16.msra.mxu0 %v8224
    %8715 = vmatprep.subr.bf16.mxu0 %v8216
    %8716 = vmatpush2.bf16.msra.mxu0 %v8215
    %8717 = vmatprep.subr.bf16.mxu0 %v8207
    %8718 = vmatpush2.bf16.msra.mxu0 %v8206
    %8719 = vmatprep.mubr.bf16.mxu0 %v466
    %8720 = vmatmul.mubr.bf16.gmra.mxu0 %v465
    %v8721 = vpop.f32.mrf.mxu0
    %v8722 = vadd.f32 %v8681, %v8721
    %v8723 = vpop.f32.mrf.mxu0
    %v8724 = vadd.f32 %v8683, %v8723
    %v8725 = vpop.f32.mrf.mxu0
    %v8726 = vpop.f32.mrf.mxu0
    %8727 = vdwg.mxu0
    %8728 = vmatprep.subr.bf16.mxu0 %v8056
    %8729 = vmatpush1.bf16.msra.mxu0 %v8055
    %8730 = vmatprep.subr.bf16.mxu0 %v8047
    %8731 = vmatpush1.bf16.msra.mxu0 %v8046
    %8732 = vmatprep.subr.bf16.mxu0 %v8038
    %8733 = vmatpush1.bf16.msra.mxu0 %v8037
    %8734 = vmatprep.subr.bf16.mxu0 %v8029
    %8735 = vmatpush1.bf16.msra.mxu0 %v8028
    %8736 = vmatprep.subr.bf16.mxu0 %v8020
    %8737 = vmatpush1.bf16.msra.mxu0 %v8019
    %8738 = vmatprep.subr.bf16.mxu0 %v8011
    %8739 = vmatpush1.bf16.msra.mxu0 %v8010
    %8740 = vmatprep.subr.bf16.mxu0 %v8002
    %8741 = vmatpush1.bf16.msra.mxu0 %v8001
    %8742 = vmatprep.subr.bf16.mxu0 %v7993
    %8743 = vmatpush1.bf16.msra.mxu0 %v7992
    %8744 = vmatprep.subr.bf16.mxu0 %v8128
    %8745 = vmatpush2.bf16.msra.mxu0 %v8127
    %8746 = vmatprep.subr.bf16.mxu0 %v8119
    %8747 = vmatpush2.bf16.msra.mxu0 %v8118
    %8748 = vmatprep.subr.bf16.mxu0 %v8110
    %8749 = vmatpush2.bf16.msra.mxu0 %v8109
    %8750 = vmatprep.subr.bf16.mxu0 %v8101
    %8751 = vmatpush2.bf16.msra.mxu0 %v8100
    %8752 = vmatprep.subr.bf16.mxu0 %v8092
    %8753 = vmatpush2.bf16.msra.mxu0 %v8091
    %8754 = vmatprep.subr.bf16.mxu0 %v8083
    %8755 = vmatpush2.bf16.msra.mxu0 %v8082
    %8756 = vmatprep.subr.bf16.mxu0 %v8074
    %8757 = vmatpush2.bf16.msra.mxu0 %v8073
    %8758 = vmatprep.subr.bf16.mxu0 %v8065
    %8759 = vmatpush2.bf16.msra.mxu0 %v8064
    %8760 = vmatprep.mubr.bf16.mxu0 %v464
    %8761 = vmatmul.mubr.bf16.gmra.mxu0 %v457
    %v8762 = vpop.f32.mrf.mxu0
    %v8763 = vadd.f32 0.0, %v8762
    %v8764 = vpop.f32.mrf.mxu0
    %v8765 = vadd.f32 0.0, %v8764
    %v8766 = vpop.f32.mrf.mxu0
    %v8767 = vpop.f32.mrf.mxu0
    %8768 = vdwg.mxu0
    %8769 = vmatprep.subr.bf16.mxu0 %v8200
    %8770 = vmatpush1.bf16.msra.mxu0 %v8199
    %8771 = vmatprep.subr.bf16.mxu0 %v8191
    %8772 = vmatpush1.bf16.msra.mxu0 %v8190
    %8773 = vmatprep.subr.bf16.mxu0 %v8182
    %8774 = vmatpush1.bf16.msra.mxu0 %v8181
    %8775 = vmatprep.subr.bf16.mxu0 %v8173
    %8776 = vmatpush1.bf16.msra.mxu0 %v8172
    %8777 = vmatprep.subr.bf16.mxu0 %v8164
    %8778 = vmatpush1.bf16.msra.mxu0 %v8163
    %8779 = vmatprep.subr.bf16.mxu0 %v8155
    %8780 = vmatpush1.bf16.msra.mxu0 %v8154
    %8781 = vmatprep.subr.bf16.mxu0 %v8146
    %8782 = vmatpush1.bf16.msra.mxu0 %v8145
    %8783 = vmatprep.subr.bf16.mxu0 %v8137
    %8784 = vmatpush1.bf16.msra.mxu0 %v8136
    %8785 = vmatprep.subr.bf16.mxu0 %v8272
    %8786 = vmatpush2.bf16.msra.mxu0 %v8271
    %8787 = vmatprep.subr.bf16.mxu0 %v8263
    %8788 = vmatpush2.bf16.msra.mxu0 %v8262
    %8789 = vmatprep.subr.bf16.mxu0 %v8254
    %8790 = vmatpush2.bf16.msra.mxu0 %v8253
    %8791 = vmatprep.subr.bf16.mxu0 %v8245
    %8792 = vmatpush2.bf16.msra.mxu0 %v8244
    %8793 = vmatprep.subr.bf16.mxu0 %v8236
    %8794 = vmatpush2.bf16.msra.mxu0 %v8235
    %8795 = vmatprep.subr.bf16.mxu0 %v8227
    %8796 = vmatpush2.bf16.msra.mxu0 %v8226
    %8797 = vmatprep.subr.bf16.mxu0 %v8218
    %8798 = vmatpush2.bf16.msra.mxu0 %v8217
    %8799 = vmatprep.subr.bf16.mxu0 %v8209
    %8800 = vmatpush2.bf16.msra.mxu0 %v8208
    %8801 = vmatprep.mubr.bf16.mxu0 %v466
    %8802 = vmatmul.mubr.bf16.gmra.mxu0 %v465
    %v8803 = vpop.f32.mrf.mxu0
    %v8804 = vadd.f32 %v8763, %v8803
    %v8805 = vpop.f32.mrf.mxu0
    %v8806 = vadd.f32 %v8765, %v8805
    %v8807 = vpop.f32.mrf.mxu0
    %v8808 = vpop.f32.mrf.mxu0
    %8809 = vdwg.mxu0
    %8810 = vmatprep.subr.bf16.mxu0 %v8058
    %8811 = vmatpush1.bf16.msra.mxu0 %v8057
    %8812 = vmatprep.subr.bf16.mxu0 %v8049
    %8813 = vmatpush1.bf16.msra.mxu0 %v8048
    %8814 = vmatprep.subr.bf16.mxu0 %v8040
    %8815 = vmatpush1.bf16.msra.mxu0 %v8039
    %8816 = vmatprep.subr.bf16.mxu0 %v8031
    %8817 = vmatpush1.bf16.msra.mxu0 %v8030
    %8818 = vmatprep.subr.bf16.mxu0 %v8022
    %8819 = vmatpush1.bf16.msra.mxu0 %v8021
    %8820 = vmatprep.subr.bf16.mxu0 %v8013
    %8821 = vmatpush1.bf16.msra.mxu0 %v8012
    %8822 = vmatprep.subr.bf16.mxu0 %v8004
    %8823 = vmatpush1.bf16.msra.mxu0 %v8003
    %8824 = vmatprep.subr.bf16.mxu0 %v7995
    %8825 = vmatpush1.bf16.msra.mxu0 %v7994
    %8826 = vmatprep.subr.bf16.mxu0 %v8130
    %8827 = vmatpush2.bf16.msra.mxu0 %v8129
    %8828 = vmatprep.subr.bf16.mxu0 %v8121
    %8829 = vmatpush2.bf16.msra.mxu0 %v8120
    %8830 = vmatprep.subr.bf16.mxu0 %v8112
    %8831 = vmatpush2.bf16.msra.mxu0 %v8111
    %8832 = vmatprep.subr.bf16.mxu0 %v8103
    %8833 = vmatpush2.bf16.msra.mxu0 %v8102
    %8834 = vmatprep.subr.bf16.mxu0 %v8094
    %8835 = vmatpush2.bf16.msra.mxu0 %v8093
    %8836 = vmatprep.subr.bf16.mxu0 %v8085
    %8837 = vmatpush2.bf16.msra.mxu0 %v8084
    %8838 = vmatprep.subr.bf16.mxu0 %v8076
    %8839 = vmatpush2.bf16.msra.mxu0 %v8075
    %8840 = vmatprep.subr.bf16.mxu0 %v8067
    %8841 = vmatpush2.bf16.msra.mxu0 %v8066
    %8842 = vmatprep.mubr.bf16.mxu0 %v464
    %8843 = vmatmul.mubr.bf16.gmra.mxu0 %v457
    %v8844 = vpop.f32.mrf.mxu0
    %v8845 = vadd.f32 0.0, %v8844
    %v8846 = vpop.f32.mrf.mxu0
    %v8847 = vadd.f32 0.0, %v8846
    %v8848 = vpop.f32.mrf.mxu0
    %v8849 = vpop.f32.mrf.mxu0
    %8850 = vdwg.mxu0
    %8851 = vmatprep.subr.bf16.mxu0 %v8202
    %8852 = vmatpush1.bf16.msra.mxu0 %v8201
    %8853 = vmatprep.subr.bf16.mxu0 %v8193
    %8854 = vmatpush1.bf16.msra.mxu0 %v8192
    %8855 = vmatprep.subr.bf16.mxu0 %v8184
    %8856 = vmatpush1.bf16.msra.mxu0 %v8183
    %8857 = vmatprep.subr.bf16.mxu0 %v8175
    %8858 = vmatpush1.bf16.msra.mxu0 %v8174
    %8859 = vmatprep.subr.bf16.mxu0 %v8166
    %8860 = vmatpush1.bf16.msra.mxu0 %v8165
    %8861 = vmatprep.subr.bf16.mxu0 %v8157
    %8862 = vmatpush1.bf16.msra.mxu0 %v8156
    %8863 = vmatprep.subr.bf16.mxu0 %v8148
    %8864 = vmatpush1.bf16.msra.mxu0 %v8147
    %8865 = vmatprep.subr.bf16.mxu0 %v8139
    %8866 = vmatpush1.bf16.msra.mxu0 %v8138
    %8867 = vmatprep.subr.bf16.mxu0 %v8274
    %8868 = vmatpush2.bf16.msra.mxu0 %v8273
    %8869 = vmatprep.subr.bf16.mxu0 %v8265
    %8870 = vmatpush2.bf16.msra.mxu0 %v8264
    %8871 = vmatprep.subr.bf16.mxu0 %v8256
    %8872 = vmatpush2.bf16.msra.mxu0 %v8255
    %8873 = vmatprep.subr.bf16.mxu0 %v8247
    %8874 = vmatpush2.bf16.msra.mxu0 %v8246
    %8875 = vmatprep.subr.bf16.mxu0 %v8238
    %8876 = vmatpush2.bf16.msra.mxu0 %v8237
    %8877 = vmatprep.subr.bf16.mxu0 %v8229
    %8878 = vmatpush2.bf16.msra.mxu0 %v8228
    %8879 = vmatprep.subr.bf16.mxu0 %v8220
    %8880 = vmatpush2.bf16.msra.mxu0 %v8219
    %8881 = vmatprep.subr.bf16.mxu0 %v8211
    %8882 = vmatpush2.bf16.msra.mxu0 %v8210
    %8883 = vmatprep.mubr.bf16.mxu0 %v466
    %8884 = vmatmul.mubr.bf16.gmra.mxu0 %v465
    %v8885 = vpop.f32.mrf.mxu0
    %v8886 = vadd.f32 %v8845, %v8885
    %v8887 = vpop.f32.mrf.mxu0
    %v8888 = vadd.f32 %v8847, %v8887
    %v8889 = vpop.f32.mrf.mxu0
    %v8890 = vpop.f32.mrf.mxu0
    %8891 = vdwg.mxu0
    %8892 = vmatprep.subr.bf16.mxu0 0
    %8893 = vmatpush1.bf16.msra.mxu0 %v8059
    %8894 = vmatprep.subr.bf16.mxu0 0
    %8895 = vmatpush1.bf16.msra.mxu0 %v8050
    %8896 = vmatprep.subr.bf16.mxu0 0
    %8897 = vmatpush1.bf16.msra.mxu0 %v8041
    %8898 = vmatprep.subr.bf16.mxu0 0
    %8899 = vmatpush1.bf16.msra.mxu0 %v8032
    %8900 = vmatprep.subr.bf16.mxu0 0
    %8901 = vmatpush1.bf16.msra.mxu0 %v8023
    %8902 = vmatprep.subr.bf16.mxu0 0
    %8903 = vmatpush1.bf16.msra.mxu0 %v8014
    %8904 = vmatprep.subr.bf16.mxu0 0
    %8905 = vmatpush1.bf16.msra.mxu0 %v8005
    %8906 = vmatprep.subr.bf16.mxu0 0
    %8907 = vmatpush1.bf16.msra.mxu0 %v7996
    %8908 = vmatprep.subr.bf16.mxu0 0
    %8909 = vmatpush2.bf16.msra.mxu0 %v8131
    %8910 = vmatprep.subr.bf16.mxu0 0
    %8911 = vmatpush2.bf16.msra.mxu0 %v8122
    %8912 = vmatprep.subr.bf16.mxu0 0
    %8913 = vmatpush2.bf16.msra.mxu0 %v8113
    %8914 = vmatprep.subr.bf16.mxu0 0
    %8915 = vmatpush2.bf16.msra.mxu0 %v8104
    %8916 = vmatprep.subr.bf16.mxu0 0
    %8917 = vmatpush2.bf16.msra.mxu0 %v8095
    %8918 = vmatprep.subr.bf16.mxu0 0
    %8919 = vmatpush2.bf16.msra.mxu0 %v8086
    %8920 = vmatprep.subr.bf16.mxu0 0
    %8921 = vmatpush2.bf16.msra.mxu0 %v8077
    %8922 = vmatprep.subr.bf16.mxu0 0
    %8923 = vmatpush2.bf16.msra.mxu0 %v8068
    %8924 = vmatprep.mubr.bf16.mxu0 %v464
    %8925 = vmatmul.mubr.bf16.gmra.mxu0 %v457
    %v8926 = vpop.f32.mrf.mxu0
    %v8927 = vadd.f32 0.0, %v8926
    %v8928 = vpop.f32.mrf.mxu0
    %v8929 = vpop.f32.mrf.mxu0
    %v8930 = vpop.f32.mrf.mxu0
    %8931 = vdwg.mxu0
    %8932 = vmatprep.subr.bf16.mxu0 0
    %8933 = vmatpush1.bf16.msra.mxu0 %v8203
    %8934 = vmatprep.subr.bf16.mxu0 0
    %8935 = vmatpush1.bf16.msra.mxu0 %v8194
    %8936 = vmatprep.subr.bf16.mxu0 0
    %8937 = vmatpush1.bf16.msra.mxu0 %v8185
    %8938 = vmatprep.subr.bf16.mxu0 0
    %8939 = vmatpush1.bf16.msra.mxu0 %v8176
    %8940 = vmatprep.subr.bf16.mxu0 0
    %8941 = vmatpush1.bf16.msra.mxu0 %v8167
    %8942 = vmatprep.subr.bf16.mxu0 0
    %8943 = vmatpush1.bf16.msra.mxu0 %v8158
    %8944 = vmatprep.subr.bf16.mxu0 0
    %8945 = vmatpush1.bf16.msra.mxu0 %v8149
    %8946 = vmatprep.subr.bf16.mxu0 0
    %8947 = vmatpush1.bf16.msra.mxu0 %v8140
    %8948 = vmatprep.subr.bf16.mxu0 0
    %8949 = vmatpush2.bf16.msra.mxu0 %v8275
    %8950 = vmatprep.subr.bf16.mxu0 0
    %8951 = vmatpush2.bf16.msra.mxu0 %v8266
    %8952 = vmatprep.subr.bf16.mxu0 0
    %8953 = vmatpush2.bf16.msra.mxu0 %v8257
    %8954 = vmatprep.subr.bf16.mxu0 0
    %8955 = vmatpush2.bf16.msra.mxu0 %v8248
    %8956 = vmatprep.subr.bf16.mxu0 0
    %8957 = vmatpush2.bf16.msra.mxu0 %v8239
    %8958 = vmatprep.subr.bf16.mxu0 0
    %8959 = vmatpush2.bf16.msra.mxu0 %v8230
    %8960 = vmatprep.subr.bf16.mxu0 0
    %8961 = vmatpush2.bf16.msra.mxu0 %v8221
    %8962 = vmatprep.subr.bf16.mxu0 0
    %8963 = vmatpush2.bf16.msra.mxu0 %v8212
    %8964 = vmatprep.mubr.bf16.mxu0 %v466
    %8965 = vmatmul.mubr.bf16.gmra.mxu0 %v465
    %v8966 = vpop.f32.mrf.mxu0
    %v8967 = vadd.f32 %v8927, %v8966
    %v8968 = vpop.f32.mrf.mxu0
    %v8969 = vpop.f32.mrf.mxu0
    %v8970 = vpop.f32.mrf.mxu0
    %8971 = vdwg.mxu0
    %v8972 = vmax.f32 %v6762, %v8640
    %v8973 = vmax.f32 %v6763, %v8642
    %v8974 = vmax.f32 %v6764, %v8722
    %v8975 = vmax.f32 %v6765, %v8724
    %v8976 = vmax.f32 %v6766, %v8804
    %v8977 = vmax.f32 %v6767, %v8806
    %v8978 = vmax.f32 %v6768, %v8886
    %v8979 = vmax.f32 %v6769, %v8888
    %v8980 = vmax.f32 %v6770, %v8967
    %v8981 = vld [vmem:[#allocation7] sm:$0xff]
    %v8982 = vld [vmem:[#allocation7 + $0x8] sm:$0x1]
    %v8985 = vlaneseq
    %v8986 = vshrl.u32 %v8985, 7
    %v8987 = vsub.s32 0, %v8986
    %v8988 = vrot.slane %v8981, %v8987
    %v8989 = vlaneseq
    %v8990 = vshrl.u32 %v8989, 7
    %v8991 = vsub.s32 1, %v8990
    %v8992 = vrot.slane %v8981, %v8991
    %v8993 = vlaneseq
    %v8994 = vshrl.u32 %v8993, 7
    %v8995 = vsub.s32 2, %v8994
    %v8996 = vrot.slane %v8981, %v8995
    %v8997 = vlaneseq
    %v8998 = vshrl.u32 %v8997, 7
    %v8999 = vsub.s32 3, %v8998
    %v9000 = vrot.slane %v8981, %v8999
    %v9001 = vlaneseq
    %v9002 = vshrl.u32 %v9001, 7
    %v9003 = vsub.s32 4, %v9002
    %v9004 = vrot.slane %v8981, %v9003
    %v9005 = vlaneseq
    %v9006 = vshrl.u32 %v9005, 7
    %v9007 = vsub.s32 5, %v9006
    %v9008 = vrot.slane %v8981, %v9007
    %v9009 = vlaneseq
    %v9010 = vshrl.u32 %v9009, 7
    %v9011 = vsub.s32 6, %v9010
    %v9012 = vrot.slane %v8981, %v9011
    %v9013 = vlaneseq
    %v9014 = vshrl.u32 %v9013, 7
    %v9015 = vsub.s32 7, %v9014
    %v9016 = vrot.slane %v8981, %v9015
    %v9017 = vlaneseq
    %v9018 = vshrl.u32 %v9017, 7
    %v9019 = vsub.s32 0, %v9018
    %v9020 = vrot.slane %v8982, %v9019
    %v9030 = vadd.f32 %v8972, %v8988
    %v9031 = vadd.f32 %v8973, %v8992
    %v9032 = vadd.f32 %v8974, %v8996
    %v9033 = vadd.f32 %v8975, %v9000
    %v9034 = vadd.f32 %v8976, %v9004
    %v9035 = vadd.f32 %v8977, %v9008
    %v9036 = vadd.f32 %v8978, %v9012
    %v9037 = vadd.f32 %v8979, %v9016
    %v9038 = vadd.f32 %v8980, %v9020
    %v9039 = vmax.f32 %v9030, 0.0
    %v9040 = vmax.f32 %v9031, 0.0
    %v9041 = vmax.f32 %v9032, 0.0
    %v9042 = vmax.f32 %v9033, 0.0
    %v9043 = vmax.f32 %v9034, 0.0
    %v9044 = vmax.f32 %v9035, 0.0
    %v9045 = vmax.f32 %v9036, 0.0
    %v9046 = vmax.f32 %v9037, 0.0
    %v9047 = vmax.f32 %v9038, 0.0
    %v9048 = vpack.c.bf16 %v9039, %v9039
    %v9049 = vpack.c.bf16 %v9040, %v9040
    %v9050 = vpack.c.bf16 %v9041, %v9041
    %v9051 = vpack.c.bf16 %v9042, %v9042
    %v9052 = vpack.c.bf16 %v9043, %v9043
    %v9053 = vpack.c.bf16 %v9044, %v9044
    %v9054 = vpack.c.bf16 %v9045, %v9045
    %v9055 = vpack.c.bf16 %v9046, %v9046
    %v9056 = vpack.c.bf16 %v9047, %v9047
    %v9066 = vcombine.low %v9048, %v9049
    %v9067 = vcombine.low %v9050, %v9051
    %v9068 = vcombine.low %v9052, %v9053
    %v9069 = vcombine.low %v9054, %v9055
    %v9071 = vunpack.c.l.s4 1966171168
    %v9072 = vunpack.c.0.s8 %v9071
    %v9073 = vlaneseq
    %v9074 = vshrl.u32 %v9073, 7
    %v9075 = vsub.s32 %v9072, %v9074
    %v9076 = vrot.slane %v9066, %v9075
    %v9078 = vunpack.c.l.s4 1966171168
    %v9079 = vunpack.c.0.s8 %v9078
    %v9080 = vlaneseq
    %v9081 = vshrl.u32 %v9080, 7
    %v9082 = vsub.s32 %v9079, %v9081
    %v9083 = vrot.slane %v9067, %v9082
    %v9085 = vunpack.c.l.s4 1966171168
    %v9086 = vunpack.c.0.s8 %v9085
    %v9087 = vlaneseq
    %v9088 = vshrl.u32 %v9087, 7
    %v9089 = vsub.s32 %v9086, %v9088
    %v9090 = vrot.slane %v9068, %v9089
    %v9092 = vunpack.c.l.s4 1966171168
    %v9093 = vunpack.c.0.s8 %v9092
    %v9094 = vlaneseq
    %v9095 = vshrl.u32 %v9094, 7
    %v9096 = vsub.s32 %v9093, %v9095
    %v9097 = vrot.slane %v9069, %v9096
    %v9098 = vcombine.low %v9076, %v9083
    %v9099 = vcombine.low %v9090, %v9097
    %v9101 = vunpack.c.l.s4 1966171168
    %v9102 = vunpack.c.0.s8 %v9101
    %v9103 = vlaneseq
    %v9104 = vshrl.u32 %v9103, 7
    %v9105 = vsub.s32 %v9102, %v9104
    %v9106 = vrot.slane %v9098, %v9105
    %v9108 = vunpack.c.l.s4 1966171168
    %v9109 = vunpack.c.0.s8 %v9108
    %v9110 = vlaneseq
    %v9111 = vshrl.u32 %v9110, 7
    %v9112 = vsub.s32 %v9109, %v9111
    %v9113 = vrot.slane %v9099, %v9112
    %v9114 = vcombine.low %v9106, %v9113
    %v9116 = vunpack.c.l.s4 1966171168
    %v9117 = vunpack.c.0.s8 %v9116
    %v9118 = vlaneseq
    %v9119 = vshrl.u32 %v9118, 7
    %v9120 = vsub.s32 %v9117, %v9119
    %v9121 = vrot.slane %v9056, %v9120
    %v9123 = vunpack.c.l.s4 1966171168
    %v9124 = vunpack.c.0.s8 %v9123
    %v9125 = vlaneseq
    %v9126 = vshrl.u32 %v9125, 7
    %v9127 = vsub.s32 %v9124, %v9126
    %v9128 = vrot.slane %v9121, %v9127
    %9131 = vst [vmem:[#allocation2] sm:$0xff] %v9114
    %9132 = vst [vmem:[#allocation2 + $0x8] sm:$0x1] %v9128
    %v9133 = vld [vmem:[#allocation2] sm:$0xff]
    %v9134 = vld [vmem:[#allocation2 + $0x8] sm:$0x1]
    %v9135 = vld [vmem:[#allocation9] sm:$0xff]
    %v9136 = vld [vmem:[#allocation9 + $0x8] sm:$0xff]
    %v9137 = vld [vmem:[#allocation9 + $0x10] sm:$0xff]
    %v9138 = vld [vmem:[#allocation9 + $0x18] sm:$0xff]
    %v9139 = vld [vmem:[#allocation9 + $0x20] sm:$0xff]
    %v9140 = vld [vmem:[#allocation9 + $0x28] sm:$0xff]
    %v9141 = vld [vmem:[#allocation9 + $0x30] sm:$0xff]
    %v9142 = vld [vmem:[#allocation9 + $0x38] sm:$0xff]
    %v9143 = vld [vmem:[#allocation9 + $0x40] sm:$0xff]
    %v9144 = vld [vmem:[#allocation9 + $0x48] sm:$0xff]
    %v9145 = vld [vmem:[#allocation9 + $0x50] sm:$0xff]
    %v9146 = vld [vmem:[#allocation9 + $0x58] sm:$0xff]
    %v9147 = vld [vmem:[#allocation9 + $0x60] sm:$0xff]
    %v9148 = vld [vmem:[#allocation9 + $0x68] sm:$0xff]
    %v9149 = vld [vmem:[#allocation9 + $0x70] sm:$0xff]
    %v9150 = vld [vmem:[#allocation9 + $0x78] sm:$0xff]
    %v9151 = vld [vmem:[#allocation9 + $0x80] sm:$0xff]
    %v9152 = vld [vmem:[#allocation9 + $0x88] sm:$0xff]
    %v9153 = vld [vmem:[#allocation9 + $0x90] sm:$0xff]
    %v9154 = vld [vmem:[#allocation9 + $0x98] sm:$0xff]
    %v9155 = vld [vmem:[#allocation9 + $0xa0] sm:$0xff]
    %v9156 = vld [vmem:[#allocation9 + $0xa8] sm:$0xff]
    %v9157 = vld [vmem:[#allocation9 + $0xb0] sm:$0xff]
    %v9158 = vld [vmem:[#allocation9 + $0xb8] sm:$0xff]
    %v9159 = vld [vmem:[#allocation9 + $0xc0] sm:$0xff]
    %v9160 = vld [vmem:[#allocation9 + $0xc8] sm:$0xff]
    %v9161 = vld [vmem:[#allocation9 + $0xd0] sm:$0xff]
    %v9162 = vld [vmem:[#allocation9 + $0xd8] sm:$0xff]
    %v9163 = vld [vmem:[#allocation9 + $0xe0] sm:$0xff]
    %v9164 = vld [vmem:[#allocation9 + $0xe8] sm:$0xff]
    %v9165 = vld [vmem:[#allocation9 + $0xf0] sm:$0xff]
    %v9166 = vld [vmem:[#allocation9 + $0xf8] sm:$0xff]
    %v9167 = vld [vmem:[#allocation9 + $0x100] sm:$0xff]
    %v9168 = vld [vmem:[#allocation9 + $0x108] sm:$0xff]
    %v9169 = vld [vmem:[#allocation9 + $0x110] sm:$0xff]
    %v9170 = vld [vmem:[#allocation9 + $0x118] sm:$0xff]
    %v9171 = vld [vmem:[#allocation9 + $0x120] sm:$0xff]
    %v9172 = vld [vmem:[#allocation9 + $0x128] sm:$0xff]
    %v9173 = vld [vmem:[#allocation9 + $0x130] sm:$0xff]
    %v9174 = vld [vmem:[#allocation9 + $0x138] sm:$0xff]
    %v9175 = vld [vmem:[#allocation9 + $0x140] sm:$0xff]
    %v9176 = vld [vmem:[#allocation9 + $0x148] sm:$0xff]
    %v9177 = vld [vmem:[#allocation9 + $0x150] sm:$0xff]
    %v9178 = vld [vmem:[#allocation9 + $0x158] sm:$0xff]
    %v9179 = vld [vmem:[#allocation9 + $0x160] sm:$0xff]
    %v9180 = vld [vmem:[#allocation9 + $0x168] sm:$0xff]
    %v9181 = vld [vmem:[#allocation9 + $0x170] sm:$0xff]
    %v9182 = vld [vmem:[#allocation9 + $0x178] sm:$0xff]
    %v9183 = vld [vmem:[#allocation9 + $0x180] sm:$0xff]
    %v9184 = vld [vmem:[#allocation9 + $0x188] sm:$0xff]
    %v9185 = vld [vmem:[#allocation9 + $0x190] sm:$0xff]
    %v9186 = vld [vmem:[#allocation9 + $0x198] sm:$0xff]
    %v9187 = vld [vmem:[#allocation9 + $0x1a0] sm:$0xff]
    %v9188 = vld [vmem:[#allocation9 + $0x1a8] sm:$0xff]
    %v9189 = vld [vmem:[#allocation9 + $0x1b0] sm:$0xff]
    %v9190 = vld [vmem:[#allocation9 + $0x1b8] sm:$0xff]
    %v9191 = vld [vmem:[#allocation9 + $0x1c0] sm:$0xff]
    %v9192 = vld [vmem:[#allocation9 + $0x1c8] sm:$0xff]
    %v9193 = vld [vmem:[#allocation9 + $0x1d0] sm:$0xff]
    %v9194 = vld [vmem:[#allocation9 + $0x1d8] sm:$0xff]
    %v9195 = vld [vmem:[#allocation9 + $0x1e0] sm:$0xff]
    %v9196 = vld [vmem:[#allocation9 + $0x1e8] sm:$0xff]
    %v9197 = vld [vmem:[#allocation9 + $0x1f0] sm:$0xff]
    %v9198 = vld [vmem:[#allocation9 + $0x1f8] sm:$0xff]
    %v9199 = vld [vmem:[#allocation9 + $0x200] sm:$0xff]
    %v9200 = vld [vmem:[#allocation9 + $0x208] sm:$0xff]
    %v9201 = vld [vmem:[#allocation9 + $0x210] sm:$0xff]
    %v9202 = vld [vmem:[#allocation9 + $0x218] sm:$0xff]
    %v9203 = vld [vmem:[#allocation9 + $0x220] sm:$0xff]
    %v9204 = vld [vmem:[#allocation9 + $0x228] sm:$0xff]
    %v9205 = vld [vmem:[#allocation9 + $0x230] sm:$0xff]
    %v9206 = vld [vmem:[#allocation9 + $0x238] sm:$0xff]
    %v9207 = vld [vmem:[#allocation9 + $0x240] sm:$0xff]
    %v9208 = vld [vmem:[#allocation9 + $0x248] sm:$0xff]
    %v9209 = vld [vmem:[#allocation9 + $0x250] sm:$0xff]
    %v9210 = vld [vmem:[#allocation9 + $0x258] sm:$0xff]
    %v9211 = vld [vmem:[#allocation9 + $0x260] sm:$0xff]
    %v9212 = vld [vmem:[#allocation9 + $0x268] sm:$0xff]
    %v9213 = vld [vmem:[#allocation9 + $0x270] sm:$0xff]
    %v9214 = vld [vmem:[#allocation9 + $0x278] sm:$0xff]
    %v9215 = vld [vmem:[#allocation9 + $0x280] sm:$0xff]
    %v9216 = vld [vmem:[#allocation9 + $0x288] sm:$0xff]
    %v9217 = vld [vmem:[#allocation9 + $0x290] sm:$0xff]
    %v9218 = vld [vmem:[#allocation9 + $0x298] sm:$0xff]
    %v9219 = vld [vmem:[#allocation9 + $0x2a0] sm:$0xff]
    %v9220 = vld [vmem:[#allocation9 + $0x2a8] sm:$0xff]
    %v9221 = vld [vmem:[#allocation9 + $0x2b0] sm:$0xff]
    %v9222 = vld [vmem:[#allocation9 + $0x2b8] sm:$0xff]
    %v9223 = vld [vmem:[#allocation9 + $0x2c0] sm:$0xff]
    %v9224 = vld [vmem:[#allocation9 + $0x2c8] sm:$0xff]
    %v9225 = vld [vmem:[#allocation9 + $0x2d0] sm:$0xff]
    %v9226 = vld [vmem:[#allocation9 + $0x2d8] sm:$0xff]
    %v9227 = vld [vmem:[#allocation9 + $0x2e0] sm:$0xff]
    %v9228 = vld [vmem:[#allocation9 + $0x2e8] sm:$0xff]
    %v9229 = vld [vmem:[#allocation9 + $0x2f0] sm:$0xff]
    %v9230 = vld [vmem:[#allocation9 + $0x2f8] sm:$0xff]
    %v9231 = vld [vmem:[#allocation9 + $0x300] sm:$0xff]
    %v9232 = vld [vmem:[#allocation9 + $0x308] sm:$0xff]
    %v9233 = vld [vmem:[#allocation9 + $0x310] sm:$0xff]
    %v9234 = vld [vmem:[#allocation9 + $0x318] sm:$0xff]
    %v9235 = vld [vmem:[#allocation9 + $0x320] sm:$0xff]
    %v9236 = vld [vmem:[#allocation9 + $0x328] sm:$0xff]
    %v9237 = vld [vmem:[#allocation9 + $0x330] sm:$0xff]
    %v9238 = vld [vmem:[#allocation9 + $0x338] sm:$0xff]
    %v9239 = vld [vmem:[#allocation9 + $0x340] sm:$0xff]
    %v9240 = vld [vmem:[#allocation9 + $0x348] sm:$0xff]
    %v9241 = vld [vmem:[#allocation9 + $0x350] sm:$0xff]
    %v9242 = vld [vmem:[#allocation9 + $0x358] sm:$0xff]
    %v9243 = vld [vmem:[#allocation9 + $0x360] sm:$0xff]
    %v9244 = vld [vmem:[#allocation9 + $0x368] sm:$0xff]
    %v9245 = vld [vmem:[#allocation9 + $0x370] sm:$0xff]
    %v9246 = vld [vmem:[#allocation9 + $0x378] sm:$0xff]
    %v9247 = vld [vmem:[#allocation9 + $0x380] sm:$0xff]
    %v9248 = vld [vmem:[#allocation9 + $0x388] sm:$0xff]
    %v9249 = vld [vmem:[#allocation9 + $0x390] sm:$0xff]
    %v9250 = vld [vmem:[#allocation9 + $0x398] sm:$0xff]
    %v9251 = vld [vmem:[#allocation9 + $0x3a0] sm:$0xff]
    %v9252 = vld [vmem:[#allocation9 + $0x3a8] sm:$0xff]
    %v9253 = vld [vmem:[#allocation9 + $0x3b0] sm:$0xff]
    %v9254 = vld [vmem:[#allocation9 + $0x3b8] sm:$0xff]
    %v9255 = vld [vmem:[#allocation9 + $0x3c0] sm:$0xff]
    %v9256 = vld [vmem:[#allocation9 + $0x3c8] sm:$0xff]
    %v9257 = vld [vmem:[#allocation9 + $0x3d0] sm:$0xff]
    %v9258 = vld [vmem:[#allocation9 + $0x3d8] sm:$0xff]
    %v9259 = vld [vmem:[#allocation9 + $0x3e0] sm:$0xff]
    %v9260 = vld [vmem:[#allocation9 + $0x3e8] sm:$0xff]
    %v9261 = vld [vmem:[#allocation9 + $0x3f0] sm:$0xff]
    %v9262 = vld [vmem:[#allocation9 + $0x3f8] sm:$0xff]
    %v9263 = vld [vmem:[#allocation9 + $0x400] sm:$0xff]
    %v9264 = vld [vmem:[#allocation9 + $0x408] sm:$0xff]
    %v9265 = vld [vmem:[#allocation9 + $0x410] sm:$0xff]
    %v9266 = vld [vmem:[#allocation9 + $0x418] sm:$0xff]
    %v9267 = vld [vmem:[#allocation9 + $0x420] sm:$0xff]
    %v9268 = vld [vmem:[#allocation9 + $0x428] sm:$0xff]
    %v9269 = vld [vmem:[#allocation9 + $0x430] sm:$0xff]
    %v9270 = vld [vmem:[#allocation9 + $0x438] sm:$0xff]
    %v9271 = vld [vmem:[#allocation9 + $0x440] sm:$0xff]
    %v9272 = vld [vmem:[#allocation9 + $0x448] sm:$0xff]
    %v9273 = vld [vmem:[#allocation9 + $0x450] sm:$0xff]
    %v9274 = vld [vmem:[#allocation9 + $0x458] sm:$0xff]
    %v9275 = vld [vmem:[#allocation9 + $0x460] sm:$0xff]
    %v9276 = vld [vmem:[#allocation9 + $0x468] sm:$0xff]
    %v9277 = vld [vmem:[#allocation9 + $0x470] sm:$0xff]
    %v9278 = vld [vmem:[#allocation9 + $0x478] sm:$0xff]
    %v9281 = vcombine.high %v9133, %v9133
    %v9283 = vunpack.c.l.s4 1966171168
    %v9284 = vunpack.c.0.s8 %v9283
    %v9285 = vlaneseq
    %v9286 = vshrl.u32 %v9285, 7
    %v9287 = vsub.s32 %v9284, %v9286
    %v9288 = vrot.slane %v9133, %v9287
    %v9290 = vunpack.c.l.s4 1966171168
    %v9291 = vunpack.c.0.s8 %v9290
    %v9292 = vlaneseq
    %v9293 = vshrl.u32 %v9292, 7
    %v9294 = vsub.s32 %v9291, %v9293
    %v9295 = vrot.slane %v9281, %v9294
    %v9296 = vcombine.high %v9288, %v9288
    %v9297 = vcombine.high %v9295, %v9295
    %v9299 = vunpack.c.l.s4 1966171168
    %v9300 = vunpack.c.0.s8 %v9299
    %v9301 = vlaneseq
    %v9302 = vshrl.u32 %v9301, 7
    %v9303 = vsub.s32 %v9300, %v9302
    %v9304 = vrot.slane %v9288, %v9303
    %v9306 = vunpack.c.l.s4 1966171168
    %v9307 = vunpack.c.0.s8 %v9306
    %v9308 = vlaneseq
    %v9309 = vshrl.u32 %v9308, 7
    %v9310 = vsub.s32 %v9307, %v9309
    %v9311 = vrot.slane %v9295, %v9310
    %v9313 = vunpack.c.l.s4 1966171168
    %v9314 = vunpack.c.0.s8 %v9313
    %v9315 = vlaneseq
    %v9316 = vshrl.u32 %v9315, 7
    %v9317 = vsub.s32 %v9314, %v9316
    %v9318 = vrot.slane %v9296, %v9317
    %v9320 = vunpack.c.l.s4 1966171168
    %v9321 = vunpack.c.0.s8 %v9320
    %v9322 = vlaneseq
    %v9323 = vshrl.u32 %v9322, 7
    %v9324 = vsub.s32 %v9321, %v9323
    %v9325 = vrot.slane %v9297, %v9324
    %v9326 = vcombine.high %v9304, %v9304
    %v9327 = vcombine.high %v9311, %v9311
    %v9328 = vcombine.high %v9318, %v9318
    %v9329 = vcombine.high %v9325, %v9325
    %v9331 = vunpack.c.l.s4 1966171168
    %v9332 = vunpack.c.0.s8 %v9331
    %v9333 = vlaneseq
    %v9334 = vshrl.u32 %v9333, 7
    %v9335 = vsub.s32 %v9332, %v9334
    %v9336 = vrot.slane %v9134, %v9335
    %v9338 = vunpack.c.l.s4 1966171168
    %v9339 = vunpack.c.0.s8 %v9338
    %v9340 = vlaneseq
    %v9341 = vshrl.u32 %v9340, 7
    %v9342 = vsub.s32 %v9339, %v9341
    %v9343 = vrot.slane %v9336, %v9342
    %v9497 = vunpack.c.l.b16 %v9135
    %v9498 = vunpack.c.h.b16 %v9135
    %v9499 = vunpack.c.l.b16 %v9136
    %v9500 = vunpack.c.h.b16 %v9136
    %v9501 = vunpack.c.l.b16 %v9137
    %v9502 = vunpack.c.h.b16 %v9137
    %v9503 = vunpack.c.l.b16 %v9138
    %v9504 = vunpack.c.h.b16 %v9138
    %v9505 = vunpack.c.l.b16 %v9139
    %v9506 = vunpack.c.h.b16 %v9139
    %v9507 = vunpack.c.l.b16 %v9140
    %v9508 = vunpack.c.h.b16 %v9140
    %v9509 = vunpack.c.l.b16 %v9141
    %v9510 = vunpack.c.h.b16 %v9141
    %v9511 = vunpack.c.l.b16 %v9142
    %v9512 = vunpack.c.h.b16 %v9142
    %v9513 = vunpack.c.l.b16 %v9143
    %v9514 = vunpack.c.h.b16 %v9143
    %v9515 = vunpack.c.l.b16 %v9144
    %v9516 = vunpack.c.h.b16 %v9144
    %v9517 = vunpack.c.l.b16 %v9145
    %v9518 = vunpack.c.h.b16 %v9145
    %v9519 = vunpack.c.l.b16 %v9146
    %v9520 = vunpack.c.h.b16 %v9146
    %v9521 = vunpack.c.l.b16 %v9147
    %v9522 = vunpack.c.h.b16 %v9147
    %v9523 = vunpack.c.l.b16 %v9148
    %v9524 = vunpack.c.h.b16 %v9148
    %v9525 = vunpack.c.l.b16 %v9149
    %v9526 = vunpack.c.h.b16 %v9149
    %v9527 = vunpack.c.l.b16 %v9150
    %v9528 = vunpack.c.h.b16 %v9150
    %v9529 = vunpack.c.l.b16 %v9151
    %v9530 = vunpack.c.h.b16 %v9151
    %v9531 = vunpack.c.l.b16 %v9152
    %v9532 = vunpack.c.h.b16 %v9152
    %v9533 = vunpack.c.l.b16 %v9153
    %v9534 = vunpack.c.h.b16 %v9153
    %v9535 = vunpack.c.l.b16 %v9154
    %v9536 = vunpack.c.h.b16 %v9154
    %v9537 = vunpack.c.l.b16 %v9155
    %v9538 = vunpack.c.h.b16 %v9155
    %v9539 = vunpack.c.l.b16 %v9156
    %v9540 = vunpack.c.h.b16 %v9156
    %v9541 = vunpack.c.l.b16 %v9157
    %v9542 = vunpack.c.h.b16 %v9157
    %v9543 = vunpack.c.l.b16 %v9158
    %v9544 = vunpack.c.h.b16 %v9158
    %v9545 = vunpack.c.l.b16 %v9159
    %v9546 = vunpack.c.h.b16 %v9159
    %v9547 = vunpack.c.l.b16 %v9160
    %v9548 = vunpack.c.h.b16 %v9160
    %v9549 = vunpack.c.l.b16 %v9161
    %v9550 = vunpack.c.h.b16 %v9161
    %v9551 = vunpack.c.l.b16 %v9162
    %v9552 = vunpack.c.h.b16 %v9162
    %v9553 = vunpack.c.l.b16 %v9163
    %v9554 = vunpack.c.h.b16 %v9163
    %v9555 = vunpack.c.l.b16 %v9164
    %v9556 = vunpack.c.h.b16 %v9164
    %v9557 = vunpack.c.l.b16 %v9165
    %v9558 = vunpack.c.h.b16 %v9165
    %v9559 = vunpack.c.l.b16 %v9166
    %v9560 = vunpack.c.h.b16 %v9166
    %v9561 = vunpack.c.l.b16 %v9167
    %v9562 = vunpack.c.h.b16 %v9167
    %v9563 = vunpack.c.l.b16 %v9168
    %v9564 = vunpack.c.h.b16 %v9168
    %v9565 = vunpack.c.l.b16 %v9169
    %v9566 = vunpack.c.h.b16 %v9169
    %v9567 = vunpack.c.l.b16 %v9170
    %v9568 = vunpack.c.h.b16 %v9170
    %v9569 = vunpack.c.l.b16 %v9171
    %v9570 = vunpack.c.h.b16 %v9171
    %v9571 = vunpack.c.l.b16 %v9172
    %v9572 = vunpack.c.h.b16 %v9172
    %v9573 = vunpack.c.l.b16 %v9173
    %v9574 = vunpack.c.h.b16 %v9173
    %v9575 = vunpack.c.l.b16 %v9174
    %v9576 = vunpack.c.h.b16 %v9174
    %v9577 = vunpack.c.l.b16 %v9175
    %v9578 = vunpack.c.h.b16 %v9175
    %v9579 = vunpack.c.l.b16 %v9176
    %v9580 = vunpack.c.h.b16 %v9176
    %v9581 = vunpack.c.l.b16 %v9177
    %v9582 = vunpack.c.h.b16 %v9177
    %v9583 = vunpack.c.l.b16 %v9178
    %v9584 = vunpack.c.h.b16 %v9178
    %v9585 = vunpack.c.l.b16 %v9179
    %v9586 = vunpack.c.h.b16 %v9179
    %v9587 = vunpack.c.l.b16 %v9180
    %v9588 = vunpack.c.h.b16 %v9180
    %v9589 = vunpack.c.l.b16 %v9181
    %v9590 = vunpack.c.h.b16 %v9181
    %v9591 = vunpack.c.l.b16 %v9182
    %v9592 = vunpack.c.h.b16 %v9182
    %v9593 = vunpack.c.l.b16 %v9183
    %v9594 = vunpack.c.h.b16 %v9183
    %v9595 = vunpack.c.l.b16 %v9184
    %v9596 = vunpack.c.h.b16 %v9184
    %v9597 = vunpack.c.l.b16 %v9185
    %v9598 = vunpack.c.h.b16 %v9185
    %v9599 = vunpack.c.l.b16 %v9186
    %v9600 = vunpack.c.h.b16 %v9186
    %v9601 = vunpack.c.l.b16 %v9187
    %v9602 = vunpack.c.h.b16 %v9187
    %v9603 = vunpack.c.l.b16 %v9188
    %v9604 = vunpack.c.h.b16 %v9188
    %v9605 = vunpack.c.l.b16 %v9189
    %v9606 = vunpack.c.h.b16 %v9189
    %v9607 = vunpack.c.l.b16 %v9190
    %v9608 = vunpack.c.h.b16 %v9190
    %v9609 = vunpack.c.l.b16 %v9191
    %v9610 = vunpack.c.h.b16 %v9191
    %v9611 = vunpack.c.l.b16 %v9192
    %v9612 = vunpack.c.h.b16 %v9192
    %v9613 = vunpack.c.l.b16 %v9193
    %v9614 = vunpack.c.h.b16 %v9193
    %v9615 = vunpack.c.l.b16 %v9194
    %v9616 = vunpack.c.h.b16 %v9194
    %v9617 = vunpack.c.l.b16 %v9195
    %v9618 = vunpack.c.h.b16 %v9195
    %v9619 = vunpack.c.l.b16 %v9196
    %v9620 = vunpack.c.h.b16 %v9196
    %v9621 = vunpack.c.l.b16 %v9197
    %v9622 = vunpack.c.h.b16 %v9197
    %v9623 = vunpack.c.l.b16 %v9198
    %v9624 = vunpack.c.h.b16 %v9198
    %v9625 = vunpack.c.l.b16 %v9199
    %v9626 = vunpack.c.h.b16 %v9199
    %v9627 = vunpack.c.l.b16 %v9200
    %v9628 = vunpack.c.h.b16 %v9200
    %v9629 = vunpack.c.l.b16 %v9201
    %v9630 = vunpack.c.h.b16 %v9201
    %v9631 = vunpack.c.l.b16 %v9202
    %v9632 = vunpack.c.h.b16 %v9202
    %v9633 = vunpack.c.l.b16 %v9203
    %v9634 = vunpack.c.h.b16 %v9203
    %v9635 = vunpack.c.l.b16 %v9204
    %v9636 = vunpack.c.h.b16 %v9204
    %v9637 = vunpack.c.l.b16 %v9205
    %v9638 = vunpack.c.h.b16 %v9205
    %v9639 = vunpack.c.l.b16 %v9206
    %v9640 = vunpack.c.h.b16 %v9206
    %v9641 = vunpack.c.l.b16 %v9207
    %v9642 = vunpack.c.h.b16 %v9207
    %v9643 = vunpack.c.l.b16 %v9208
    %v9644 = vunpack.c.h.b16 %v9208
    %v9645 = vunpack.c.l.b16 %v9209
    %v9646 = vunpack.c.h.b16 %v9209
    %v9647 = vunpack.c.l.b16 %v9210
    %v9648 = vunpack.c.h.b16 %v9210
    %v9649 = vunpack.c.l.b16 %v9211
    %v9650 = vunpack.c.h.b16 %v9211
    %v9651 = vunpack.c.l.b16 %v9212
    %v9652 = vunpack.c.h.b16 %v9212
    %v9653 = vunpack.c.l.b16 %v9213
    %v9654 = vunpack.c.h.b16 %v9213
    %v9655 = vunpack.c.l.b16 %v9214
    %v9656 = vunpack.c.h.b16 %v9214
    %v9657 = vunpack.c.l.b16 %v9215
    %v9658 = vunpack.c.h.b16 %v9215
    %v9659 = vunpack.c.l.b16 %v9216
    %v9660 = vunpack.c.h.b16 %v9216
    %v9661 = vunpack.c.l.b16 %v9217
    %v9662 = vunpack.c.h.b16 %v9217
    %v9663 = vunpack.c.l.b16 %v9218
    %v9664 = vunpack.c.h.b16 %v9218
    %v9665 = vunpack.c.l.b16 %v9219
    %v9666 = vunpack.c.h.b16 %v9219
    %v9667 = vunpack.c.l.b16 %v9220
    %v9668 = vunpack.c.h.b16 %v9220
    %v9669 = vunpack.c.l.b16 %v9221
    %v9670 = vunpack.c.h.b16 %v9221
    %v9671 = vunpack.c.l.b16 %v9222
    %v9672 = vunpack.c.h.b16 %v9222
    %v9673 = vunpack.c.l.b16 %v9223
    %v9674 = vunpack.c.h.b16 %v9223
    %v9675 = vunpack.c.l.b16 %v9224
    %v9676 = vunpack.c.h.b16 %v9224
    %v9677 = vunpack.c.l.b16 %v9225
    %v9678 = vunpack.c.h.b16 %v9225
    %v9679 = vunpack.c.l.b16 %v9226
    %v9680 = vunpack.c.h.b16 %v9226
    %v9681 = vunpack.c.l.b16 %v9227
    %v9682 = vunpack.c.h.b16 %v9227
    %v9683 = vunpack.c.l.b16 %v9228
    %v9684 = vunpack.c.h.b16 %v9228
    %v9685 = vunpack.c.l.b16 %v9229
    %v9686 = vunpack.c.h.b16 %v9229
    %v9687 = vunpack.c.l.b16 %v9230
    %v9688 = vunpack.c.h.b16 %v9230
    %v9689 = vunpack.c.l.b16 %v9231
    %v9690 = vunpack.c.h.b16 %v9231
    %v9691 = vunpack.c.l.b16 %v9232
    %v9692 = vunpack.c.h.b16 %v9232
    %v9693 = vunpack.c.l.b16 %v9233
    %v9694 = vunpack.c.h.b16 %v9233
    %v9695 = vunpack.c.l.b16 %v9234
    %v9696 = vunpack.c.h.b16 %v9234
    %v9697 = vunpack.c.l.b16 %v9235
    %v9698 = vunpack.c.h.b16 %v9235
    %v9699 = vunpack.c.l.b16 %v9236
    %v9700 = vunpack.c.h.b16 %v9236
    %v9701 = vunpack.c.l.b16 %v9237
    %v9702 = vunpack.c.h.b16 %v9237
    %v9703 = vunpack.c.l.b16 %v9238
    %v9704 = vunpack.c.h.b16 %v9238
    %v9705 = vunpack.c.l.b16 %v9239
    %v9706 = vunpack.c.h.b16 %v9239
    %v9707 = vunpack.c.l.b16 %v9240
    %v9708 = vunpack.c.h.b16 %v9240
    %v9709 = vunpack.c.l.b16 %v9241
    %v9710 = vunpack.c.h.b16 %v9241
    %v9711 = vunpack.c.l.b16 %v9242
    %v9712 = vunpack.c.h.b16 %v9242
    %v9713 = vunpack.c.l.b16 %v9243
    %v9714 = vunpack.c.h.b16 %v9243
    %v9715 = vunpack.c.l.b16 %v9244
    %v9716 = vunpack.c.h.b16 %v9244
    %v9717 = vunpack.c.l.b16 %v9245
    %v9718 = vunpack.c.h.b16 %v9245
    %v9719 = vunpack.c.l.b16 %v9246
    %v9720 = vunpack.c.h.b16 %v9246
    %v9721 = vunpack.c.l.b16 %v9247
    %v9722 = vunpack.c.h.b16 %v9247
    %v9723 = vunpack.c.l.b16 %v9248
    %v9724 = vunpack.c.h.b16 %v9248
    %v9725 = vunpack.c.l.b16 %v9249
    %v9726 = vunpack.c.h.b16 %v9249
    %v9727 = vunpack.c.l.b16 %v9250
    %v9728 = vunpack.c.h.b16 %v9250
    %v9729 = vunpack.c.l.b16 %v9251
    %v9730 = vunpack.c.h.b16 %v9251
    %v9731 = vunpack.c.l.b16 %v9252
    %v9732 = vunpack.c.h.b16 %v9252
    %v9733 = vunpack.c.l.b16 %v9253
    %v9734 = vunpack.c.h.b16 %v9253
    %v9735 = vunpack.c.l.b16 %v9254
    %v9736 = vunpack.c.h.b16 %v9254
    %v9737 = vunpack.c.l.b16 %v9255
    %v9738 = vunpack.c.h.b16 %v9255
    %v9739 = vunpack.c.l.b16 %v9256
    %v9740 = vunpack.c.h.b16 %v9256
    %v9741 = vunpack.c.l.b16 %v9257
    %v9742 = vunpack.c.h.b16 %v9257
    %v9743 = vunpack.c.l.b16 %v9258
    %v9744 = vunpack.c.h.b16 %v9258
    %v9745 = vunpack.c.l.b16 %v9259
    %v9746 = vunpack.c.h.b16 %v9259
    %v9747 = vunpack.c.l.b16 %v9260
    %v9748 = vunpack.c.h.b16 %v9260
    %v9749 = vunpack.c.l.b16 %v9261
    %v9750 = vunpack.c.h.b16 %v9261
    %v9751 = vunpack.c.l.b16 %v9262
    %v9752 = vunpack.c.h.b16 %v9262
    %v9753 = vunpack.c.l.b16 %v9263
    %v9754 = vunpack.c.h.b16 %v9263
    %v9755 = vunpack.c.l.b16 %v9264
    %v9756 = vunpack.c.h.b16 %v9264
    %v9757 = vunpack.c.l.b16 %v9265
    %v9758 = vunpack.c.h.b16 %v9265
    %v9759 = vunpack.c.l.b16 %v9266
    %v9760 = vunpack.c.h.b16 %v9266
    %v9761 = vunpack.c.l.b16 %v9267
    %v9762 = vunpack.c.h.b16 %v9267
    %v9763 = vunpack.c.l.b16 %v9268
    %v9764 = vunpack.c.h.b16 %v9268
    %v9765 = vunpack.c.l.b16 %v9269
    %v9766 = vunpack.c.h.b16 %v9269
    %v9767 = vunpack.c.l.b16 %v9270
    %v9768 = vunpack.c.h.b16 %v9270
    %v9769 = vunpack.c.l.b16 %v9271
    %v9770 = vunpack.c.h.b16 %v9271
    %v9771 = vunpack.c.l.b16 %v9272
    %v9772 = vunpack.c.h.b16 %v9272
    %v9773 = vunpack.c.l.b16 %v9273
    %v9774 = vunpack.c.h.b16 %v9273
    %v9775 = vunpack.c.l.b16 %v9274
    %v9776 = vunpack.c.h.b16 %v9274
    %v9777 = vunpack.c.l.b16 %v9275
    %v9778 = vunpack.c.h.b16 %v9275
    %v9779 = vunpack.c.l.b16 %v9276
    %v9780 = vunpack.c.h.b16 %v9276
    %v9781 = vunpack.c.l.b16 %v9277
    %v9782 = vunpack.c.h.b16 %v9277
    %v9783 = vunpack.c.l.b16 %v9278
    %v9784 = vunpack.c.h.b16 %v9278
    %v9785 = vpack.c.b16 %v9499, %v9497
    %v9786 = vpack.c.b16 %v9500, %v9498
    %v9787 = vpack.c.b16 %v9503, %v9501
    %v9788 = vpack.c.b16 %v9504, %v9502
    %v9789 = vpack.c.b16 %v9507, %v9505
    %v9790 = vpack.c.b16 %v9508, %v9506
    %v9791 = vpack.c.b16 %v9511, %v9509
    %v9792 = vpack.c.b16 %v9512, %v9510
    %v9793 = vpack.c.b16 %v9515, %v9513
    %v9794 = vpack.c.b16 %v9516, %v9514
    %v9795 = vpack.c.b16 %v9519, %v9517
    %v9796 = vpack.c.b16 %v9520, %v9518
    %v9797 = vpack.c.b16 %v9523, %v9521
    %v9798 = vpack.c.b16 %v9524, %v9522
    %v9799 = vpack.c.b16 %v9527, %v9525
    %v9800 = vpack.c.b16 %v9528, %v9526
    %v9801 = vpack.c.b16 %v9531, %v9529
    %v9802 = vpack.c.b16 %v9532, %v9530
    %v9803 = vpack.c.b16 %v9535, %v9533
    %v9804 = vpack.c.b16 %v9536, %v9534
    %v9805 = vpack.c.b16 %v9539, %v9537
    %v9806 = vpack.c.b16 %v9540, %v9538
    %v9807 = vpack.c.b16 %v9543, %v9541
    %v9808 = vpack.c.b16 %v9544, %v9542
    %v9809 = vpack.c.b16 %v9547, %v9545
    %v9810 = vpack.c.b16 %v9548, %v9546
    %v9811 = vpack.c.b16 %v9551, %v9549
    %v9812 = vpack.c.b16 %v9552, %v9550
    %v9813 = vpack.c.b16 %v9555, %v9553
    %v9814 = vpack.c.b16 %v9556, %v9554
    %v9815 = vpack.c.b16 %v9559, %v9557
    %v9816 = vpack.c.b16 %v9560, %v9558
    %v9817 = vpack.c.b16 %v9563, %v9561
    %v9818 = vpack.c.b16 %v9564, %v9562
    %v9819 = vpack.c.b16 %v9567, %v9565
    %v9820 = vpack.c.b16 %v9568, %v9566
    %v9821 = vpack.c.b16 %v9571, %v9569
    %v9822 = vpack.c.b16 %v9572, %v9570
    %v9823 = vpack.c.b16 %v9575, %v9573
    %v9824 = vpack.c.b16 %v9576, %v9574
    %v9825 = vpack.c.b16 %v9579, %v9577
    %v9826 = vpack.c.b16 %v9580, %v9578
    %v9827 = vpack.c.b16 %v9583, %v9581
    %v9828 = vpack.c.b16 %v9584, %v9582
    %v9829 = vpack.c.b16 %v9587, %v9585
    %v9830 = vpack.c.b16 %v9588, %v9586
    %v9831 = vpack.c.b16 %v9591, %v9589
    %v9832 = vpack.c.b16 %v9592, %v9590
    %v9833 = vpack.c.b16 %v9595, %v9593
    %v9834 = vpack.c.b16 %v9596, %v9594
    %v9835 = vpack.c.b16 %v9599, %v9597
    %v9836 = vpack.c.b16 %v9600, %v9598
    %v9837 = vpack.c.b16 %v9603, %v9601
    %v9838 = vpack.c.b16 %v9604, %v9602
    %v9839 = vpack.c.b16 %v9607, %v9605
    %v9840 = vpack.c.b16 %v9608, %v9606
    %v9841 = vpack.c.b16 %v9611, %v9609
    %v9842 = vpack.c.b16 %v9612, %v9610
    %v9843 = vpack.c.b16 %v9615, %v9613
    %v9844 = vpack.c.b16 %v9616, %v9614
    %v9845 = vpack.c.b16 %v9619, %v9617
    %v9846 = vpack.c.b16 %v9620, %v9618
    %v9847 = vpack.c.b16 %v9623, %v9621
    %v9848 = vpack.c.b16 %v9624, %v9622
    %v9849 = vpack.c.b16 %v9627, %v9625
    %v9850 = vpack.c.b16 %v9628, %v9626
    %v9851 = vpack.c.b16 %v9631, %v9629
    %v9852 = vpack.c.b16 %v9632, %v9630
    %v9853 = vpack.c.b16 %v9635, %v9633
    %v9854 = vpack.c.b16 %v9636, %v9634
    %v9855 = vpack.c.b16 %v9639, %v9637
    %v9856 = vpack.c.b16 %v9640, %v9638
    %v9857 = vpack.c.b16 %v9643, %v9641
    %v9858 = vpack.c.b16 %v9644, %v9642
    %v9859 = vpack.c.b16 %v9647, %v9645
    %v9860 = vpack.c.b16 %v9648, %v9646
    %v9861 = vpack.c.b16 %v9651, %v9649
    %v9862 = vpack.c.b16 %v9652, %v9650
    %v9863 = vpack.c.b16 %v9655, %v9653
    %v9864 = vpack.c.b16 %v9656, %v9654
    %v9865 = vpack.c.b16 %v9659, %v9657
    %v9866 = vpack.c.b16 %v9660, %v9658
    %v9867 = vpack.c.b16 %v9663, %v9661
    %v9868 = vpack.c.b16 %v9664, %v9662
    %v9869 = vpack.c.b16 %v9667, %v9665
    %v9870 = vpack.c.b16 %v9668, %v9666
    %v9871 = vpack.c.b16 %v9671, %v9669
    %v9872 = vpack.c.b16 %v9672, %v9670
    %v9873 = vpack.c.b16 %v9675, %v9673
    %v9874 = vpack.c.b16 %v9676, %v9674
    %v9875 = vpack.c.b16 %v9679, %v9677
    %v9876 = vpack.c.b16 %v9680, %v9678
    %v9877 = vpack.c.b16 %v9683, %v9681
    %v9878 = vpack.c.b16 %v9684, %v9682
    %v9879 = vpack.c.b16 %v9687, %v9685
    %v9880 = vpack.c.b16 %v9688, %v9686
    %v9881 = vpack.c.b16 %v9691, %v9689
    %v9882 = vpack.c.b16 %v9692, %v9690
    %v9883 = vpack.c.b16 %v9695, %v9693
    %v9884 = vpack.c.b16 %v9696, %v9694
    %v9885 = vpack.c.b16 %v9699, %v9697
    %v9886 = vpack.c.b16 %v9700, %v9698
    %v9887 = vpack.c.b16 %v9703, %v9701
    %v9888 = vpack.c.b16 %v9704, %v9702
    %v9889 = vpack.c.b16 %v9707, %v9705
    %v9890 = vpack.c.b16 %v9708, %v9706
    %v9891 = vpack.c.b16 %v9711, %v9709
    %v9892 = vpack.c.b16 %v9712, %v9710
    %v9893 = vpack.c.b16 %v9715, %v9713
    %v9894 = vpack.c.b16 %v9716, %v9714
    %v9895 = vpack.c.b16 %v9719, %v9717
    %v9896 = vpack.c.b16 %v9720, %v9718
    %v9897 = vpack.c.b16 %v9723, %v9721
    %v9898 = vpack.c.b16 %v9724, %v9722
    %v9899 = vpack.c.b16 %v9727, %v9725
    %v9900 = vpack.c.b16 %v9728, %v9726
    %v9901 = vpack.c.b16 %v9731, %v9729
    %v9902 = vpack.c.b16 %v9732, %v9730
    %v9903 = vpack.c.b16 %v9735, %v9733
    %v9904 = vpack.c.b16 %v9736, %v9734
    %v9905 = vpack.c.b16 %v9739, %v9737
    %v9906 = vpack.c.b16 %v9740, %v9738
    %v9907 = vpack.c.b16 %v9743, %v9741
    %v9908 = vpack.c.b16 %v9744, %v9742
    %v9909 = vpack.c.b16 %v9747, %v9745
    %v9910 = vpack.c.b16 %v9748, %v9746
    %v9911 = vpack.c.b16 %v9751, %v9749
    %v9912 = vpack.c.b16 %v9752, %v9750
    %v9913 = vpack.c.b16 %v9755, %v9753
    %v9914 = vpack.c.b16 %v9756, %v9754
    %v9915 = vpack.c.b16 %v9759, %v9757
    %v9916 = vpack.c.b16 %v9760, %v9758
    %v9917 = vpack.c.b16 %v9763, %v9761
    %v9918 = vpack.c.b16 %v9764, %v9762
    %v9919 = vpack.c.b16 %v9767, %v9765
    %v9920 = vpack.c.b16 %v9768, %v9766
    %v9921 = vpack.c.b16 %v9771, %v9769
    %v9922 = vpack.c.b16 %v9772, %v9770
    %v9923 = vpack.c.b16 %v9775, %v9773
    %v9924 = vpack.c.b16 %v9776, %v9774
    %v9925 = vpack.c.b16 %v9779, %v9777
    %v9926 = vpack.c.b16 %v9780, %v9778
    %v9927 = vpack.c.b16 %v9783, %v9781
    %v9928 = vpack.c.b16 %v9784, %v9782
    %10073 = vmatprep.subr.bf16.mxu0 %v9800
    %10074 = vmatpush1.bf16.msra.mxu0 %v9799
    %10075 = vmatprep.subr.bf16.mxu0 %v9798
    %10076 = vmatpush1.bf16.msra.mxu0 %v9797
    %10077 = vmatprep.subr.bf16.mxu0 %v9796
    %10078 = vmatpush1.bf16.msra.mxu0 %v9795
    %10079 = vmatprep.subr.bf16.mxu0 %v9794
    %10080 = vmatpush1.bf16.msra.mxu0 %v9793
    %10081 = vmatprep.subr.bf16.mxu0 %v9792
    %10082 = vmatpush1.bf16.msra.mxu0 %v9791
    %10083 = vmatprep.subr.bf16.mxu0 %v9790
    %10084 = vmatpush1.bf16.msra.mxu0 %v9789
    %10085 = vmatprep.subr.bf16.mxu0 %v9788
    %10086 = vmatpush1.bf16.msra.mxu0 %v9787
    %10087 = vmatprep.subr.bf16.mxu0 %v9786
    %10088 = vmatpush1.bf16.msra.mxu0 %v9785
    %10089 = vmatprep.subr.bf16.mxu0 %v9816
    %10090 = vmatpush2.bf16.msra.mxu0 %v9815
    %10091 = vmatprep.subr.bf16.mxu0 %v9814
    %10092 = vmatpush2.bf16.msra.mxu0 %v9813
    %10093 = vmatprep.subr.bf16.mxu0 %v9812
    %10094 = vmatpush2.bf16.msra.mxu0 %v9811
    %10095 = vmatprep.subr.bf16.mxu0 %v9810
    %10096 = vmatpush2.bf16.msra.mxu0 %v9809
    %10097 = vmatprep.subr.bf16.mxu0 %v9808
    %10098 = vmatpush2.bf16.msra.mxu0 %v9807
    %10099 = vmatprep.subr.bf16.mxu0 %v9806
    %10100 = vmatpush2.bf16.msra.mxu0 %v9805
    %10101 = vmatprep.subr.bf16.mxu0 %v9804
    %10102 = vmatpush2.bf16.msra.mxu0 %v9803
    %10103 = vmatprep.subr.bf16.mxu0 %v9802
    %10104 = vmatpush2.bf16.msra.mxu0 %v9801
    %10105 = vmatprep.mubr.bf16.mxu0 %v9318
    %10106 = vmatmul.mubr.bf16.gmra.mxu0 %v9304
    %v10107 = vpop.f32.mrf.mxu0
    %v10108 = vadd.f32 0.0, %v10107
    %v10109 = vpop.f32.mrf.mxu0
    %v10110 = vadd.f32 0.0, %v10109
    %v10111 = vpop.f32.mrf.mxu0
    %v10112 = vpop.f32.mrf.mxu0
    %10113 = vdwg.mxu0
    %10114 = vmatprep.subr.bf16.mxu0 %v9832
    %10115 = vmatpush1.bf16.msra.mxu0 %v9831
    %10116 = vmatprep.subr.bf16.mxu0 %v9830
    %10117 = vmatpush1.bf16.msra.mxu0 %v9829
    %10118 = vmatprep.subr.bf16.mxu0 %v9828
    %10119 = vmatpush1.bf16.msra.mxu0 %v9827
    %10120 = vmatprep.subr.bf16.mxu0 %v9826
    %10121 = vmatpush1.bf16.msra.mxu0 %v9825
    %10122 = vmatprep.subr.bf16.mxu0 %v9824
    %10123 = vmatpush1.bf16.msra.mxu0 %v9823
    %10124 = vmatprep.subr.bf16.mxu0 %v9822
    %10125 = vmatpush1.bf16.msra.mxu0 %v9821
    %10126 = vmatprep.subr.bf16.mxu0 %v9820
    %10127 = vmatpush1.bf16.msra.mxu0 %v9819
    %10128 = vmatprep.subr.bf16.mxu0 %v9818
    %10129 = vmatpush1.bf16.msra.mxu0 %v9817
    %10130 = vmatprep.subr.bf16.mxu0 %v9848
    %10131 = vmatpush2.bf16.msra.mxu0 %v9847
    %10132 = vmatprep.subr.bf16.mxu0 %v9846
    %10133 = vmatpush2.bf16.msra.mxu0 %v9845
    %10134 = vmatprep.subr.bf16.mxu0 %v9844
    %10135 = vmatpush2.bf16.msra.mxu0 %v9843
    %10136 = vmatprep.subr.bf16.mxu0 %v9842
    %10137 = vmatpush2.bf16.msra.mxu0 %v9841
    %10138 = vmatprep.subr.bf16.mxu0 %v9840
    %10139 = vmatpush2.bf16.msra.mxu0 %v9839
    %10140 = vmatprep.subr.bf16.mxu0 %v9838
    %10141 = vmatpush2.bf16.msra.mxu0 %v9837
    %10142 = vmatprep.subr.bf16.mxu0 %v9836
    %10143 = vmatpush2.bf16.msra.mxu0 %v9835
    %10144 = vmatprep.subr.bf16.mxu0 %v9834
    %10145 = vmatpush2.bf16.msra.mxu0 %v9833
    %10146 = vmatprep.mubr.bf16.mxu0 %v9328
    %10147 = vmatmul.mubr.bf16.gmra.mxu0 %v9326
    %v10148 = vpop.f32.mrf.mxu0
    %v10149 = vadd.f32 %v10108, %v10148
    %v10150 = vpop.f32.mrf.mxu0
    %v10151 = vadd.f32 %v10110, %v10150
    %v10152 = vpop.f32.mrf.mxu0
    %v10153 = vpop.f32.mrf.mxu0
    %10154 = vdwg.mxu0
    %10155 = vmatprep.subr.bf16.mxu0 %v9864
    %10156 = vmatpush1.bf16.msra.mxu0 %v9863
    %10157 = vmatprep.subr.bf16.mxu0 %v9862
    %10158 = vmatpush1.bf16.msra.mxu0 %v9861
    %10159 = vmatprep.subr.bf16.mxu0 %v9860
    %10160 = vmatpush1.bf16.msra.mxu0 %v9859
    %10161 = vmatprep.subr.bf16.mxu0 %v9858
    %10162 = vmatpush1.bf16.msra.mxu0 %v9857
    %10163 = vmatprep.subr.bf16.mxu0 %v9856
    %10164 = vmatpush1.bf16.msra.mxu0 %v9855
    %10165 = vmatprep.subr.bf16.mxu0 %v9854
    %10166 = vmatpush1.bf16.msra.mxu0 %v9853
    %10167 = vmatprep.subr.bf16.mxu0 %v9852
    %10168 = vmatpush1.bf16.msra.mxu0 %v9851
    %10169 = vmatprep.subr.bf16.mxu0 %v9850
    %10170 = vmatpush1.bf16.msra.mxu0 %v9849
    %10171 = vmatprep.subr.bf16.mxu0 %v9880
    %10172 = vmatpush2.bf16.msra.mxu0 %v9879
    %10173 = vmatprep.subr.bf16.mxu0 %v9878
    %10174 = vmatpush2.bf16.msra.mxu0 %v9877
    %10175 = vmatprep.subr.bf16.mxu0 %v9876
    %10176 = vmatpush2.bf16.msra.mxu0 %v9875
    %10177 = vmatprep.subr.bf16.mxu0 %v9874
    %10178 = vmatpush2.bf16.msra.mxu0 %v9873
    %10179 = vmatprep.subr.bf16.mxu0 %v9872
    %10180 = vmatpush2.bf16.msra.mxu0 %v9871
    %10181 = vmatprep.subr.bf16.mxu0 %v9870
    %10182 = vmatpush2.bf16.msra.mxu0 %v9869
    %10183 = vmatprep.subr.bf16.mxu0 %v9868
    %10184 = vmatpush2.bf16.msra.mxu0 %v9867
    %10185 = vmatprep.subr.bf16.mxu0 %v9866
    %10186 = vmatpush2.bf16.msra.mxu0 %v9865
    %10187 = vmatprep.mubr.bf16.mxu0 %v9325
    %10188 = vmatmul.mubr.bf16.gmra.mxu0 %v9311
    %v10189 = vpop.f32.mrf.mxu0
    %v10190 = vadd.f32 %v10149, %v10189
    %v10191 = vpop.f32.mrf.mxu0
    %v10192 = vadd.f32 %v10151, %v10191
    %v10193 = vpop.f32.mrf.mxu0
    %v10194 = vpop.f32.mrf.mxu0
    %10195 = vdwg.mxu0
    %10196 = vmatprep.subr.bf16.mxu0 %v9896
    %10197 = vmatpush1.bf16.msra.mxu0 %v9895
    %10198 = vmatprep.subr.bf16.mxu0 %v9894
    %10199 = vmatpush1.bf16.msra.mxu0 %v9893
    %10200 = vmatprep.subr.bf16.mxu0 %v9892
    %10201 = vmatpush1.bf16.msra.mxu0 %v9891
    %10202 = vmatprep.subr.bf16.mxu0 %v9890
    %10203 = vmatpush1.bf16.msra.mxu0 %v9889
    %10204 = vmatprep.subr.bf16.mxu0 %v9888
    %10205 = vmatpush1.bf16.msra.mxu0 %v9887
    %10206 = vmatprep.subr.bf16.mxu0 %v9886
    %10207 = vmatpush1.bf16.msra.mxu0 %v9885
    %10208 = vmatprep.subr.bf16.mxu0 %v9884
    %10209 = vmatpush1.bf16.msra.mxu0 %v9883
    %10210 = vmatprep.subr.bf16.mxu0 %v9882
    %10211 = vmatpush1.bf16.msra.mxu0 %v9881
    %10212 = vmatprep.subr.bf16.mxu0 %v9912
    %10213 = vmatpush2.bf16.msra.mxu0 %v9911
    %10214 = vmatprep.subr.bf16.mxu0 %v9910
    %10215 = vmatpush2.bf16.msra.mxu0 %v9909
    %10216 = vmatprep.subr.bf16.mxu0 %v9908
    %10217 = vmatpush2.bf16.msra.mxu0 %v9907
    %10218 = vmatprep.subr.bf16.mxu0 %v9906
    %10219 = vmatpush2.bf16.msra.mxu0 %v9905
    %10220 = vmatprep.subr.bf16.mxu0 %v9904
    %10221 = vmatpush2.bf16.msra.mxu0 %v9903
    %10222 = vmatprep.subr.bf16.mxu0 %v9902
    %10223 = vmatpush2.bf16.msra.mxu0 %v9901
    %10224 = vmatprep.subr.bf16.mxu0 %v9900
    %10225 = vmatpush2.bf16.msra.mxu0 %v9899
    %10226 = vmatprep.subr.bf16.mxu0 %v9898
    %10227 = vmatpush2.bf16.msra.mxu0 %v9897
    %10228 = vmatprep.mubr.bf16.mxu0 %v9329
    %10229 = vmatmul.mubr.bf16.gmra.mxu0 %v9327
    %v10230 = vpop.f32.mrf.mxu0
    %v10231 = vadd.f32 %v10190, %v10230
    %v10232 = vpop.f32.mrf.mxu0
    %v10233 = vadd.f32 %v10192, %v10232
    %v10234 = vpop.f32.mrf.mxu0
    %v10235 = vpop.f32.mrf.mxu0
    %10236 = vdwg.mxu0
    %10237 = vmatprep.subr.bf16.mxu0 %v9928
    %10238 = vmatpush1.bf16.msra.mxu0 %v9927
    %10239 = vmatprep.subr.bf16.mxu0 %v9926
    %10240 = vmatpush1.bf16.msra.mxu0 %v9925
    %10241 = vmatprep.subr.bf16.mxu0 %v9924
    %10242 = vmatpush1.bf16.msra.mxu0 %v9923
    %10243 = vmatprep.subr.bf16.mxu0 %v9922
    %10244 = vmatpush1.bf16.msra.mxu0 %v9921
    %10245 = vmatprep.subr.bf16.mxu0 %v9920
    %10246 = vmatpush1.bf16.msra.mxu0 %v9919
    %10247 = vmatprep.subr.bf16.mxu0 %v9918
    %10248 = vmatpush1.bf16.msra.mxu0 %v9917
    %10249 = vmatprep.subr.bf16.mxu0 %v9916
    %10250 = vmatpush1.bf16.msra.mxu0 %v9915
    %10251 = vmatprep.subr.bf16.mxu0 %v9914
    %10252 = vmatpush1.bf16.msra.mxu0 %v9913
    %10253 = vmatprep.subr.bf16.mxu0 0
    %10254 = vmatpush2.bf16.msra.mxu0 0
    %10255 = vmatprep.subr.bf16.mxu0 0
    %10256 = vmatpush2.bf16.msra.mxu0 0
    %10257 = vmatprep.subr.bf16.mxu0 0
    %10258 = vmatpush2.bf16.msra.mxu0 0
    %10259 = vmatprep.subr.bf16.mxu0 0
    %10260 = vmatpush2.bf16.msra.mxu0 0
    %10261 = vmatprep.subr.bf16.mxu0 0
    %10262 = vmatpush2.bf16.msra.mxu0 0
    %10263 = vmatprep.subr.bf16.mxu0 0
    %10264 = vmatpush2.bf16.msra.mxu0 0
    %10265 = vmatprep.subr.bf16.mxu0 0
    %10266 = vmatpush2.bf16.msra.mxu0 0
    %10267 = vmatprep.subr.bf16.mxu0 0
    %10268 = vmatpush2.bf16.msra.mxu0 0
    %10269 = vmatprep.mubr.bf16.mxu0 0
    %10270 = vmatmul.mubr.bf16.gmra.mxu0 %v9343
    %v10271 = vpop.f32.mrf.mxu0
    %v10272 = vadd.f32 %v10231, %v10271
    %v10273 = vpop.f32.mrf.mxu0
    %v10274 = vadd.f32 %v10233, %v10273
    %v10275 = vpop.f32.mrf.mxu0
    %v10276 = vpop.f32.mrf.mxu0
    %10277 = vdwg.mxu0
    %s10278 = scalar_lea.vmem [#allocation9], 1152
    %v10279 = vld [vmem:[%s10278] sm:$0xff]
    %v10280 = vld [vmem:[%s10278 + $0x8] sm:$0xff]
    %v10281 = vld [vmem:[%s10278 + $0x10] sm:$0xff]
    %v10282 = vld [vmem:[%s10278 + $0x18] sm:$0xff]
    %v10283 = vld [vmem:[%s10278 + $0x20] sm:$0xff]
    %v10284 = vld [vmem:[%s10278 + $0x28] sm:$0xff]
    %v10285 = vld [vmem:[%s10278 + $0x30] sm:$0xff]
    %v10286 = vld [vmem:[%s10278 + $0x38] sm:$0xff]
    %v10287 = vld [vmem:[%s10278 + $0x40] sm:$0xff]
    %v10288 = vld [vmem:[%s10278 + $0x48] sm:$0xff]
    %v10289 = vld [vmem:[%s10278 + $0x50] sm:$0xff]
    %v10290 = vld [vmem:[%s10278 + $0x58] sm:$0xff]
    %v10291 = vld [vmem:[%s10278 + $0x60] sm:$0xff]
    %v10292 = vld [vmem:[%s10278 + $0x68] sm:$0xff]
    %v10293 = vld [vmem:[%s10278 + $0x70] sm:$0xff]
    %v10294 = vld [vmem:[%s10278 + $0x78] sm:$0xff]
    %v10295 = vld [vmem:[%s10278 + $0x80] sm:$0xff]
    %v10296 = vld [vmem:[%s10278 + $0x88] sm:$0xff]
    %v10297 = vld [vmem:[%s10278 + $0x90] sm:$0xff]
    %v10298 = vld [vmem:[%s10278 + $0x98] sm:$0xff]
    %v10299 = vld [vmem:[%s10278 + $0xa0] sm:$0xff]
    %v10300 = vld [vmem:[%s10278 + $0xa8] sm:$0xff]
    %v10301 = vld [vmem:[%s10278 + $0xb0] sm:$0xff]
    %v10302 = vld [vmem:[%s10278 + $0xb8] sm:$0xff]
    %v10303 = vld [vmem:[%s10278 + $0xc0] sm:$0xff]
    %v10304 = vld [vmem:[%s10278 + $0xc8] sm:$0xff]
    %v10305 = vld [vmem:[%s10278 + $0xd0] sm:$0xff]
    %v10306 = vld [vmem:[%s10278 + $0xd8] sm:$0xff]
    %v10307 = vld [vmem:[%s10278 + $0xe0] sm:$0xff]
    %v10308 = vld [vmem:[%s10278 + $0xe8] sm:$0xff]
    %v10309 = vld [vmem:[%s10278 + $0xf0] sm:$0xff]
    %v10310 = vld [vmem:[%s10278 + $0xf8] sm:$0xff]
    %v10311 = vld [vmem:[%s10278 + $0x100] sm:$0xff]
    %v10312 = vld [vmem:[%s10278 + $0x108] sm:$0xff]
    %v10313 = vld [vmem:[%s10278 + $0x110] sm:$0xff]
    %v10314 = vld [vmem:[%s10278 + $0x118] sm:$0xff]
    %v10315 = vld [vmem:[%s10278 + $0x120] sm:$0xff]
    %v10316 = vld [vmem:[%s10278 + $0x128] sm:$0xff]
    %v10317 = vld [vmem:[%s10278 + $0x130] sm:$0xff]
    %v10318 = vld [vmem:[%s10278 + $0x138] sm:$0xff]
    %v10319 = vld [vmem:[%s10278 + $0x140] sm:$0xff]
    %v10320 = vld [vmem:[%s10278 + $0x148] sm:$0xff]
    %v10321 = vld [vmem:[%s10278 + $0x150] sm:$0xff]
    %v10322 = vld [vmem:[%s10278 + $0x158] sm:$0xff]
    %v10323 = vld [vmem:[%s10278 + $0x160] sm:$0xff]
    %v10324 = vld [vmem:[%s10278 + $0x168] sm:$0xff]
    %v10325 = vld [vmem:[%s10278 + $0x170] sm:$0xff]
    %v10326 = vld [vmem:[%s10278 + $0x178] sm:$0xff]
    %v10327 = vld [vmem:[%s10278 + $0x180] sm:$0xff]
    %v10328 = vld [vmem:[%s10278 + $0x188] sm:$0xff]
    %v10329 = vld [vmem:[%s10278 + $0x190] sm:$0xff]
    %v10330 = vld [vmem:[%s10278 + $0x198] sm:$0xff]
    %v10331 = vld [vmem:[%s10278 + $0x1a0] sm:$0xff]
    %v10332 = vld [vmem:[%s10278 + $0x1a8] sm:$0xff]
    %v10333 = vld [vmem:[%s10278 + $0x1b0] sm:$0xff]
    %v10334 = vld [vmem:[%s10278 + $0x1b8] sm:$0xff]
    %v10335 = vld [vmem:[%s10278 + $0x1c0] sm:$0xff]
    %v10336 = vld [vmem:[%s10278 + $0x1c8] sm:$0xff]
    %v10337 = vld [vmem:[%s10278 + $0x1d0] sm:$0xff]
    %v10338 = vld [vmem:[%s10278 + $0x1d8] sm:$0xff]
    %v10339 = vld [vmem:[%s10278 + $0x1e0] sm:$0xff]
    %v10340 = vld [vmem:[%s10278 + $0x1e8] sm:$0xff]
    %v10341 = vld [vmem:[%s10278 + $0x1f0] sm:$0xff]
    %v10342 = vld [vmem:[%s10278 + $0x1f8] sm:$0xff]
    %v10343 = vld [vmem:[%s10278 + $0x200] sm:$0xff]
    %v10344 = vld [vmem:[%s10278 + $0x208] sm:$0xff]
    %v10345 = vld [vmem:[%s10278 + $0x210] sm:$0xff]
    %v10346 = vld [vmem:[%s10278 + $0x218] sm:$0xff]
    %v10347 = vld [vmem:[%s10278 + $0x220] sm:$0xff]
    %v10348 = vld [vmem:[%s10278 + $0x228] sm:$0xff]
    %v10349 = vld [vmem:[%s10278 + $0x230] sm:$0xff]
    %v10350 = vld [vmem:[%s10278 + $0x238] sm:$0xff]
    %v10351 = vld [vmem:[%s10278 + $0x240] sm:$0xff]
    %v10352 = vld [vmem:[%s10278 + $0x248] sm:$0xff]
    %v10353 = vld [vmem:[%s10278 + $0x250] sm:$0xff]
    %v10354 = vld [vmem:[%s10278 + $0x258] sm:$0xff]
    %v10355 = vld [vmem:[%s10278 + $0x260] sm:$0xff]
    %v10356 = vld [vmem:[%s10278 + $0x268] sm:$0xff]
    %v10357 = vld [vmem:[%s10278 + $0x270] sm:$0xff]
    %v10358 = vld [vmem:[%s10278 + $0x278] sm:$0xff]
    %v10359 = vld [vmem:[%s10278 + $0x280] sm:$0xff]
    %v10360 = vld [vmem:[%s10278 + $0x288] sm:$0xff]
    %v10361 = vld [vmem:[%s10278 + $0x290] sm:$0xff]
    %v10362 = vld [vmem:[%s10278 + $0x298] sm:$0xff]
    %v10363 = vld [vmem:[%s10278 + $0x2a0] sm:$0xff]
    %v10364 = vld [vmem:[%s10278 + $0x2a8] sm:$0xff]
    %v10365 = vld [vmem:[%s10278 + $0x2b0] sm:$0xff]
    %v10366 = vld [vmem:[%s10278 + $0x2b8] sm:$0xff]
    %v10367 = vld [vmem:[%s10278 + $0x2c0] sm:$0xff]
    %v10368 = vld [vmem:[%s10278 + $0x2c8] sm:$0xff]
    %v10369 = vld [vmem:[%s10278 + $0x2d0] sm:$0xff]
    %v10370 = vld [vmem:[%s10278 + $0x2d8] sm:$0xff]
    %v10371 = vld [vmem:[%s10278 + $0x2e0] sm:$0xff]
    %v10372 = vld [vmem:[%s10278 + $0x2e8] sm:$0xff]
    %v10373 = vld [vmem:[%s10278 + $0x2f0] sm:$0xff]
    %v10374 = vld [vmem:[%s10278 + $0x2f8] sm:$0xff]
    %v10375 = vld [vmem:[%s10278 + $0x300] sm:$0xff]
    %v10376 = vld [vmem:[%s10278 + $0x308] sm:$0xff]
    %v10377 = vld [vmem:[%s10278 + $0x310] sm:$0xff]
    %v10378 = vld [vmem:[%s10278 + $0x318] sm:$0xff]
    %v10379 = vld [vmem:[%s10278 + $0x320] sm:$0xff]
    %v10380 = vld [vmem:[%s10278 + $0x328] sm:$0xff]
    %v10381 = vld [vmem:[%s10278 + $0x330] sm:$0xff]
    %v10382 = vld [vmem:[%s10278 + $0x338] sm:$0xff]
    %v10383 = vld [vmem:[%s10278 + $0x340] sm:$0xff]
    %v10384 = vld [vmem:[%s10278 + $0x348] sm:$0xff]
    %v10385 = vld [vmem:[%s10278 + $0x350] sm:$0xff]
    %v10386 = vld [vmem:[%s10278 + $0x358] sm:$0xff]
    %v10387 = vld [vmem:[%s10278 + $0x360] sm:$0xff]
    %v10388 = vld [vmem:[%s10278 + $0x368] sm:$0xff]
    %v10389 = vld [vmem:[%s10278 + $0x370] sm:$0xff]
    %v10390 = vld [vmem:[%s10278 + $0x378] sm:$0xff]
    %v10391 = vld [vmem:[%s10278 + $0x380] sm:$0xff]
    %v10392 = vld [vmem:[%s10278 + $0x388] sm:$0xff]
    %v10393 = vld [vmem:[%s10278 + $0x390] sm:$0xff]
    %v10394 = vld [vmem:[%s10278 + $0x398] sm:$0xff]
    %v10395 = vld [vmem:[%s10278 + $0x3a0] sm:$0xff]
    %v10396 = vld [vmem:[%s10278 + $0x3a8] sm:$0xff]
    %v10397 = vld [vmem:[%s10278 + $0x3b0] sm:$0xff]
    %v10398 = vld [vmem:[%s10278 + $0x3b8] sm:$0xff]
    %v10399 = vld [vmem:[%s10278 + $0x3c0] sm:$0xff]
    %v10400 = vld [vmem:[%s10278 + $0x3c8] sm:$0xff]
    %v10401 = vld [vmem:[%s10278 + $0x3d0] sm:$0xff]
    %v10402 = vld [vmem:[%s10278 + $0x3d8] sm:$0xff]
    %v10403 = vld [vmem:[%s10278 + $0x3e0] sm:$0xff]
    %v10404 = vld [vmem:[%s10278 + $0x3e8] sm:$0xff]
    %v10405 = vld [vmem:[%s10278 + $0x3f0] sm:$0xff]
    %v10406 = vld [vmem:[%s10278 + $0x3f8] sm:$0xff]
    %v10407 = vld [vmem:[%s10278 + $0x400] sm:$0xff]
    %v10408 = vld [vmem:[%s10278 + $0x408] sm:$0xff]
    %v10409 = vld [vmem:[%s10278 + $0x410] sm:$0xff]
    %v10410 = vld [vmem:[%s10278 + $0x418] sm:$0xff]
    %v10411 = vld [vmem:[%s10278 + $0x420] sm:$0xff]
    %v10412 = vld [vmem:[%s10278 + $0x428] sm:$0xff]
    %v10413 = vld [vmem:[%s10278 + $0x430] sm:$0xff]
    %v10414 = vld [vmem:[%s10278 + $0x438] sm:$0xff]
    %v10415 = vld [vmem:[%s10278 + $0x440] sm:$0xff]
    %v10416 = vld [vmem:[%s10278 + $0x448] sm:$0xff]
    %v10417 = vld [vmem:[%s10278 + $0x450] sm:$0xff]
    %v10418 = vld [vmem:[%s10278 + $0x458] sm:$0xff]
    %v10419 = vld [vmem:[%s10278 + $0x460] sm:$0xff]
    %v10420 = vld [vmem:[%s10278 + $0x468] sm:$0xff]
    %v10421 = vld [vmem:[%s10278 + $0x470] sm:$0xff]
    %v10422 = vld [vmem:[%s10278 + $0x478] sm:$0xff]
    %v10567 = vunpack.c.l.b16 %v10279
    %v10568 = vunpack.c.h.b16 %v10279
    %v10569 = vunpack.c.l.b16 %v10280
    %v10570 = vunpack.c.h.b16 %v10280
    %v10571 = vunpack.c.l.b16 %v10281
    %v10572 = vunpack.c.h.b16 %v10281
    %v10573 = vunpack.c.l.b16 %v10282
    %v10574 = vunpack.c.h.b16 %v10282
    %v10575 = vunpack.c.l.b16 %v10283
    %v10576 = vunpack.c.h.b16 %v10283
    %v10577 = vunpack.c.l.b16 %v10284
    %v10578 = vunpack.c.h.b16 %v10284
    %v10579 = vunpack.c.l.b16 %v10285
    %v10580 = vunpack.c.h.b16 %v10285
    %v10581 = vunpack.c.l.b16 %v10286
    %v10582 = vunpack.c.h.b16 %v10286
    %v10583 = vunpack.c.l.b16 %v10287
    %v10584 = vunpack.c.h.b16 %v10287
    %v10585 = vunpack.c.l.b16 %v10288
    %v10586 = vunpack.c.h.b16 %v10288
    %v10587 = vunpack.c.l.b16 %v10289
    %v10588 = vunpack.c.h.b16 %v10289
    %v10589 = vunpack.c.l.b16 %v10290
    %v10590 = vunpack.c.h.b16 %v10290
    %v10591 = vunpack.c.l.b16 %v10291
    %v10592 = vunpack.c.h.b16 %v10291
    %v10593 = vunpack.c.l.b16 %v10292
    %v10594 = vunpack.c.h.b16 %v10292
    %v10595 = vunpack.c.l.b16 %v10293
    %v10596 = vunpack.c.h.b16 %v10293
    %v10597 = vunpack.c.l.b16 %v10294
    %v10598 = vunpack.c.h.b16 %v10294
    %v10599 = vunpack.c.l.b16 %v10295
    %v10600 = vunpack.c.h.b16 %v10295
    %v10601 = vunpack.c.l.b16 %v10296
    %v10602 = vunpack.c.h.b16 %v10296
    %v10603 = vunpack.c.l.b16 %v10297
    %v10604 = vunpack.c.h.b16 %v10297
    %v10605 = vunpack.c.l.b16 %v10298
    %v10606 = vunpack.c.h.b16 %v10298
    %v10607 = vunpack.c.l.b16 %v10299
    %v10608 = vunpack.c.h.b16 %v10299
    %v10609 = vunpack.c.l.b16 %v10300
    %v10610 = vunpack.c.h.b16 %v10300
    %v10611 = vunpack.c.l.b16 %v10301
    %v10612 = vunpack.c.h.b16 %v10301
    %v10613 = vunpack.c.l.b16 %v10302
    %v10614 = vunpack.c.h.b16 %v10302
    %v10615 = vunpack.c.l.b16 %v10303
    %v10616 = vunpack.c.h.b16 %v10303
    %v10617 = vunpack.c.l.b16 %v10304
    %v10618 = vunpack.c.h.b16 %v10304
    %v10619 = vunpack.c.l.b16 %v10305
    %v10620 = vunpack.c.h.b16 %v10305
    %v10621 = vunpack.c.l.b16 %v10306
    %v10622 = vunpack.c.h.b16 %v10306
    %v10623 = vunpack.c.l.b16 %v10307
    %v10624 = vunpack.c.h.b16 %v10307
    %v10625 = vunpack.c.l.b16 %v10308
    %v10626 = vunpack.c.h.b16 %v10308
    %v10627 = vunpack.c.l.b16 %v10309
    %v10628 = vunpack.c.h.b16 %v10309
    %v10629 = vunpack.c.l.b16 %v10310
    %v10630 = vunpack.c.h.b16 %v10310
    %v10631 = vunpack.c.l.b16 %v10311
    %v10632 = vunpack.c.h.b16 %v10311
    %v10633 = vunpack.c.l.b16 %v10312
    %v10634 = vunpack.c.h.b16 %v10312
    %v10635 = vunpack.c.l.b16 %v10313
    %v10636 = vunpack.c.h.b16 %v10313
    %v10637 = vunpack.c.l.b16 %v10314
    %v10638 = vunpack.c.h.b16 %v10314
    %v10639 = vunpack.c.l.b16 %v10315
    %v10640 = vunpack.c.h.b16 %v10315
    %v10641 = vunpack.c.l.b16 %v10316
    %v10642 = vunpack.c.h.b16 %v10316
    %v10643 = vunpack.c.l.b16 %v10317
    %v10644 = vunpack.c.h.b16 %v10317
    %v10645 = vunpack.c.l.b16 %v10318
    %v10646 = vunpack.c.h.b16 %v10318
    %v10647 = vunpack.c.l.b16 %v10319
    %v10648 = vunpack.c.h.b16 %v10319
    %v10649 = vunpack.c.l.b16 %v10320
    %v10650 = vunpack.c.h.b16 %v10320
    %v10651 = vunpack.c.l.b16 %v10321
    %v10652 = vunpack.c.h.b16 %v10321
    %v10653 = vunpack.c.l.b16 %v10322
    %v10654 = vunpack.c.h.b16 %v10322
    %v10655 = vunpack.c.l.b16 %v10323
    %v10656 = vunpack.c.h.b16 %v10323
    %v10657 = vunpack.c.l.b16 %v10324
    %v10658 = vunpack.c.h.b16 %v10324
    %v10659 = vunpack.c.l.b16 %v10325
    %v10660 = vunpack.c.h.b16 %v10325
    %v10661 = vunpack.c.l.b16 %v10326
    %v10662 = vunpack.c.h.b16 %v10326
    %v10663 = vunpack.c.l.b16 %v10327
    %v10664 = vunpack.c.h.b16 %v10327
    %v10665 = vunpack.c.l.b16 %v10328
    %v10666 = vunpack.c.h.b16 %v10328
    %v10667 = vunpack.c.l.b16 %v10329
    %v10668 = vunpack.c.h.b16 %v10329
    %v10669 = vunpack.c.l.b16 %v10330
    %v10670 = vunpack.c.h.b16 %v10330
    %v10671 = vunpack.c.l.b16 %v10331
    %v10672 = vunpack.c.h.b16 %v10331
    %v10673 = vunpack.c.l.b16 %v10332
    %v10674 = vunpack.c.h.b16 %v10332
    %v10675 = vunpack.c.l.b16 %v10333
    %v10676 = vunpack.c.h.b16 %v10333
    %v10677 = vunpack.c.l.b16 %v10334
    %v10678 = vunpack.c.h.b16 %v10334
    %v10679 = vunpack.c.l.b16 %v10335
    %v10680 = vunpack.c.h.b16 %v10335
    %v10681 = vunpack.c.l.b16 %v10336
    %v10682 = vunpack.c.h.b16 %v10336
    %v10683 = vunpack.c.l.b16 %v10337
    %v10684 = vunpack.c.h.b16 %v10337
    %v10685 = vunpack.c.l.b16 %v10338
    %v10686 = vunpack.c.h.b16 %v10338
    %v10687 = vunpack.c.l.b16 %v10339
    %v10688 = vunpack.c.h.b16 %v10339
    %v10689 = vunpack.c.l.b16 %v10340
    %v10690 = vunpack.c.h.b16 %v10340
    %v10691 = vunpack.c.l.b16 %v10341
    %v10692 = vunpack.c.h.b16 %v10341
    %v10693 = vunpack.c.l.b16 %v10342
    %v10694 = vunpack.c.h.b16 %v10342
    %v10695 = vunpack.c.l.b16 %v10343
    %v10696 = vunpack.c.h.b16 %v10343
    %v10697 = vunpack.c.l.b16 %v10344
    %v10698 = vunpack.c.h.b16 %v10344
    %v10699 = vunpack.c.l.b16 %v10345
    %v10700 = vunpack.c.h.b16 %v10345
    %v10701 = vunpack.c.l.b16 %v10346
    %v10702 = vunpack.c.h.b16 %v10346
    %v10703 = vunpack.c.l.b16 %v10347
    %v10704 = vunpack.c.h.b16 %v10347
    %v10705 = vunpack.c.l.b16 %v10348
    %v10706 = vunpack.c.h.b16 %v10348
    %v10707 = vunpack.c.l.b16 %v10349
    %v10708 = vunpack.c.h.b16 %v10349
    %v10709 = vunpack.c.l.b16 %v10350
    %v10710 = vunpack.c.h.b16 %v10350
    %v10711 = vunpack.c.l.b16 %v10351
    %v10712 = vunpack.c.h.b16 %v10351
    %v10713 = vunpack.c.l.b16 %v10352
    %v10714 = vunpack.c.h.b16 %v10352
    %v10715 = vunpack.c.l.b16 %v10353
    %v10716 = vunpack.c.h.b16 %v10353
    %v10717 = vunpack.c.l.b16 %v10354
    %v10718 = vunpack.c.h.b16 %v10354
    %v10719 = vunpack.c.l.b16 %v10355
    %v10720 = vunpack.c.h.b16 %v10355
    %v10721 = vunpack.c.l.b16 %v10356
    %v10722 = vunpack.c.h.b16 %v10356
    %v10723 = vunpack.c.l.b16 %v10357
    %v10724 = vunpack.c.h.b16 %v10357
    %v10725 = vunpack.c.l.b16 %v10358
    %v10726 = vunpack.c.h.b16 %v10358
    %v10727 = vunpack.c.l.b16 %v10359
    %v10728 = vunpack.c.h.b16 %v10359
    %v10729 = vunpack.c.l.b16 %v10360
    %v10730 = vunpack.c.h.b16 %v10360
    %v10731 = vunpack.c.l.b16 %v10361
    %v10732 = vunpack.c.h.b16 %v10361
    %v10733 = vunpack.c.l.b16 %v10362
    %v10734 = vunpack.c.h.b16 %v10362
    %v10735 = vunpack.c.l.b16 %v10363
    %v10736 = vunpack.c.h.b16 %v10363
    %v10737 = vunpack.c.l.b16 %v10364
    %v10738 = vunpack.c.h.b16 %v10364
    %v10739 = vunpack.c.l.b16 %v10365
    %v10740 = vunpack.c.h.b16 %v10365
    %v10741 = vunpack.c.l.b16 %v10366
    %v10742 = vunpack.c.h.b16 %v10366
    %v10743 = vunpack.c.l.b16 %v10367
    %v10744 = vunpack.c.h.b16 %v10367
    %v10745 = vunpack.c.l.b16 %v10368
    %v10746 = vunpack.c.h.b16 %v10368
    %v10747 = vunpack.c.l.b16 %v10369
    %v10748 = vunpack.c.h.b16 %v10369
    %v10749 = vunpack.c.l.b16 %v10370
    %v10750 = vunpack.c.h.b16 %v10370
    %v10751 = vunpack.c.l.b16 %v10371
    %v10752 = vunpack.c.h.b16 %v10371
    %v10753 = vunpack.c.l.b16 %v10372
    %v10754 = vunpack.c.h.b16 %v10372
    %v10755 = vunpack.c.l.b16 %v10373
    %v10756 = vunpack.c.h.b16 %v10373
    %v10757 = vunpack.c.l.b16 %v10374
    %v10758 = vunpack.c.h.b16 %v10374
    %v10759 = vunpack.c.l.b16 %v10375
    %v10760 = vunpack.c.h.b16 %v10375
    %v10761 = vunpack.c.l.b16 %v10376
    %v10762 = vunpack.c.h.b16 %v10376
    %v10763 = vunpack.c.l.b16 %v10377
    %v10764 = vunpack.c.h.b16 %v10377
    %v10765 = vunpack.c.l.b16 %v10378
    %v10766 = vunpack.c.h.b16 %v10378
    %v10767 = vunpack.c.l.b16 %v10379
    %v10768 = vunpack.c.h.b16 %v10379
    %v10769 = vunpack.c.l.b16 %v10380
    %v10770 = vunpack.c.h.b16 %v10380
    %v10771 = vunpack.c.l.b16 %v10381
    %v10772 = vunpack.c.h.b16 %v10381
    %v10773 = vunpack.c.l.b16 %v10382
    %v10774 = vunpack.c.h.b16 %v10382
    %v10775 = vunpack.c.l.b16 %v10383
    %v10776 = vunpack.c.h.b16 %v10383
    %v10777 = vunpack.c.l.b16 %v10384
    %v10778 = vunpack.c.h.b16 %v10384
    %v10779 = vunpack.c.l.b16 %v10385
    %v10780 = vunpack.c.h.b16 %v10385
    %v10781 = vunpack.c.l.b16 %v10386
    %v10782 = vunpack.c.h.b16 %v10386
    %v10783 = vunpack.c.l.b16 %v10387
    %v10784 = vunpack.c.h.b16 %v10387
    %v10785 = vunpack.c.l.b16 %v10388
    %v10786 = vunpack.c.h.b16 %v10388
    %v10787 = vunpack.c.l.b16 %v10389
    %v10788 = vunpack.c.h.b16 %v10389
    %v10789 = vunpack.c.l.b16 %v10390
    %v10790 = vunpack.c.h.b16 %v10390
    %v10791 = vunpack.c.l.b16 %v10391
    %v10792 = vunpack.c.h.b16 %v10391
    %v10793 = vunpack.c.l.b16 %v10392
    %v10794 = vunpack.c.h.b16 %v10392
    %v10795 = vunpack.c.l.b16 %v10393
    %v10796 = vunpack.c.h.b16 %v10393
    %v10797 = vunpack.c.l.b16 %v10394
    %v10798 = vunpack.c.h.b16 %v10394
    %v10799 = vunpack.c.l.b16 %v10395
    %v10800 = vunpack.c.h.b16 %v10395
    %v10801 = vunpack.c.l.b16 %v10396
    %v10802 = vunpack.c.h.b16 %v10396
    %v10803 = vunpack.c.l.b16 %v10397
    %v10804 = vunpack.c.h.b16 %v10397
    %v10805 = vunpack.c.l.b16 %v10398
    %v10806 = vunpack.c.h.b16 %v10398
    %v10807 = vunpack.c.l.b16 %v10399
    %v10808 = vunpack.c.h.b16 %v10399
    %v10809 = vunpack.c.l.b16 %v10400
    %v10810 = vunpack.c.h.b16 %v10400
    %v10811 = vunpack.c.l.b16 %v10401
    %v10812 = vunpack.c.h.b16 %v10401
    %v10813 = vunpack.c.l.b16 %v10402
    %v10814 = vunpack.c.h.b16 %v10402
    %v10815 = vunpack.c.l.b16 %v10403
    %v10816 = vunpack.c.h.b16 %v10403
    %v10817 = vunpack.c.l.b16 %v10404
    %v10818 = vunpack.c.h.b16 %v10404
    %v10819 = vunpack.c.l.b16 %v10405
    %v10820 = vunpack.c.h.b16 %v10405
    %v10821 = vunpack.c.l.b16 %v10406
    %v10822 = vunpack.c.h.b16 %v10406
    %v10823 = vunpack.c.l.b16 %v10407
    %v10824 = vunpack.c.h.b16 %v10407
    %v10825 = vunpack.c.l.b16 %v10408
    %v10826 = vunpack.c.h.b16 %v10408
    %v10827 = vunpack.c.l.b16 %v10409
    %v10828 = vunpack.c.h.b16 %v10409
    %v10829 = vunpack.c.l.b16 %v10410
    %v10830 = vunpack.c.h.b16 %v10410
    %v10831 = vunpack.c.l.b16 %v10411
    %v10832 = vunpack.c.h.b16 %v10411
    %v10833 = vunpack.c.l.b16 %v10412
    %v10834 = vunpack.c.h.b16 %v10412
    %v10835 = vunpack.c.l.b16 %v10413
    %v10836 = vunpack.c.h.b16 %v10413
    %v10837 = vunpack.c.l.b16 %v10414
    %v10838 = vunpack.c.h.b16 %v10414
    %v10839 = vunpack.c.l.b16 %v10415
    %v10840 = vunpack.c.h.b16 %v10415
    %v10841 = vunpack.c.l.b16 %v10416
    %v10842 = vunpack.c.h.b16 %v10416
    %v10843 = vunpack.c.l.b16 %v10417
    %v10844 = vunpack.c.h.b16 %v10417
    %v10845 = vunpack.c.l.b16 %v10418
    %v10846 = vunpack.c.h.b16 %v10418
    %v10847 = vunpack.c.l.b16 %v10419
    %v10848 = vunpack.c.h.b16 %v10419
    %v10849 = vunpack.c.l.b16 %v10420
    %v10850 = vunpack.c.h.b16 %v10420
    %v10851 = vunpack.c.l.b16 %v10421
    %v10852 = vunpack.c.h.b16 %v10421
    %v10853 = vunpack.c.l.b16 %v10422
    %v10854 = vunpack.c.h.b16 %v10422
    %v10855 = vpack.c.b16 %v10569, %v10567
    %v10856 = vpack.c.b16 %v10570, %v10568
    %v10857 = vpack.c.b16 %v10573, %v10571
    %v10858 = vpack.c.b16 %v10574, %v10572
    %v10859 = vpack.c.b16 %v10577, %v10575
    %v10860 = vpack.c.b16 %v10578, %v10576
    %v10861 = vpack.c.b16 %v10581, %v10579
    %v10862 = vpack.c.b16 %v10582, %v10580
    %v10863 = vpack.c.b16 %v10585, %v10583
    %v10864 = vpack.c.b16 %v10586, %v10584
    %v10865 = vpack.c.b16 %v10589, %v10587
    %v10866 = vpack.c.b16 %v10590, %v10588
    %v10867 = vpack.c.b16 %v10593, %v10591
    %v10868 = vpack.c.b16 %v10594, %v10592
    %v10869 = vpack.c.b16 %v10597, %v10595
    %v10870 = vpack.c.b16 %v10598, %v10596
    %v10871 = vpack.c.b16 %v10601, %v10599
    %v10872 = vpack.c.b16 %v10602, %v10600
    %v10873 = vpack.c.b16 %v10605, %v10603
    %v10874 = vpack.c.b16 %v10606, %v10604
    %v10875 = vpack.c.b16 %v10609, %v10607
    %v10876 = vpack.c.b16 %v10610, %v10608
    %v10877 = vpack.c.b16 %v10613, %v10611
    %v10878 = vpack.c.b16 %v10614, %v10612
    %v10879 = vpack.c.b16 %v10617, %v10615
    %v10880 = vpack.c.b16 %v10618, %v10616
    %v10881 = vpack.c.b16 %v10621, %v10619
    %v10882 = vpack.c.b16 %v10622, %v10620
    %v10883 = vpack.c.b16 %v10625, %v10623
    %v10884 = vpack.c.b16 %v10626, %v10624
    %v10885 = vpack.c.b16 %v10629, %v10627
    %v10886 = vpack.c.b16 %v10630, %v10628
    %v10887 = vpack.c.b16 %v10633, %v10631
    %v10888 = vpack.c.b16 %v10634, %v10632
    %v10889 = vpack.c.b16 %v10637, %v10635
    %v10890 = vpack.c.b16 %v10638, %v10636
    %v10891 = vpack.c.b16 %v10641, %v10639
    %v10892 = vpack.c.b16 %v10642, %v10640
    %v10893 = vpack.c.b16 %v10645, %v10643
    %v10894 = vpack.c.b16 %v10646, %v10644
    %v10895 = vpack.c.b16 %v10649, %v10647
    %v10896 = vpack.c.b16 %v10650, %v10648
    %v10897 = vpack.c.b16 %v10653, %v10651
    %v10898 = vpack.c.b16 %v10654, %v10652
    %v10899 = vpack.c.b16 %v10657, %v10655
    %v10900 = vpack.c.b16 %v10658, %v10656
    %v10901 = vpack.c.b16 %v10661, %v10659
    %v10902 = vpack.c.b16 %v10662, %v10660
    %v10903 = vpack.c.b16 %v10665, %v10663
    %v10904 = vpack.c.b16 %v10666, %v10664
    %v10905 = vpack.c.b16 %v10669, %v10667
    %v10906 = vpack.c.b16 %v10670, %v10668
    %v10907 = vpack.c.b16 %v10673, %v10671
    %v10908 = vpack.c.b16 %v10674, %v10672
    %v10909 = vpack.c.b16 %v10677, %v10675
    %v10910 = vpack.c.b16 %v10678, %v10676
    %v10911 = vpack.c.b16 %v10681, %v10679
    %v10912 = vpack.c.b16 %v10682, %v10680
    %v10913 = vpack.c.b16 %v10685, %v10683
    %v10914 = vpack.c.b16 %v10686, %v10684
    %v10915 = vpack.c.b16 %v10689, %v10687
    %v10916 = vpack.c.b16 %v10690, %v10688
    %v10917 = vpack.c.b16 %v10693, %v10691
    %v10918 = vpack.c.b16 %v10694, %v10692
    %v10919 = vpack.c.b16 %v10697, %v10695
    %v10920 = vpack.c.b16 %v10698, %v10696
    %v10921 = vpack.c.b16 %v10701, %v10699
    %v10922 = vpack.c.b16 %v10702, %v10700
    %v10923 = vpack.c.b16 %v10705, %v10703
    %v10924 = vpack.c.b16 %v10706, %v10704
    %v10925 = vpack.c.b16 %v10709, %v10707
    %v10926 = vpack.c.b16 %v10710, %v10708
    %v10927 = vpack.c.b16 %v10713, %v10711
    %v10928 = vpack.c.b16 %v10714, %v10712
    %v10929 = vpack.c.b16 %v10717, %v10715
    %v10930 = vpack.c.b16 %v10718, %v10716
    %v10931 = vpack.c.b16 %v10721, %v10719
    %v10932 = vpack.c.b16 %v10722, %v10720
    %v10933 = vpack.c.b16 %v10725, %v10723
    %v10934 = vpack.c.b16 %v10726, %v10724
    %v10935 = vpack.c.b16 %v10729, %v10727
    %v10936 = vpack.c.b16 %v10730, %v10728
    %v10937 = vpack.c.b16 %v10733, %v10731
    %v10938 = vpack.c.b16 %v10734, %v10732
    %v10939 = vpack.c.b16 %v10737, %v10735
    %v10940 = vpack.c.b16 %v10738, %v10736
    %v10941 = vpack.c.b16 %v10741, %v10739
    %v10942 = vpack.c.b16 %v10742, %v10740
    %v10943 = vpack.c.b16 %v10745, %v10743
    %v10944 = vpack.c.b16 %v10746, %v10744
    %v10945 = vpack.c.b16 %v10749, %v10747
    %v10946 = vpack.c.b16 %v10750, %v10748
    %v10947 = vpack.c.b16 %v10753, %v10751
    %v10948 = vpack.c.b16 %v10754, %v10752
    %v10949 = vpack.c.b16 %v10757, %v10755
    %v10950 = vpack.c.b16 %v10758, %v10756
    %v10951 = vpack.c.b16 %v10761, %v10759
    %v10952 = vpack.c.b16 %v10762, %v10760
    %v10953 = vpack.c.b16 %v10765, %v10763
    %v10954 = vpack.c.b16 %v10766, %v10764
    %v10955 = vpack.c.b16 %v10769, %v10767
    %v10956 = vpack.c.b16 %v10770, %v10768
    %v10957 = vpack.c.b16 %v10773, %v10771
    %v10958 = vpack.c.b16 %v10774, %v10772
    %v10959 = vpack.c.b16 %v10777, %v10775
    %v10960 = vpack.c.b16 %v10778, %v10776
    %v10961 = vpack.c.b16 %v10781, %v10779
    %v10962 = vpack.c.b16 %v10782, %v10780
    %v10963 = vpack.c.b16 %v10785, %v10783
    %v10964 = vpack.c.b16 %v10786, %v10784
    %v10965 = vpack.c.b16 %v10789, %v10787
    %v10966 = vpack.c.b16 %v10790, %v10788
    %v10967 = vpack.c.b16 %v10793, %v10791
    %v10968 = vpack.c.b16 %v10794, %v10792
    %v10969 = vpack.c.b16 %v10797, %v10795
    %v10970 = vpack.c.b16 %v10798, %v10796
    %v10971 = vpack.c.b16 %v10801, %v10799
    %v10972 = vpack.c.b16 %v10802, %v10800
    %v10973 = vpack.c.b16 %v10805, %v10803
    %v10974 = vpack.c.b16 %v10806, %v10804
    %v10975 = vpack.c.b16 %v10809, %v10807
    %v10976 = vpack.c.b16 %v10810, %v10808
    %v10977 = vpack.c.b16 %v10813, %v10811
    %v10978 = vpack.c.b16 %v10814, %v10812
    %v10979 = vpack.c.b16 %v10817, %v10815
    %v10980 = vpack.c.b16 %v10818, %v10816
    %v10981 = vpack.c.b16 %v10821, %v10819
    %v10982 = vpack.c.b16 %v10822, %v10820
    %v10983 = vpack.c.b16 %v10825, %v10823
    %v10984 = vpack.c.b16 %v10826, %v10824
    %v10985 = vpack.c.b16 %v10829, %v10827
    %v10986 = vpack.c.b16 %v10830, %v10828
    %v10987 = vpack.c.b16 %v10833, %v10831
    %v10988 = vpack.c.b16 %v10834, %v10832
    %v10989 = vpack.c.b16 %v10837, %v10835
    %v10990 = vpack.c.b16 %v10838, %v10836
    %v10991 = vpack.c.b16 %v10841, %v10839
    %v10992 = vpack.c.b16 %v10842, %v10840
    %v10993 = vpack.c.b16 %v10845, %v10843
    %v10994 = vpack.c.b16 %v10846, %v10844
    %v10995 = vpack.c.b16 %v10849, %v10847
    %v10996 = vpack.c.b16 %v10850, %v10848
    %v10997 = vpack.c.b16 %v10853, %v10851
    %v10998 = vpack.c.b16 %v10854, %v10852
    %11143 = vmatprep.subr.bf16.mxu0 %v10870
    %11144 = vmatpush1.bf16.msra.mxu0 %v10869
    %11145 = vmatprep.subr.bf16.mxu0 %v10868
    %11146 = vmatpush1.bf16.msra.mxu0 %v10867
    %11147 = vmatprep.subr.bf16.mxu0 %v10866
    %11148 = vmatpush1.bf16.msra.mxu0 %v10865
    %11149 = vmatprep.subr.bf16.mxu0 %v10864
    %11150 = vmatpush1.bf16.msra.mxu0 %v10863
    %11151 = vmatprep.subr.bf16.mxu0 %v10862
    %11152 = vmatpush1.bf16.msra.mxu0 %v10861
    %11153 = vmatprep.subr.bf16.mxu0 %v10860
    %11154 = vmatpush1.bf16.msra.mxu0 %v10859
    %11155 = vmatprep.subr.bf16.mxu0 %v10858
    %11156 = vmatpush1.bf16.msra.mxu0 %v10857
    %11157 = vmatprep.subr.bf16.mxu0 %v10856
    %11158 = vmatpush1.bf16.msra.mxu0 %v10855
    %11159 = vmatprep.subr.bf16.mxu0 %v10886
    %11160 = vmatpush2.bf16.msra.mxu0 %v10885
    %11161 = vmatprep.subr.bf16.mxu0 %v10884
    %11162 = vmatpush2.bf16.msra.mxu0 %v10883
    %11163 = vmatprep.subr.bf16.mxu0 %v10882
    %11164 = vmatpush2.bf16.msra.mxu0 %v10881
    %11165 = vmatprep.subr.bf16.mxu0 %v10880
    %11166 = vmatpush2.bf16.msra.mxu0 %v10879
    %11167 = vmatprep.subr.bf16.mxu0 %v10878
    %11168 = vmatpush2.bf16.msra.mxu0 %v10877
    %11169 = vmatprep.subr.bf16.mxu0 %v10876
    %11170 = vmatpush2.bf16.msra.mxu0 %v10875
    %11171 = vmatprep.subr.bf16.mxu0 %v10874
    %11172 = vmatpush2.bf16.msra.mxu0 %v10873
    %11173 = vmatprep.subr.bf16.mxu0 %v10872
    %11174 = vmatpush2.bf16.msra.mxu0 %v10871
    %11175 = vmatprep.mubr.bf16.mxu0 %v9318
    %11176 = vmatmul.mubr.bf16.gmra.mxu0 %v9304
    %v11177 = vpop.f32.mrf.mxu0
    %v11178 = vadd.f32 0.0, %v11177
    %v11179 = vpop.f32.mrf.mxu0
    %v11180 = vadd.f32 0.0, %v11179
    %v11181 = vpop.f32.mrf.mxu0
    %v11182 = vpop.f32.mrf.mxu0
    %11183 = vdwg.mxu0
    %11184 = vmatprep.subr.bf16.mxu0 %v10902
    %11185 = vmatpush1.bf16.msra.mxu0 %v10901
    %11186 = vmatprep.subr.bf16.mxu0 %v10900
    %11187 = vmatpush1.bf16.msra.mxu0 %v10899
    %11188 = vmatprep.subr.bf16.mxu0 %v10898
    %11189 = vmatpush1.bf16.msra.mxu0 %v10897
    %11190 = vmatprep.subr.bf16.mxu0 %v10896
    %11191 = vmatpush1.bf16.msra.mxu0 %v10895
    %11192 = vmatprep.subr.bf16.mxu0 %v10894
    %11193 = vmatpush1.bf16.msra.mxu0 %v10893
    %11194 = vmatprep.subr.bf16.mxu0 %v10892
    %11195 = vmatpush1.bf16.msra.mxu0 %v10891
    %11196 = vmatprep.subr.bf16.mxu0 %v10890
    %11197 = vmatpush1.bf16.msra.mxu0 %v10889
    %11198 = vmatprep.subr.bf16.mxu0 %v10888
    %11199 = vmatpush1.bf16.msra.mxu0 %v10887
    %11200 = vmatprep.subr.bf16.mxu0 %v10918
    %11201 = vmatpush2.bf16.msra.mxu0 %v10917
    %11202 = vmatprep.subr.bf16.mxu0 %v10916
    %11203 = vmatpush2.bf16.msra.mxu0 %v10915
    %11204 = vmatprep.subr.bf16.mxu0 %v10914
    %11205 = vmatpush2.bf16.msra.mxu0 %v10913
    %11206 = vmatprep.subr.bf16.mxu0 %v10912
    %11207 = vmatpush2.bf16.msra.mxu0 %v10911
    %11208 = vmatprep.subr.bf16.mxu0 %v10910
    %11209 = vmatpush2.bf16.msra.mxu0 %v10909
    %11210 = vmatprep.subr.bf16.mxu0 %v10908
    %11211 = vmatpush2.bf16.msra.mxu0 %v10907
    %11212 = vmatprep.subr.bf16.mxu0 %v10906
    %11213 = vmatpush2.bf16.msra.mxu0 %v10905
    %11214 = vmatprep.subr.bf16.mxu0 %v10904
    %11215 = vmatpush2.bf16.msra.mxu0 %v10903
    %11216 = vmatprep.mubr.bf16.mxu0 %v9328
    %11217 = vmatmul.mubr.bf16.gmra.mxu0 %v9326
    %v11218 = vpop.f32.mrf.mxu0
    %v11219 = vadd.f32 %v11178, %v11218
    %v11220 = vpop.f32.mrf.mxu0
    %v11221 = vadd.f32 %v11180, %v11220
    %v11222 = vpop.f32.mrf.mxu0
    %v11223 = vpop.f32.mrf.mxu0
    %11224 = vdwg.mxu0
    %11225 = vmatprep.subr.bf16.mxu0 %v10934
    %11226 = vmatpush1.bf16.msra.mxu0 %v10933
    %11227 = vmatprep.subr.bf16.mxu0 %v10932
    %11228 = vmatpush1.bf16.msra.mxu0 %v10931
    %11229 = vmatprep.subr.bf16.mxu0 %v10930
    %11230 = vmatpush1.bf16.msra.mxu0 %v10929
    %11231 = vmatprep.subr.bf16.mxu0 %v10928
    %11232 = vmatpush1.bf16.msra.mxu0 %v10927
    %11233 = vmatprep.subr.bf16.mxu0 %v10926
    %11234 = vmatpush1.bf16.msra.mxu0 %v10925
    %11235 = vmatprep.subr.bf16.mxu0 %v10924
    %11236 = vmatpush1.bf16.msra.mxu0 %v10923
    %11237 = vmatprep.subr.bf16.mxu0 %v10922
    %11238 = vmatpush1.bf16.msra.mxu0 %v10921
    %11239 = vmatprep.subr.bf16.mxu0 %v10920
    %11240 = vmatpush1.bf16.msra.mxu0 %v10919
    %11241 = vmatprep.subr.bf16.mxu0 %v10950
    %11242 = vmatpush2.bf16.msra.mxu0 %v10949
    %11243 = vmatprep.subr.bf16.mxu0 %v10948
    %11244 = vmatpush2.bf16.msra.mxu0 %v10947
    %11245 = vmatprep.subr.bf16.mxu0 %v10946
    %11246 = vmatpush2.bf16.msra.mxu0 %v10945
    %11247 = vmatprep.subr.bf16.mxu0 %v10944
    %11248 = vmatpush2.bf16.msra.mxu0 %v10943
    %11249 = vmatprep.subr.bf16.mxu0 %v10942
    %11250 = vmatpush2.bf16.msra.mxu0 %v10941
    %11251 = vmatprep.subr.bf16.mxu0 %v10940
    %11252 = vmatpush2.bf16.msra.mxu0 %v10939
    %11253 = vmatprep.subr.bf16.mxu0 %v10938
    %11254 = vmatpush2.bf16.msra.mxu0 %v10937
    %11255 = vmatprep.subr.bf16.mxu0 %v10936
    %11256 = vmatpush2.bf16.msra.mxu0 %v10935
    %11257 = vmatprep.mubr.bf16.mxu0 %v9325
    %11258 = vmatmul.mubr.bf16.gmra.mxu0 %v9311
    %v11259 = vpop.f32.mrf.mxu0
    %v11260 = vadd.f32 %v11219, %v11259
    %v11261 = vpop.f32.mrf.mxu0
    %v11262 = vadd.f32 %v11221, %v11261
    %v11263 = vpop.f32.mrf.mxu0
    %v11264 = vpop.f32.mrf.mxu0
    %11265 = vdwg.mxu0
    %11266 = vmatprep.subr.bf16.mxu0 %v10966
    %11267 = vmatpush1.bf16.msra.mxu0 %v10965
    %11268 = vmatprep.subr.bf16.mxu0 %v10964
    %11269 = vmatpush1.bf16.msra.mxu0 %v10963
    %11270 = vmatprep.subr.bf16.mxu0 %v10962
    %11271 = vmatpush1.bf16.msra.mxu0 %v10961
    %11272 = vmatprep.subr.bf16.mxu0 %v10960
    %11273 = vmatpush1.bf16.msra.mxu0 %v10959
    %11274 = vmatprep.subr.bf16.mxu0 %v10958
    %11275 = vmatpush1.bf16.msra.mxu0 %v10957
    %11276 = vmatprep.subr.bf16.mxu0 %v10956
    %11277 = vmatpush1.bf16.msra.mxu0 %v10955
    %11278 = vmatprep.subr.bf16.mxu0 %v10954
    %11279 = vmatpush1.bf16.msra.mxu0 %v10953
    %11280 = vmatprep.subr.bf16.mxu0 %v10952
    %11281 = vmatpush1.bf16.msra.mxu0 %v10951
    %11282 = vmatprep.subr.bf16.mxu0 %v10982
    %11283 = vmatpush2.bf16.msra.mxu0 %v10981
    %11284 = vmatprep.subr.bf16.mxu0 %v10980
    %11285 = vmatpush2.bf16.msra.mxu0 %v10979
    %11286 = vmatprep.subr.bf16.mxu0 %v10978
    %11287 = vmatpush2.bf16.msra.mxu0 %v10977
    %11288 = vmatprep.subr.bf16.mxu0 %v10976
    %11289 = vmatpush2.bf16.msra.mxu0 %v10975
    %11290 = vmatprep.subr.bf16.mxu0 %v10974
    %11291 = vmatpush2.bf16.msra.mxu0 %v10973
    %11292 = vmatprep.subr.bf16.mxu0 %v10972
    %11293 = vmatpush2.bf16.msra.mxu0 %v10971
    %11294 = vmatprep.subr.bf16.mxu0 %v10970
    %11295 = vmatpush2.bf16.msra.mxu0 %v10969
    %11296 = vmatprep.subr.bf16.mxu0 %v10968
    %11297 = vmatpush2.bf16.msra.mxu0 %v10967
    %11298 = vmatprep.mubr.bf16.mxu0 %v9329
    %11299 = vmatmul.mubr.bf16.gmra.mxu0 %v9327
    %v11300 = vpop.f32.mrf.mxu0
    %v11301 = vadd.f32 %v11260, %v11300
    %v11302 = vpop.f32.mrf.mxu0
    %v11303 = vadd.f32 %v11262, %v11302
    %v11304 = vpop.f32.mrf.mxu0
    %v11305 = vpop.f32.mrf.mxu0
    %11306 = vdwg.mxu0
    %11307 = vmatprep.subr.bf16.mxu0 %v10998
    %11308 = vmatpush1.bf16.msra.mxu0 %v10997
    %11309 = vmatprep.subr.bf16.mxu0 %v10996
    %11310 = vmatpush1.bf16.msra.mxu0 %v10995
    %11311 = vmatprep.subr.bf16.mxu0 %v10994
    %11312 = vmatpush1.bf16.msra.mxu0 %v10993
    %11313 = vmatprep.subr.bf16.mxu0 %v10992
    %11314 = vmatpush1.bf16.msra.mxu0 %v10991
    %11315 = vmatprep.subr.bf16.mxu0 %v10990
    %11316 = vmatpush1.bf16.msra.mxu0 %v10989
    %11317 = vmatprep.subr.bf16.mxu0 %v10988
    %11318 = vmatpush1.bf16.msra.mxu0 %v10987
    %11319 = vmatprep.subr.bf16.mxu0 %v10986
    %11320 = vmatpush1.bf16.msra.mxu0 %v10985
    %11321 = vmatprep.subr.bf16.mxu0 %v10984
    %11322 = vmatpush1.bf16.msra.mxu0 %v10983
    %11323 = vmatprep.subr.bf16.mxu0 0
    %11324 = vmatpush2.bf16.msra.mxu0 0
    %11325 = vmatprep.subr.bf16.mxu0 0
    %11326 = vmatpush2.bf16.msra.mxu0 0
    %11327 = vmatprep.subr.bf16.mxu0 0
    %11328 = vmatpush2.bf16.msra.mxu0 0
    %11329 = vmatprep.subr.bf16.mxu0 0
    %11330 = vmatpush2.bf16.msra.mxu0 0
    %11331 = vmatprep.subr.bf16.mxu0 0
    %11332 = vmatpush2.bf16.msra.mxu0 0
    %11333 = vmatprep.subr.bf16.mxu0 0
    %11334 = vmatpush2.bf16.msra.mxu0 0
    %11335 = vmatprep.subr.bf16.mxu0 0
    %11336 = vmatpush2.bf16.msra.mxu0 0
    %11337 = vmatprep.subr.bf16.mxu0 0
    %11338 = vmatpush2.bf16.msra.mxu0 0
    %11339 = vmatprep.mubr.bf16.mxu0 0
    %11340 = vmatmul.mubr.bf16.gmra.mxu0 %v9343
    %v11341 = vpop.f32.mrf.mxu0
    %v11342 = vadd.f32 %v11301, %v11341
    %v11343 = vpop.f32.mrf.mxu0
    %v11344 = vadd.f32 %v11303, %v11343
    %v11345 = vpop.f32.mrf.mxu0
    %v11346 = vpop.f32.mrf.mxu0
    %11347 = vdwg.mxu0
    %v11348 = vmax.f32 %v10272, %v11342
    %v11349 = vmax.f32 %v10274, %v11344
    %s11350 = scalar_lea.vmem [#allocation9], 2304
    %v11351 = vld [vmem:[%s11350] sm:$0xff]
    %v11352 = vld [vmem:[%s11350 + $0x8] sm:$0xff]
    %v11353 = vld [vmem:[%s11350 + $0x10] sm:$0xff]
    %v11354 = vld [vmem:[%s11350 + $0x18] sm:$0xff]
    %v11355 = vld [vmem:[%s11350 + $0x20] sm:$0xff]
    %v11356 = vld [vmem:[%s11350 + $0x28] sm:$0xff]
    %v11357 = vld [vmem:[%s11350 + $0x30] sm:$0xff]
    %v11358 = vld [vmem:[%s11350 + $0x38] sm:$0xff]
    %v11359 = vld [vmem:[%s11350 + $0x40] sm:$0xff]
    %v11360 = vld [vmem:[%s11350 + $0x48] sm:$0xff]
    %v11361 = vld [vmem:[%s11350 + $0x50] sm:$0xff]
    %v11362 = vld [vmem:[%s11350 + $0x58] sm:$0xff]
    %v11363 = vld [vmem:[%s11350 + $0x60] sm:$0xff]
    %v11364 = vld [vmem:[%s11350 + $0x68] sm:$0xff]
    %v11365 = vld [vmem:[%s11350 + $0x70] sm:$0xff]
    %v11366 = vld [vmem:[%s11350 + $0x78] sm:$0xff]
    %v11367 = vld [vmem:[%s11350 + $0x80] sm:$0xff]
    %v11368 = vld [vmem:[%s11350 + $0x88] sm:$0xff]
    %v11369 = vld [vmem:[%s11350 + $0x90] sm:$0xff]
    %v11370 = vld [vmem:[%s11350 + $0x98] sm:$0xff]
    %v11371 = vld [vmem:[%s11350 + $0xa0] sm:$0xff]
    %v11372 = vld [vmem:[%s11350 + $0xa8] sm:$0xff]
    %v11373 = vld [vmem:[%s11350 + $0xb0] sm:$0xff]
    %v11374 = vld [vmem:[%s11350 + $0xb8] sm:$0xff]
    %v11375 = vld [vmem:[%s11350 + $0xc0] sm:$0xff]
    %v11376 = vld [vmem:[%s11350 + $0xc8] sm:$0xff]
    %v11377 = vld [vmem:[%s11350 + $0xd0] sm:$0xff]
    %v11378 = vld [vmem:[%s11350 + $0xd8] sm:$0xff]
    %v11379 = vld [vmem:[%s11350 + $0xe0] sm:$0xff]
    %v11380 = vld [vmem:[%s11350 + $0xe8] sm:$0xff]
    %v11381 = vld [vmem:[%s11350 + $0xf0] sm:$0xff]
    %v11382 = vld [vmem:[%s11350 + $0xf8] sm:$0xff]
    %v11383 = vld [vmem:[%s11350 + $0x100] sm:$0xff]
    %v11384 = vld [vmem:[%s11350 + $0x108] sm:$0xff]
    %v11385 = vld [vmem:[%s11350 + $0x110] sm:$0xff]
    %v11386 = vld [vmem:[%s11350 + $0x118] sm:$0xff]
    %v11387 = vld [vmem:[%s11350 + $0x120] sm:$0xff]
    %v11388 = vld [vmem:[%s11350 + $0x128] sm:$0xff]
    %v11389 = vld [vmem:[%s11350 + $0x130] sm:$0xff]
    %v11390 = vld [vmem:[%s11350 + $0x138] sm:$0xff]
    %v11391 = vld [vmem:[%s11350 + $0x140] sm:$0xff]
    %v11392 = vld [vmem:[%s11350 + $0x148] sm:$0xff]
    %v11393 = vld [vmem:[%s11350 + $0x150] sm:$0xff]
    %v11394 = vld [vmem:[%s11350 + $0x158] sm:$0xff]
    %v11395 = vld [vmem:[%s11350 + $0x160] sm:$0xff]
    %v11396 = vld [vmem:[%s11350 + $0x168] sm:$0xff]
    %v11397 = vld [vmem:[%s11350 + $0x170] sm:$0xff]
    %v11398 = vld [vmem:[%s11350 + $0x178] sm:$0xff]
    %v11399 = vld [vmem:[%s11350 + $0x180] sm:$0xff]
    %v11400 = vld [vmem:[%s11350 + $0x188] sm:$0xff]
    %v11401 = vld [vmem:[%s11350 + $0x190] sm:$0xff]
    %v11402 = vld [vmem:[%s11350 + $0x198] sm:$0xff]
    %v11403 = vld [vmem:[%s11350 + $0x1a0] sm:$0xff]
    %v11404 = vld [vmem:[%s11350 + $0x1a8] sm:$0xff]
    %v11405 = vld [vmem:[%s11350 + $0x1b0] sm:$0xff]
    %v11406 = vld [vmem:[%s11350 + $0x1b8] sm:$0xff]
    %v11407 = vld [vmem:[%s11350 + $0x1c0] sm:$0xff]
    %v11408 = vld [vmem:[%s11350 + $0x1c8] sm:$0xff]
    %v11409 = vld [vmem:[%s11350 + $0x1d0] sm:$0xff]
    %v11410 = vld [vmem:[%s11350 + $0x1d8] sm:$0xff]
    %v11411 = vld [vmem:[%s11350 + $0x1e0] sm:$0xff]
    %v11412 = vld [vmem:[%s11350 + $0x1e8] sm:$0xff]
    %v11413 = vld [vmem:[%s11350 + $0x1f0] sm:$0xff]
    %v11414 = vld [vmem:[%s11350 + $0x1f8] sm:$0xff]
    %v11415 = vld [vmem:[%s11350 + $0x200] sm:$0xff]
    %v11416 = vld [vmem:[%s11350 + $0x208] sm:$0xff]
    %v11417 = vld [vmem:[%s11350 + $0x210] sm:$0xff]
    %v11418 = vld [vmem:[%s11350 + $0x218] sm:$0xff]
    %v11419 = vld [vmem:[%s11350 + $0x220] sm:$0xff]
    %v11420 = vld [vmem:[%s11350 + $0x228] sm:$0xff]
    %v11421 = vld [vmem:[%s11350 + $0x230] sm:$0xff]
    %v11422 = vld [vmem:[%s11350 + $0x238] sm:$0xff]
    %v11423 = vld [vmem:[%s11350 + $0x240] sm:$0xff]
    %v11424 = vld [vmem:[%s11350 + $0x248] sm:$0xff]
    %v11425 = vld [vmem:[%s11350 + $0x250] sm:$0xff]
    %v11426 = vld [vmem:[%s11350 + $0x258] sm:$0xff]
    %v11427 = vld [vmem:[%s11350 + $0x260] sm:$0xff]
    %v11428 = vld [vmem:[%s11350 + $0x268] sm:$0xff]
    %v11429 = vld [vmem:[%s11350 + $0x270] sm:$0xff]
    %v11430 = vld [vmem:[%s11350 + $0x278] sm:$0xff]
    %v11431 = vld [vmem:[%s11350 + $0x280] sm:$0xff]
    %v11432 = vld [vmem:[%s11350 + $0x288] sm:$0xff]
    %v11433 = vld [vmem:[%s11350 + $0x290] sm:$0xff]
    %v11434 = vld [vmem:[%s11350 + $0x298] sm:$0xff]
    %v11435 = vld [vmem:[%s11350 + $0x2a0] sm:$0xff]
    %v11436 = vld [vmem:[%s11350 + $0x2a8] sm:$0xff]
    %v11437 = vld [vmem:[%s11350 + $0x2b0] sm:$0xff]
    %v11438 = vld [vmem:[%s11350 + $0x2b8] sm:$0xff]
    %v11439 = vld [vmem:[%s11350 + $0x2c0] sm:$0xff]
    %v11440 = vld [vmem:[%s11350 + $0x2c8] sm:$0xff]
    %v11441 = vld [vmem:[%s11350 + $0x2d0] sm:$0xff]
    %v11442 = vld [vmem:[%s11350 + $0x2d8] sm:$0xff]
    %v11443 = vld [vmem:[%s11350 + $0x2e0] sm:$0xff]
    %v11444 = vld [vmem:[%s11350 + $0x2e8] sm:$0xff]
    %v11445 = vld [vmem:[%s11350 + $0x2f0] sm:$0xff]
    %v11446 = vld [vmem:[%s11350 + $0x2f8] sm:$0xff]
    %v11447 = vld [vmem:[%s11350 + $0x300] sm:$0xff]
    %v11448 = vld [vmem:[%s11350 + $0x308] sm:$0xff]
    %v11449 = vld [vmem:[%s11350 + $0x310] sm:$0xff]
    %v11450 = vld [vmem:[%s11350 + $0x318] sm:$0xff]
    %v11451 = vld [vmem:[%s11350 + $0x320] sm:$0xff]
    %v11452 = vld [vmem:[%s11350 + $0x328] sm:$0xff]
    %v11453 = vld [vmem:[%s11350 + $0x330] sm:$0xff]
    %v11454 = vld [vmem:[%s11350 + $0x338] sm:$0xff]
    %v11455 = vld [vmem:[%s11350 + $0x340] sm:$0xff]
    %v11456 = vld [vmem:[%s11350 + $0x348] sm:$0xff]
    %v11457 = vld [vmem:[%s11350 + $0x350] sm:$0xff]
    %v11458 = vld [vmem:[%s11350 + $0x358] sm:$0xff]
    %v11459 = vld [vmem:[%s11350 + $0x360] sm:$0xff]
    %v11460 = vld [vmem:[%s11350 + $0x368] sm:$0xff]
    %v11461 = vld [vmem:[%s11350 + $0x370] sm:$0xff]
    %v11462 = vld [vmem:[%s11350 + $0x378] sm:$0xff]
    %v11463 = vld [vmem:[%s11350 + $0x380] sm:$0xff]
    %v11464 = vld [vmem:[%s11350 + $0x388] sm:$0xff]
    %v11465 = vld [vmem:[%s11350 + $0x390] sm:$0xff]
    %v11466 = vld [vmem:[%s11350 + $0x398] sm:$0xff]
    %v11467 = vld [vmem:[%s11350 + $0x3a0] sm:$0xff]
    %v11468 = vld [vmem:[%s11350 + $0x3a8] sm:$0xff]
    %v11469 = vld [vmem:[%s11350 + $0x3b0] sm:$0xff]
    %v11470 = vld [vmem:[%s11350 + $0x3b8] sm:$0xff]
    %v11471 = vld [vmem:[%s11350 + $0x3c0] sm:$0xff]
    %v11472 = vld [vmem:[%s11350 + $0x3c8] sm:$0xff]
    %v11473 = vld [vmem:[%s11350 + $0x3d0] sm:$0xff]
    %v11474 = vld [vmem:[%s11350 + $0x3d8] sm:$0xff]
    %v11475 = vld [vmem:[%s11350 + $0x3e0] sm:$0xff]
    %v11476 = vld [vmem:[%s11350 + $0x3e8] sm:$0xff]
    %v11477 = vld [vmem:[%s11350 + $0x3f0] sm:$0xff]
    %v11478 = vld [vmem:[%s11350 + $0x3f8] sm:$0xff]
    %v11479 = vld [vmem:[%s11350 + $0x400] sm:$0xff]
    %v11480 = vld [vmem:[%s11350 + $0x408] sm:$0xff]
    %v11481 = vld [vmem:[%s11350 + $0x410] sm:$0xff]
    %v11482 = vld [vmem:[%s11350 + $0x418] sm:$0xff]
    %v11483 = vld [vmem:[%s11350 + $0x420] sm:$0xff]
    %v11484 = vld [vmem:[%s11350 + $0x428] sm:$0xff]
    %v11485 = vld [vmem:[%s11350 + $0x430] sm:$0xff]
    %v11486 = vld [vmem:[%s11350 + $0x438] sm:$0xff]
    %v11487 = vld [vmem:[%s11350 + $0x440] sm:$0xff]
    %v11488 = vld [vmem:[%s11350 + $0x448] sm:$0xff]
    %v11489 = vld [vmem:[%s11350 + $0x450] sm:$0xff]
    %v11490 = vld [vmem:[%s11350 + $0x458] sm:$0xff]
    %v11491 = vld [vmem:[%s11350 + $0x460] sm:$0xff]
    %v11492 = vld [vmem:[%s11350 + $0x468] sm:$0xff]
    %v11493 = vld [vmem:[%s11350 + $0x470] sm:$0xff]
    %v11494 = vld [vmem:[%s11350 + $0x478] sm:$0xff]
    %v11639 = vunpack.c.l.b16 %v11351
    %v11640 = vunpack.c.h.b16 %v11351
    %v11641 = vunpack.c.l.b16 %v11352
    %v11642 = vunpack.c.h.b16 %v11352
    %v11643 = vunpack.c.l.b16 %v11353
    %v11644 = vunpack.c.h.b16 %v11353
    %v11645 = vunpack.c.l.b16 %v11354
    %v11646 = vunpack.c.h.b16 %v11354
    %v11647 = vunpack.c.l.b16 %v11355
    %v11648 = vunpack.c.h.b16 %v11355
    %v11649 = vunpack.c.l.b16 %v11356
    %v11650 = vunpack.c.h.b16 %v11356
    %v11651 = vunpack.c.l.b16 %v11357
    %v11652 = vunpack.c.h.b16 %v11357
    %v11653 = vunpack.c.l.b16 %v11358
    %v11654 = vunpack.c.h.b16 %v11358
    %v11655 = vunpack.c.l.b16 %v11359
    %v11656 = vunpack.c.h.b16 %v11359
    %v11657 = vunpack.c.l.b16 %v11360
    %v11658 = vunpack.c.h.b16 %v11360
    %v11659 = vunpack.c.l.b16 %v11361
    %v11660 = vunpack.c.h.b16 %v11361
    %v11661 = vunpack.c.l.b16 %v11362
    %v11662 = vunpack.c.h.b16 %v11362
    %v11663 = vunpack.c.l.b16 %v11363
    %v11664 = vunpack.c.h.b16 %v11363
    %v11665 = vunpack.c.l.b16 %v11364
    %v11666 = vunpack.c.h.b16 %v11364
    %v11667 = vunpack.c.l.b16 %v11365
    %v11668 = vunpack.c.h.b16 %v11365
    %v11669 = vunpack.c.l.b16 %v11366
    %v11670 = vunpack.c.h.b16 %v11366
    %v11671 = vunpack.c.l.b16 %v11367
    %v11672 = vunpack.c.h.b16 %v11367
    %v11673 = vunpack.c.l.b16 %v11368
    %v11674 = vunpack.c.h.b16 %v11368
    %v11675 = vunpack.c.l.b16 %v11369
    %v11676 = vunpack.c.h.b16 %v11369
    %v11677 = vunpack.c.l.b16 %v11370
    %v11678 = vunpack.c.h.b16 %v11370
    %v11679 = vunpack.c.l.b16 %v11371
    %v11680 = vunpack.c.h.b16 %v11371
    %v11681 = vunpack.c.l.b16 %v11372
    %v11682 = vunpack.c.h.b16 %v11372
    %v11683 = vunpack.c.l.b16 %v11373
    %v11684 = vunpack.c.h.b16 %v11373
    %v11685 = vunpack.c.l.b16 %v11374
    %v11686 = vunpack.c.h.b16 %v11374
    %v11687 = vunpack.c.l.b16 %v11375
    %v11688 = vunpack.c.h.b16 %v11375
    %v11689 = vunpack.c.l.b16 %v11376
    %v11690 = vunpack.c.h.b16 %v11376
    %v11691 = vunpack.c.l.b16 %v11377
    %v11692 = vunpack.c.h.b16 %v11377
    %v11693 = vunpack.c.l.b16 %v11378
    %v11694 = vunpack.c.h.b16 %v11378
    %v11695 = vunpack.c.l.b16 %v11379
    %v11696 = vunpack.c.h.b16 %v11379
    %v11697 = vunpack.c.l.b16 %v11380
    %v11698 = vunpack.c.h.b16 %v11380
    %v11699 = vunpack.c.l.b16 %v11381
    %v11700 = vunpack.c.h.b16 %v11381
    %v11701 = vunpack.c.l.b16 %v11382
    %v11702 = vunpack.c.h.b16 %v11382
    %v11703 = vunpack.c.l.b16 %v11383
    %v11704 = vunpack.c.h.b16 %v11383
    %v11705 = vunpack.c.l.b16 %v11384
    %v11706 = vunpack.c.h.b16 %v11384
    %v11707 = vunpack.c.l.b16 %v11385
    %v11708 = vunpack.c.h.b16 %v11385
    %v11709 = vunpack.c.l.b16 %v11386
    %v11710 = vunpack.c.h.b16 %v11386
    %v11711 = vunpack.c.l.b16 %v11387
    %v11712 = vunpack.c.h.b16 %v11387
    %v11713 = vunpack.c.l.b16 %v11388
    %v11714 = vunpack.c.h.b16 %v11388
    %v11715 = vunpack.c.l.b16 %v11389
    %v11716 = vunpack.c.h.b16 %v11389
    %v11717 = vunpack.c.l.b16 %v11390
    %v11718 = vunpack.c.h.b16 %v11390
    %v11719 = vunpack.c.l.b16 %v11391
    %v11720 = vunpack.c.h.b16 %v11391
    %v11721 = vunpack.c.l.b16 %v11392
    %v11722 = vunpack.c.h.b16 %v11392
    %v11723 = vunpack.c.l.b16 %v11393
    %v11724 = vunpack.c.h.b16 %v11393
    %v11725 = vunpack.c.l.b16 %v11394
    %v11726 = vunpack.c.h.b16 %v11394
    %v11727 = vunpack.c.l.b16 %v11395
    %v11728 = vunpack.c.h.b16 %v11395
    %v11729 = vunpack.c.l.b16 %v11396
    %v11730 = vunpack.c.h.b16 %v11396
    %v11731 = vunpack.c.l.b16 %v11397
    %v11732 = vunpack.c.h.b16 %v11397
    %v11733 = vunpack.c.l.b16 %v11398
    %v11734 = vunpack.c.h.b16 %v11398
    %v11735 = vunpack.c.l.b16 %v11399
    %v11736 = vunpack.c.h.b16 %v11399
    %v11737 = vunpack.c.l.b16 %v11400
    %v11738 = vunpack.c.h.b16 %v11400
    %v11739 = vunpack.c.l.b16 %v11401
    %v11740 = vunpack.c.h.b16 %v11401
    %v11741 = vunpack.c.l.b16 %v11402
    %v11742 = vunpack.c.h.b16 %v11402
    %v11743 = vunpack.c.l.b16 %v11403
    %v11744 = vunpack.c.h.b16 %v11403
    %v11745 = vunpack.c.l.b16 %v11404
    %v11746 = vunpack.c.h.b16 %v11404
    %v11747 = vunpack.c.l.b16 %v11405
    %v11748 = vunpack.c.h.b16 %v11405
    %v11749 = vunpack.c.l.b16 %v11406
    %v11750 = vunpack.c.h.b16 %v11406
    %v11751 = vunpack.c.l.b16 %v11407
    %v11752 = vunpack.c.h.b16 %v11407
    %v11753 = vunpack.c.l.b16 %v11408
    %v11754 = vunpack.c.h.b16 %v11408
    %v11755 = vunpack.c.l.b16 %v11409
    %v11756 = vunpack.c.h.b16 %v11409
    %v11757 = vunpack.c.l.b16 %v11410
    %v11758 = vunpack.c.h.b16 %v11410
    %v11759 = vunpack.c.l.b16 %v11411
    %v11760 = vunpack.c.h.b16 %v11411
    %v11761 = vunpack.c.l.b16 %v11412
    %v11762 = vunpack.c.h.b16 %v11412
    %v11763 = vunpack.c.l.b16 %v11413
    %v11764 = vunpack.c.h.b16 %v11413
    %v11765 = vunpack.c.l.b16 %v11414
    %v11766 = vunpack.c.h.b16 %v11414
    %v11767 = vunpack.c.l.b16 %v11415
    %v11768 = vunpack.c.h.b16 %v11415
    %v11769 = vunpack.c.l.b16 %v11416
    %v11770 = vunpack.c.h.b16 %v11416
    %v11771 = vunpack.c.l.b16 %v11417
    %v11772 = vunpack.c.h.b16 %v11417
    %v11773 = vunpack.c.l.b16 %v11418
    %v11774 = vunpack.c.h.b16 %v11418
    %v11775 = vunpack.c.l.b16 %v11419
    %v11776 = vunpack.c.h.b16 %v11419
    %v11777 = vunpack.c.l.b16 %v11420
    %v11778 = vunpack.c.h.b16 %v11420
    %v11779 = vunpack.c.l.b16 %v11421
    %v11780 = vunpack.c.h.b16 %v11421
    %v11781 = vunpack.c.l.b16 %v11422
    %v11782 = vunpack.c.h.b16 %v11422
    %v11783 = vunpack.c.l.b16 %v11423
    %v11784 = vunpack.c.h.b16 %v11423
    %v11785 = vunpack.c.l.b16 %v11424
    %v11786 = vunpack.c.h.b16 %v11424
    %v11787 = vunpack.c.l.b16 %v11425
    %v11788 = vunpack.c.h.b16 %v11425
    %v11789 = vunpack.c.l.b16 %v11426
    %v11790 = vunpack.c.h.b16 %v11426
    %v11791 = vunpack.c.l.b16 %v11427
    %v11792 = vunpack.c.h.b16 %v11427
    %v11793 = vunpack.c.l.b16 %v11428
    %v11794 = vunpack.c.h.b16 %v11428
    %v11795 = vunpack.c.l.b16 %v11429
    %v11796 = vunpack.c.h.b16 %v11429
    %v11797 = vunpack.c.l.b16 %v11430
    %v11798 = vunpack.c.h.b16 %v11430
    %v11799 = vunpack.c.l.b16 %v11431
    %v11800 = vunpack.c.h.b16 %v11431
    %v11801 = vunpack.c.l.b16 %v11432
    %v11802 = vunpack.c.h.b16 %v11432
    %v11803 = vunpack.c.l.b16 %v11433
    %v11804 = vunpack.c.h.b16 %v11433
    %v11805 = vunpack.c.l.b16 %v11434
    %v11806 = vunpack.c.h.b16 %v11434
    %v11807 = vunpack.c.l.b16 %v11435
    %v11808 = vunpack.c.h.b16 %v11435
    %v11809 = vunpack.c.l.b16 %v11436
    %v11810 = vunpack.c.h.b16 %v11436
    %v11811 = vunpack.c.l.b16 %v11437
    %v11812 = vunpack.c.h.b16 %v11437
    %v11813 = vunpack.c.l.b16 %v11438
    %v11814 = vunpack.c.h.b16 %v11438
    %v11815 = vunpack.c.l.b16 %v11439
    %v11816 = vunpack.c.h.b16 %v11439
    %v11817 = vunpack.c.l.b16 %v11440
    %v11818 = vunpack.c.h.b16 %v11440
    %v11819 = vunpack.c.l.b16 %v11441
    %v11820 = vunpack.c.h.b16 %v11441
    %v11821 = vunpack.c.l.b16 %v11442
    %v11822 = vunpack.c.h.b16 %v11442
    %v11823 = vunpack.c.l.b16 %v11443
    %v11824 = vunpack.c.h.b16 %v11443
    %v11825 = vunpack.c.l.b16 %v11444
    %v11826 = vunpack.c.h.b16 %v11444
    %v11827 = vunpack.c.l.b16 %v11445
    %v11828 = vunpack.c.h.b16 %v11445
    %v11829 = vunpack.c.l.b16 %v11446
    %v11830 = vunpack.c.h.b16 %v11446
    %v11831 = vunpack.c.l.b16 %v11447
    %v11832 = vunpack.c.h.b16 %v11447
    %v11833 = vunpack.c.l.b16 %v11448
    %v11834 = vunpack.c.h.b16 %v11448
    %v11835 = vunpack.c.l.b16 %v11449
    %v11836 = vunpack.c.h.b16 %v11449
    %v11837 = vunpack.c.l.b16 %v11450
    %v11838 = vunpack.c.h.b16 %v11450
    %v11839 = vunpack.c.l.b16 %v11451
    %v11840 = vunpack.c.h.b16 %v11451
    %v11841 = vunpack.c.l.b16 %v11452
    %v11842 = vunpack.c.h.b16 %v11452
    %v11843 = vunpack.c.l.b16 %v11453
    %v11844 = vunpack.c.h.b16 %v11453
    %v11845 = vunpack.c.l.b16 %v11454
    %v11846 = vunpack.c.h.b16 %v11454
    %v11847 = vunpack.c.l.b16 %v11455
    %v11848 = vunpack.c.h.b16 %v11455
    %v11849 = vunpack.c.l.b16 %v11456
    %v11850 = vunpack.c.h.b16 %v11456
    %v11851 = vunpack.c.l.b16 %v11457
    %v11852 = vunpack.c.h.b16 %v11457
    %v11853 = vunpack.c.l.b16 %v11458
    %v11854 = vunpack.c.h.b16 %v11458
    %v11855 = vunpack.c.l.b16 %v11459
    %v11856 = vunpack.c.h.b16 %v11459
    %v11857 = vunpack.c.l.b16 %v11460
    %v11858 = vunpack.c.h.b16 %v11460
    %v11859 = vunpack.c.l.b16 %v11461
    %v11860 = vunpack.c.h.b16 %v11461
    %v11861 = vunpack.c.l.b16 %v11462
    %v11862 = vunpack.c.h.b16 %v11462
    %v11863 = vunpack.c.l.b16 %v11463
    %v11864 = vunpack.c.h.b16 %v11463
    %v11865 = vunpack.c.l.b16 %v11464
    %v11866 = vunpack.c.h.b16 %v11464
    %v11867 = vunpack.c.l.b16 %v11465
    %v11868 = vunpack.c.h.b16 %v11465
    %v11869 = vunpack.c.l.b16 %v11466
    %v11870 = vunpack.c.h.b16 %v11466
    %v11871 = vunpack.c.l.b16 %v11467
    %v11872 = vunpack.c.h.b16 %v11467
    %v11873 = vunpack.c.l.b16 %v11468
    %v11874 = vunpack.c.h.b16 %v11468
    %v11875 = vunpack.c.l.b16 %v11469
    %v11876 = vunpack.c.h.b16 %v11469
    %v11877 = vunpack.c.l.b16 %v11470
    %v11878 = vunpack.c.h.b16 %v11470
    %v11879 = vunpack.c.l.b16 %v11471
    %v11880 = vunpack.c.h.b16 %v11471
    %v11881 = vunpack.c.l.b16 %v11472
    %v11882 = vunpack.c.h.b16 %v11472
    %v11883 = vunpack.c.l.b16 %v11473
    %v11884 = vunpack.c.h.b16 %v11473
    %v11885 = vunpack.c.l.b16 %v11474
    %v11886 = vunpack.c.h.b16 %v11474
    %v11887 = vunpack.c.l.b16 %v11475
    %v11888 = vunpack.c.h.b16 %v11475
    %v11889 = vunpack.c.l.b16 %v11476
    %v11890 = vunpack.c.h.b16 %v11476
    %v11891 = vunpack.c.l.b16 %v11477
    %v11892 = vunpack.c.h.b16 %v11477
    %v11893 = vunpack.c.l.b16 %v11478
    %v11894 = vunpack.c.h.b16 %v11478
    %v11895 = vunpack.c.l.b16 %v11479
    %v11896 = vunpack.c.h.b16 %v11479
    %v11897 = vunpack.c.l.b16 %v11480
    %v11898 = vunpack.c.h.b16 %v11480
    %v11899 = vunpack.c.l.b16 %v11481
    %v11900 = vunpack.c.h.b16 %v11481
    %v11901 = vunpack.c.l.b16 %v11482
    %v11902 = vunpack.c.h.b16 %v11482
    %v11903 = vunpack.c.l.b16 %v11483
    %v11904 = vunpack.c.h.b16 %v11483
    %v11905 = vunpack.c.l.b16 %v11484
    %v11906 = vunpack.c.h.b16 %v11484
    %v11907 = vunpack.c.l.b16 %v11485
    %v11908 = vunpack.c.h.b16 %v11485
    %v11909 = vunpack.c.l.b16 %v11486
    %v11910 = vunpack.c.h.b16 %v11486
    %v11911 = vunpack.c.l.b16 %v11487
    %v11912 = vunpack.c.h.b16 %v11487
    %v11913 = vunpack.c.l.b16 %v11488
    %v11914 = vunpack.c.h.b16 %v11488
    %v11915 = vunpack.c.l.b16 %v11489
    %v11916 = vunpack.c.h.b16 %v11489
    %v11917 = vunpack.c.l.b16 %v11490
    %v11918 = vunpack.c.h.b16 %v11490
    %v11919 = vunpack.c.l.b16 %v11491
    %v11920 = vunpack.c.h.b16 %v11491
    %v11921 = vunpack.c.l.b16 %v11492
    %v11922 = vunpack.c.h.b16 %v11492
    %v11923 = vunpack.c.l.b16 %v11493
    %v11924 = vunpack.c.h.b16 %v11493
    %v11925 = vunpack.c.l.b16 %v11494
    %v11926 = vunpack.c.h.b16 %v11494
    %v11927 = vpack.c.b16 %v11641, %v11639
    %v11928 = vpack.c.b16 %v11642, %v11640
    %v11929 = vpack.c.b16 %v11645, %v11643
    %v11930 = vpack.c.b16 %v11646, %v11644
    %v11931 = vpack.c.b16 %v11649, %v11647
    %v11932 = vpack.c.b16 %v11650, %v11648
    %v11933 = vpack.c.b16 %v11653, %v11651
    %v11934 = vpack.c.b16 %v11654, %v11652
    %v11935 = vpack.c.b16 %v11657, %v11655
    %v11936 = vpack.c.b16 %v11658, %v11656
    %v11937 = vpack.c.b16 %v11661, %v11659
    %v11938 = vpack.c.b16 %v11662, %v11660
    %v11939 = vpack.c.b16 %v11665, %v11663
    %v11940 = vpack.c.b16 %v11666, %v11664
    %v11941 = vpack.c.b16 %v11669, %v11667
    %v11942 = vpack.c.b16 %v11670, %v11668
    %v11943 = vpack.c.b16 %v11673, %v11671
    %v11944 = vpack.c.b16 %v11674, %v11672
    %v11945 = vpack.c.b16 %v11677, %v11675
    %v11946 = vpack.c.b16 %v11678, %v11676
    %v11947 = vpack.c.b16 %v11681, %v11679
    %v11948 = vpack.c.b16 %v11682, %v11680
    %v11949 = vpack.c.b16 %v11685, %v11683
    %v11950 = vpack.c.b16 %v11686, %v11684
    %v11951 = vpack.c.b16 %v11689, %v11687
    %v11952 = vpack.c.b16 %v11690, %v11688
    %v11953 = vpack.c.b16 %v11693, %v11691
    %v11954 = vpack.c.b16 %v11694, %v11692
    %v11955 = vpack.c.b16 %v11697, %v11695
    %v11956 = vpack.c.b16 %v11698, %v11696
    %v11957 = vpack.c.b16 %v11701, %v11699
    %v11958 = vpack.c.b16 %v11702, %v11700
    %v11959 = vpack.c.b16 %v11705, %v11703
    %v11960 = vpack.c.b16 %v11706, %v11704
    %v11961 = vpack.c.b16 %v11709, %v11707
    %v11962 = vpack.c.b16 %v11710, %v11708
    %v11963 = vpack.c.b16 %v11713, %v11711
    %v11964 = vpack.c.b16 %v11714, %v11712
    %v11965 = vpack.c.b16 %v11717, %v11715
    %v11966 = vpack.c.b16 %v11718, %v11716
    %v11967 = vpack.c.b16 %v11721, %v11719
    %v11968 = vpack.c.b16 %v11722, %v11720
    %v11969 = vpack.c.b16 %v11725, %v11723
    %v11970 = vpack.c.b16 %v11726, %v11724
    %v11971 = vpack.c.b16 %v11729, %v11727
    %v11972 = vpack.c.b16 %v11730, %v11728
    %v11973 = vpack.c.b16 %v11733, %v11731
    %v11974 = vpack.c.b16 %v11734, %v11732
    %v11975 = vpack.c.b16 %v11737, %v11735
    %v11976 = vpack.c.b16 %v11738, %v11736
    %v11977 = vpack.c.b16 %v11741, %v11739
    %v11978 = vpack.c.b16 %v11742, %v11740
    %v11979 = vpack.c.b16 %v11745, %v11743
    %v11980 = vpack.c.b16 %v11746, %v11744
    %v11981 = vpack.c.b16 %v11749, %v11747
    %v11982 = vpack.c.b16 %v11750, %v11748
    %v11983 = vpack.c.b16 %v11753, %v11751
    %v11984 = vpack.c.b16 %v11754, %v11752
    %v11985 = vpack.c.b16 %v11757, %v11755
    %v11986 = vpack.c.b16 %v11758, %v11756
    %v11987 = vpack.c.b16 %v11761, %v11759
    %v11988 = vpack.c.b16 %v11762, %v11760
    %v11989 = vpack.c.b16 %v11765, %v11763
    %v11990 = vpack.c.b16 %v11766, %v11764
    %v11991 = vpack.c.b16 %v11769, %v11767
    %v11992 = vpack.c.b16 %v11770, %v11768
    %v11993 = vpack.c.b16 %v11773, %v11771
    %v11994 = vpack.c.b16 %v11774, %v11772
    %v11995 = vpack.c.b16 %v11777, %v11775
    %v11996 = vpack.c.b16 %v11778, %v11776
    %v11997 = vpack.c.b16 %v11781, %v11779
    %v11998 = vpack.c.b16 %v11782, %v11780
    %v11999 = vpack.c.b16 %v11785, %v11783
    %v12000 = vpack.c.b16 %v11786, %v11784
    %v12001 = vpack.c.b16 %v11789, %v11787
    %v12002 = vpack.c.b16 %v11790, %v11788
    %v12003 = vpack.c.b16 %v11793, %v11791
    %v12004 = vpack.c.b16 %v11794, %v11792
    %v12005 = vpack.c.b16 %v11797, %v11795
    %v12006 = vpack.c.b16 %v11798, %v11796
    %v12007 = vpack.c.b16 %v11801, %v11799
    %v12008 = vpack.c.b16 %v11802, %v11800
    %v12009 = vpack.c.b16 %v11805, %v11803
    %v12010 = vpack.c.b16 %v11806, %v11804
    %v12011 = vpack.c.b16 %v11809, %v11807
    %v12012 = vpack.c.b16 %v11810, %v11808
    %v12013 = vpack.c.b16 %v11813, %v11811
    %v12014 = vpack.c.b16 %v11814, %v11812
    %v12015 = vpack.c.b16 %v11817, %v11815
    %v12016 = vpack.c.b16 %v11818, %v11816
    %v12017 = vpack.c.b16 %v11821, %v11819
    %v12018 = vpack.c.b16 %v11822, %v11820
    %v12019 = vpack.c.b16 %v11825, %v11823
    %v12020 = vpack.c.b16 %v11826, %v11824
    %v12021 = vpack.c.b16 %v11829, %v11827
    %v12022 = vpack.c.b16 %v11830, %v11828
    %v12023 = vpack.c.b16 %v11833, %v11831
    %v12024 = vpack.c.b16 %v11834, %v11832
    %v12025 = vpack.c.b16 %v11837, %v11835
    %v12026 = vpack.c.b16 %v11838, %v11836
    %v12027 = vpack.c.b16 %v11841, %v11839
    %v12028 = vpack.c.b16 %v11842, %v11840
    %v12029 = vpack.c.b16 %v11845, %v11843
    %v12030 = vpack.c.b16 %v11846, %v11844
    %v12031 = vpack.c.b16 %v11849, %v11847
    %v12032 = vpack.c.b16 %v11850, %v11848
    %v12033 = vpack.c.b16 %v11853, %v11851
    %v12034 = vpack.c.b16 %v11854, %v11852
    %v12035 = vpack.c.b16 %v11857, %v11855
    %v12036 = vpack.c.b16 %v11858, %v11856
    %v12037 = vpack.c.b16 %v11861, %v11859
    %v12038 = vpack.c.b16 %v11862, %v11860
    %v12039 = vpack.c.b16 %v11865, %v11863
    %v12040 = vpack.c.b16 %v11866, %v11864
    %v12041 = vpack.c.b16 %v11869, %v11867
    %v12042 = vpack.c.b16 %v11870, %v11868
    %v12043 = vpack.c.b16 %v11873, %v11871
    %v12044 = vpack.c.b16 %v11874, %v11872
    %v12045 = vpack.c.b16 %v11877, %v11875
    %v12046 = vpack.c.b16 %v11878, %v11876
    %v12047 = vpack.c.b16 %v11881, %v11879
    %v12048 = vpack.c.b16 %v11882, %v11880
    %v12049 = vpack.c.b16 %v11885, %v11883
    %v12050 = vpack.c.b16 %v11886, %v11884
    %v12051 = vpack.c.b16 %v11889, %v11887
    %v12052 = vpack.c.b16 %v11890, %v11888
    %v12053 = vpack.c.b16 %v11893, %v11891
    %v12054 = vpack.c.b16 %v11894, %v11892
    %v12055 = vpack.c.b16 %v11897, %v11895
    %v12056 = vpack.c.b16 %v11898, %v11896
    %v12057 = vpack.c.b16 %v11901, %v11899
    %v12058 = vpack.c.b16 %v11902, %v11900
    %v12059 = vpack.c.b16 %v11905, %v11903
    %v12060 = vpack.c.b16 %v11906, %v11904
    %v12061 = vpack.c.b16 %v11909, %v11907
    %v12062 = vpack.c.b16 %v11910, %v11908
    %v12063 = vpack.c.b16 %v11913, %v11911
    %v12064 = vpack.c.b16 %v11914, %v11912
    %v12065 = vpack.c.b16 %v11917, %v11915
    %v12066 = vpack.c.b16 %v11918, %v11916
    %v12067 = vpack.c.b16 %v11921, %v11919
    %v12068 = vpack.c.b16 %v11922, %v11920
    %v12069 = vpack.c.b16 %v11925, %v11923
    %v12070 = vpack.c.b16 %v11926, %v11924
    %12215 = vmatprep.subr.bf16.mxu0 %v11942
    %12216 = vmatpush1.bf16.msra.mxu0 %v11941
    %12217 = vmatprep.subr.bf16.mxu0 %v11940
    %12218 = vmatpush1.bf16.msra.mxu0 %v11939
    %12219 = vmatprep.subr.bf16.mxu0 %v11938
    %12220 = vmatpush1.bf16.msra.mxu0 %v11937
    %12221 = vmatprep.subr.bf16.mxu0 %v11936
    %12222 = vmatpush1.bf16.msra.mxu0 %v11935
    %12223 = vmatprep.subr.bf16.mxu0 %v11934
    %12224 = vmatpush1.bf16.msra.mxu0 %v11933
    %12225 = vmatprep.subr.bf16.mxu0 %v11932
    %12226 = vmatpush1.bf16.msra.mxu0 %v11931
    %12227 = vmatprep.subr.bf16.mxu0 %v11930
    %12228 = vmatpush1.bf16.msra.mxu0 %v11929
    %12229 = vmatprep.subr.bf16.mxu0 %v11928
    %12230 = vmatpush1.bf16.msra.mxu0 %v11927
    %12231 = vmatprep.subr.bf16.mxu0 %v11958
    %12232 = vmatpush2.bf16.msra.mxu0 %v11957
    %12233 = vmatprep.subr.bf16.mxu0 %v11956
    %12234 = vmatpush2.bf16.msra.mxu0 %v11955
    %12235 = vmatprep.subr.bf16.mxu0 %v11954
    %12236 = vmatpush2.bf16.msra.mxu0 %v11953
    %12237 = vmatprep.subr.bf16.mxu0 %v11952
    %12238 = vmatpush2.bf16.msra.mxu0 %v11951
    %12239 = vmatprep.subr.bf16.mxu0 %v11950
    %12240 = vmatpush2.bf16.msra.mxu0 %v11949
    %12241 = vmatprep.subr.bf16.mxu0 %v11948
    %12242 = vmatpush2.bf16.msra.mxu0 %v11947
    %12243 = vmatprep.subr.bf16.mxu0 %v11946
    %12244 = vmatpush2.bf16.msra.mxu0 %v11945
    %12245 = vmatprep.subr.bf16.mxu0 %v11944
    %12246 = vmatpush2.bf16.msra.mxu0 %v11943
    %12247 = vmatprep.mubr.bf16.mxu0 %v9318
    %12248 = vmatmul.mubr.bf16.gmra.mxu0 %v9304
    %v12249 = vpop.f32.mrf.mxu0
    %v12250 = vadd.f32 0.0, %v12249
    %v12251 = vpop.f32.mrf.mxu0
    %v12252 = vadd.f32 0.0, %v12251
    %v12253 = vpop.f32.mrf.mxu0
    %v12254 = vpop.f32.mrf.mxu0
    %12255 = vdwg.mxu0
    %12256 = vmatprep.subr.bf16.mxu0 %v11974
    %12257 = vmatpush1.bf16.msra.mxu0 %v11973
    %12258 = vmatprep.subr.bf16.mxu0 %v11972
    %12259 = vmatpush1.bf16.msra.mxu0 %v11971
    %12260 = vmatprep.subr.bf16.mxu0 %v11970
    %12261 = vmatpush1.bf16.msra.mxu0 %v11969
    %12262 = vmatprep.subr.bf16.mxu0 %v11968
    %12263 = vmatpush1.bf16.msra.mxu0 %v11967
    %12264 = vmatprep.subr.bf16.mxu0 %v11966
    %12265 = vmatpush1.bf16.msra.mxu0 %v11965
    %12266 = vmatprep.subr.bf16.mxu0 %v11964
    %12267 = vmatpush1.bf16.msra.mxu0 %v11963
    %12268 = vmatprep.subr.bf16.mxu0 %v11962
    %12269 = vmatpush1.bf16.msra.mxu0 %v11961
    %12270 = vmatprep.subr.bf16.mxu0 %v11960
    %12271 = vmatpush1.bf16.msra.mxu0 %v11959
    %12272 = vmatprep.subr.bf16.mxu0 %v11990
    %12273 = vmatpush2.bf16.msra.mxu0 %v11989
    %12274 = vmatprep.subr.bf16.mxu0 %v11988
    %12275 = vmatpush2.bf16.msra.mxu0 %v11987
    %12276 = vmatprep.subr.bf16.mxu0 %v11986
    %12277 = vmatpush2.bf16.msra.mxu0 %v11985
    %12278 = vmatprep.subr.bf16.mxu0 %v11984
    %12279 = vmatpush2.bf16.msra.mxu0 %v11983
    %12280 = vmatprep.subr.bf16.mxu0 %v11982
    %12281 = vmatpush2.bf16.msra.mxu0 %v11981
    %12282 = vmatprep.subr.bf16.mxu0 %v11980
    %12283 = vmatpush2.bf16.msra.mxu0 %v11979
    %12284 = vmatprep.subr.bf16.mxu0 %v11978
    %12285 = vmatpush2.bf16.msra.mxu0 %v11977
    %12286 = vmatprep.subr.bf16.mxu0 %v11976
    %12287 = vmatpush2.bf16.msra.mxu0 %v11975
    %12288 = vmatprep.mubr.bf16.mxu0 %v9328
    %12289 = vmatmul.mubr.bf16.gmra.mxu0 %v9326
    %v12290 = vpop.f32.mrf.mxu0
    %v12291 = vadd.f32 %v12250, %v12290
    %v12292 = vpop.f32.mrf.mxu0
    %v12293 = vadd.f32 %v12252, %v12292
    %v12294 = vpop.f32.mrf.mxu0
    %v12295 = vpop.f32.mrf.mxu0
    %12296 = vdwg.mxu0
    %12297 = vmatprep.subr.bf16.mxu0 %v12006
    %12298 = vmatpush1.bf16.msra.mxu0 %v12005
    %12299 = vmatprep.subr.bf16.mxu0 %v12004
    %12300 = vmatpush1.bf16.msra.mxu0 %v12003
    %12301 = vmatprep.subr.bf16.mxu0 %v12002
    %12302 = vmatpush1.bf16.msra.mxu0 %v12001
    %12303 = vmatprep.subr.bf16.mxu0 %v12000
    %12304 = vmatpush1.bf16.msra.mxu0 %v11999
    %12305 = vmatprep.subr.bf16.mxu0 %v11998
    %12306 = vmatpush1.bf16.msra.mxu0 %v11997
    %12307 = vmatprep.subr.bf16.mxu0 %v11996
    %12308 = vmatpush1.bf16.msra.mxu0 %v11995
    %12309 = vmatprep.subr.bf16.mxu0 %v11994
    %12310 = vmatpush1.bf16.msra.mxu0 %v11993
    %12311 = vmatprep.subr.bf16.mxu0 %v11992
    %12312 = vmatpush1.bf16.msra.mxu0 %v11991
    %12313 = vmatprep.subr.bf16.mxu0 %v12022
    %12314 = vmatpush2.bf16.msra.mxu0 %v12021
    %12315 = vmatprep.subr.bf16.mxu0 %v12020
    %12316 = vmatpush2.bf16.msra.mxu0 %v12019
    %12317 = vmatprep.subr.bf16.mxu0 %v12018
    %12318 = vmatpush2.bf16.msra.mxu0 %v12017
    %12319 = vmatprep.subr.bf16.mxu0 %v12016
    %12320 = vmatpush2.bf16.msra.mxu0 %v12015
    %12321 = vmatprep.subr.bf16.mxu0 %v12014
    %12322 = vmatpush2.bf16.msra.mxu0 %v12013
    %12323 = vmatprep.subr.bf16.mxu0 %v12012
    %12324 = vmatpush2.bf16.msra.mxu0 %v12011
    %12325 = vmatprep.subr.bf16.mxu0 %v12010
    %12326 = vmatpush2.bf16.msra.mxu0 %v12009
    %12327 = vmatprep.subr.bf16.mxu0 %v12008
    %12328 = vmatpush2.bf16.msra.mxu0 %v12007
    %12329 = vmatprep.mubr.bf16.mxu0 %v9325
    %12330 = vmatmul.mubr.bf16.gmra.mxu0 %v9311
    %v12331 = vpop.f32.mrf.mxu0
    %v12332 = vadd.f32 %v12291, %v12331
    %v12333 = vpop.f32.mrf.mxu0
    %v12334 = vadd.f32 %v12293, %v12333
    %v12335 = vpop.f32.mrf.mxu0
    %v12336 = vpop.f32.mrf.mxu0
    %12337 = vdwg.mxu0
    %12338 = vmatprep.subr.bf16.mxu0 %v12038
    %12339 = vmatpush1.bf16.msra.mxu0 %v12037
    %12340 = vmatprep.subr.bf16.mxu0 %v12036
    %12341 = vmatpush1.bf16.msra.mxu0 %v12035
    %12342 = vmatprep.subr.bf16.mxu0 %v12034
    %12343 = vmatpush1.bf16.msra.mxu0 %v12033
    %12344 = vmatprep.subr.bf16.mxu0 %v12032
    %12345 = vmatpush1.bf16.msra.mxu0 %v12031
    %12346 = vmatprep.subr.bf16.mxu0 %v12030
    %12347 = vmatpush1.bf16.msra.mxu0 %v12029
    %12348 = vmatprep.subr.bf16.mxu0 %v12028
    %12349 = vmatpush1.bf16.msra.mxu0 %v12027
    %12350 = vmatprep.subr.bf16.mxu0 %v12026
    %12351 = vmatpush1.bf16.msra.mxu0 %v12025
    %12352 = vmatprep.subr.bf16.mxu0 %v12024
    %12353 = vmatpush1.bf16.msra.mxu0 %v12023
    %12354 = vmatprep.subr.bf16.mxu0 %v12054
    %12355 = vmatpush2.bf16.msra.mxu0 %v12053
    %12356 = vmatprep.subr.bf16.mxu0 %v12052
    %12357 = vmatpush2.bf16.msra.mxu0 %v12051
    %12358 = vmatprep.subr.bf16.mxu0 %v12050
    %12359 = vmatpush2.bf16.msra.mxu0 %v12049
    %12360 = vmatprep.subr.bf16.mxu0 %v12048
    %12361 = vmatpush2.bf16.msra.mxu0 %v12047
    %12362 = vmatprep.subr.bf16.mxu0 %v12046
    %12363 = vmatpush2.bf16.msra.mxu0 %v12045
    %12364 = vmatprep.subr.bf16.mxu0 %v12044
    %12365 = vmatpush2.bf16.msra.mxu0 %v12043
    %12366 = vmatprep.subr.bf16.mxu0 %v12042
    %12367 = vmatpush2.bf16.msra.mxu0 %v12041
    %12368 = vmatprep.subr.bf16.mxu0 %v12040
    %12369 = vmatpush2.bf16.msra.mxu0 %v12039
    %12370 = vmatprep.mubr.bf16.mxu0 %v9329
    %12371 = vmatmul.mubr.bf16.gmra.mxu0 %v9327
    %v12372 = vpop.f32.mrf.mxu0
    %v12373 = vadd.f32 %v12332, %v12372
    %v12374 = vpop.f32.mrf.mxu0
    %v12375 = vadd.f32 %v12334, %v12374
    %v12376 = vpop.f32.mrf.mxu0
    %v12377 = vpop.f32.mrf.mxu0
    %12378 = vdwg.mxu0
    %12379 = vmatprep.subr.bf16.mxu0 %v12070
    %12380 = vmatpush1.bf16.msra.mxu0 %v12069
    %12381 = vmatprep.subr.bf16.mxu0 %v12068
    %12382 = vmatpush1.bf16.msra.mxu0 %v12067
    %12383 = vmatprep.subr.bf16.mxu0 %v12066
    %12384 = vmatpush1.bf16.msra.mxu0 %v12065
    %12385 = vmatprep.subr.bf16.mxu0 %v12064
    %12386 = vmatpush1.bf16.msra.mxu0 %v12063
    %12387 = vmatprep.subr.bf16.mxu0 %v12062
    %12388 = vmatpush1.bf16.msra.mxu0 %v12061
    %12389 = vmatprep.subr.bf16.mxu0 %v12060
    %12390 = vmatpush1.bf16.msra.mxu0 %v12059
    %12391 = vmatprep.subr.bf16.mxu0 %v12058
    %12392 = vmatpush1.bf16.msra.mxu0 %v12057
    %12393 = vmatprep.subr.bf16.mxu0 %v12056
    %12394 = vmatpush1.bf16.msra.mxu0 %v12055
    %12395 = vmatprep.subr.bf16.mxu0 0
    %12396 = vmatpush2.bf16.msra.mxu0 0
    %12397 = vmatprep.subr.bf16.mxu0 0
    %12398 = vmatpush2.bf16.msra.mxu0 0
    %12399 = vmatprep.subr.bf16.mxu0 0
    %12400 = vmatpush2.bf16.msra.mxu0 0
    %12401 = vmatprep.subr.bf16.mxu0 0
    %12402 = vmatpush2.bf16.msra.mxu0 0
    %12403 = vmatprep.subr.bf16.mxu0 0
    %12404 = vmatpush2.bf16.msra.mxu0 0
    %12405 = vmatprep.subr.bf16.mxu0 0
    %12406 = vmatpush2.bf16.msra.mxu0 0
    %12407 = vmatprep.subr.bf16.mxu0 0
    %12408 = vmatpush2.bf16.msra.mxu0 0
    %12409 = vmatprep.subr.bf16.mxu0 0
    %12410 = vmatpush2.bf16.msra.mxu0 0
    %12411 = vmatprep.mubr.bf16.mxu0 0
    %12412 = vmatmul.mubr.bf16.gmra.mxu0 %v9343
    %v12413 = vpop.f32.mrf.mxu0
    %v12414 = vadd.f32 %v12373, %v12413
    %v12415 = vpop.f32.mrf.mxu0
    %v12416 = vadd.f32 %v12375, %v12415
    %v12417 = vpop.f32.mrf.mxu0
    %v12418 = vpop.f32.mrf.mxu0
    %12419 = vdwg.mxu0
    %v12420 = vmax.f32 %v11348, %v12414
    %v12421 = vmax.f32 %v11349, %v12416
    %s12422 = scalar_lea.vmem [#allocation9], 3456
    %v12423 = vld [vmem:[%s12422] sm:$0xff]
    %v12424 = vld [vmem:[%s12422 + $0x8] sm:$0xff]
    %v12425 = vld [vmem:[%s12422 + $0x10] sm:$0xff]
    %v12426 = vld [vmem:[%s12422 + $0x18] sm:$0xff]
    %v12427 = vld [vmem:[%s12422 + $0x20] sm:$0xff]
    %v12428 = vld [vmem:[%s12422 + $0x28] sm:$0xff]
    %v12429 = vld [vmem:[%s12422 + $0x30] sm:$0xff]
    %v12430 = vld [vmem:[%s12422 + $0x38] sm:$0xff]
    %v12431 = vld [vmem:[%s12422 + $0x40] sm:$0xff]
    %v12432 = vld [vmem:[%s12422 + $0x48] sm:$0xff]
    %v12433 = vld [vmem:[%s12422 + $0x50] sm:$0xff]
    %v12434 = vld [vmem:[%s12422 + $0x58] sm:$0xff]
    %v12435 = vld [vmem:[%s12422 + $0x60] sm:$0xff]
    %v12436 = vld [vmem:[%s12422 + $0x68] sm:$0xff]
    %v12437 = vld [vmem:[%s12422 + $0x70] sm:$0xff]
    %v12438 = vld [vmem:[%s12422 + $0x78] sm:$0xff]
    %v12439 = vld [vmem:[%s12422 + $0x80] sm:$0xff]
    %v12440 = vld [vmem:[%s12422 + $0x88] sm:$0xff]
    %v12441 = vld [vmem:[%s12422 + $0x90] sm:$0xff]
    %v12442 = vld [vmem:[%s12422 + $0x98] sm:$0xff]
    %v12443 = vld [vmem:[%s12422 + $0xa0] sm:$0xff]
    %v12444 = vld [vmem:[%s12422 + $0xa8] sm:$0xff]
    %v12445 = vld [vmem:[%s12422 + $0xb0] sm:$0xff]
    %v12446 = vld [vmem:[%s12422 + $0xb8] sm:$0xff]
    %v12447 = vld [vmem:[%s12422 + $0xc0] sm:$0xff]
    %v12448 = vld [vmem:[%s12422 + $0xc8] sm:$0xff]
    %v12449 = vld [vmem:[%s12422 + $0xd0] sm:$0xff]
    %v12450 = vld [vmem:[%s12422 + $0xd8] sm:$0xff]
    %v12451 = vld [vmem:[%s12422 + $0xe0] sm:$0xff]
    %v12452 = vld [vmem:[%s12422 + $0xe8] sm:$0xff]
    %v12453 = vld [vmem:[%s12422 + $0xf0] sm:$0xff]
    %v12454 = vld [vmem:[%s12422 + $0xf8] sm:$0xff]
    %v12455 = vld [vmem:[%s12422 + $0x100] sm:$0xff]
    %v12456 = vld [vmem:[%s12422 + $0x108] sm:$0xff]
    %v12457 = vld [vmem:[%s12422 + $0x110] sm:$0xff]
    %v12458 = vld [vmem:[%s12422 + $0x118] sm:$0xff]
    %v12459 = vld [vmem:[%s12422 + $0x120] sm:$0xff]
    %v12460 = vld [vmem:[%s12422 + $0x128] sm:$0xff]
    %v12461 = vld [vmem:[%s12422 + $0x130] sm:$0xff]
    %v12462 = vld [vmem:[%s12422 + $0x138] sm:$0xff]
    %v12463 = vld [vmem:[%s12422 + $0x140] sm:$0xff]
    %v12464 = vld [vmem:[%s12422 + $0x148] sm:$0xff]
    %v12465 = vld [vmem:[%s12422 + $0x150] sm:$0xff]
    %v12466 = vld [vmem:[%s12422 + $0x158] sm:$0xff]
    %v12467 = vld [vmem:[%s12422 + $0x160] sm:$0xff]
    %v12468 = vld [vmem:[%s12422 + $0x168] sm:$0xff]
    %v12469 = vld [vmem:[%s12422 + $0x170] sm:$0xff]
    %v12470 = vld [vmem:[%s12422 + $0x178] sm:$0xff]
    %v12471 = vld [vmem:[%s12422 + $0x180] sm:$0xff]
    %v12472 = vld [vmem:[%s12422 + $0x188] sm:$0xff]
    %v12473 = vld [vmem:[%s12422 + $0x190] sm:$0xff]
    %v12474 = vld [vmem:[%s12422 + $0x198] sm:$0xff]
    %v12475 = vld [vmem:[%s12422 + $0x1a0] sm:$0xff]
    %v12476 = vld [vmem:[%s12422 + $0x1a8] sm:$0xff]
    %v12477 = vld [vmem:[%s12422 + $0x1b0] sm:$0xff]
    %v12478 = vld [vmem:[%s12422 + $0x1b8] sm:$0xff]
    %v12479 = vld [vmem:[%s12422 + $0x1c0] sm:$0xff]
    %v12480 = vld [vmem:[%s12422 + $0x1c8] sm:$0xff]
    %v12481 = vld [vmem:[%s12422 + $0x1d0] sm:$0xff]
    %v12482 = vld [vmem:[%s12422 + $0x1d8] sm:$0xff]
    %v12483 = vld [vmem:[%s12422 + $0x1e0] sm:$0xff]
    %v12484 = vld [vmem:[%s12422 + $0x1e8] sm:$0xff]
    %v12485 = vld [vmem:[%s12422 + $0x1f0] sm:$0xff]
    %v12486 = vld [vmem:[%s12422 + $0x1f8] sm:$0xff]
    %v12487 = vld [vmem:[%s12422 + $0x200] sm:$0xff]
    %v12488 = vld [vmem:[%s12422 + $0x208] sm:$0xff]
    %v12489 = vld [vmem:[%s12422 + $0x210] sm:$0xff]
    %v12490 = vld [vmem:[%s12422 + $0x218] sm:$0xff]
    %v12491 = vld [vmem:[%s12422 + $0x220] sm:$0xff]
    %v12492 = vld [vmem:[%s12422 + $0x228] sm:$0xff]
    %v12493 = vld [vmem:[%s12422 + $0x230] sm:$0xff]
    %v12494 = vld [vmem:[%s12422 + $0x238] sm:$0xff]
    %v12495 = vld [vmem:[%s12422 + $0x240] sm:$0xff]
    %v12496 = vld [vmem:[%s12422 + $0x248] sm:$0xff]
    %v12497 = vld [vmem:[%s12422 + $0x250] sm:$0xff]
    %v12498 = vld [vmem:[%s12422 + $0x258] sm:$0xff]
    %v12499 = vld [vmem:[%s12422 + $0x260] sm:$0xff]
    %v12500 = vld [vmem:[%s12422 + $0x268] sm:$0xff]
    %v12501 = vld [vmem:[%s12422 + $0x270] sm:$0xff]
    %v12502 = vld [vmem:[%s12422 + $0x278] sm:$0xff]
    %v12503 = vld [vmem:[%s12422 + $0x280] sm:$0xff]
    %v12504 = vld [vmem:[%s12422 + $0x288] sm:$0xff]
    %v12505 = vld [vmem:[%s12422 + $0x290] sm:$0xff]
    %v12506 = vld [vmem:[%s12422 + $0x298] sm:$0xff]
    %v12507 = vld [vmem:[%s12422 + $0x2a0] sm:$0xff]
    %v12508 = vld [vmem:[%s12422 + $0x2a8] sm:$0xff]
    %v12509 = vld [vmem:[%s12422 + $0x2b0] sm:$0xff]
    %v12510 = vld [vmem:[%s12422 + $0x2b8] sm:$0xff]
    %v12511 = vld [vmem:[%s12422 + $0x2c0] sm:$0xff]
    %v12512 = vld [vmem:[%s12422 + $0x2c8] sm:$0xff]
    %v12513 = vld [vmem:[%s12422 + $0x2d0] sm:$0xff]
    %v12514 = vld [vmem:[%s12422 + $0x2d8] sm:$0xff]
    %v12515 = vld [vmem:[%s12422 + $0x2e0] sm:$0xff]
    %v12516 = vld [vmem:[%s12422 + $0x2e8] sm:$0xff]
    %v12517 = vld [vmem:[%s12422 + $0x2f0] sm:$0xff]
    %v12518 = vld [vmem:[%s12422 + $0x2f8] sm:$0xff]
    %v12519 = vld [vmem:[%s12422 + $0x300] sm:$0xff]
    %v12520 = vld [vmem:[%s12422 + $0x308] sm:$0xff]
    %v12521 = vld [vmem:[%s12422 + $0x310] sm:$0xff]
    %v12522 = vld [vmem:[%s12422 + $0x318] sm:$0xff]
    %v12523 = vld [vmem:[%s12422 + $0x320] sm:$0xff]
    %v12524 = vld [vmem:[%s12422 + $0x328] sm:$0xff]
    %v12525 = vld [vmem:[%s12422 + $0x330] sm:$0xff]
    %v12526 = vld [vmem:[%s12422 + $0x338] sm:$0xff]
    %v12527 = vld [vmem:[%s12422 + $0x340] sm:$0xff]
    %v12528 = vld [vmem:[%s12422 + $0x348] sm:$0xff]
    %v12529 = vld [vmem:[%s12422 + $0x350] sm:$0xff]
    %v12530 = vld [vmem:[%s12422 + $0x358] sm:$0xff]
    %v12531 = vld [vmem:[%s12422 + $0x360] sm:$0xff]
    %v12532 = vld [vmem:[%s12422 + $0x368] sm:$0xff]
    %v12533 = vld [vmem:[%s12422 + $0x370] sm:$0xff]
    %v12534 = vld [vmem:[%s12422 + $0x378] sm:$0xff]
    %v12535 = vld [vmem:[%s12422 + $0x380] sm:$0xff]
    %v12536 = vld [vmem:[%s12422 + $0x388] sm:$0xff]
    %v12537 = vld [vmem:[%s12422 + $0x390] sm:$0xff]
    %v12538 = vld [vmem:[%s12422 + $0x398] sm:$0xff]
    %v12539 = vld [vmem:[%s12422 + $0x3a0] sm:$0xff]
    %v12540 = vld [vmem:[%s12422 + $0x3a8] sm:$0xff]
    %v12541 = vld [vmem:[%s12422 + $0x3b0] sm:$0xff]
    %v12542 = vld [vmem:[%s12422 + $0x3b8] sm:$0xff]
    %v12543 = vld [vmem:[%s12422 + $0x3c0] sm:$0xff]
    %v12544 = vld [vmem:[%s12422 + $0x3c8] sm:$0xff]
    %v12545 = vld [vmem:[%s12422 + $0x3d0] sm:$0xff]
    %v12546 = vld [vmem:[%s12422 + $0x3d8] sm:$0xff]
    %v12547 = vld [vmem:[%s12422 + $0x3e0] sm:$0xff]
    %v12548 = vld [vmem:[%s12422 + $0x3e8] sm:$0xff]
    %v12549 = vld [vmem:[%s12422 + $0x3f0] sm:$0xff]
    %v12550 = vld [vmem:[%s12422 + $0x3f8] sm:$0xff]
    %v12551 = vld [vmem:[%s12422 + $0x400] sm:$0xff]
    %v12552 = vld [vmem:[%s12422 + $0x408] sm:$0xff]
    %v12553 = vld [vmem:[%s12422 + $0x410] sm:$0xff]
    %v12554 = vld [vmem:[%s12422 + $0x418] sm:$0xff]
    %v12555 = vld [vmem:[%s12422 + $0x420] sm:$0xff]
    %v12556 = vld [vmem:[%s12422 + $0x428] sm:$0xff]
    %v12557 = vld [vmem:[%s12422 + $0x430] sm:$0xff]
    %v12558 = vld [vmem:[%s12422 + $0x438] sm:$0xff]
    %v12559 = vld [vmem:[%s12422 + $0x440] sm:$0xff]
    %v12560 = vld [vmem:[%s12422 + $0x448] sm:$0xff]
    %v12561 = vld [vmem:[%s12422 + $0x450] sm:$0xff]
    %v12562 = vld [vmem:[%s12422 + $0x458] sm:$0xff]
    %v12563 = vld [vmem:[%s12422 + $0x460] sm:$0xff]
    %v12564 = vld [vmem:[%s12422 + $0x468] sm:$0xff]
    %v12565 = vld [vmem:[%s12422 + $0x470] sm:$0xff]
    %v12566 = vld [vmem:[%s12422 + $0x478] sm:$0xff]
    %v12711 = vunpack.c.l.b16 %v12423
    %v12712 = vunpack.c.h.b16 %v12423
    %v12713 = vunpack.c.l.b16 %v12424
    %v12714 = vunpack.c.h.b16 %v12424
    %v12715 = vunpack.c.l.b16 %v12425
    %v12716 = vunpack.c.h.b16 %v12425
    %v12717 = vunpack.c.l.b16 %v12426
    %v12718 = vunpack.c.h.b16 %v12426
    %v12719 = vunpack.c.l.b16 %v12427
    %v12720 = vunpack.c.h.b16 %v12427
    %v12721 = vunpack.c.l.b16 %v12428
    %v12722 = vunpack.c.h.b16 %v12428
    %v12723 = vunpack.c.l.b16 %v12429
    %v12724 = vunpack.c.h.b16 %v12429
    %v12725 = vunpack.c.l.b16 %v12430
    %v12726 = vunpack.c.h.b16 %v12430
    %v12727 = vunpack.c.l.b16 %v12431
    %v12728 = vunpack.c.h.b16 %v12431
    %v12729 = vunpack.c.l.b16 %v12432
    %v12730 = vunpack.c.h.b16 %v12432
    %v12731 = vunpack.c.l.b16 %v12433
    %v12732 = vunpack.c.h.b16 %v12433
    %v12733 = vunpack.c.l.b16 %v12434
    %v12734 = vunpack.c.h.b16 %v12434
    %v12735 = vunpack.c.l.b16 %v12435
    %v12736 = vunpack.c.h.b16 %v12435
    %v12737 = vunpack.c.l.b16 %v12436
    %v12738 = vunpack.c.h.b16 %v12436
    %v12739 = vunpack.c.l.b16 %v12437
    %v12740 = vunpack.c.h.b16 %v12437
    %v12741 = vunpack.c.l.b16 %v12438
    %v12742 = vunpack.c.h.b16 %v12438
    %v12743 = vunpack.c.l.b16 %v12439
    %v12744 = vunpack.c.h.b16 %v12439
    %v12745 = vunpack.c.l.b16 %v12440
    %v12746 = vunpack.c.h.b16 %v12440
    %v12747 = vunpack.c.l.b16 %v12441
    %v12748 = vunpack.c.h.b16 %v12441
    %v12749 = vunpack.c.l.b16 %v12442
    %v12750 = vunpack.c.h.b16 %v12442
    %v12751 = vunpack.c.l.b16 %v12443
    %v12752 = vunpack.c.h.b16 %v12443
    %v12753 = vunpack.c.l.b16 %v12444
    %v12754 = vunpack.c.h.b16 %v12444
    %v12755 = vunpack.c.l.b16 %v12445
    %v12756 = vunpack.c.h.b16 %v12445
    %v12757 = vunpack.c.l.b16 %v12446
    %v12758 = vunpack.c.h.b16 %v12446
    %v12759 = vunpack.c.l.b16 %v12447
    %v12760 = vunpack.c.h.b16 %v12447
    %v12761 = vunpack.c.l.b16 %v12448
    %v12762 = vunpack.c.h.b16 %v12448
    %v12763 = vunpack.c.l.b16 %v12449
    %v12764 = vunpack.c.h.b16 %v12449
    %v12765 = vunpack.c.l.b16 %v12450
    %v12766 = vunpack.c.h.b16 %v12450
    %v12767 = vunpack.c.l.b16 %v12451
    %v12768 = vunpack.c.h.b16 %v12451
    %v12769 = vunpack.c.l.b16 %v12452
    %v12770 = vunpack.c.h.b16 %v12452
    %v12771 = vunpack.c.l.b16 %v12453
    %v12772 = vunpack.c.h.b16 %v12453
    %v12773 = vunpack.c.l.b16 %v12454
    %v12774 = vunpack.c.h.b16 %v12454
    %v12775 = vunpack.c.l.b16 %v12455
    %v12776 = vunpack.c.h.b16 %v12455
    %v12777 = vunpack.c.l.b16 %v12456
    %v12778 = vunpack.c.h.b16 %v12456
    %v12779 = vunpack.c.l.b16 %v12457
    %v12780 = vunpack.c.h.b16 %v12457
    %v12781 = vunpack.c.l.b16 %v12458
    %v12782 = vunpack.c.h.b16 %v12458
    %v12783 = vunpack.c.l.b16 %v12459
    %v12784 = vunpack.c.h.b16 %v12459
    %v12785 = vunpack.c.l.b16 %v12460
    %v12786 = vunpack.c.h.b16 %v12460
    %v12787 = vunpack.c.l.b16 %v12461
    %v12788 = vunpack.c.h.b16 %v12461
    %v12789 = vunpack.c.l.b16 %v12462
    %v12790 = vunpack.c.h.b16 %v12462
    %v12791 = vunpack.c.l.b16 %v12463
    %v12792 = vunpack.c.h.b16 %v12463
    %v12793 = vunpack.c.l.b16 %v12464
    %v12794 = vunpack.c.h.b16 %v12464
    %v12795 = vunpack.c.l.b16 %v12465
    %v12796 = vunpack.c.h.b16 %v12465
    %v12797 = vunpack.c.l.b16 %v12466
    %v12798 = vunpack.c.h.b16 %v12466
    %v12799 = vunpack.c.l.b16 %v12467
    %v12800 = vunpack.c.h.b16 %v12467
    %v12801 = vunpack.c.l.b16 %v12468
    %v12802 = vunpack.c.h.b16 %v12468
    %v12803 = vunpack.c.l.b16 %v12469
    %v12804 = vunpack.c.h.b16 %v12469
    %v12805 = vunpack.c.l.b16 %v12470
    %v12806 = vunpack.c.h.b16 %v12470
    %v12807 = vunpack.c.l.b16 %v12471
    %v12808 = vunpack.c.h.b16 %v12471
    %v12809 = vunpack.c.l.b16 %v12472
    %v12810 = vunpack.c.h.b16 %v12472
    %v12811 = vunpack.c.l.b16 %v12473
    %v12812 = vunpack.c.h.b16 %v12473
    %v12813 = vunpack.c.l.b16 %v12474
    %v12814 = vunpack.c.h.b16 %v12474
    %v12815 = vunpack.c.l.b16 %v12475
    %v12816 = vunpack.c.h.b16 %v12475
    %v12817 = vunpack.c.l.b16 %v12476
    %v12818 = vunpack.c.h.b16 %v12476
    %v12819 = vunpack.c.l.b16 %v12477
    %v12820 = vunpack.c.h.b16 %v12477
    %v12821 = vunpack.c.l.b16 %v12478
    %v12822 = vunpack.c.h.b16 %v12478
    %v12823 = vunpack.c.l.b16 %v12479
    %v12824 = vunpack.c.h.b16 %v12479
    %v12825 = vunpack.c.l.b16 %v12480
    %v12826 = vunpack.c.h.b16 %v12480
    %v12827 = vunpack.c.l.b16 %v12481
    %v12828 = vunpack.c.h.b16 %v12481
    %v12829 = vunpack.c.l.b16 %v12482
    %v12830 = vunpack.c.h.b16 %v12482
    %v12831 = vunpack.c.l.b16 %v12483
    %v12832 = vunpack.c.h.b16 %v12483
    %v12833 = vunpack.c.l.b16 %v12484
    %v12834 = vunpack.c.h.b16 %v12484
    %v12835 = vunpack.c.l.b16 %v12485
    %v12836 = vunpack.c.h.b16 %v12485
    %v12837 = vunpack.c.l.b16 %v12486
    %v12838 = vunpack.c.h.b16 %v12486
    %v12839 = vunpack.c.l.b16 %v12487
    %v12840 = vunpack.c.h.b16 %v12487
    %v12841 = vunpack.c.l.b16 %v12488
    %v12842 = vunpack.c.h.b16 %v12488
    %v12843 = vunpack.c.l.b16 %v12489
    %v12844 = vunpack.c.h.b16 %v12489
    %v12845 = vunpack.c.l.b16 %v12490
    %v12846 = vunpack.c.h.b16 %v12490
    %v12847 = vunpack.c.l.b16 %v12491
    %v12848 = vunpack.c.h.b16 %v12491
    %v12849 = vunpack.c.l.b16 %v12492
    %v12850 = vunpack.c.h.b16 %v12492
    %v12851 = vunpack.c.l.b16 %v12493
    %v12852 = vunpack.c.h.b16 %v12493
    %v12853 = vunpack.c.l.b16 %v12494
    %v12854 = vunpack.c.h.b16 %v12494
    %v12855 = vunpack.c.l.b16 %v12495
    %v12856 = vunpack.c.h.b16 %v12495
    %v12857 = vunpack.c.l.b16 %v12496
    %v12858 = vunpack.c.h.b16 %v12496
    %v12859 = vunpack.c.l.b16 %v12497
    %v12860 = vunpack.c.h.b16 %v12497
    %v12861 = vunpack.c.l.b16 %v12498
    %v12862 = vunpack.c.h.b16 %v12498
    %v12863 = vunpack.c.l.b16 %v12499
    %v12864 = vunpack.c.h.b16 %v12499
    %v12865 = vunpack.c.l.b16 %v12500
    %v12866 = vunpack.c.h.b16 %v12500
    %v12867 = vunpack.c.l.b16 %v12501
    %v12868 = vunpack.c.h.b16 %v12501
    %v12869 = vunpack.c.l.b16 %v12502
    %v12870 = vunpack.c.h.b16 %v12502
    %v12871 = vunpack.c.l.b16 %v12503
    %v12872 = vunpack.c.h.b16 %v12503
    %v12873 = vunpack.c.l.b16 %v12504
    %v12874 = vunpack.c.h.b16 %v12504
    %v12875 = vunpack.c.l.b16 %v12505
    %v12876 = vunpack.c.h.b16 %v12505
    %v12877 = vunpack.c.l.b16 %v12506
    %v12878 = vunpack.c.h.b16 %v12506
    %v12879 = vunpack.c.l.b16 %v12507
    %v12880 = vunpack.c.h.b16 %v12507
    %v12881 = vunpack.c.l.b16 %v12508
    %v12882 = vunpack.c.h.b16 %v12508
    %v12883 = vunpack.c.l.b16 %v12509
    %v12884 = vunpack.c.h.b16 %v12509
    %v12885 = vunpack.c.l.b16 %v12510
    %v12886 = vunpack.c.h.b16 %v12510
    %v12887 = vunpack.c.l.b16 %v12511
    %v12888 = vunpack.c.h.b16 %v12511
    %v12889 = vunpack.c.l.b16 %v12512
    %v12890 = vunpack.c.h.b16 %v12512
    %v12891 = vunpack.c.l.b16 %v12513
    %v12892 = vunpack.c.h.b16 %v12513
    %v12893 = vunpack.c.l.b16 %v12514
    %v12894 = vunpack.c.h.b16 %v12514
    %v12895 = vunpack.c.l.b16 %v12515
    %v12896 = vunpack.c.h.b16 %v12515
    %v12897 = vunpack.c.l.b16 %v12516
    %v12898 = vunpack.c.h.b16 %v12516
    %v12899 = vunpack.c.l.b16 %v12517
    %v12900 = vunpack.c.h.b16 %v12517
    %v12901 = vunpack.c.l.b16 %v12518
    %v12902 = vunpack.c.h.b16 %v12518
    %v12903 = vunpack.c.l.b16 %v12519
    %v12904 = vunpack.c.h.b16 %v12519
    %v12905 = vunpack.c.l.b16 %v12520
    %v12906 = vunpack.c.h.b16 %v12520
    %v12907 = vunpack.c.l.b16 %v12521
    %v12908 = vunpack.c.h.b16 %v12521
    %v12909 = vunpack.c.l.b16 %v12522
    %v12910 = vunpack.c.h.b16 %v12522
    %v12911 = vunpack.c.l.b16 %v12523
    %v12912 = vunpack.c.h.b16 %v12523
    %v12913 = vunpack.c.l.b16 %v12524
    %v12914 = vunpack.c.h.b16 %v12524
    %v12915 = vunpack.c.l.b16 %v12525
    %v12916 = vunpack.c.h.b16 %v12525
    %v12917 = vunpack.c.l.b16 %v12526
    %v12918 = vunpack.c.h.b16 %v12526
    %v12919 = vunpack.c.l.b16 %v12527
    %v12920 = vunpack.c.h.b16 %v12527
    %v12921 = vunpack.c.l.b16 %v12528
    %v12922 = vunpack.c.h.b16 %v12528
    %v12923 = vunpack.c.l.b16 %v12529
    %v12924 = vunpack.c.h.b16 %v12529
    %v12925 = vunpack.c.l.b16 %v12530
    %v12926 = vunpack.c.h.b16 %v12530
    %v12927 = vunpack.c.l.b16 %v12531
    %v12928 = vunpack.c.h.b16 %v12531
    %v12929 = vunpack.c.l.b16 %v12532
    %v12930 = vunpack.c.h.b16 %v12532
    %v12931 = vunpack.c.l.b16 %v12533
    %v12932 = vunpack.c.h.b16 %v12533
    %v12933 = vunpack.c.l.b16 %v12534
    %v12934 = vunpack.c.h.b16 %v12534
    %v12935 = vunpack.c.l.b16 %v12535
    %v12936 = vunpack.c.h.b16 %v12535
    %v12937 = vunpack.c.l.b16 %v12536
    %v12938 = vunpack.c.h.b16 %v12536
    %v12939 = vunpack.c.l.b16 %v12537
    %v12940 = vunpack.c.h.b16 %v12537
    %v12941 = vunpack.c.l.b16 %v12538
    %v12942 = vunpack.c.h.b16 %v12538
    %v12943 = vunpack.c.l.b16 %v12539
    %v12944 = vunpack.c.h.b16 %v12539
    %v12945 = vunpack.c.l.b16 %v12540
    %v12946 = vunpack.c.h.b16 %v12540
    %v12947 = vunpack.c.l.b16 %v12541
    %v12948 = vunpack.c.h.b16 %v12541
    %v12949 = vunpack.c.l.b16 %v12542
    %v12950 = vunpack.c.h.b16 %v12542
    %v12951 = vunpack.c.l.b16 %v12543
    %v12952 = vunpack.c.h.b16 %v12543
    %v12953 = vunpack.c.l.b16 %v12544
    %v12954 = vunpack.c.h.b16 %v12544
    %v12955 = vunpack.c.l.b16 %v12545
    %v12956 = vunpack.c.h.b16 %v12545
    %v12957 = vunpack.c.l.b16 %v12546
    %v12958 = vunpack.c.h.b16 %v12546
    %v12959 = vunpack.c.l.b16 %v12547
    %v12960 = vunpack.c.h.b16 %v12547
    %v12961 = vunpack.c.l.b16 %v12548
    %v12962 = vunpack.c.h.b16 %v12548
    %v12963 = vunpack.c.l.b16 %v12549
    %v12964 = vunpack.c.h.b16 %v12549
    %v12965 = vunpack.c.l.b16 %v12550
    %v12966 = vunpack.c.h.b16 %v12550
    %v12967 = vunpack.c.l.b16 %v12551
    %v12968 = vunpack.c.h.b16 %v12551
    %v12969 = vunpack.c.l.b16 %v12552
    %v12970 = vunpack.c.h.b16 %v12552
    %v12971 = vunpack.c.l.b16 %v12553
    %v12972 = vunpack.c.h.b16 %v12553
    %v12973 = vunpack.c.l.b16 %v12554
    %v12974 = vunpack.c.h.b16 %v12554
    %v12975 = vunpack.c.l.b16 %v12555
    %v12976 = vunpack.c.h.b16 %v12555
    %v12977 = vunpack.c.l.b16 %v12556
    %v12978 = vunpack.c.h.b16 %v12556
    %v12979 = vunpack.c.l.b16 %v12557
    %v12980 = vunpack.c.h.b16 %v12557
    %v12981 = vunpack.c.l.b16 %v12558
    %v12982 = vunpack.c.h.b16 %v12558
    %v12983 = vunpack.c.l.b16 %v12559
    %v12984 = vunpack.c.h.b16 %v12559
    %v12985 = vunpack.c.l.b16 %v12560
    %v12986 = vunpack.c.h.b16 %v12560
    %v12987 = vunpack.c.l.b16 %v12561
    %v12988 = vunpack.c.h.b16 %v12561
    %v12989 = vunpack.c.l.b16 %v12562
    %v12990 = vunpack.c.h.b16 %v12562
    %v12991 = vunpack.c.l.b16 %v12563
    %v12992 = vunpack.c.h.b16 %v12563
    %v12993 = vunpack.c.l.b16 %v12564
    %v12994 = vunpack.c.h.b16 %v12564
    %v12995 = vunpack.c.l.b16 %v12565
    %v12996 = vunpack.c.h.b16 %v12565
    %v12997 = vunpack.c.l.b16 %v12566
    %v12998 = vunpack.c.h.b16 %v12566
    %v12999 = vpack.c.b16 %v12713, %v12711
    %v13000 = vpack.c.b16 %v12714, %v12712
    %v13001 = vpack.c.b16 %v12717, %v12715
    %v13002 = vpack.c.b16 %v12718, %v12716
    %v13003 = vpack.c.b16 %v12721, %v12719
    %v13004 = vpack.c.b16 %v12722, %v12720
    %v13005 = vpack.c.b16 %v12725, %v12723
    %v13006 = vpack.c.b16 %v12726, %v12724
    %v13007 = vpack.c.b16 %v12729, %v12727
    %v13008 = vpack.c.b16 %v12730, %v12728
    %v13009 = vpack.c.b16 %v12733, %v12731
    %v13010 = vpack.c.b16 %v12734, %v12732
    %v13011 = vpack.c.b16 %v12737, %v12735
    %v13012 = vpack.c.b16 %v12738, %v12736
    %v13013 = vpack.c.b16 %v12741, %v12739
    %v13014 = vpack.c.b16 %v12742, %v12740
    %v13015 = vpack.c.b16 %v12745, %v12743
    %v13016 = vpack.c.b16 %v12746, %v12744
    %v13017 = vpack.c.b16 %v12749, %v12747
    %v13018 = vpack.c.b16 %v12750, %v12748
    %v13019 = vpack.c.b16 %v12753, %v12751
    %v13020 = vpack.c.b16 %v12754, %v12752
    %v13021 = vpack.c.b16 %v12757, %v12755
    %v13022 = vpack.c.b16 %v12758, %v12756
    %v13023 = vpack.c.b16 %v12761, %v12759
    %v13024 = vpack.c.b16 %v12762, %v12760
    %v13025 = vpack.c.b16 %v12765, %v12763
    %v13026 = vpack.c.b16 %v12766, %v12764
    %v13027 = vpack.c.b16 %v12769, %v12767
    %v13028 = vpack.c.b16 %v12770, %v12768
    %v13029 = vpack.c.b16 %v12773, %v12771
    %v13030 = vpack.c.b16 %v12774, %v12772
    %v13031 = vpack.c.b16 %v12777, %v12775
    %v13032 = vpack.c.b16 %v12778, %v12776
    %v13033 = vpack.c.b16 %v12781, %v12779
    %v13034 = vpack.c.b16 %v12782, %v12780
    %v13035 = vpack.c.b16 %v12785, %v12783
    %v13036 = vpack.c.b16 %v12786, %v12784
    %v13037 = vpack.c.b16 %v12789, %v12787
    %v13038 = vpack.c.b16 %v12790, %v12788
    %v13039 = vpack.c.b16 %v12793, %v12791
    %v13040 = vpack.c.b16 %v12794, %v12792
    %v13041 = vpack.c.b16 %v12797, %v12795
    %v13042 = vpack.c.b16 %v12798, %v12796
    %v13043 = vpack.c.b16 %v12801, %v12799
    %v13044 = vpack.c.b16 %v12802, %v12800
    %v13045 = vpack.c.b16 %v12805, %v12803
    %v13046 = vpack.c.b16 %v12806, %v12804
    %v13047 = vpack.c.b16 %v12809, %v12807
    %v13048 = vpack.c.b16 %v12810, %v12808
    %v13049 = vpack.c.b16 %v12813, %v12811
    %v13050 = vpack.c.b16 %v12814, %v12812
    %v13051 = vpack.c.b16 %v12817, %v12815
    %v13052 = vpack.c.b16 %v12818, %v12816
    %v13053 = vpack.c.b16 %v12821, %v12819
    %v13054 = vpack.c.b16 %v12822, %v12820
    %v13055 = vpack.c.b16 %v12825, %v12823
    %v13056 = vpack.c.b16 %v12826, %v12824
    %v13057 = vpack.c.b16 %v12829, %v12827
    %v13058 = vpack.c.b16 %v12830, %v12828
    %v13059 = vpack.c.b16 %v12833, %v12831
    %v13060 = vpack.c.b16 %v12834, %v12832
    %v13061 = vpack.c.b16 %v12837, %v12835
    %v13062 = vpack.c.b16 %v12838, %v12836
    %v13063 = vpack.c.b16 %v12841, %v12839
    %v13064 = vpack.c.b16 %v12842, %v12840
    %v13065 = vpack.c.b16 %v12845, %v12843
    %v13066 = vpack.c.b16 %v12846, %v12844
    %v13067 = vpack.c.b16 %v12849, %v12847
    %v13068 = vpack.c.b16 %v12850, %v12848
    %v13069 = vpack.c.b16 %v12853, %v12851
    %v13070 = vpack.c.b16 %v12854, %v12852
    %v13071 = vpack.c.b16 %v12857, %v12855
    %v13072 = vpack.c.b16 %v12858, %v12856
    %v13073 = vpack.c.b16 %v12861, %v12859
    %v13074 = vpack.c.b16 %v12862, %v12860
    %v13075 = vpack.c.b16 %v12865, %v12863
    %v13076 = vpack.c.b16 %v12866, %v12864
    %v13077 = vpack.c.b16 %v12869, %v12867
    %v13078 = vpack.c.b16 %v12870, %v12868
    %v13079 = vpack.c.b16 %v12873, %v12871
    %v13080 = vpack.c.b16 %v12874, %v12872
    %v13081 = vpack.c.b16 %v12877, %v12875
    %v13082 = vpack.c.b16 %v12878, %v12876
    %v13083 = vpack.c.b16 %v12881, %v12879
    %v13084 = vpack.c.b16 %v12882, %v12880
    %v13085 = vpack.c.b16 %v12885, %v12883
    %v13086 = vpack.c.b16 %v12886, %v12884
    %v13087 = vpack.c.b16 %v12889, %v12887
    %v13088 = vpack.c.b16 %v12890, %v12888
    %v13089 = vpack.c.b16 %v12893, %v12891
    %v13090 = vpack.c.b16 %v12894, %v12892
    %v13091 = vpack.c.b16 %v12897, %v12895
    %v13092 = vpack.c.b16 %v12898, %v12896
    %v13093 = vpack.c.b16 %v12901, %v12899
    %v13094 = vpack.c.b16 %v12902, %v12900
    %v13095 = vpack.c.b16 %v12905, %v12903
    %v13096 = vpack.c.b16 %v12906, %v12904
    %v13097 = vpack.c.b16 %v12909, %v12907
    %v13098 = vpack.c.b16 %v12910, %v12908
    %v13099 = vpack.c.b16 %v12913, %v12911
    %v13100 = vpack.c.b16 %v12914, %v12912
    %v13101 = vpack.c.b16 %v12917, %v12915
    %v13102 = vpack.c.b16 %v12918, %v12916
    %v13103 = vpack.c.b16 %v12921, %v12919
    %v13104 = vpack.c.b16 %v12922, %v12920
    %v13105 = vpack.c.b16 %v12925, %v12923
    %v13106 = vpack.c.b16 %v12926, %v12924
    %v13107 = vpack.c.b16 %v12929, %v12927
    %v13108 = vpack.c.b16 %v12930, %v12928
    %v13109 = vpack.c.b16 %v12933, %v12931
    %v13110 = vpack.c.b16 %v12934, %v12932
    %v13111 = vpack.c.b16 %v12937, %v12935
    %v13112 = vpack.c.b16 %v12938, %v12936
    %v13113 = vpack.c.b16 %v12941, %v12939
    %v13114 = vpack.c.b16 %v12942, %v12940
    %v13115 = vpack.c.b16 %v12945, %v12943
    %v13116 = vpack.c.b16 %v12946, %v12944
    %v13117 = vpack.c.b16 %v12949, %v12947
    %v13118 = vpack.c.b16 %v12950, %v12948
    %v13119 = vpack.c.b16 %v12953, %v12951
    %v13120 = vpack.c.b16 %v12954, %v12952
    %v13121 = vpack.c.b16 %v12957, %v12955
    %v13122 = vpack.c.b16 %v12958, %v12956
    %v13123 = vpack.c.b16 %v12961, %v12959
    %v13124 = vpack.c.b16 %v12962, %v12960
    %v13125 = vpack.c.b16 %v12965, %v12963
    %v13126 = vpack.c.b16 %v12966, %v12964
    %v13127 = vpack.c.b16 %v12969, %v12967
    %v13128 = vpack.c.b16 %v12970, %v12968
    %v13129 = vpack.c.b16 %v12973, %v12971
    %v13130 = vpack.c.b16 %v12974, %v12972
    %v13131 = vpack.c.b16 %v12977, %v12975
    %v13132 = vpack.c.b16 %v12978, %v12976
    %v13133 = vpack.c.b16 %v12981, %v12979
    %v13134 = vpack.c.b16 %v12982, %v12980
    %v13135 = vpack.c.b16 %v12985, %v12983
    %v13136 = vpack.c.b16 %v12986, %v12984
    %v13137 = vpack.c.b16 %v12989, %v12987
    %v13138 = vpack.c.b16 %v12990, %v12988
    %v13139 = vpack.c.b16 %v12993, %v12991
    %v13140 = vpack.c.b16 %v12994, %v12992
    %v13141 = vpack.c.b16 %v12997, %v12995
    %v13142 = vpack.c.b16 %v12998, %v12996
    %13287 = vmatprep.subr.bf16.mxu0 %v13014
    %13288 = vmatpush1.bf16.msra.mxu0 %v13013
    %13289 = vmatprep.subr.bf16.mxu0 %v13012
    %13290 = vmatpush1.bf16.msra.mxu0 %v13011
    %13291 = vmatprep.subr.bf16.mxu0 %v13010
    %13292 = vmatpush1.bf16.msra.mxu0 %v13009
    %13293 = vmatprep.subr.bf16.mxu0 %v13008
    %13294 = vmatpush1.bf16.msra.mxu0 %v13007
    %13295 = vmatprep.subr.bf16.mxu0 %v13006
    %13296 = vmatpush1.bf16.msra.mxu0 %v13005
    %13297 = vmatprep.subr.bf16.mxu0 %v13004
    %13298 = vmatpush1.bf16.msra.mxu0 %v13003
    %13299 = vmatprep.subr.bf16.mxu0 %v13002
    %13300 = vmatpush1.bf16.msra.mxu0 %v13001
    %13301 = vmatprep.subr.bf16.mxu0 %v13000
    %13302 = vmatpush1.bf16.msra.mxu0 %v12999
    %13303 = vmatprep.subr.bf16.mxu0 %v13030
    %13304 = vmatpush2.bf16.msra.mxu0 %v13029
    %13305 = vmatprep.subr.bf16.mxu0 %v13028
    %13306 = vmatpush2.bf16.msra.mxu0 %v13027
    %13307 = vmatprep.subr.bf16.mxu0 %v13026
    %13308 = vmatpush2.bf16.msra.mxu0 %v13025
    %13309 = vmatprep.subr.bf16.mxu0 %v13024
    %13310 = vmatpush2.bf16.msra.mxu0 %v13023
    %13311 = vmatprep.subr.bf16.mxu0 %v13022
    %13312 = vmatpush2.bf16.msra.mxu0 %v13021
    %13313 = vmatprep.subr.bf16.mxu0 %v13020
    %13314 = vmatpush2.bf16.msra.mxu0 %v13019
    %13315 = vmatprep.subr.bf16.mxu0 %v13018
    %13316 = vmatpush2.bf16.msra.mxu0 %v13017
    %13317 = vmatprep.subr.bf16.mxu0 %v13016
    %13318 = vmatpush2.bf16.msra.mxu0 %v13015
    %13319 = vmatprep.mubr.bf16.mxu0 %v9318
    %13320 = vmatmul.mubr.bf16.gmra.mxu0 %v9304
    %v13321 = vpop.f32.mrf.mxu0
    %v13322 = vadd.f32 0.0, %v13321
    %v13323 = vpop.f32.mrf.mxu0
    %v13324 = vadd.f32 0.0, %v13323
    %v13325 = vpop.f32.mrf.mxu0
    %v13326 = vpop.f32.mrf.mxu0
    %13327 = vdwg.mxu0
    %13328 = vmatprep.subr.bf16.mxu0 %v13046
    %13329 = vmatpush1.bf16.msra.mxu0 %v13045
    %13330 = vmatprep.subr.bf16.mxu0 %v13044
    %13331 = vmatpush1.bf16.msra.mxu0 %v13043
    %13332 = vmatprep.subr.bf16.mxu0 %v13042
    %13333 = vmatpush1.bf16.msra.mxu0 %v13041
    %13334 = vmatprep.subr.bf16.mxu0 %v13040
    %13335 = vmatpush1.bf16.msra.mxu0 %v13039
    %13336 = vmatprep.subr.bf16.mxu0 %v13038
    %13337 = vmatpush1.bf16.msra.mxu0 %v13037
    %13338 = vmatprep.subr.bf16.mxu0 %v13036
    %13339 = vmatpush1.bf16.msra.mxu0 %v13035
    %13340 = vmatprep.subr.bf16.mxu0 %v13034
    %13341 = vmatpush1.bf16.msra.mxu0 %v13033
    %13342 = vmatprep.subr.bf16.mxu0 %v13032
    %13343 = vmatpush1.bf16.msra.mxu0 %v13031
    %13344 = vmatprep.subr.bf16.mxu0 %v13062
    %13345 = vmatpush2.bf16.msra.mxu0 %v13061
    %13346 = vmatprep.subr.bf16.mxu0 %v13060
    %13347 = vmatpush2.bf16.msra.mxu0 %v13059
    %13348 = vmatprep.subr.bf16.mxu0 %v13058
    %13349 = vmatpush2.bf16.msra.mxu0 %v13057
    %13350 = vmatprep.subr.bf16.mxu0 %v13056
    %13351 = vmatpush2.bf16.msra.mxu0 %v13055
    %13352 = vmatprep.subr.bf16.mxu0 %v13054
    %13353 = vmatpush2.bf16.msra.mxu0 %v13053
    %13354 = vmatprep.subr.bf16.mxu0 %v13052
    %13355 = vmatpush2.bf16.msra.mxu0 %v13051
    %13356 = vmatprep.subr.bf16.mxu0 %v13050
    %13357 = vmatpush2.bf16.msra.mxu0 %v13049
    %13358 = vmatprep.subr.bf16.mxu0 %v13048
    %13359 = vmatpush2.bf16.msra.mxu0 %v13047
    %13360 = vmatprep.mubr.bf16.mxu0 %v9328
    %13361 = vmatmul.mubr.bf16.gmra.mxu0 %v9326
    %v13362 = vpop.f32.mrf.mxu0
    %v13363 = vadd.f32 %v13322, %v13362
    %v13364 = vpop.f32.mrf.mxu0
    %v13365 = vadd.f32 %v13324, %v13364
    %v13366 = vpop.f32.mrf.mxu0
    %v13367 = vpop.f32.mrf.mxu0
    %13368 = vdwg.mxu0
    %13369 = vmatprep.subr.bf16.mxu0 %v13078
    %13370 = vmatpush1.bf16.msra.mxu0 %v13077
    %13371 = vmatprep.subr.bf16.mxu0 %v13076
    %13372 = vmatpush1.bf16.msra.mxu0 %v13075
    %13373 = vmatprep.subr.bf16.mxu0 %v13074
    %13374 = vmatpush1.bf16.msra.mxu0 %v13073
    %13375 = vmatprep.subr.bf16.mxu0 %v13072
    %13376 = vmatpush1.bf16.msra.mxu0 %v13071
    %13377 = vmatprep.subr.bf16.mxu0 %v13070
    %13378 = vmatpush1.bf16.msra.mxu0 %v13069
    %13379 = vmatprep.subr.bf16.mxu0 %v13068
    %13380 = vmatpush1.bf16.msra.mxu0 %v13067
    %13381 = vmatprep.subr.bf16.mxu0 %v13066
    %13382 = vmatpush1.bf16.msra.mxu0 %v13065
    %13383 = vmatprep.subr.bf16.mxu0 %v13064
    %13384 = vmatpush1.bf16.msra.mxu0 %v13063
    %13385 = vmatprep.subr.bf16.mxu0 %v13094
    %13386 = vmatpush2.bf16.msra.mxu0 %v13093
    %13387 = vmatprep.subr.bf16.mxu0 %v13092
    %13388 = vmatpush2.bf16.msra.mxu0 %v13091
    %13389 = vmatprep.subr.bf16.mxu0 %v13090
    %13390 = vmatpush2.bf16.msra.mxu0 %v13089
    %13391 = vmatprep.subr.bf16.mxu0 %v13088
    %13392 = vmatpush2.bf16.msra.mxu0 %v13087
    %13393 = vmatprep.subr.bf16.mxu0 %v13086
    %13394 = vmatpush2.bf16.msra.mxu0 %v13085
    %13395 = vmatprep.subr.bf16.mxu0 %v13084
    %13396 = vmatpush2.bf16.msra.mxu0 %v13083
    %13397 = vmatprep.subr.bf16.mxu0 %v13082
    %13398 = vmatpush2.bf16.msra.mxu0 %v13081
    %13399 = vmatprep.subr.bf16.mxu0 %v13080
    %13400 = vmatpush2.bf16.msra.mxu0 %v13079
    %13401 = vmatprep.mubr.bf16.mxu0 %v9325
    %13402 = vmatmul.mubr.bf16.gmra.mxu0 %v9311
    %v13403 = vpop.f32.mrf.mxu0
    %v13404 = vadd.f32 %v13363, %v13403
    %v13405 = vpop.f32.mrf.mxu0
    %v13406 = vadd.f32 %v13365, %v13405
    %v13407 = vpop.f32.mrf.mxu0
    %v13408 = vpop.f32.mrf.mxu0
    %13409 = vdwg.mxu0
    %13410 = vmatprep.subr.bf16.mxu0 %v13110
    %13411 = vmatpush1.bf16.msra.mxu0 %v13109
    %13412 = vmatprep.subr.bf16.mxu0 %v13108
    %13413 = vmatpush1.bf16.msra.mxu0 %v13107
    %13414 = vmatprep.subr.bf16.mxu0 %v13106
    %13415 = vmatpush1.bf16.msra.mxu0 %v13105
    %13416 = vmatprep.subr.bf16.mxu0 %v13104
    %13417 = vmatpush1.bf16.msra.mxu0 %v13103
    %13418 = vmatprep.subr.bf16.mxu0 %v13102
    %13419 = vmatpush1.bf16.msra.mxu0 %v13101
    %13420 = vmatprep.subr.bf16.mxu0 %v13100
    %13421 = vmatpush1.bf16.msra.mxu0 %v13099
    %13422 = vmatprep.subr.bf16.mxu0 %v13098
    %13423 = vmatpush1.bf16.msra.mxu0 %v13097
    %13424 = vmatprep.subr.bf16.mxu0 %v13096
    %13425 = vmatpush1.bf16.msra.mxu0 %v13095
    %13426 = vmatprep.subr.bf16.mxu0 %v13126
    %13427 = vmatpush2.bf16.msra.mxu0 %v13125
    %13428 = vmatprep.subr.bf16.mxu0 %v13124
    %13429 = vmatpush2.bf16.msra.mxu0 %v13123
    %13430 = vmatprep.subr.bf16.mxu0 %v13122
    %13431 = vmatpush2.bf16.msra.mxu0 %v13121
    %13432 = vmatprep.subr.bf16.mxu0 %v13120
    %13433 = vmatpush2.bf16.msra.mxu0 %v13119
    %13434 = vmatprep.subr.bf16.mxu0 %v13118
    %13435 = vmatpush2.bf16.msra.mxu0 %v13117
    %13436 = vmatprep.subr.bf16.mxu0 %v13116
    %13437 = vmatpush2.bf16.msra.mxu0 %v13115
    %13438 = vmatprep.subr.bf16.mxu0 %v13114
    %13439 = vmatpush2.bf16.msra.mxu0 %v13113
    %13440 = vmatprep.subr.bf16.mxu0 %v13112
    %13441 = vmatpush2.bf16.msra.mxu0 %v13111
    %13442 = vmatprep.mubr.bf16.mxu0 %v9329
    %13443 = vmatmul.mubr.bf16.gmra.mxu0 %v9327
    %v13444 = vpop.f32.mrf.mxu0
    %v13445 = vadd.f32 %v13404, %v13444
    %v13446 = vpop.f32.mrf.mxu0
    %v13447 = vadd.f32 %v13406, %v13446
    %v13448 = vpop.f32.mrf.mxu0
    %v13449 = vpop.f32.mrf.mxu0
    %13450 = vdwg.mxu0
    %13451 = vmatprep.subr.bf16.mxu0 %v13142
    %13452 = vmatpush1.bf16.msra.mxu0 %v13141
    %13453 = vmatprep.subr.bf16.mxu0 %v13140
    %13454 = vmatpush1.bf16.msra.mxu0 %v13139
    %13455 = vmatprep.subr.bf16.mxu0 %v13138
    %13456 = vmatpush1.bf16.msra.mxu0 %v13137
    %13457 = vmatprep.subr.bf16.mxu0 %v13136
    %13458 = vmatpush1.bf16.msra.mxu0 %v13135
    %13459 = vmatprep.subr.bf16.mxu0 %v13134
    %13460 = vmatpush1.bf16.msra.mxu0 %v13133
    %13461 = vmatprep.subr.bf16.mxu0 %v13132
    %13462 = vmatpush1.bf16.msra.mxu0 %v13131
    %13463 = vmatprep.subr.bf16.mxu0 %v13130
    %13464 = vmatpush1.bf16.msra.mxu0 %v13129
    %13465 = vmatprep.subr.bf16.mxu0 %v13128
    %13466 = vmatpush1.bf16.msra.mxu0 %v13127
    %13467 = vmatprep.subr.bf16.mxu0 0
    %13468 = vmatpush2.bf16.msra.mxu0 0
    %13469 = vmatprep.subr.bf16.mxu0 0
    %13470 = vmatpush2.bf16.msra.mxu0 0
    %13471 = vmatprep.subr.bf16.mxu0 0
    %13472 = vmatpush2.bf16.msra.mxu0 0
    %13473 = vmatprep.subr.bf16.mxu0 0
    %13474 = vmatpush2.bf16.msra.mxu0 0
    %13475 = vmatprep.subr.bf16.mxu0 0
    %13476 = vmatpush2.bf16.msra.mxu0 0
    %13477 = vmatprep.subr.bf16.mxu0 0
    %13478 = vmatpush2.bf16.msra.mxu0 0
    %13479 = vmatprep.subr.bf16.mxu0 0
    %13480 = vmatpush2.bf16.msra.mxu0 0
    %13481 = vmatprep.subr.bf16.mxu0 0
    %13482 = vmatpush2.bf16.msra.mxu0 0
    %13483 = vmatprep.mubr.bf16.mxu0 0
    %13484 = vmatmul.mubr.bf16.gmra.mxu0 %v9343
    %v13485 = vpop.f32.mrf.mxu0
    %v13486 = vadd.f32 %v13445, %v13485
    %v13487 = vpop.f32.mrf.mxu0
    %v13488 = vadd.f32 %v13447, %v13487
    %v13489 = vpop.f32.mrf.mxu0
    %v13490 = vpop.f32.mrf.mxu0
    %13491 = vdwg.mxu0
    %v13492 = vmax.f32 %v12420, %v13486
    %v13493 = vmax.f32 %v12421, %v13488
    %v13494 = vld [vmem:[#allocation10] sm:$0x3]
    %v13496 = vlaneseq
    %v13497 = vshrl.u32 %v13496, 7
    %v13498 = vsub.s32 0, %v13497
    %v13499 = vrot.slane %v13494, %v13498
    %v13500 = vlaneseq
    %v13501 = vshrl.u32 %v13500, 7
    %v13502 = vsub.s32 1, %v13501
    %v13503 = vrot.slane %v13494, %v13502
    %v13506 = vadd.f32 %v13492, %v13499
    %v13507 = vadd.f32 %v13493, %v13503
    %v13508 = vmax.f32 %v13506, 0.0
    %v13509 = vmax.f32 %v13507, 0.0
    %v13510 = vpack.c.bf16 %v13508, %v13508
    %v13511 = vpack.c.bf16 %v13509, %v13509
    %v13514 = vcombine.low %v13510, %v13511
    %v13516 = vunpack.c.l.s4 1966171168
    %v13517 = vunpack.c.0.s8 %v13516
    %v13518 = vlaneseq
    %v13519 = vshrl.u32 %v13518, 7
    %v13520 = vsub.s32 %v13517, %v13519
    %v13521 = vrot.slane %v13514, %v13520
    %v13523 = vunpack.c.l.s4 1966171168
    %v13524 = vunpack.c.0.s8 %v13523
    %v13525 = vlaneseq
    %v13526 = vshrl.u32 %v13525, 7
    %v13527 = vsub.s32 %v13524, %v13526
    %v13528 = vrot.slane %v13521, %v13527
    %13530 = vst [vmem:[#allocation3] sm:$0x3] %v13528
    %v13531 = vld [vmem:[#allocation3] sm:$0x3]
    %v13532 = vld [vmem:[#allocation12] sm:$0xf]
    %v13533 = vld [vmem:[#allocation12 + $0x4] sm:$0xf]
    %v13534 = vld [vmem:[#allocation12 + $0x8] sm:$0xf]
    %v13535 = vld [vmem:[#allocation12 + $0xc] sm:$0xf]
    %v13536 = vld [vmem:[#allocation12 + $0x10] sm:$0xf]
    %v13537 = vld [vmem:[#allocation12 + $0x14] sm:$0xf]
    %v13538 = vld [vmem:[#allocation12 + $0x18] sm:$0xf]
    %v13539 = vld [vmem:[#allocation12 + $0x1c] sm:$0xf]
    %v13540 = vld [vmem:[#allocation12 + $0x20] sm:$0xf]
    %v13541 = vld [vmem:[#allocation12 + $0x24] sm:$0xf]
    %v13542 = vld [vmem:[#allocation12 + $0x28] sm:$0xf]
    %v13543 = vld [vmem:[#allocation12 + $0x2c] sm:$0xf]
    %v13544 = vld [vmem:[#allocation12 + $0x30] sm:$0xf]
    %v13545 = vld [vmem:[#allocation12 + $0x34] sm:$0xf]
    %v13546 = vld [vmem:[#allocation12 + $0x38] sm:$0xf]
    %v13547 = vld [vmem:[#allocation12 + $0x3c] sm:$0xf]
    %v13548 = vld [vmem:[#allocation12 + $0x40] sm:$0xf]
    %v13549 = vld [vmem:[#allocation12 + $0x44] sm:$0xf]
    %v13550 = vld [vmem:[#allocation12 + $0x48] sm:$0xf]
    %v13551 = vld [vmem:[#allocation12 + $0x4c] sm:$0xf]
    %v13552 = vld [vmem:[#allocation12 + $0x50] sm:$0xf]
    %v13553 = vld [vmem:[#allocation12 + $0x54] sm:$0xf]
    %v13554 = vld [vmem:[#allocation12 + $0x58] sm:$0xf]
    %v13555 = vld [vmem:[#allocation12 + $0x5c] sm:$0xf]
    %v13556 = vld [vmem:[#allocation12 + $0x60] sm:$0xf]
    %v13557 = vld [vmem:[#allocation12 + $0x64] sm:$0xf]
    %v13558 = vld [vmem:[#allocation12 + $0x68] sm:$0xf]
    %v13559 = vld [vmem:[#allocation12 + $0x6c] sm:$0xf]
    %v13560 = vld [vmem:[#allocation12 + $0x70] sm:$0xf]
    %v13561 = vld [vmem:[#allocation12 + $0x74] sm:$0xf]
    %v13562 = vld [vmem:[#allocation12 + $0x78] sm:$0xf]
    %v13563 = vld [vmem:[#allocation12 + $0x7c] sm:$0xf]
    %v13564 = vld [vmem:[#allocation13] sm:$0x1]
    %v13566 = vlaneseq
    %v13567 = vshrl.u32 %v13566, 7
    %v13568 = vsub.s32 0, %v13567
    %v13569 = vrot.slane %v13564, %v13568
    %v13573 = vunpack.c.l.s4 1966171168
    %v13574 = vunpack.c.0.s8 %v13573
    %v13575 = vlaneseq
    %v13576 = vshrl.u32 %v13575, 7
    %v13577 = vsub.s32 %v13574, %v13576
    %v13578 = vrot.slane %v13531, %v13577
    %v13579 = vcombine.high %v13578, %v13578
    %v13581 = vunpack.c.l.s4 1966171168
    %v13582 = vunpack.c.0.s8 %v13581
    %v13583 = vlaneseq
    %v13584 = vshrl.u32 %v13583, 7
    %v13585 = vsub.s32 %v13582, %v13584
    %v13586 = vrot.slane %v13578, %v13585
    %v13588 = vunpack.c.l.s4 1966171168
    %v13589 = vunpack.c.0.s8 %v13588
    %v13590 = vlaneseq
    %v13591 = vshrl.u32 %v13590, 7
    %v13592 = vsub.s32 %v13589, %v13591
    %v13593 = vrot.slane %v13579, %v13592
    %v13628 = vunpack.c.l.b16 %v13532
    %v13629 = vunpack.c.l.b16 %v13533
    %v13630 = vunpack.c.l.b16 %v13534
    %v13631 = vunpack.c.l.b16 %v13535
    %v13632 = vunpack.c.l.b16 %v13536
    %v13633 = vunpack.c.l.b16 %v13537
    %v13634 = vunpack.c.l.b16 %v13538
    %v13635 = vunpack.c.l.b16 %v13539
    %v13636 = vunpack.c.l.b16 %v13540
    %v13637 = vunpack.c.l.b16 %v13541
    %v13638 = vunpack.c.l.b16 %v13542
    %v13639 = vunpack.c.l.b16 %v13543
    %v13640 = vunpack.c.l.b16 %v13544
    %v13641 = vunpack.c.l.b16 %v13545
    %v13642 = vunpack.c.l.b16 %v13546
    %v13643 = vunpack.c.l.b16 %v13547
    %v13644 = vunpack.c.l.b16 %v13548
    %v13645 = vunpack.c.l.b16 %v13549
    %v13646 = vunpack.c.l.b16 %v13550
    %v13647 = vunpack.c.l.b16 %v13551
    %v13648 = vunpack.c.l.b16 %v13552
    %v13649 = vunpack.c.l.b16 %v13553
    %v13650 = vunpack.c.l.b16 %v13554
    %v13651 = vunpack.c.l.b16 %v13555
    %v13652 = vunpack.c.l.b16 %v13556
    %v13653 = vunpack.c.l.b16 %v13557
    %v13654 = vunpack.c.l.b16 %v13558
    %v13655 = vunpack.c.l.b16 %v13559
    %v13656 = vunpack.c.l.b16 %v13560
    %v13657 = vunpack.c.l.b16 %v13561
    %v13658 = vunpack.c.l.b16 %v13562
    %v13659 = vunpack.c.l.b16 %v13563
    %v13660 = vpack.c.b16 %v13629, %v13628
    %v13661 = vpack.c.b16 %v13631, %v13630
    %v13662 = vpack.c.b16 %v13633, %v13632
    %v13663 = vpack.c.b16 %v13635, %v13634
    %v13664 = vpack.c.b16 %v13637, %v13636
    %v13665 = vpack.c.b16 %v13639, %v13638
    %v13666 = vpack.c.b16 %v13641, %v13640
    %v13667 = vpack.c.b16 %v13643, %v13642
    %v13668 = vpack.c.b16 %v13645, %v13644
    %v13669 = vpack.c.b16 %v13647, %v13646
    %v13670 = vpack.c.b16 %v13649, %v13648
    %v13671 = vpack.c.b16 %v13651, %v13650
    %v13672 = vpack.c.b16 %v13653, %v13652
    %v13673 = vpack.c.b16 %v13655, %v13654
    %v13674 = vpack.c.b16 %v13657, %v13656
    %v13675 = vpack.c.b16 %v13659, %v13658
    %13692 = vmatprep.subr.bf16.mxu0 0
    %13693 = vmatpush1.bf16.msra.mxu0 %v13667
    %13694 = vmatprep.subr.bf16.mxu0 0
    %13695 = vmatpush1.bf16.msra.mxu0 %v13666
    %13696 = vmatprep.subr.bf16.mxu0 0
    %13697 = vmatpush1.bf16.msra.mxu0 %v13665
    %13698 = vmatprep.subr.bf16.mxu0 0
    %13699 = vmatpush1.bf16.msra.mxu0 %v13664
    %13700 = vmatprep.subr.bf16.mxu0 0
    %13701 = vmatpush1.bf16.msra.mxu0 %v13663
    %13702 = vmatprep.subr.bf16.mxu0 0
    %13703 = vmatpush1.bf16.msra.mxu0 %v13662
    %13704 = vmatprep.subr.bf16.mxu0 0
    %13705 = vmatpush1.bf16.msra.mxu0 %v13661
    %13706 = vmatprep.subr.bf16.mxu0 0
    %13707 = vmatpush1.bf16.msra.mxu0 %v13660
    %13708 = vmatprep.subr.bf16.mxu0 0
    %13709 = vmatpush2.bf16.msra.mxu0 %v13675
    %13710 = vmatprep.subr.bf16.mxu0 0
    %13711 = vmatpush2.bf16.msra.mxu0 %v13674
    %13712 = vmatprep.subr.bf16.mxu0 0
    %13713 = vmatpush2.bf16.msra.mxu0 %v13673
    %13714 = vmatprep.subr.bf16.mxu0 0
    %13715 = vmatpush2.bf16.msra.mxu0 %v13672
    %13716 = vmatprep.subr.bf16.mxu0 0
    %13717 = vmatpush2.bf16.msra.mxu0 %v13671
    %13718 = vmatprep.subr.bf16.mxu0 0
    %13719 = vmatpush2.bf16.msra.mxu0 %v13670
    %13720 = vmatprep.subr.bf16.mxu0 0
    %13721 = vmatpush2.bf16.msra.mxu0 %v13669
    %13722 = vmatprep.subr.bf16.mxu0 0
    %13723 = vmatpush2.bf16.msra.mxu0 %v13668
    %13724 = vmatprep.mubr.bf16.mxu0 %v13593
    %13725 = vmatmul.mubr.bf16.gmra.mxu0 %v13586
    %v13726 = vpop.f32.mrf.mxu0
    %v13727 = vadd.f32 %v13569, %v13726
    %v13728 = vpop.f32.mrf.mxu0
    %v13729 = vpop.f32.mrf.mxu0
    %v13730 = vpop.f32.mrf.mxu0
    %13731 = vdwg.mxu0
    %v13732 = vmax.f32 %v13727, 0.0
    %v13733 = vpack.c.bf16 %v13732, %v13732
    %v13734 = vld [vmem:[%s7] sm:$0xf]
    %v13735 = vld [vmem:[%s7 + $0x4] sm:$0xf]
    %v13736 = vld [vmem:[%s7 + $0x8] sm:$0xf]
    %v13737 = vld [vmem:[%s7 + $0xc] sm:$0xf]
    %v13738 = vld [vmem:[%s7 + $0x10] sm:$0xf]
    %v13739 = vld [vmem:[%s7 + $0x14] sm:$0xf]
    %v13740 = vld [vmem:[%s7 + $0x18] sm:$0xf]
    %v13741 = vld [vmem:[%s7 + $0x1c] sm:$0xf]
    %v13742 = vld [vmem:[%s7 + $0x20] sm:$0xf]
    %v13743 = vld [vmem:[%s7 + $0x24] sm:$0xf]
    %v13744 = vld [vmem:[%s7 + $0x28] sm:$0xf]
    %v13745 = vld [vmem:[%s7 + $0x2c] sm:$0xf]
    %v13746 = vld [vmem:[%s7 + $0x30] sm:$0xf]
    %v13747 = vld [vmem:[%s7 + $0x34] sm:$0xf]
    %v13748 = vld [vmem:[%s7 + $0x38] sm:$0xf]
    %v13749 = vld [vmem:[%s7 + $0x3c] sm:$0xf]
    %v13750 = vld [vmem:[#allocation15] sm:$0x1]
    %v13752 = vlaneseq
    %v13753 = vshrl.u32 %v13752, 7
    %v13754 = vsub.s32 0, %v13753
    %v13755 = vrot.slane %v13750, %v13754
    %v13773 = vunpack.c.l.b16 %v13734
    %v13774 = vunpack.c.l.b16 %v13735
    %v13775 = vunpack.c.l.b16 %v13736
    %v13776 = vunpack.c.l.b16 %v13737
    %v13777 = vunpack.c.l.b16 %v13738
    %v13778 = vunpack.c.l.b16 %v13739
    %v13779 = vunpack.c.l.b16 %v13740
    %v13780 = vunpack.c.l.b16 %v13741
    %v13781 = vunpack.c.l.b16 %v13742
    %v13782 = vunpack.c.l.b16 %v13743
    %v13783 = vunpack.c.l.b16 %v13744
    %v13784 = vunpack.c.l.b16 %v13745
    %v13785 = vunpack.c.l.b16 %v13746
    %v13786 = vunpack.c.l.b16 %v13747
    %v13787 = vunpack.c.l.b16 %v13748
    %v13788 = vunpack.c.l.b16 %v13749
    %v13789 = vpack.c.b16 %v13774, %v13773
    %v13790 = vpack.c.b16 %v13776, %v13775
    %v13791 = vpack.c.b16 %v13778, %v13777
    %v13792 = vpack.c.b16 %v13780, %v13779
    %v13793 = vpack.c.b16 %v13782, %v13781
    %v13794 = vpack.c.b16 %v13784, %v13783
    %v13795 = vpack.c.b16 %v13786, %v13785
    %v13796 = vpack.c.b16 %v13788, %v13787
    %13805 = vmatprep.subr.bf16.mxu0 0
    %13806 = vmatpush1.bf16.msra.mxu0 %v13796
    %13807 = vmatprep.subr.bf16.mxu0 0
    %13808 = vmatpush1.bf16.msra.mxu0 %v13795
    %13809 = vmatprep.subr.bf16.mxu0 0
    %13810 = vmatpush1.bf16.msra.mxu0 %v13794
    %13811 = vmatprep.subr.bf16.mxu0 0
    %13812 = vmatpush1.bf16.msra.mxu0 %v13793
    %13813 = vmatprep.subr.bf16.mxu0 0
    %13814 = vmatpush1.bf16.msra.mxu0 %v13792
    %13815 = vmatprep.subr.bf16.mxu0 0
    %13816 = vmatpush1.bf16.msra.mxu0 %v13791
    %13817 = vmatprep.subr.bf16.mxu0 0
    %13818 = vmatpush1.bf16.msra.mxu0 %v13790
    %13819 = vmatprep.subr.bf16.mxu0 0
    %13820 = vmatpush1.bf16.msra.mxu0 %v13789
    %13821 = vmatprep.subr.bf16.mxu0 0
    %13822 = vmatpush2.bf16.msra.mxu0 0
    %13823 = vmatprep.subr.bf16.mxu0 0
    %13824 = vmatpush2.bf16.msra.mxu0 0
    %13825 = vmatprep.subr.bf16.mxu0 0
    %13826 = vmatpush2.bf16.msra.mxu0 0
    %13827 = vmatprep.subr.bf16.mxu0 0
    %13828 = vmatpush2.bf16.msra.mxu0 0
    %13829 = vmatprep.subr.bf16.mxu0 0
    %13830 = vmatpush2.bf16.msra.mxu0 0
    %13831 = vmatprep.subr.bf16.mxu0 0
    %13832 = vmatpush2.bf16.msra.mxu0 0
    %13833 = vmatprep.subr.bf16.mxu0 0
    %13834 = vmatpush2.bf16.msra.mxu0 0
    %13835 = vmatprep.subr.bf16.mxu0 0
    %13836 = vmatpush2.bf16.msra.mxu0 0
    %13837 = vmatprep.mubr.bf16.mxu0 0
    %13838 = vmatmul.mubr.bf16.gmra.mxu0 %v13733
    %v13839 = vpop.f32.mrf.mxu0
    %v13840 = vadd.f32 %v13755, %v13839
    %v13841 = vpop.f32.mrf.mxu0
    %v13842 = vpop.f32.mrf.mxu0
    %v13843 = vpop.f32.mrf.mxu0
    %13844 = vdwg.mxu0
    %vm13845 = vcmask 9216
    %13846 = vst.msk [vmem:[#allocation16] sm:$0x3] %vm13845, %v13840
    // Predicated region
    $region66: #{forward.1} parent=1 // pred_check
      _
    $region67: #{forward.1} parent=1 // pred_check_branch
      %13848 = sbr.rel (0) target = $region69
    $region68: #{forward.1} parent=1 // pred_region
      %s13850 = ssub.s32 32, 32
      %13851 = vsyncadd [#allocation6], %s13850
      %s13853 = sshll.u32 [#allocation16], 4
      %s13854 = int_to_ptr.vmem [resolvable:$true] %s13853
      %13856 = dma.vmem_to_hbm [thread:$0]  %s13854, 32, %s9, [#allocation6]
    $region69: #{forward.1} parent=1 // pred_fallthru
      _
    // Predicated region
    $region70: #{forward.1} parent=1 // pred_check
      _
    $region71: #{forward.1} parent=1 // pred_check_branch
      %13858 = sbr.rel (0) target = $region73
    $region72: #{forward.1} parent=1 // pred_region
      %13859 = dma.done [#allocation6], 32
    $region73: #{forward.1} parent=1 // pred_fallthru
      _
    %13860 = vsyncpa [#allocation5], 1
    %13861 = vsyncpa [#allocation8], 1
    %13862 = vsyncpa [#allocation11], 1
    %13863 = vsyncpa [#allocation14], 1
    %13864 = vsyncpa [#allocation6], 1

</llo_original>
